<compile_context>
chip_gen: v7x
topology: tpu7x:2x2x1
jax: 0.10.0
libtpu: 0.0.40
codegen_flags: <defaults>
</compile_context>

<pallas_src>
import functools
import math

import jax
import jax.numpy as jnp
from jax import lax
from jax.experimental import pallas as pl
from jax.experimental.pallas import tpu as pltpu


# ------------------------------ tiling helper -------------------------------

def _pick_tile(n, target, align):
    """Largest divisor of n that is <= target and a multiple of `align`; else n (full dim)."""
    if n <= target:
        return n
    t = (min(target, n) // align) * align
    while t >= align:
        if n % t == 0:
            return t
        t -= align
    return n


# ------------------------------ linear kernel -------------------------------

def _linear_kernel(x_ref, w_ref, b_ref, o_ref, *, activation):
    # x: (tm, K) f32, w: (K, tn) bf16, b: (1, tn) f32 -> o: (tm, tn) f32
    y = jnp.dot(x_ref[...].astype(jnp.bfloat16), w_ref[...],
                preferred_element_type=jnp.float32)
    y = y + b_ref[...]
    if activation == "relu":
        y = jnp.maximum(y, 0.0)
    o_ref[...] = y


def linear(x2d, w, b, activation="none"):
    """x2d @ w + b, with w stored (in_features, out_features) in bf16, b (1, out)."""
    M, K = x2d.shape
    N = w.shape[1]
    tm = _pick_tile(M, 256, 8)
    tn = _pick_tile(N, 512, 128)
    return pl.pallas_call(
        functools.partial(_linear_kernel, activation=activation),
        out_shape=jax.ShapeDtypeStruct((M, N), jnp.float32),
        grid=(M // tm, N // tn),
        in_specs=[
            pl.BlockSpec((tm, K), lambda i, j: (i, 0)),
            pl.BlockSpec((K, tn), lambda i, j: (0, j)),
            pl.BlockSpec((1, tn), lambda i, j: (0, j)),
        ],
        out_specs=pl.BlockSpec((tm, tn), lambda i, j: (i, j)),
        compiler_params=pltpu.CompilerParams(
            dimension_semantics=("parallel", "parallel")),
    )(x2d, w, b)


# --------------------- residual-add + LayerNorm kernel ----------------------

def _add_ln_kernel(x_ref, r_ref, g_ref, b_ref, o_ref):
    x = x_ref[...] + r_ref[...]                      # fused residual add
    mu = jnp.mean(x, axis=-1, keepdims=True)
    var = jnp.mean(jnp.square(x - mu), axis=-1, keepdims=True)
    o_ref[...] = (x - mu) * lax.rsqrt(var + 1e-5) * g_ref[...] + b_ref[...]


def add_layer_norm(x2d, r2d, gamma, beta):
    """LayerNorm(x + r); gamma/beta stored (1, D)."""
    M, D = x2d.shape
    tm = _pick_tile(M, 512, 8)
    return pl.pallas_call(
        _add_ln_kernel,
        out_shape=jax.ShapeDtypeStruct((M, D), jnp.float32),
        grid=(M // tm,),
        in_specs=[
            pl.BlockSpec((tm, D), lambda i: (i, 0)),
            pl.BlockSpec((tm, D), lambda i: (i, 0)),
            pl.BlockSpec((1, D), lambda i: (0, 0)),
            pl.BlockSpec((1, D), lambda i: (0, 0)),
        ],
        out_specs=pl.BlockSpec((tm, D), lambda i: (i, 0)),
        compiler_params=pltpu.CompilerParams(dimension_semantics=("parallel",)),
    )(x2d, r2d, gamma, beta)


# ----------------------------- attention kernels ----------------------------

def _attend(q, k, v, mask, n_heads, scale):
    """q: (Lq, D), k/v: (Lk, D) f32; returns (Lq, D) f32. All heads, unrolled."""
    D = q.shape[-1]
    Dh = D // n_heads
    qb = q.astype(jnp.bfloat16)
    kb = k.astype(jnp.bfloat16)
    vb = v.astype(jnp.bfloat16)
    outs = []
    for h in range(n_heads):
        sl = slice(h * Dh, (h + 1) * Dh)
        # contract on Dh of both q and k (== q @ k.T) without an explicit transpose
        s = lax.dot_general(qb[:, sl], kb[:, sl], (((1,), (1,)), ((), ())),
                            preferred_element_type=jnp.float32) * scale
        if mask is not None:
            s = s + mask
        s = s - jnp.max(s, axis=-1, keepdims=True)
        p = jnp.exp(s)
        p = p / jnp.sum(p, axis=-1, keepdims=True)
        outs.append(jnp.dot(p.astype(jnp.bfloat16), vb[:, sl],
                            preferred_element_type=jnp.float32))
    return jnp.concatenate(outs, axis=-1)


def _self_attn_kernel(qkv_ref, o_ref, *, n_heads, causal, scale):
    qkv = qkv_ref[0]                                  # (L, 3D)
    D = qkv.shape[-1] // 3
    q = qkv[:, :D]
    k = qkv[:, D:2 * D]
    v = qkv[:, 2 * D:]
    mask = None
    if causal:
        L = q.shape[0]
        r = lax.broadcasted_iota(jnp.int32, (L, L), 0)
        c = lax.broadcasted_iota(jnp.int32, (L, L), 1)
        # finite large-negative instead of -inf: robust even if a row were fully masked
        mask = jnp.where(c > r, -1e30, 0.0).astype(jnp.float32)
    o_ref[0] = _attend(q, k, v, mask, n_heads, scale)


def _cross_attn_kernel(q_ref, kv_ref, o_ref, *, n_heads, scale):
    q = q_ref[0]                                      # (Lq, D)
    kv = kv_ref[0]                                    # (Lk, 2D)
    D = q.shape[-1]
    o_ref[0] = _attend(q, kv[:, :D], kv[:, D:], None, n_heads, scale)


def sdpa_self(qkv, n_heads, causal):
    """qkv: (B, L, 3D) fused projection output -> (B, L, D)."""
    B, L, D3 = qkv.shape
    D = D3 // 3
    scale = 1.0 / math.sqrt(D // n_heads)
    return pl.pallas_call(
        functools.partial(_self_attn_kernel, n_heads=n_heads, causal=causal, scale=scale),
        out_shape=jax.ShapeDtypeStruct((B, L, D), jnp.float32),
        grid=(B,),
        in_specs=[pl.BlockSpec((1, L, D3), lambda b: (b, 0, 0))],
        out_specs=pl.BlockSpec((1, L, D), lambda b: (b, 0, 0)),
        compiler_params=pltpu.CompilerParams(dimension_semantics=("parallel",)),
    )(qkv)


def sdpa_cross(q, kv, n_heads):
    """q: (B, Lq, D), kv: (B, Lk, 2D) -> (B, Lq, D)."""
    B, Lq, D = q.shape
    Lk = kv.shape[1]
    scale = 1.0 / math.sqrt(D // n_heads)
    return pl.pallas_call(
        functools.partial(_cross_attn_kernel, n_heads=n_heads, scale=scale),
        out_shape=jax.ShapeDtypeStruct((B, Lq, D), jnp.float32),
        grid=(B,),
        in_specs=[
            pl.BlockSpec((1, Lq, D), lambda b: (b, 0, 0)),
            pl.BlockSpec((1, Lk, 2 * D), lambda b: (b, 0, 0)),
        ],
        out_specs=pl.BlockSpec((1, Lq, D), lambda b: (b, 0, 0)),
        compiler_params=pltpu.CompilerParams(dimension_semantics=("parallel",)),
    )(q, kv)


# ------------------------------- model glue ---------------------------------

def self_attention_block(x2d, B, L, p, n_heads, causal):
    D = x2d.shape[1]
    qkv = linear(x2d, p["qkv_w"], p["qkv_b"])         # one fused (M, 3D) projection
    o = sdpa_self(qkv.reshape(B, L, 3 * D), n_heads, causal)
    return linear(o.reshape(B * L, D), p["out_w"], p["out_b"])


def cross_attention_block(x2d, mem2d, B, Lq, Lk, p, n_heads):
    D = x2d.shape[1]
    q = linear(x2d, p["q_w"], p["q_b"])               # (B*Lq, D)
    kv = linear(mem2d, p["kv_w"], p["kv_b"])          # fused (B*Lk, 2D)
    o = sdpa_cross(q.reshape(B, Lq, D), kv.reshape(B, Lk, 2 * D), n_heads)
    return linear(o.reshape(B * Lq, D), p["out_w"], p["out_b"])


def _ffn(x2d, p):
    h = linear(x2d, p["lin1_w"], p["lin1_b"], activation="relu")
    return linear(h, p["lin2_w"], p["lin2_b"])


def encoder_layer(x, B, L, p, n_heads):
    # PyTorch default post-LN: x = norm1(x + SA(x)); x = norm2(x + FFN(x))
    a = self_attention_block(x, B, L, p["self_attn"], n_heads, causal=False)
    x = add_layer_norm(x, a, p["norm1_g"], p["norm1_b"])
    f = _ffn(x, p)
    x = add_layer_norm(x, f, p["norm2_g"], p["norm2_b"])
    return x


def decoder_layer(x, mem, B, Lt, Ls, p, n_heads):
    a = self_attention_block(x, B, Lt, p["self_attn"], n_heads, causal=True)
    x = add_layer_norm(x, a, p["norm1_g"], p["norm1_b"])
    c = cross_attention_block(x, mem, B, Lt, Ls, p["cross_attn"], n_heads)
    x = add_layer_norm(x, c, p["norm2_g"], p["norm2_b"])
    f = _ffn(x, p)
    x = add_layer_norm(x, f, p["norm3_g"], p["norm3_b"])
    return x


def codegen_forward(params, src, tgt, *, n_heads):
    emb = params["embedding"]                          # (vocab, d_model), row 0 == padding
    B, Ls = src.shape
    Lt = tgt.shape[1]
    D = emb.shape[1]
    # TODO(synk): embedding gather stays as an XLA jnp.take (no clean Pallas gather here).
    src_x = jnp.take(emb, src, axis=0).reshape(B * Ls, D)
    tgt_x = jnp.take(emb, tgt, axis=0).reshape(B * Lt, D)

    mem = src_x
    for lp in params["enc_layers"]:
        mem = encoder_layer(mem, B, Ls, lp, n_heads)

    x = tgt_x
    for lp in params["dec_layers"]:
        x = decoder_layer(x, mem, B, Lt, Ls, lp, n_heads)

    # self.dropout(dec_out): identity at inference.
    logits = linear(x, params["fc_w"], params["fc_b"])
    return logits.reshape(B, Lt, -1)


# ------------------------------ parameter init ------------------------------

def _dense(key, shape, scale=0.02, dtype=jnp.float32):
    return (scale * jax.random.normal(key, shape, dtype=jnp.float32)).astype(dtype)


def _init_self_attn(key, d):
    k1, k2 = jax.random.split(key)
    return {
        "qkv_w": _dense(k1, (d, 3 * d), dtype=jnp.bfloat16),   # fused, pre-transposed
        "qkv_b": jnp.zeros((1, 3 * d), jnp.float32),
        "out_w": _dense(k2, (d, d), dtype=jnp.bfloat16),
        "out_b": jnp.zeros((1, d), jnp.float32),
    }


def _init_cross_attn(key, d):
    k1, k2, k3 = jax.random.split(key, 3)
    return {
        "q_w": _dense(k1, (d, d), dtype=jnp.bfloat16),
        "q_b": jnp.zeros((1, d), jnp.float32),
        "kv_w": _dense(k2, (d, 2 * d), dtype=jnp.bfloat16),    # fused K/V
        "kv_b": jnp.zeros((1, 2 * d), jnp.float32),
        "out_w": _dense(k3, (d, d), dtype=jnp.bfloat16),
        "out_b": jnp.zeros((1, d), jnp.float32),
    }


def _init_ffn_norms(key, d, dff, n_norms):
    k1, k2 = jax.random.split(key)
    p = {
        "lin1_w": _dense(k1, (d, dff), dtype=jnp.bfloat16),
        "lin1_b": jnp.zeros((1, dff), jnp.float32),
        "lin2_w": _dense(k2, (dff, d), dtype=jnp.bfloat16),
        "lin2_b": jnp.zeros((1, d), jnp.float32),
    }
    for n in range(1, n_norms + 1):
        p[f"norm{n}_g"] = jnp.ones((1, d), jnp.float32)
        p[f"norm{n}_b"] = jnp.zeros((1, d), jnp.float32)
    return p


def init_params(key, vocab_size, d_model, n_heads, n_layers, dff=2048):
    keys = jax.random.split(key, 2 + 3 * n_layers)
    emb = 0.02 * jax.random.normal(keys[0], (vocab_size, d_model), jnp.float32)
    emb = emb.at[0].set(0.0)                           # padding_idx=0
    enc_layers, dec_layers = [], []
    idx = 2
    for _ in range(n_layers):
        k_sa, k_rest = jax.random.split(keys[idx]); idx += 1
        enc_layers.append({"self_attn": _init_self_attn(k_sa, d_model),
                           **_init_ffn_norms(k_rest, d_model, dff, 2)})
    for _ in range(n_layers):
        k_sa, k_ca = jax.random.split(keys[idx]); idx += 1
        k_rest = keys[idx]; idx += 1
        dec_layers.append({"self_attn": _init_self_attn(k_sa, d_model),
                           "cross_attn": _init_cross_attn(k_ca, d_model),
                           **_init_ffn_norms(k_rest, d_model, dff, 3)})
    return {
        "embedding": emb,
        "enc_layers": enc_layers,
        "dec_layers": dec_layers,
        "fc_w": _dense(keys[1], (d_model, vocab_size), dtype=jnp.bfloat16),
        "fc_b": jnp.zeros((1, vocab_size), jnp.float32),
    }


# ----------------------------------- main ------------------------------------

if __name__ == "__main__":
    vocab_size, d_model, n_heads, n_layers = 128, 32, 4, 2
    B, Ls, Lt = 2, 12, 8

    key = jax.random.PRNGKey(0)
    kp, ks, kt = jax.random.split(key, 3)
    params = init_params(kp, vocab_size, d_model, n_heads, n_layers)
    src = jax.random.randint(ks, (B, Ls), 0, vocab_size, dtype=jnp.int32)
    tgt = jax.random.randint(kt, (B, Lt), 0, vocab_size, dtype=jnp.int32)

    fwd = jax.jit(codegen_forward, static_argnames=("n_heads",))
    out = fwd(params, src, tgt, n_heads=n_heads)
    out = jax.block_until_ready(out)
    assert out.shape == (B, Lt, vocab_size), out.shape
    assert bool(jnp.all(jnp.isfinite(out)))
    print("KERNEL_OK")
</pallas_src>

<mosaic_0001>
module attributes {stable_mosaic.version = 11 : i64} {
  func.func @_self_attn_kernel(%arg0: i32, %arg1: memref<1x8x96xf32, #tpu.memory_space<vmem>>, %arg2: memref<1x8x32xf32, #tpu.memory_space<vmem>>) attributes {dimension_semantics = [#tpu.dimension_semantics<parallel>], iteration_bounds = array<i64: 2>, scalar_prefetch = 0 : i64, scratch_operands = 0 : i64, tpu.core_type = #tpu.core_type<tc>, window_params = [{transform_indices = @transform_0, window_bounds = array<i64: 1, 8, 96>}, {transform_indices = @transform_1, window_bounds = array<i64: 1, 8, 32>}]} {
    %c0 = arith.constant 0 : index
    %c0_0 = arith.constant 0 : index
    %c0_1 = arith.constant 0 : index
    %0 = vector.load %arg1[%c0, %c0_0, %c0_1] : memref<1x8x96xf32, #tpu.memory_space<vmem>>, vector<1x8x96xf32>
    %1 = vector.shape_cast %0 : vector<1x8x96xf32> to vector<8x96xf32>
    %2 = vector.extract_strided_slice %1 {offsets = [0, 0], sizes = [8, 32], strides = [1, 1]} : vector<8x96xf32> to vector<8x32xf32>
    %3 = vector.extract_strided_slice %1 {offsets = [0, 32], sizes = [8, 32], strides = [1, 1]} : vector<8x96xf32> to vector<8x32xf32>
    %4 = vector.extract_strided_slice %1 {offsets = [0, 64], sizes = [8, 32], strides = [1, 1]} : vector<8x96xf32> to vector<8x32xf32>
    %5 = tpu.iota {dimensions = array<i32: 0>} : vector<8x8xi32>
    %6 = tpu.iota {dimensions = array<i32: 1>} : vector<8x8xi32>
    %7 = arith.cmpi sgt, %6, %5 : vector<8x8xi32>
    %cst = arith.constant -1.000000e+30 : f32
    %cst_2 = arith.constant 0.000000e+00 : f32
    %8 = vector.broadcast %cst : f32 to vector<8x8xf32>
    %9 = vector.broadcast %cst_2 : f32 to vector<8x8xf32>
    %10 = arith.select %7, %8, %9 : vector<8x8xi1>, vector<8x8xf32>
    %11 = arith.truncf %2 : vector<8x32xf32> to vector<8x32xbf16>
    %12 = arith.truncf %3 : vector<8x32xf32> to vector<8x32xbf16>
    %13 = arith.truncf %4 : vector<8x32xf32> to vector<8x32xbf16>
    %14 = vector.extract_strided_slice %11 {offsets = [0, 0], sizes = [8, 8], strides = [1, 1]} : vector<8x32xbf16> to vector<8x8xbf16>
    %15 = vector.extract_strided_slice %12 {offsets = [0, 0], sizes = [8, 8], strides = [1, 1]} : vector<8x32xbf16> to vector<8x8xbf16>
    %cst_3 = arith.constant dense<0.000000e+00> : vector<8x8xf32>
    %16 = tpu.matmul %14, %15, %cst_3 {dimension_numbers = #tpu.dot_dimension_numbers<[1], [1], [0], [0], [0, 0, 1, 0], [], []>} : vector<8x8xbf16>, vector<8x8xbf16>, vector<8x8xf32> -> vector<8x8xf32>
    %cst_4 = arith.constant 0.353553385 : f32
    %17 = vector.broadcast %cst_4 : f32 to vector<8x8xf32>
    %18 = arith.mulf %16, %17 : vector<8x8xf32>
    %19 = arith.addf %18, %10 : vector<8x8xf32>
    %cst_5 = arith.constant dense<0xFF800000> : vector<8xf32>
    %20 = vector.multi_reduction <maximumf>, %19, %cst_5 [1] : vector<8x8xf32> to vector<8xf32>
    %21 = vector.shape_cast %20 : vector<8xf32> to vector<8x1xf32>
    %22 = vector.broadcast %21 : vector<8x1xf32> to vector<8x8xf32>
    %23 = arith.subf %19, %22 : vector<8x8xf32>
    %24 = math.exp %23 : vector<8x8xf32>
    %cst_6 = arith.constant dense<0.000000e+00> : vector<8xf32>
    %25 = vector.multi_reduction <add>, %24, %cst_6 [1] : vector<8x8xf32> to vector<8xf32>
    %26 = vector.shape_cast %25 : vector<8xf32> to vector<8x1xf32>
    %27 = vector.broadcast %26 : vector<8x1xf32> to vector<8x8xf32>
    %28 = arith.divf %24, %27 : vector<8x8xf32>
    %29 = arith.truncf %28 : vector<8x8xf32> to vector<8x8xbf16>
    %30 = vector.extract_strided_slice %13 {offsets = [0, 0], sizes = [8, 8], strides = [1, 1]} : vector<8x32xbf16> to vector<8x8xbf16>
    %cst_7 = arith.constant dense<0.000000e+00> : vector<8x8xf32>
    %31 = tpu.matmul %29, %30, %cst_7 {dimension_numbers = #tpu.dot_dimension_numbers<[1], [0], [0], [1], [0, 0, 1, 1], [], []>} : vector<8x8xbf16>, vector<8x8xbf16>, vector<8x8xf32> -> vector<8x8xf32>
    %32 = vector.extract_strided_slice %11 {offsets = [0, 8], sizes = [8, 8], strides = [1, 1]} : vector<8x32xbf16> to vector<8x8xbf16>
    %33 = vector.extract_strided_slice %12 {offsets = [0, 8], sizes = [8, 8], strides = [1, 1]} : vector<8x32xbf16> to vector<8x8xbf16>
    %cst_8 = arith.constant dense<0.000000e+00> : vector<8x8xf32>
    %34 = tpu.matmul %32, %33, %cst_8 {dimension_numbers = #tpu.dot_dimension_numbers<[1], [1], [0], [0], [0, 0, 1, 0], [], []>} : vector<8x8xbf16>, vector<8x8xbf16>, vector<8x8xf32> -> vector<8x8xf32>
    %cst_9 = arith.constant 0.353553385 : f32
    %35 = vector.broadcast %cst_9 : f32 to vector<8x8xf32>
    %36 = arith.mulf %34, %35 : vector<8x8xf32>
    %37 = arith.addf %36, %10 : vector<8x8xf32>
    %cst_10 = arith.constant dense<0xFF800000> : vector<8xf32>
    %38 = vector.multi_reduction <maximumf>, %37, %cst_10 [1] : vector<8x8xf32> to vector<8xf32>
    %39 = vector.shape_cast %38 : vector<8xf32> to vector<8x1xf32>
    %40 = vector.broadcast %39 : vector<8x1xf32> to vector<8x8xf32>
    %41 = arith.subf %37, %40 : vector<8x8xf32>
    %42 = math.exp %41 : vector<8x8xf32>
    %cst_11 = arith.constant dense<0.000000e+00> : vector<8xf32>
    %43 = vector.multi_reduction <add>, %42, %cst_11 [1] : vector<8x8xf32> to vector<8xf32>
    %44 = vector.shape_cast %43 : vector<8xf32> to vector<8x1xf32>
    %45 = vector.broadcast %44 : vector<8x1xf32> to vector<8x8xf32>
    %46 = arith.divf %42, %45 : vector<8x8xf32>
    %47 = arith.truncf %46 : vector<8x8xf32> to vector<8x8xbf16>
    %48 = vector.extract_strided_slice %13 {offsets = [0, 8], sizes = [8, 8], strides = [1, 1]} : vector<8x32xbf16> to vector<8x8xbf16>
    %cst_12 = arith.constant dense<0.000000e+00> : vector<8x8xf32>
    %49 = tpu.matmul %47, %48, %cst_12 {dimension_numbers = #tpu.dot_dimension_numbers<[1], [0], [0], [1], [0, 0, 1, 1], [], []>} : vector<8x8xbf16>, vector<8x8xbf16>, vector<8x8xf32> -> vector<8x8xf32>
    %50 = vector.extract_strided_slice %11 {offsets = [0, 16], sizes = [8, 8], strides = [1, 1]} : vector<8x32xbf16> to vector<8x8xbf16>
    %51 = vector.extract_strided_slice %12 {offsets = [0, 16], sizes = [8, 8], strides = [1, 1]} : vector<8x32xbf16> to vector<8x8xbf16>
    %cst_13 = arith.constant dense<0.000000e+00> : vector<8x8xf32>
    %52 = tpu.matmul %50, %51, %cst_13 {dimension_numbers = #tpu.dot_dimension_numbers<[1], [1], [0], [0], [0, 0, 1, 0], [], []>} : vector<8x8xbf16>, vector<8x8xbf16>, vector<8x8xf32> -> vector<8x8xf32>
    %cst_14 = arith.constant 0.353553385 : f32
    %53 = vector.broadcast %cst_14 : f32 to vector<8x8xf32>
    %54 = arith.mulf %52, %53 : vector<8x8xf32>
    %55 = arith.addf %54, %10 : vector<8x8xf32>
    %cst_15 = arith.constant dense<0xFF800000> : vector<8xf32>
    %56 = vector.multi_reduction <maximumf>, %55, %cst_15 [1] : vector<8x8xf32> to vector<8xf32>
    %57 = vector.shape_cast %56 : vector<8xf32> to vector<8x1xf32>
    %58 = vector.broadcast %57 : vector<8x1xf32> to vector<8x8xf32>
    %59 = arith.subf %55, %58 : vector<8x8xf32>
    %60 = math.exp %59 : vector<8x8xf32>
    %cst_16 = arith.constant dense<0.000000e+00> : vector<8xf32>
    %61 = vector.multi_reduction <add>, %60, %cst_16 [1] : vector<8x8xf32> to vector<8xf32>
    %62 = vector.shape_cast %61 : vector<8xf32> to vector<8x1xf32>
    %63 = vector.broadcast %62 : vector<8x1xf32> to vector<8x8xf32>
    %64 = arith.divf %60, %63 : vector<8x8xf32>
    %65 = arith.truncf %64 : vector<8x8xf32> to vector<8x8xbf16>
    %66 = vector.extract_strided_slice %13 {offsets = [0, 16], sizes = [8, 8], strides = [1, 1]} : vector<8x32xbf16> to vector<8x8xbf16>
    %cst_17 = arith.constant dense<0.000000e+00> : vector<8x8xf32>
    %67 = tpu.matmul %65, %66, %cst_17 {dimension_numbers = #tpu.dot_dimension_numbers<[1], [0], [0], [1], [0, 0, 1, 1], [], []>} : vector<8x8xbf16>, vector<8x8xbf16>, vector<8x8xf32> -> vector<8x8xf32>
    %68 = vector.extract_strided_slice %11 {offsets = [0, 24], sizes = [8, 8], strides = [1, 1]} : vector<8x32xbf16> to vector<8x8xbf16>
    %69 = vector.extract_strided_slice %12 {offsets = [0, 24], sizes = [8, 8], strides = [1, 1]} : vector<8x32xbf16> to vector<8x8xbf16>
    %cst_18 = arith.constant dense<0.000000e+00> : vector<8x8xf32>
    %70 = tpu.matmul %68, %69, %cst_18 {dimension_numbers = #tpu.dot_dimension_numbers<[1], [1], [0], [0], [0, 0, 1, 0], [], []>} : vector<8x8xbf16>, vector<8x8xbf16>, vector<8x8xf32> -> vector<8x8xf32>
    %cst_19 = arith.constant 0.353553385 : f32
    %71 = vector.broadcast %cst_19 : f32 to vector<8x8xf32>
    %72 = arith.mulf %70, %71 : vector<8x8xf32>
    %73 = arith.addf %72, %10 : vector<8x8xf32>
    %cst_20 = arith.constant dense<0xFF800000> : vector<8xf32>
    %74 = vector.multi_reduction <maximumf>, %73, %cst_20 [1] : vector<8x8xf32> to vector<8xf32>
    %75 = vector.shape_cast %74 : vector<8xf32> to vector<8x1xf32>
    %76 = vector.broadcast %75 : vector<8x1xf32> to vector<8x8xf32>
    %77 = arith.subf %73, %76 : vector<8x8xf32>
    %78 = math.exp %77 : vector<8x8xf32>
    %cst_21 = arith.constant dense<0.000000e+00> : vector<8xf32>
    %79 = vector.multi_reduction <add>, %78, %cst_21 [1] : vector<8x8xf32> to vector<8xf32>
    %80 = vector.shape_cast %79 : vector<8xf32> to vector<8x1xf32>
    %81 = vector.broadcast %80 : vector<8x1xf32> to vector<8x8xf32>
    %82 = arith.divf %78, %81 : vector<8x8xf32>
    %83 = arith.truncf %82 : vector<8x8xf32> to vector<8x8xbf16>
    %84 = vector.extract_strided_slice %13 {offsets = [0, 24], sizes = [8, 8], strides = [1, 1]} : vector<8x32xbf16> to vector<8x8xbf16>
    %cst_22 = arith.constant dense<0.000000e+00> : vector<8x8xf32>
    %85 = tpu.matmul %83, %84, %cst_22 {dimension_numbers = #tpu.dot_dimension_numbers<[1], [0], [0], [1], [0, 0, 1, 1], [], []>} : vector<8x8xbf16>, vector<8x8xbf16>, vector<8x8xf32> -> vector<8x8xf32>
    %86 = tpu.concatenate %31, %49, %67, %85 in 1 : vector<8x8xf32>, vector<8x8xf32>, vector<8x8xf32>, vector<8x8xf32> -> vector<8x32xf32>
    %c0_23 = arith.constant 0 : index
    %c0_24 = arith.constant 0 : index
    %c0_25 = arith.constant 0 : index
    %87 = vector.load %arg2[%c0_23, %c0_24, %c0_25] : memref<1x8x32xf32, #tpu.memory_space<vmem>>, vector<1x8x32xf32>
    %88 = vector.shape_cast %87 : vector<1x8x32xf32> to vector<8x32xf32>
    %89 = vector.shape_cast %86 : vector<8x32xf32> to vector<1x8x32xf32>
    tpu.vector_store %arg2[%c0_23, %c0_24, %c0_25], %89 {strides = array<i32>} : memref<1x8x32xf32, #tpu.memory_space<vmem>>, vector<1x8x32xf32>,
    return
  }
  func.func @transform_0(%arg0: i32) -> (i32, i32, i32) {
    %c0_i32 = arith.constant 0 : i32
    %c0_i32_0 = arith.constant 0 : i32
    %c0_i32_1 = arith.constant 0 : i32
    return %arg0, %c0_i32, %c0_i32_0 : i32, i32, i32
  }
  func.func @transform_1(%arg0: i32) -> (i32, i32, i32) {
    %c0_i32 = arith.constant 0 : i32
    %c0_i32_0 = arith.constant 0 : i32
    %c0_i32_1 = arith.constant 0 : i32
    return %arg0, %c0_i32, %c0_i32_0 : i32, i32, i32
  }
}

module attributes {stable_mosaic.version = 11 : i64} {
  func.func @_linear_kernel(%arg0: i32, %arg1: i32, %arg2: memref<16x32xf32, #tpu.memory_space<vmem>>, %arg3: memref<32x96xbf16, #tpu.memory_space<vmem>>, %arg4: memref<1x96xf32, #tpu.memory_space<vmem>>, %arg5: memref<16x96xf32, #tpu.memory_space<vmem>>) attributes {dimension_semantics = [#tpu.dimension_semantics<parallel>, #tpu.dimension_semantics<parallel>], iteration_bounds = array<i64: 1, 1>, scalar_prefetch = 0 : i64, scratch_operands = 0 : i64, tpu.core_type = #tpu.core_type<tc>, window_params = [{transform_indices = @transform_0, window_bounds = array<i64: 16, 32>}, {transform_indices = @transform_1, window_bounds = array<i64: 32, 96>}, {transform_indices = @transform_2, window_bounds = array<i64: 1, 96>}, {transform_indices = @transform_3, window_bounds = array<i64: 16, 96>}]} {
    %c0 = arith.constant 0 : index
    %c0_0 = arith.constant 0 : index
    %0 = vector.load %arg2[%c0, %c0_0] : memref<16x32xf32, #tpu.memory_space<vmem>>, vector<16x32xf32>
    %1 = arith.truncf %0 : vector<16x32xf32> to vector<16x32xbf16>
    %c0_1 = arith.constant 0 : index
    %c0_2 = arith.constant 0 : index
    %2 = vector.load %arg3[%c0_1, %c0_2] : memref<32x96xbf16, #tpu.memory_space<vmem>>, vector<32x96xbf16>
    %cst = arith.constant dense<0.000000e+00> : vector<16x96xf32>
    %3 = tpu.matmul %1, %2, %cst {dimension_numbers = #tpu.dot_dimension_numbers<[1], [0], [0], [1], [0, 0, 1, 1], [], []>} : vector<16x32xbf16>, vector<32x96xbf16>, vector<16x96xf32> -> vector<16x96xf32>
    %c0_3 = arith.constant 0 : index
    %c0_4 = arith.constant 0 : index
    %4 = vector.load %arg4[%c0_3, %c0_4] : memref<1x96xf32, #tpu.memory_space<vmem>>, vector<1x96xf32>
    %5 = vector.broadcast %4 : vector<1x96xf32> to vector<16x96xf32>
    %6 = arith.addf %3, %5 : vector<16x96xf32>
    %c0_5 = arith.constant 0 : index
    %c0_6 = arith.constant 0 : index
    %7 = vector.load %arg5[%c0_5, %c0_6] : memref<16x96xf32, #tpu.memory_space<vmem>>, vector<16x96xf32>
    tpu.vector_store %arg5[%c0_5, %c0_6], %6 {strides = array<i32>} : memref<16x96xf32, #tpu.memory_space<vmem>>, vector<16x96xf32>,
    return
  }
  func.func @transform_0(%arg0: i32, %arg1: i32) -> (i32, i32) {
    %c0_i32 = arith.constant 0 : i32
    %c0_i32_0 = arith.constant 0 : i32
    return %arg0, %c0_i32 : i32, i32
  }
  func.func @transform_1(%arg0: i32, %arg1: i32) -> (i32, i32) {
    %c0_i32 = arith.constant 0 : i32
    %c0_i32_0 = arith.constant 0 : i32
    return %c0_i32, %arg1 : i32, i32
  }
  func.func @transform_2(%arg0: i32, %arg1: i32) -> (i32, i32) {
    %c0_i32 = arith.constant 0 : i32
    %c0_i32_0 = arith.constant 0 : i32
    return %c0_i32, %arg1 : i32, i32
  }
  func.func @transform_3(%arg0: i32, %arg1: i32) -> (i32, i32) {
    %c0_i32 = arith.constant 0 : i32
    return %arg0, %arg1 : i32, i32
  }
}

module attributes {stable_mosaic.version = 11 : i64} {
  func.func @_linear_kernel(%arg0: i32, %arg1: i32, %arg2: memref<16x32xf32, #tpu.memory_space<vmem>>, %arg3: memref<32x32xbf16, #tpu.memory_space<vmem>>, %arg4: memref<1x32xf32, #tpu.memory_space<vmem>>, %arg5: memref<16x32xf32, #tpu.memory_space<vmem>>) attributes {dimension_semantics = [#tpu.dimension_semantics<parallel>, #tpu.dimension_semantics<parallel>], iteration_bounds = array<i64: 1, 1>, scalar_prefetch = 0 : i64, scratch_operands = 0 : i64, tpu.core_type = #tpu.core_type<tc>, window_params = [{transform_indices = @transform_0, window_bounds = array<i64: 16, 32>}, {transform_indices = @transform_1, window_bounds = array<i64: 32, 32>}, {transform_indices = @transform_2, window_bounds = array<i64: 1, 32>}, {transform_indices = @transform_3, window_bounds = array<i64: 16, 32>}]} {
    %c0 = arith.constant 0 : index
    %c0_0 = arith.constant 0 : index
    %0 = vector.load %arg2[%c0, %c0_0] : memref<16x32xf32, #tpu.memory_space<vmem>>, vector<16x32xf32>
    %1 = arith.truncf %0 : vector<16x32xf32> to vector<16x32xbf16>
    %c0_1 = arith.constant 0 : index
    %c0_2 = arith.constant 0 : index
    %2 = vector.load %arg3[%c0_1, %c0_2] : memref<32x32xbf16, #tpu.memory_space<vmem>>, vector<32x32xbf16>
    %cst = arith.constant dense<0.000000e+00> : vector<16x32xf32>
    %3 = tpu.matmul %1, %2, %cst {dimension_numbers = #tpu.dot_dimension_numbers<[1], [0], [0], [1], [0, 0, 1, 1], [], []>} : vector<16x32xbf16>, vector<32x32xbf16>, vector<16x32xf32> -> vector<16x32xf32>
    %c0_3 = arith.constant 0 : index
    %c0_4 = arith.constant 0 : index
    %4 = vector.load %arg4[%c0_3, %c0_4] : memref<1x32xf32, #tpu.memory_space<vmem>>, vector<1x32xf32>
    %5 = vector.broadcast %4 : vector<1x32xf32> to vector<16x32xf32>
    %6 = arith.addf %3, %5 : vector<16x32xf32>
    %c0_5 = arith.constant 0 : index
    %c0_6 = arith.constant 0 : index
    %7 = vector.load %arg5[%c0_5, %c0_6] : memref<16x32xf32, #tpu.memory_space<vmem>>, vector<16x32xf32>
    tpu.vector_store %arg5[%c0_5, %c0_6], %6 {strides = array<i32>} : memref<16x32xf32, #tpu.memory_space<vmem>>, vector<16x32xf32>,
    return
  }
  func.func @transform_0(%arg0: i32, %arg1: i32) -> (i32, i32) {
    %c0_i32 = arith.constant 0 : i32
    %c0_i32_0 = arith.constant 0 : i32
    return %arg0, %c0_i32 : i32, i32
  }
  func.func @transform_1(%arg0: i32, %arg1: i32) -> (i32, i32) {
    %c0_i32 = arith.constant 0 : i32
    %c0_i32_0 = arith.constant 0 : i32
    return %c0_i32, %arg1 : i32, i32
  }
  func.func @transform_2(%arg0: i32, %arg1: i32) -> (i32, i32) {
    %c0_i32 = arith.constant 0 : i32
    %c0_i32_0 = arith.constant 0 : i32
    return %c0_i32, %arg1 : i32, i32
  }
  func.func @transform_3(%arg0: i32, %arg1: i32) -> (i32, i32) {
    %c0_i32 = arith.constant 0 : i32
    return %arg0, %arg1 : i32, i32
  }
}

module attributes {stable_mosaic.version = 11 : i64} {
  func.func @_add_ln_kernel(%arg0: i32, %arg1: memref<16x32xf32, #tpu.memory_space<vmem>>, %arg2: memref<16x32xf32, #tpu.memory_space<vmem>>, %arg3: memref<1x32xf32, #tpu.memory_space<vmem>>, %arg4: memref<1x32xf32, #tpu.memory_space<vmem>>, %arg5: memref<16x32xf32, #tpu.memory_space<vmem>>) attributes {dimension_semantics = [#tpu.dimension_semantics<parallel>], iteration_bounds = array<i64: 1>, scalar_prefetch = 0 : i64, scratch_operands = 0 : i64, tpu.core_type = #tpu.core_type<tc>, window_params = [{transform_indices = @transform_0, window_bounds = array<i64: 16, 32>}, {transform_indices = @transform_1, window_bounds = array<i64: 16, 32>}, {pipeline_mode = #tpu.pipeline_mode<synchronous>, transform_indices = @transform_2, window_bounds = array<i64: 1, 32>}, {pipeline_mode = #tpu.pipeline_mode<synchronous>, transform_indices = @transform_3, window_bounds = array<i64: 1, 32>}, {transform_indices = @transform_4, window_bounds = array<i64: 16, 32>}]} {
    %c0 = arith.constant 0 : index
    %c0_0 = arith.constant 0 : index
    %0 = vector.load %arg1[%c0, %c0_0] : memref<16x32xf32, #tpu.memory_space<vmem>>, vector<16x32xf32>
    %c0_1 = arith.constant 0 : index
    %c0_2 = arith.constant 0 : index
    %1 = vector.load %arg2[%c0_1, %c0_2] : memref<16x32xf32, #tpu.memory_space<vmem>>, vector<16x32xf32>
    %2 = arith.addf %0, %1 : vector<16x32xf32>
    %cst = arith.constant dense<0.000000e+00> : vector<16xf32>
    %3 = vector.multi_reduction <add>, %2, %cst [1] : vector<16x32xf32> to vector<16xf32>
    %4 = vector.shape_cast %3 : vector<16xf32> to vector<16x1xf32>
    %cst_3 = arith.constant 3.200000e+01 : f32
    %5 = vector.broadcast %cst_3 : f32 to vector<16x1xf32>
    %6 = arith.divf %4, %5 : vector<16x1xf32>
    %7 = vector.broadcast %6 : vector<16x1xf32> to vector<16x32xf32>
    %8 = arith.subf %2, %7 : vector<16x32xf32>
    %9 = arith.mulf %8, %8 : vector<16x32xf32>
    %cst_4 = arith.constant dense<0.000000e+00> : vector<16xf32>
    %10 = vector.multi_reduction <add>, %9, %cst_4 [1] : vector<16x32xf32> to vector<16xf32>
    %11 = vector.shape_cast %10 : vector<16xf32> to vector<16x1xf32>
    %cst_5 = arith.constant 3.200000e+01 : f32
    %12 = vector.broadcast %cst_5 : f32 to vector<16x1xf32>
    %13 = arith.divf %11, %12 : vector<16x1xf32>
    %14 = vector.broadcast %6 : vector<16x1xf32> to vector<16x32xf32>
    %15 = arith.subf %2, %14 : vector<16x32xf32>
    %cst_6 = arith.constant 9.99999974E-6 : f32
    %16 = vector.broadcast %cst_6 : f32 to vector<16x1xf32>
    %17 = arith.addf %13, %16 : vector<16x1xf32>
    %18 = math.rsqrt %17 : vector<16x1xf32>
    %19 = vector.broadcast %18 : vector<16x1xf32> to vector<16x32xf32>
    %20 = arith.mulf %15, %19 : vector<16x32xf32>
    %c0_7 = arith.constant 0 : index
    %c0_8 = arith.constant 0 : index
    %21 = vector.load %arg3[%c0_7, %c0_8] : memref<1x32xf32, #tpu.memory_space<vmem>>, vector<1x32xf32>
    %22 = vector.broadcast %21 : vector<1x32xf32> to vector<16x32xf32>
    %23 = arith.mulf %20, %22 : vector<16x32xf32>
    %c0_9 = arith.constant 0 : index
    %c0_10 = arith.constant 0 : index
    %24 = vector.load %arg4[%c0_9, %c0_10] : memref<1x32xf32, #tpu.memory_space<vmem>>, vector<1x32xf32>
    %25 = vector.broadcast %24 : vector<1x32xf32> to vector<16x32xf32>
    %26 = arith.addf %23, %25 : vector<16x32xf32>
    %c0_11 = arith.constant 0 : index
    %c0_12 = arith.constant 0 : index
    %27 = vector.load %arg5[%c0_11, %c0_12] : memref<16x32xf32, #tpu.memory_space<vmem>>, vector<16x32xf32>
    tpu.vector_store %arg5[%c0_11, %c0_12], %26 {strides = array<i32>} : memref<16x32xf32, #tpu.memory_space<vmem>>, vector<16x32xf32>,
    return
  }
  func.func @transform_0(%arg0: i32) -> (i32, i32) {
    %c0_i32 = arith.constant 0 : i32
    %c0_i32_0 = arith.constant 0 : i32
    return %arg0, %c0_i32 : i32, i32
  }
  func.func @transform_1(%arg0: i32) -> (i32, i32) {
    %c0_i32 = arith.constant 0 : i32
    %c0_i32_0 = arith.constant 0 : i32
    return %arg0, %c0_i32 : i32, i32
  }
  func.func @transform_2(%arg0: i32) -> (i32, i32) {
    %c0_i32 = arith.constant 0 : i32
    %c0_i32_0 = arith.constant 0 : i32
    %c0_i32_1 = arith.constant 0 : i32
    return %c0_i32, %c0_i32_0 : i32, i32
  }
  func.func @transform_3(%arg0: i32) -> (i32, i32) {
    %c0_i32 = arith.constant 0 : i32
    %c0_i32_0 = arith.constant 0 : i32
    %c0_i32_1 = arith.constant 0 : i32
    return %c0_i32, %c0_i32_0 : i32, i32
  }
  func.func @transform_4(%arg0: i32) -> (i32, i32) {
    %c0_i32 = arith.constant 0 : i32
    %c0_i32_0 = arith.constant 0 : i32
    return %arg0, %c0_i32 : i32, i32
  }
}

module attributes {stable_mosaic.version = 11 : i64} {
  func.func @_linear_kernel(%arg0: i32, %arg1: i32, %arg2: memref<24x32xf32, #tpu.memory_space<vmem>>, %arg3: memref<32x96xbf16, #tpu.memory_space<vmem>>, %arg4: memref<1x96xf32, #tpu.memory_space<vmem>>, %arg5: memref<24x96xf32, #tpu.memory_space<vmem>>) attributes {dimension_semantics = [#tpu.dimension_semantics<parallel>, #tpu.dimension_semantics<parallel>], iteration_bounds = array<i64: 1, 1>, scalar_prefetch = 0 : i64, scratch_operands = 0 : i64, tpu.core_type = #tpu.core_type<tc>, window_params = [{transform_indices = @transform_0, window_bounds = array<i64: 24, 32>}, {transform_indices = @transform_1, window_bounds = array<i64: 32, 96>}, {transform_indices = @transform_2, window_bounds = array<i64: 1, 96>}, {transform_indices = @transform_3, window_bounds = array<i64: 24, 96>}]} {
    %c0 = arith.constant 0 : index
    %c0_0 = arith.constant 0 : index
    %0 = vector.load %arg2[%c0, %c0_0] : memref<24x32xf32, #tpu.memory_space<vmem>>, vector<24x32xf32>
    %1 = arith.truncf %0 : vector<24x32xf32> to vector<24x32xbf16>
    %c0_1 = arith.constant 0 : index
    %c0_2 = arith.constant 0 : index
    %2 = vector.load %arg3[%c0_1, %c0_2] : memref<32x96xbf16, #tpu.memory_space<vmem>>, vector<32x96xbf16>
    %cst = arith.constant dense<0.000000e+00> : vector<24x96xf32>
    %3 = tpu.matmul %1, %2, %cst {dimension_numbers = #tpu.dot_dimension_numbers<[1], [0], [0], [1], [0, 0, 1, 1], [], []>} : vector<24x32xbf16>, vector<32x96xbf16>, vector<24x96xf32> -> vector<24x96xf32>
    %c0_3 = arith.constant 0 : index
    %c0_4 = arith.constant 0 : index
    %4 = vector.load %arg4[%c0_3, %c0_4] : memref<1x96xf32, #tpu.memory_space<vmem>>, vector<1x96xf32>
    %5 = vector.broadcast %4 : vector<1x96xf32> to vector<24x96xf32>
    %6 = arith.addf %3, %5 : vector<24x96xf32>
    %c0_5 = arith.constant 0 : index
    %c0_6 = arith.constant 0 : index
    %7 = vector.load %arg5[%c0_5, %c0_6] : memref<24x96xf32, #tpu.memory_space<vmem>>, vector<24x96xf32>
    tpu.vector_store %arg5[%c0_5, %c0_6], %6 {strides = array<i32>} : memref<24x96xf32, #tpu.memory_space<vmem>>, vector<24x96xf32>,
    return
  }
  func.func @transform_0(%arg0: i32, %arg1: i32) -> (i32, i32) {
    %c0_i32 = arith.constant 0 : i32
    %c0_i32_0 = arith.constant 0 : i32
    return %arg0, %c0_i32 : i32, i32
  }
  func.func @transform_1(%arg0: i32, %arg1: i32) -> (i32, i32) {
    %c0_i32 = arith.constant 0 : i32
    %c0_i32_0 = arith.constant 0 : i32
    return %c0_i32, %arg1 : i32, i32
  }
  func.func @transform_2(%arg0: i32, %arg1: i32) -> (i32, i32) {
    %c0_i32 = arith.constant 0 : i32
    %c0_i32_0 = arith.constant 0 : i32
    return %c0_i32, %arg1 : i32, i32
  }
  func.func @transform_3(%arg0: i32, %arg1: i32) -> (i32, i32) {
    %c0_i32 = arith.constant 0 : i32
    return %arg0, %arg1 : i32, i32
  }
}

module attributes {stable_mosaic.version = 11 : i64} {
  func.func @_add_ln_kernel(%arg0: i32, %arg1: memref<24x32xf32, #tpu.memory_space<vmem>>, %arg2: memref<24x32xf32, #tpu.memory_space<vmem>>, %arg3: memref<1x32xf32, #tpu.memory_space<vmem>>, %arg4: memref<1x32xf32, #tpu.memory_space<vmem>>, %arg5: memref<24x32xf32, #tpu.memory_space<vmem>>) attributes {dimension_semantics = [#tpu.dimension_semantics<parallel>], iteration_bounds = array<i64: 1>, scalar_prefetch = 0 : i64, scratch_operands = 0 : i64, tpu.core_type = #tpu.core_type<tc>, window_params = [{transform_indices = @transform_0, window_bounds = array<i64: 24, 32>}, {transform_indices = @transform_1, window_bounds = array<i64: 24, 32>}, {pipeline_mode = #tpu.pipeline_mode<synchronous>, transform_indices = @transform_2, window_bounds = array<i64: 1, 32>}, {pipeline_mode = #tpu.pipeline_mode<synchronous>, transform_indices = @transform_3, window_bounds = array<i64: 1, 32>}, {transform_indices = @transform_4, window_bounds = array<i64: 24, 32>}]} {
    %c0 = arith.constant 0 : index
    %c0_0 = arith.constant 0 : index
    %0 = vector.load %arg1[%c0, %c0_0] : memref<24x32xf32, #tpu.memory_space<vmem>>, vector<24x32xf32>
    %c0_1 = arith.constant 0 : index
    %c0_2 = arith.constant 0 : index
    %1 = vector.load %arg2[%c0_1, %c0_2] : memref<24x32xf32, #tpu.memory_space<vmem>>, vector<24x32xf32>
    %2 = arith.addf %0, %1 : vector<24x32xf32>
    %cst = arith.constant dense<0.000000e+00> : vector<24xf32>
    %3 = vector.multi_reduction <add>, %2, %cst [1] : vector<24x32xf32> to vector<24xf32>
    %4 = vector.shape_cast %3 : vector<24xf32> to vector<24x1xf32>
    %cst_3 = arith.constant 3.200000e+01 : f32
    %5 = vector.broadcast %cst_3 : f32 to vector<24x1xf32>
    %6 = arith.divf %4, %5 : vector<24x1xf32>
    %7 = vector.broadcast %6 : vector<24x1xf32> to vector<24x32xf32>
    %8 = arith.subf %2, %7 : vector<24x32xf32>
    %9 = arith.mulf %8, %8 : vector<24x32xf32>
    %cst_4 = arith.constant dense<0.000000e+00> : vector<24xf32>
    %10 = vector.multi_reduction <add>, %9, %cst_4 [1] : vector<24x32xf32> to vector<24xf32>
    %11 = vector.shape_cast %10 : vector<24xf32> to vector<24x1xf32>
    %cst_5 = arith.constant 3.200000e+01 : f32
    %12 = vector.broadcast %cst_5 : f32 to vector<24x1xf32>
    %13 = arith.divf %11, %12 : vector<24x1xf32>
    %14 = vector.broadcast %6 : vector<24x1xf32> to vector<24x32xf32>
    %15 = arith.subf %2, %14 : vector<24x32xf32>
    %cst_6 = arith.constant 9.99999974E-6 : f32
    %16 = vector.broadcast %cst_6 : f32 to vector<24x1xf32>
    %17 = arith.addf %13, %16 : vector<24x1xf32>
    %18 = math.rsqrt %17 : vector<24x1xf32>
    %19 = vector.broadcast %18 : vector<24x1xf32> to vector<24x32xf32>
    %20 = arith.mulf %15, %19 : vector<24x32xf32>
    %c0_7 = arith.constant 0 : index
    %c0_8 = arith.constant 0 : index
    %21 = vector.load %arg3[%c0_7, %c0_8] : memref<1x32xf32, #tpu.memory_space<vmem>>, vector<1x32xf32>
    %22 = vector.broadcast %21 : vector<1x32xf32> to vector<24x32xf32>
    %23 = arith.mulf %20, %22 : vector<24x32xf32>
    %c0_9 = arith.constant 0 : index
    %c0_10 = arith.constant 0 : index
    %24 = vector.load %arg4[%c0_9, %c0_10] : memref<1x32xf32, #tpu.memory_space<vmem>>, vector<1x32xf32>
    %25 = vector.broadcast %24 : vector<1x32xf32> to vector<24x32xf32>
    %26 = arith.addf %23, %25 : vector<24x32xf32>
    %c0_11 = arith.constant 0 : index
    %c0_12 = arith.constant 0 : index
    %27 = vector.load %arg5[%c0_11, %c0_12] : memref<24x32xf32, #tpu.memory_space<vmem>>, vector<24x32xf32>
    tpu.vector_store %arg5[%c0_11, %c0_12], %26 {strides = array<i32>} : memref<24x32xf32, #tpu.memory_space<vmem>>, vector<24x32xf32>,
    return
  }
  func.func @transform_0(%arg0: i32) -> (i32, i32) {
    %c0_i32 = arith.constant 0 : i32
    %c0_i32_0 = arith.constant 0 : i32
    return %arg0, %c0_i32 : i32, i32
  }
  func.func @transform_1(%arg0: i32) -> (i32, i32) {
    %c0_i32 = arith.constant 0 : i32
    %c0_i32_0 = arith.constant 0 : i32
    return %arg0, %c0_i32 : i32, i32
  }
  func.func @transform_2(%arg0: i32) -> (i32, i32) {
    %c0_i32 = arith.constant 0 : i32
    %c0_i32_0 = arith.constant 0 : i32
    %c0_i32_1 = arith.constant 0 : i32
    return %c0_i32, %c0_i32_0 : i32, i32
  }
  func.func @transform_3(%arg0: i32) -> (i32, i32) {
    %c0_i32 = arith.constant 0 : i32
    %c0_i32_0 = arith.constant 0 : i32
    %c0_i32_1 = arith.constant 0 : i32
    return %c0_i32, %c0_i32_0 : i32, i32
  }
  func.func @transform_4(%arg0: i32) -> (i32, i32) {
    %c0_i32 = arith.constant 0 : i32
    %c0_i32_0 = arith.constant 0 : i32
    return %arg0, %c0_i32 : i32, i32
  }
}

module attributes {stable_mosaic.version = 11 : i64} {
  func.func @_self_attn_kernel(%arg0: i32, %arg1: memref<1x12x96xf32, #tpu.memory_space<vmem>>, %arg2: memref<1x12x32xf32, #tpu.memory_space<vmem>>) attributes {dimension_semantics = [#tpu.dimension_semantics<parallel>], iteration_bounds = array<i64: 2>, scalar_prefetch = 0 : i64, scratch_operands = 0 : i64, tpu.core_type = #tpu.core_type<tc>, window_params = [{transform_indices = @transform_0, window_bounds = array<i64: 1, 12, 96>}, {transform_indices = @transform_1, window_bounds = array<i64: 1, 12, 32>}]} {
    %c0 = arith.constant 0 : index
    %c0_0 = arith.constant 0 : index
    %c0_1 = arith.constant 0 : index
    %0 = vector.load %arg1[%c0, %c0_0, %c0_1] : memref<1x12x96xf32, #tpu.memory_space<vmem>>, vector<1x12x96xf32>
    %1 = vector.shape_cast %0 : vector<1x12x96xf32> to vector<12x96xf32>
    %2 = vector.extract_strided_slice %1 {offsets = [0, 0], sizes = [12, 32], strides = [1, 1]} : vector<12x96xf32> to vector<12x32xf32>
    %3 = vector.extract_strided_slice %1 {offsets = [0, 32], sizes = [12, 32], strides = [1, 1]} : vector<12x96xf32> to vector<12x32xf32>
    %4 = vector.extract_strided_slice %1 {offsets = [0, 64], sizes = [12, 32], strides = [1, 1]} : vector<12x96xf32> to vector<12x32xf32>
    %5 = arith.truncf %2 : vector<12x32xf32> to vector<12x32xbf16>
    %6 = arith.truncf %3 : vector<12x32xf32> to vector<12x32xbf16>
    %7 = arith.truncf %4 : vector<12x32xf32> to vector<12x32xbf16>
    %8 = vector.extract_strided_slice %5 {offsets = [0, 0], sizes = [12, 8], strides = [1, 1]} : vector<12x32xbf16> to vector<12x8xbf16>
    %9 = vector.extract_strided_slice %6 {offsets = [0, 0], sizes = [12, 8], strides = [1, 1]} : vector<12x32xbf16> to vector<12x8xbf16>
    %cst = arith.constant dense<0.000000e+00> : vector<12x12xf32>
    %10 = tpu.matmul %8, %9, %cst {dimension_numbers = #tpu.dot_dimension_numbers<[1], [1], [0], [0], [0, 0, 1, 0], [], []>} : vector<12x8xbf16>, vector<12x8xbf16>, vector<12x12xf32> -> vector<12x12xf32>
    %cst_2 = arith.constant 0.353553385 : f32
    %11 = vector.broadcast %cst_2 : f32 to vector<12x12xf32>
    %12 = arith.mulf %10, %11 : vector<12x12xf32>
    %cst_3 = arith.constant dense<0xFF800000> : vector<12xf32>
    %13 = vector.multi_reduction <maximumf>, %12, %cst_3 [1] : vector<12x12xf32> to vector<12xf32>
    %14 = vector.shape_cast %13 : vector<12xf32> to vector<12x1xf32>
    %15 = vector.broadcast %14 : vector<12x1xf32> to vector<12x12xf32>
    %16 = arith.subf %12, %15 : vector<12x12xf32>
    %17 = math.exp %16 : vector<12x12xf32>
    %cst_4 = arith.constant dense<0.000000e+00> : vector<12xf32>
    %18 = vector.multi_reduction <add>, %17, %cst_4 [1] : vector<12x12xf32> to vector<12xf32>
    %19 = vector.shape_cast %18 : vector<12xf32> to vector<12x1xf32>
    %20 = vector.broadcast %19 : vector<12x1xf32> to vector<12x12xf32>
    %21 = arith.divf %17, %20 : vector<12x12xf32>
    %22 = arith.truncf %21 : vector<12x12xf32> to vector<12x12xbf16>
    %23 = vector.extract_strided_slice %7 {offsets = [0, 0], sizes = [12, 8], strides = [1, 1]} : vector<12x32xbf16> to vector<12x8xbf16>
    %cst_5 = arith.constant dense<0.000000e+00> : vector<12x8xf32>
    %24 = tpu.matmul %22, %23, %cst_5 {dimension_numbers = #tpu.dot_dimension_numbers<[1], [0], [0], [1], [0, 0, 1, 1], [], []>} : vector<12x12xbf16>, vector<12x8xbf16>, vector<12x8xf32> -> vector<12x8xf32>
    %25 = vector.extract_strided_slice %5 {offsets = [0, 8], sizes = [12, 8], strides = [1, 1]} : vector<12x32xbf16> to vector<12x8xbf16>
    %26 = vector.extract_strided_slice %6 {offsets = [0, 8], sizes = [12, 8], strides = [1, 1]} : vector<12x32xbf16> to vector<12x8xbf16>
    %cst_6 = arith.constant dense<0.000000e+00> : vector<12x12xf32>
    %27 = tpu.matmul %25, %26, %cst_6 {dimension_numbers = #tpu.dot_dimension_numbers<[1], [1], [0], [0], [0, 0, 1, 0], [], []>} : vector<12x8xbf16>, vector<12x8xbf16>, vector<12x12xf32> -> vector<12x12xf32>
    %cst_7 = arith.constant 0.353553385 : f32
    %28 = vector.broadcast %cst_7 : f32 to vector<12x12xf32>
    %29 = arith.mulf %27, %28 : vector<12x12xf32>
    %cst_8 = arith.constant dense<0xFF800000> : vector<12xf32>
    %30 = vector.multi_reduction <maximumf>, %29, %cst_8 [1] : vector<12x12xf32> to vector<12xf32>
    %31 = vector.shape_cast %30 : vector<12xf32> to vector<12x1xf32>
    %32 = vector.broadcast %31 : vector<12x1xf32> to vector<12x12xf32>
    %33 = arith.subf %29, %32 : vector<12x12xf32>
    %34 = math.exp %33 : vector<12x12xf32>
    %cst_9 = arith.constant dense<0.000000e+00> : vector<12xf32>
    %35 = vector.multi_reduction <add>, %34, %cst_9 [1] : vector<12x12xf32> to vector<12xf32>
    %36 = vector.shape_cast %35 : vector<12xf32> to vector<12x1xf32>
    %37 = vector.broadcast %36 : vector<12x1xf32> to vector<12x12xf32>
    %38 = arith.divf %34, %37 : vector<12x12xf32>
    %39 = arith.truncf %38 : vector<12x12xf32> to vector<12x12xbf16>
    %40 = vector.extract_strided_slice %7 {offsets = [0, 8], sizes = [12, 8], strides = [1, 1]} : vector<12x32xbf16> to vector<12x8xbf16>
    %cst_10 = arith.constant dense<0.000000e+00> : vector<12x8xf32>
    %41 = tpu.matmul %39, %40, %cst_10 {dimension_numbers = #tpu.dot_dimension_numbers<[1], [0], [0], [1], [0, 0, 1, 1], [], []>} : vector<12x12xbf16>, vector<12x8xbf16>, vector<12x8xf32> -> vector<12x8xf32>
    %42 = vector.extract_strided_slice %5 {offsets = [0, 16], sizes = [12, 8], strides = [1, 1]} : vector<12x32xbf16> to vector<12x8xbf16>
    %43 = vector.extract_strided_slice %6 {offsets = [0, 16], sizes = [12, 8], strides = [1, 1]} : vector<12x32xbf16> to vector<12x8xbf16>
    %cst_11 = arith.constant dense<0.000000e+00> : vector<12x12xf32>
    %44 = tpu.matmul %42, %43, %cst_11 {dimension_numbers = #tpu.dot_dimension_numbers<[1], [1], [0], [0], [0, 0, 1, 0], [], []>} : vector<12x8xbf16>, vector<12x8xbf16>, vector<12x12xf32> -> vector<12x12xf32>
    %cst_12 = arith.constant 0.353553385 : f32
    %45 = vector.broadcast %cst_12 : f32 to vector<12x12xf32>
    %46 = arith.mulf %44, %45 : vector<12x12xf32>
    %cst_13 = arith.constant dense<0xFF800000> : vector<12xf32>
    %47 = vector.multi_reduction <maximumf>, %46, %cst_13 [1] : vector<12x12xf32> to vector<12xf32>
    %48 = vector.shape_cast %47 : vector<12xf32> to vector<12x1xf32>
    %49 = vector.broadcast %48 : vector<12x1xf32> to vector<12x12xf32>
    %50 = arith.subf %46, %49 : vector<12x12xf32>
    %51 = math.exp %50 : vector<12x12xf32>
    %cst_14 = arith.constant dense<0.000000e+00> : vector<12xf32>
    %52 = vector.multi_reduction <add>, %51, %cst_14 [1] : vector<12x12xf32> to vector<12xf32>
    %53 = vector.shape_cast %52 : vector<12xf32> to vector<12x1xf32>
    %54 = vector.broadcast %53 : vector<12x1xf32> to vector<12x12xf32>
    %55 = arith.divf %51, %54 : vector<12x12xf32>
    %56 = arith.truncf %55 : vector<12x12xf32> to vector<12x12xbf16>
    %57 = vector.extract_strided_slice %7 {offsets = [0, 16], sizes = [12, 8], strides = [1, 1]} : vector<12x32xbf16> to vector<12x8xbf16>
    %cst_15 = arith.constant dense<0.000000e+00> : vector<12x8xf32>
    %58 = tpu.matmul %56, %57, %cst_15 {dimension_numbers = #tpu.dot_dimension_numbers<[1], [0], [0], [1], [0, 0, 1, 1], [], []>} : vector<12x12xbf16>, vector<12x8xbf16>, vector<12x8xf32> -> vector<12x8xf32>
    %59 = vector.extract_strided_slice %5 {offsets = [0, 24], sizes = [12, 8], strides = [1, 1]} : vector<12x32xbf16> to vector<12x8xbf16>
    %60 = vector.extract_strided_slice %6 {offsets = [0, 24], sizes = [12, 8], strides = [1, 1]} : vector<12x32xbf16> to vector<12x8xbf16>
    %cst_16 = arith.constant dense<0.000000e+00> : vector<12x12xf32>
    %61 = tpu.matmul %59, %60, %cst_16 {dimension_numbers = #tpu.dot_dimension_numbers<[1], [1], [0], [0], [0, 0, 1, 0], [], []>} : vector<12x8xbf16>, vector<12x8xbf16>, vector<12x12xf32> -> vector<12x12xf32>
    %cst_17 = arith.constant 0.353553385 : f32
    %62 = vector.broadcast %cst_17 : f32 to vector<12x12xf32>
    %63 = arith.mulf %61, %62 : vector<12x12xf32>
    %cst_18 = arith.constant dense<0xFF800000> : vector<12xf32>
    %64 = vector.multi_reduction <maximumf>, %63, %cst_18 [1] : vector<12x12xf32> to vector<12xf32>
    %65 = vector.shape_cast %64 : vector<12xf32> to vector<12x1xf32>
    %66 = vector.broadcast %65 : vector<12x1xf32> to vector<12x12xf32>
    %67 = arith.subf %63, %66 : vector<12x12xf32>
    %68 = math.exp %67 : vector<12x12xf32>
    %cst_19 = arith.constant dense<0.000000e+00> : vector<12xf32>
    %69 = vector.multi_reduction <add>, %68, %cst_19 [1] : vector<12x12xf32> to vector<12xf32>
    %70 = vector.shape_cast %69 : vector<12xf32> to vector<12x1xf32>
    %71 = vector.broadcast %70 : vector<12x1xf32> to vector<12x12xf32>
    %72 = arith.divf %68, %71 : vector<12x12xf32>
    %73 = arith.truncf %72 : vector<12x12xf32> to vector<12x12xbf16>
    %74 = vector.extract_strided_slice %7 {offsets = [0, 24], sizes = [12, 8], strides = [1, 1]} : vector<12x32xbf16> to vector<12x8xbf16>
    %cst_20 = arith.constant dense<0.000000e+00> : vector<12x8xf32>
    %75 = tpu.matmul %73, %74, %cst_20 {dimension_numbers = #tpu.dot_dimension_numbers<[1], [0], [0], [1], [0, 0, 1, 1], [], []>} : vector<12x12xbf16>, vector<12x8xbf16>, vector<12x8xf32> -> vector<12x8xf32>
    %76 = tpu.concatenate %24, %41, %58, %75 in 1 : vector<12x8xf32>, vector<12x8xf32>, vector<12x8xf32>, vector<12x8xf32> -> vector<12x32xf32>
    %c0_21 = arith.constant 0 : index
    %c0_22 = arith.constant 0 : index
    %c0_23 = arith.constant 0 : index
    %77 = vector.load %arg2[%c0_21, %c0_22, %c0_23] : memref<1x12x32xf32, #tpu.memory_space<vmem>>, vector<1x12x32xf32>
    %78 = vector.shape_cast %77 : vector<1x12x32xf32> to vector<12x32xf32>
    %79 = vector.shape_cast %76 : vector<12x32xf32> to vector<1x12x32xf32>
    tpu.vector_store %arg2[%c0_21, %c0_22, %c0_23], %79 {strides = array<i32>} : memref<1x12x32xf32, #tpu.memory_space<vmem>>, vector<1x12x32xf32>,
    return
  }
  func.func @transform_0(%arg0: i32) -> (i32, i32, i32) {
    %c0_i32 = arith.constant 0 : i32
    %c0_i32_0 = arith.constant 0 : i32
    %c0_i32_1 = arith.constant 0 : i32
    return %arg0, %c0_i32, %c0_i32_0 : i32, i32, i32
  }
  func.func @transform_1(%arg0: i32) -> (i32, i32, i32) {
    %c0_i32 = arith.constant 0 : i32
    %c0_i32_0 = arith.constant 0 : i32
    %c0_i32_1 = arith.constant 0 : i32
    return %arg0, %c0_i32, %c0_i32_0 : i32, i32, i32
  }
}

module attributes {stable_mosaic.version = 11 : i64} {
  func.func @_linear_kernel(%arg0: i32, %arg1: i32, %arg2: memref<24x32xf32, #tpu.memory_space<vmem>>, %arg3: memref<32x32xbf16, #tpu.memory_space<vmem>>, %arg4: memref<1x32xf32, #tpu.memory_space<vmem>>, %arg5: memref<24x32xf32, #tpu.memory_space<vmem>>) attributes {dimension_semantics = [#tpu.dimension_semantics<parallel>, #tpu.dimension_semantics<parallel>], iteration_bounds = array<i64: 1, 1>, scalar_prefetch = 0 : i64, scratch_operands = 0 : i64, tpu.core_type = #tpu.core_type<tc>, window_params = [{transform_indices = @transform_0, window_bounds = array<i64: 24, 32>}, {transform_indices = @transform_1, window_bounds = array<i64: 32, 32>}, {transform_indices = @transform_2, window_bounds = array<i64: 1, 32>}, {transform_indices = @transform_3, window_bounds = array<i64: 24, 32>}]} {
    %c0 = arith.constant 0 : index
    %c0_0 = arith.constant 0 : index
    %0 = vector.load %arg2[%c0, %c0_0] : memref<24x32xf32, #tpu.memory_space<vmem>>, vector<24x32xf32>
    %1 = arith.truncf %0 : vector<24x32xf32> to vector<24x32xbf16>
    %c0_1 = arith.constant 0 : index
    %c0_2 = arith.constant 0 : index
    %2 = vector.load %arg3[%c0_1, %c0_2] : memref<32x32xbf16, #tpu.memory_space<vmem>>, vector<32x32xbf16>
    %cst = arith.constant dense<0.000000e+00> : vector<24x32xf32>
    %3 = tpu.matmul %1, %2, %cst {dimension_numbers = #tpu.dot_dimension_numbers<[1], [0], [0], [1], [0, 0, 1, 1], [], []>} : vector<24x32xbf16>, vector<32x32xbf16>, vector<24x32xf32> -> vector<24x32xf32>
    %c0_3 = arith.constant 0 : index
    %c0_4 = arith.constant 0 : index
    %4 = vector.load %arg4[%c0_3, %c0_4] : memref<1x32xf32, #tpu.memory_space<vmem>>, vector<1x32xf32>
    %5 = vector.broadcast %4 : vector<1x32xf32> to vector<24x32xf32>
    %6 = arith.addf %3, %5 : vector<24x32xf32>
    %c0_5 = arith.constant 0 : index
    %c0_6 = arith.constant 0 : index
    %7 = vector.load %arg5[%c0_5, %c0_6] : memref<24x32xf32, #tpu.memory_space<vmem>>, vector<24x32xf32>
    tpu.vector_store %arg5[%c0_5, %c0_6], %6 {strides = array<i32>} : memref<24x32xf32, #tpu.memory_space<vmem>>, vector<24x32xf32>,
    return
  }
  func.func @transform_0(%arg0: i32, %arg1: i32) -> (i32, i32) {
    %c0_i32 = arith.constant 0 : i32
    %c0_i32_0 = arith.constant 0 : i32
    return %arg0, %c0_i32 : i32, i32
  }
  func.func @transform_1(%arg0: i32, %arg1: i32) -> (i32, i32) {
    %c0_i32 = arith.constant 0 : i32
    %c0_i32_0 = arith.constant 0 : i32
    return %c0_i32, %arg1 : i32, i32
  }
  func.func @transform_2(%arg0: i32, %arg1: i32) -> (i32, i32) {
    %c0_i32 = arith.constant 0 : i32
    %c0_i32_0 = arith.constant 0 : i32
    return %c0_i32, %arg1 : i32, i32
  }
  func.func @transform_3(%arg0: i32, %arg1: i32) -> (i32, i32) {
    %c0_i32 = arith.constant 0 : i32
    return %arg0, %arg1 : i32, i32
  }
}

module attributes {stable_mosaic.version = 11 : i64} {
  func.func @_linear_kernel(%arg0: i32, %arg1: i32, %arg2: memref<24x32xf32, #tpu.memory_space<vmem>>, %arg3: memref<32x512xbf16, #tpu.memory_space<vmem>>, %arg4: memref<1x512xf32, #tpu.memory_space<vmem>>, %arg5: memref<24x512xf32, #tpu.memory_space<vmem>>) attributes {dimension_semantics = [#tpu.dimension_semantics<parallel>, #tpu.dimension_semantics<parallel>], iteration_bounds = array<i64: 1, 4>, scalar_prefetch = 0 : i64, scratch_operands = 0 : i64, tpu.core_type = #tpu.core_type<tc>, window_params = [{transform_indices = @transform_0, window_bounds = array<i64: 24, 32>}, {transform_indices = @transform_1, window_bounds = array<i64: 32, 512>}, {transform_indices = @transform_2, window_bounds = array<i64: 1, 512>}, {transform_indices = @transform_3, window_bounds = array<i64: 24, 512>}]} {
    %c0 = arith.constant 0 : index
    %c0_0 = arith.constant 0 : index
    %0 = vector.load %arg2[%c0, %c0_0] : memref<24x32xf32, #tpu.memory_space<vmem>>, vector<24x32xf32>
    %1 = arith.truncf %0 : vector<24x32xf32> to vector<24x32xbf16>
    %c0_1 = arith.constant 0 : index
    %c0_2 = arith.constant 0 : index
    %2 = vector.load %arg3[%c0_1, %c0_2] : memref<32x512xbf16, #tpu.memory_space<vmem>>, vector<32x512xbf16>
    %cst = arith.constant dense<0.000000e+00> : vector<24x512xf32>
    %3 = tpu.matmul %1, %2, %cst {dimension_numbers = #tpu.dot_dimension_numbers<[1], [0], [0], [1], [0, 0, 1, 1], [], []>} : vector<24x32xbf16>, vector<32x512xbf16>, vector<24x512xf32> -> vector<24x512xf32>
    %c0_3 = arith.constant 0 : index
    %c0_4 = arith.constant 0 : index
    %4 = vector.load %arg4[%c0_3, %c0_4] : memref<1x512xf32, #tpu.memory_space<vmem>>, vector<1x512xf32>
    %5 = vector.broadcast %4 : vector<1x512xf32> to vector<24x512xf32>
    %6 = arith.addf %3, %5 : vector<24x512xf32>
    %cst_5 = arith.constant 0.000000e+00 : f32
    %7 = vector.broadcast %cst_5 : f32 to vector<24x512xf32>
    %8 = arith.maximumf %6, %7 : vector<24x512xf32>
    %c0_6 = arith.constant 0 : index
    %c0_7 = arith.constant 0 : index
    %9 = vector.load %arg5[%c0_6, %c0_7] : memref<24x512xf32, #tpu.memory_space<vmem>>, vector<24x512xf32>
    tpu.vector_store %arg5[%c0_6, %c0_7], %8 {strides = array<i32>} : memref<24x512xf32, #tpu.memory_space<vmem>>, vector<24x512xf32>,
    return
  }
  func.func @transform_0(%arg0: i32, %arg1: i32) -> (i32, i32) {
    %c0_i32 = arith.constant 0 : i32
    %c0_i32_0 = arith.constant 0 : i32
    return %arg0, %c0_i32 : i32, i32
  }
  func.func @transform_1(%arg0: i32, %arg1: i32) -> (i32, i32) {
    %c0_i32 = arith.constant 0 : i32
    %c0_i32_0 = arith.constant 0 : i32
    return %c0_i32, %arg1 : i32, i32
  }
  func.func @transform_2(%arg0: i32, %arg1: i32) -> (i32, i32) {
    %c0_i32 = arith.constant 0 : i32
    %c0_i32_0 = arith.constant 0 : i32
    return %c0_i32, %arg1 : i32, i32
  }
  func.func @transform_3(%arg0: i32, %arg1: i32) -> (i32, i32) {
    %c0_i32 = arith.constant 0 : i32
    return %arg0, %arg1 : i32, i32
  }
}

module attributes {stable_mosaic.version = 11 : i64} {
  func.func @_linear_kernel(%arg0: i32, %arg1: i32, %arg2: memref<24x2048xf32, #tpu.memory_space<vmem>>, %arg3: memref<2048x32xbf16, #tpu.memory_space<vmem>>, %arg4: memref<1x32xf32, #tpu.memory_space<vmem>>, %arg5: memref<24x32xf32, #tpu.memory_space<vmem>>) attributes {dimension_semantics = [#tpu.dimension_semantics<parallel>, #tpu.dimension_semantics<parallel>], iteration_bounds = array<i64: 1, 1>, scalar_prefetch = 0 : i64, scratch_operands = 0 : i64, tpu.core_type = #tpu.core_type<tc>, window_params = [{transform_indices = @transform_0, window_bounds = array<i64: 24, 2048>}, {transform_indices = @transform_1, window_bounds = array<i64: 2048, 32>}, {transform_indices = @transform_2, window_bounds = array<i64: 1, 32>}, {transform_indices = @transform_3, window_bounds = array<i64: 24, 32>}]} {
    %c0 = arith.constant 0 : index
    %c0_0 = arith.constant 0 : index
    %0 = vector.load %arg2[%c0, %c0_0] : memref<24x2048xf32, #tpu.memory_space<vmem>>, vector<24x2048xf32>
    %1 = arith.truncf %0 : vector<24x2048xf32> to vector<24x2048xbf16>
    %c0_1 = arith.constant 0 : index
    %c0_2 = arith.constant 0 : index
    %2 = vector.load %arg3[%c0_1, %c0_2] : memref<2048x32xbf16, #tpu.memory_space<vmem>>, vector<2048x32xbf16>
    %cst = arith.constant dense<0.000000e+00> : vector<24x32xf32>
    %3 = tpu.matmul %1, %2, %cst {dimension_numbers = #tpu.dot_dimension_numbers<[1], [0], [0], [1], [0, 0, 1, 1], [], []>} : vector<24x2048xbf16>, vector<2048x32xbf16>, vector<24x32xf32> -> vector<24x32xf32>
    %c0_3 = arith.constant 0 : index
    %c0_4 = arith.constant 0 : index
    %4 = vector.load %arg4[%c0_3, %c0_4] : memref<1x32xf32, #tpu.memory_space<vmem>>, vector<1x32xf32>
    %5 = vector.broadcast %4 : vector<1x32xf32> to vector<24x32xf32>
    %6 = arith.addf %3, %5 : vector<24x32xf32>
    %c0_5 = arith.constant 0 : index
    %c0_6 = arith.constant 0 : index
    %7 = vector.load %arg5[%c0_5, %c0_6] : memref<24x32xf32, #tpu.memory_space<vmem>>, vector<24x32xf32>
    tpu.vector_store %arg5[%c0_5, %c0_6], %6 {strides = array<i32>} : memref<24x32xf32, #tpu.memory_space<vmem>>, vector<24x32xf32>,
    return
  }
  func.func @transform_0(%arg0: i32, %arg1: i32) -> (i32, i32) {
    %c0_i32 = arith.constant 0 : i32
    %c0_i32_0 = arith.constant 0 : i32
    return %arg0, %c0_i32 : i32, i32
  }
  func.func @transform_1(%arg0: i32, %arg1: i32) -> (i32, i32) {
    %c0_i32 = arith.constant 0 : i32
    %c0_i32_0 = arith.constant 0 : i32
    return %c0_i32, %arg1 : i32, i32
  }
  func.func @transform_2(%arg0: i32, %arg1: i32) -> (i32, i32) {
    %c0_i32 = arith.constant 0 : i32
    %c0_i32_0 = arith.constant 0 : i32
    return %c0_i32, %arg1 : i32, i32
  }
  func.func @transform_3(%arg0: i32, %arg1: i32) -> (i32, i32) {
    %c0_i32 = arith.constant 0 : i32
    return %arg0, %arg1 : i32, i32
  }
}

module attributes {stable_mosaic.version = 11 : i64} {
  func.func @_linear_kernel(%arg0: i32, %arg1: i32, %arg2: memref<24x32xf32, #tpu.memory_space<vmem>>, %arg3: memref<32x64xbf16, #tpu.memory_space<vmem>>, %arg4: memref<1x64xf32, #tpu.memory_space<vmem>>, %arg5: memref<24x64xf32, #tpu.memory_space<vmem>>) attributes {dimension_semantics = [#tpu.dimension_semantics<parallel>, #tpu.dimension_semantics<parallel>], iteration_bounds = array<i64: 1, 1>, scalar_prefetch = 0 : i64, scratch_operands = 0 : i64, tpu.core_type = #tpu.core_type<tc>, window_params = [{transform_indices = @transform_0, window_bounds = array<i64: 24, 32>}, {transform_indices = @transform_1, window_bounds = array<i64: 32, 64>}, {transform_indices = @transform_2, window_bounds = array<i64: 1, 64>}, {transform_indices = @transform_3, window_bounds = array<i64: 24, 64>}]} {
    %c0 = arith.constant 0 : index
    %c0_0 = arith.constant 0 : index
    %0 = vector.load %arg2[%c0, %c0_0] : memref<24x32xf32, #tpu.memory_space<vmem>>, vector<24x32xf32>
    %1 = arith.truncf %0 : vector<24x32xf32> to vector<24x32xbf16>
    %c0_1 = arith.constant 0 : index
    %c0_2 = arith.constant 0 : index
    %2 = vector.load %arg3[%c0_1, %c0_2] : memref<32x64xbf16, #tpu.memory_space<vmem>>, vector<32x64xbf16>
    %cst = arith.constant dense<0.000000e+00> : vector<24x64xf32>
    %3 = tpu.matmul %1, %2, %cst {dimension_numbers = #tpu.dot_dimension_numbers<[1], [0], [0], [1], [0, 0, 1, 1], [], []>} : vector<24x32xbf16>, vector<32x64xbf16>, vector<24x64xf32> -> vector<24x64xf32>
    %c0_3 = arith.constant 0 : index
    %c0_4 = arith.constant 0 : index
    %4 = vector.load %arg4[%c0_3, %c0_4] : memref<1x64xf32, #tpu.memory_space<vmem>>, vector<1x64xf32>
    %5 = vector.broadcast %4 : vector<1x64xf32> to vector<24x64xf32>
    %6 = arith.addf %3, %5 : vector<24x64xf32>
    %c0_5 = arith.constant 0 : index
    %c0_6 = arith.constant 0 : index
    %7 = vector.load %arg5[%c0_5, %c0_6] : memref<24x64xf32, #tpu.memory_space<vmem>>, vector<24x64xf32>
    tpu.vector_store %arg5[%c0_5, %c0_6], %6 {strides = array<i32>} : memref<24x64xf32, #tpu.memory_space<vmem>>, vector<24x64xf32>,
    return
  }
  func.func @transform_0(%arg0: i32, %arg1: i32) -> (i32, i32) {
    %c0_i32 = arith.constant 0 : i32
    %c0_i32_0 = arith.constant 0 : i32
    return %arg0, %c0_i32 : i32, i32
  }
  func.func @transform_1(%arg0: i32, %arg1: i32) -> (i32, i32) {
    %c0_i32 = arith.constant 0 : i32
    %c0_i32_0 = arith.constant 0 : i32
    return %c0_i32, %arg1 : i32, i32
  }
  func.func @transform_2(%arg0: i32, %arg1: i32) -> (i32, i32) {
    %c0_i32 = arith.constant 0 : i32
    %c0_i32_0 = arith.constant 0 : i32
    return %c0_i32, %arg1 : i32, i32
  }
  func.func @transform_3(%arg0: i32, %arg1: i32) -> (i32, i32) {
    %c0_i32 = arith.constant 0 : i32
    return %arg0, %arg1 : i32, i32
  }
}

module attributes {stable_mosaic.version = 11 : i64} {
  func.func @_cross_attn_kernel(%arg0: i32, %arg1: memref<1x8x32xf32, #tpu.memory_space<vmem>>, %arg2: memref<1x12x64xf32, #tpu.memory_space<vmem>>, %arg3: memref<1x8x32xf32, #tpu.memory_space<vmem>>) attributes {dimension_semantics = [#tpu.dimension_semantics<parallel>], iteration_bounds = array<i64: 2>, scalar_prefetch = 0 : i64, scratch_operands = 0 : i64, tpu.core_type = #tpu.core_type<tc>, window_params = [{transform_indices = @transform_0, window_bounds = array<i64: 1, 8, 32>}, {transform_indices = @transform_1, window_bounds = array<i64: 1, 12, 64>}, {transform_indices = @transform_2, window_bounds = array<i64: 1, 8, 32>}]} {
    %c0 = arith.constant 0 : index
    %c0_0 = arith.constant 0 : index
    %c0_1 = arith.constant 0 : index
    %0 = vector.load %arg1[%c0, %c0_0, %c0_1] : memref<1x8x32xf32, #tpu.memory_space<vmem>>, vector<1x8x32xf32>
    %1 = vector.shape_cast %0 : vector<1x8x32xf32> to vector<8x32xf32>
    %c0_2 = arith.constant 0 : index
    %c0_3 = arith.constant 0 : index
    %c0_4 = arith.constant 0 : index
    %2 = vector.load %arg2[%c0_2, %c0_3, %c0_4] : memref<1x12x64xf32, #tpu.memory_space<vmem>>, vector<1x12x64xf32>
    %3 = vector.shape_cast %2 : vector<1x12x64xf32> to vector<12x64xf32>
    %4 = vector.extract_strided_slice %3 {offsets = [0, 0], sizes = [12, 32], strides = [1, 1]} : vector<12x64xf32> to vector<12x32xf32>
    %5 = vector.extract_strided_slice %3 {offsets = [0, 32], sizes = [12, 32], strides = [1, 1]} : vector<12x64xf32> to vector<12x32xf32>
    %6 = arith.truncf %1 : vector<8x32xf32> to vector<8x32xbf16>
    %7 = arith.truncf %4 : vector<12x32xf32> to vector<12x32xbf16>
    %8 = arith.truncf %5 : vector<12x32xf32> to vector<12x32xbf16>
    %9 = vector.extract_strided_slice %6 {offsets = [0, 0], sizes = [8, 8], strides = [1, 1]} : vector<8x32xbf16> to vector<8x8xbf16>
    %10 = vector.extract_strided_slice %7 {offsets = [0, 0], sizes = [12, 8], strides = [1, 1]} : vector<12x32xbf16> to vector<12x8xbf16>
    %cst = arith.constant dense<0.000000e+00> : vector<8x12xf32>
    %11 = tpu.matmul %9, %10, %cst {dimension_numbers = #tpu.dot_dimension_numbers<[1], [1], [0], [0], [0, 0, 1, 0], [], []>} : vector<8x8xbf16>, vector<12x8xbf16>, vector<8x12xf32> -> vector<8x12xf32>
    %cst_5 = arith.constant 0.353553385 : f32
    %12 = vector.broadcast %cst_5 : f32 to vector<8x12xf32>
    %13 = arith.mulf %11, %12 : vector<8x12xf32>
    %cst_6 = arith.constant dense<0xFF800000> : vector<8xf32>
    %14 = vector.multi_reduction <maximumf>, %13, %cst_6 [1] : vector<8x12xf32> to vector<8xf32>
    %15 = vector.shape_cast %14 : vector<8xf32> to vector<8x1xf32>
    %16 = vector.broadcast %15 : vector<8x1xf32> to vector<8x12xf32>
    %17 = arith.subf %13, %16 : vector<8x12xf32>
    %18 = math.exp %17 : vector<8x12xf32>
    %cst_7 = arith.constant dense<0.000000e+00> : vector<8xf32>
    %19 = vector.multi_reduction <add>, %18, %cst_7 [1] : vector<8x12xf32> to vector<8xf32>
    %20 = vector.shape_cast %19 : vector<8xf32> to vector<8x1xf32>
    %21 = vector.broadcast %20 : vector<8x1xf32> to vector<8x12xf32>
    %22 = arith.divf %18, %21 : vector<8x12xf32>
    %23 = arith.truncf %22 : vector<8x12xf32> to vector<8x12xbf16>
    %24 = vector.extract_strided_slice %8 {offsets = [0, 0], sizes = [12, 8], strides = [1, 1]} : vector<12x32xbf16> to vector<12x8xbf16>
    %cst_8 = arith.constant dense<0.000000e+00> : vector<8x8xf32>
    %25 = tpu.matmul %23, %24, %cst_8 {dimension_numbers = #tpu.dot_dimension_numbers<[1], [0], [0], [1], [0, 0, 1, 1], [], []>} : vector<8x12xbf16>, vector<12x8xbf16>, vector<8x8xf32> -> vector<8x8xf32>
    %26 = vector.extract_strided_slice %6 {offsets = [0, 8], sizes = [8, 8], strides = [1, 1]} : vector<8x32xbf16> to vector<8x8xbf16>
    %27 = vector.extract_strided_slice %7 {offsets = [0, 8], sizes = [12, 8], strides = [1, 1]} : vector<12x32xbf16> to vector<12x8xbf16>
    %cst_9 = arith.constant dense<0.000000e+00> : vector<8x12xf32>
    %28 = tpu.matmul %26, %27, %cst_9 {dimension_numbers = #tpu.dot_dimension_numbers<[1], [1], [0], [0], [0, 0, 1, 0], [], []>} : vector<8x8xbf16>, vector<12x8xbf16>, vector<8x12xf32> -> vector<8x12xf32>
    %cst_10 = arith.constant 0.353553385 : f32
    %29 = vector.broadcast %cst_10 : f32 to vector<8x12xf32>
    %30 = arith.mulf %28, %29 : vector<8x12xf32>
    %cst_11 = arith.constant dense<0xFF800000> : vector<8xf32>
    %31 = vector.multi_reduction <maximumf>, %30, %cst_11 [1] : vector<8x12xf32> to vector<8xf32>
    %32 = vector.shape_cast %31 : vector<8xf32> to vector<8x1xf32>
    %33 = vector.broadcast %32 : vector<8x1xf32> to vector<8x12xf32>
    %34 = arith.subf %30, %33 : vector<8x12xf32>
    %35 = math.exp %34 : vector<8x12xf32>
    %cst_12 = arith.constant dense<0.000000e+00> : vector<8xf32>
    %36 = vector.multi_reduction <add>, %35, %cst_12 [1] : vector<8x12xf32> to vector<8xf32>
    %37 = vector.shape_cast %36 : vector<8xf32> to vector<8x1xf32>
    %38 = vector.broadcast %37 : vector<8x1xf32> to vector<8x12xf32>
    %39 = arith.divf %35, %38 : vector<8x12xf32>
    %40 = arith.truncf %39 : vector<8x12xf32> to vector<8x12xbf16>
    %41 = vector.extract_strided_slice %8 {offsets = [0, 8], sizes = [12, 8], strides = [1, 1]} : vector<12x32xbf16> to vector<12x8xbf16>
    %cst_13 = arith.constant dense<0.000000e+00> : vector<8x8xf32>
    %42 = tpu.matmul %40, %41, %cst_13 {dimension_numbers = #tpu.dot_dimension_numbers<[1], [0], [0], [1], [0, 0, 1, 1], [], []>} : vector<8x12xbf16>, vector<12x8xbf16>, vector<8x8xf32> -> vector<8x8xf32>
    %43 = vector.extract_strided_slice %6 {offsets = [0, 16], sizes = [8, 8], strides = [1, 1]} : vector<8x32xbf16> to vector<8x8xbf16>
    %44 = vector.extract_strided_slice %7 {offsets = [0, 16], sizes = [12, 8], strides = [1, 1]} : vector<12x32xbf16> to vector<12x8xbf16>
    %cst_14 = arith.constant dense<0.000000e+00> : vector<8x12xf32>
    %45 = tpu.matmul %43, %44, %cst_14 {dimension_numbers = #tpu.dot_dimension_numbers<[1], [1], [0], [0], [0, 0, 1, 0], [], []>} : vector<8x8xbf16>, vector<12x8xbf16>, vector<8x12xf32> -> vector<8x12xf32>
    %cst_15 = arith.constant 0.353553385 : f32
    %46 = vector.broadcast %cst_15 : f32 to vector<8x12xf32>
    %47 = arith.mulf %45, %46 : vector<8x12xf32>
    %cst_16 = arith.constant dense<0xFF800000> : vector<8xf32>
    %48 = vector.multi_reduction <maximumf>, %47, %cst_16 [1] : vector<8x12xf32> to vector<8xf32>
    %49 = vector.shape_cast %48 : vector<8xf32> to vector<8x1xf32>
    %50 = vector.broadcast %49 : vector<8x1xf32> to vector<8x12xf32>
    %51 = arith.subf %47, %50 : vector<8x12xf32>
    %52 = math.exp %51 : vector<8x12xf32>
    %cst_17 = arith.constant dense<0.000000e+00> : vector<8xf32>
    %53 = vector.multi_reduction <add>, %52, %cst_17 [1] : vector<8x12xf32> to vector<8xf32>
    %54 = vector.shape_cast %53 : vector<8xf32> to vector<8x1xf32>
    %55 = vector.broadcast %54 : vector<8x1xf32> to vector<8x12xf32>
    %56 = arith.divf %52, %55 : vector<8x12xf32>
    %57 = arith.truncf %56 : vector<8x12xf32> to vector<8x12xbf16>
    %58 = vector.extract_strided_slice %8 {offsets = [0, 16], sizes = [12, 8], strides = [1, 1]} : vector<12x32xbf16> to vector<12x8xbf16>
    %cst_18 = arith.constant dense<0.000000e+00> : vector<8x8xf32>
    %59 = tpu.matmul %57, %58, %cst_18 {dimension_numbers = #tpu.dot_dimension_numbers<[1], [0], [0], [1], [0, 0, 1, 1], [], []>} : vector<8x12xbf16>, vector<12x8xbf16>, vector<8x8xf32> -> vector<8x8xf32>
    %60 = vector.extract_strided_slice %6 {offsets = [0, 24], sizes = [8, 8], strides = [1, 1]} : vector<8x32xbf16> to vector<8x8xbf16>
    %61 = vector.extract_strided_slice %7 {offsets = [0, 24], sizes = [12, 8], strides = [1, 1]} : vector<12x32xbf16> to vector<12x8xbf16>
    %cst_19 = arith.constant dense<0.000000e+00> : vector<8x12xf32>
    %62 = tpu.matmul %60, %61, %cst_19 {dimension_numbers = #tpu.dot_dimension_numbers<[1], [1], [0], [0], [0, 0, 1, 0], [], []>} : vector<8x8xbf16>, vector<12x8xbf16>, vector<8x12xf32> -> vector<8x12xf32>
    %cst_20 = arith.constant 0.353553385 : f32
    %63 = vector.broadcast %cst_20 : f32 to vector<8x12xf32>
    %64 = arith.mulf %62, %63 : vector<8x12xf32>
    %cst_21 = arith.constant dense<0xFF800000> : vector<8xf32>
    %65 = vector.multi_reduction <maximumf>, %64, %cst_21 [1] : vector<8x12xf32> to vector<8xf32>
    %66 = vector.shape_cast %65 : vector<8xf32> to vector<8x1xf32>
    %67 = vector.broadcast %66 : vector<8x1xf32> to vector<8x12xf32>
    %68 = arith.subf %64, %67 : vector<8x12xf32>
    %69 = math.exp %68 : vector<8x12xf32>
    %cst_22 = arith.constant dense<0.000000e+00> : vector<8xf32>
    %70 = vector.multi_reduction <add>, %69, %cst_22 [1] : vector<8x12xf32> to vector<8xf32>
    %71 = vector.shape_cast %70 : vector<8xf32> to vector<8x1xf32>
    %72 = vector.broadcast %71 : vector<8x1xf32> to vector<8x12xf32>
    %73 = arith.divf %69, %72 : vector<8x12xf32>
    %74 = arith.truncf %73 : vector<8x12xf32> to vector<8x12xbf16>
    %75 = vector.extract_strided_slice %8 {offsets = [0, 24], sizes = [12, 8], strides = [1, 1]} : vector<12x32xbf16> to vector<12x8xbf16>
    %cst_23 = arith.constant dense<0.000000e+00> : vector<8x8xf32>
    %76 = tpu.matmul %74, %75, %cst_23 {dimension_numbers = #tpu.dot_dimension_numbers<[1], [0], [0], [1], [0, 0, 1, 1], [], []>} : vector<8x12xbf16>, vector<12x8xbf16>, vector<8x8xf32> -> vector<8x8xf32>
    %77 = tpu.concatenate %25, %42, %59, %76 in 1 : vector<8x8xf32>, vector<8x8xf32>, vector<8x8xf32>, vector<8x8xf32> -> vector<8x32xf32>
    %c0_24 = arith.constant 0 : index
    %c0_25 = arith.constant 0 : index
    %c0_26 = arith.constant 0 : index
    %78 = vector.load %arg3[%c0_24, %c0_25, %c0_26] : memref<1x8x32xf32, #tpu.memory_space<vmem>>, vector<1x8x32xf32>
    %79 = vector.shape_cast %78 : vector<1x8x32xf32> to vector<8x32xf32>
    %80 = vector.shape_cast %77 : vector<8x32xf32> to vector<1x8x32xf32>
    tpu.vector_store %arg3[%c0_24, %c0_25, %c0_26], %80 {strides = array<i32>} : memref<1x8x32xf32, #tpu.memory_space<vmem>>, vector<1x8x32xf32>,
    return
  }
  func.func @transform_0(%arg0: i32) -> (i32, i32, i32) {
    %c0_i32 = arith.constant 0 : i32
    %c0_i32_0 = arith.constant 0 : i32
    %c0_i32_1 = arith.constant 0 : i32
    return %arg0, %c0_i32, %c0_i32_0 : i32, i32, i32
  }
  func.func @transform_1(%arg0: i32) -> (i32, i32, i32) {
    %c0_i32 = arith.constant 0 : i32
    %c0_i32_0 = arith.constant 0 : i32
    %c0_i32_1 = arith.constant 0 : i32
    return %arg0, %c0_i32, %c0_i32_0 : i32, i32, i32
  }
  func.func @transform_2(%arg0: i32) -> (i32, i32, i32) {
    %c0_i32 = arith.constant 0 : i32
    %c0_i32_0 = arith.constant 0 : i32
    %c0_i32_1 = arith.constant 0 : i32
    return %arg0, %c0_i32, %c0_i32_0 : i32, i32, i32
  }
}

module attributes {stable_mosaic.version = 11 : i64} {
  func.func @_linear_kernel(%arg0: i32, %arg1: i32, %arg2: memref<16x32xf32, #tpu.memory_space<vmem>>, %arg3: memref<32x512xbf16, #tpu.memory_space<vmem>>, %arg4: memref<1x512xf32, #tpu.memory_space<vmem>>, %arg5: memref<16x512xf32, #tpu.memory_space<vmem>>) attributes {dimension_semantics = [#tpu.dimension_semantics<parallel>, #tpu.dimension_semantics<parallel>], iteration_bounds = array<i64: 1, 4>, scalar_prefetch = 0 : i64, scratch_operands = 0 : i64, tpu.core_type = #tpu.core_type<tc>, window_params = [{transform_indices = @transform_0, window_bounds = array<i64: 16, 32>}, {transform_indices = @transform_1, window_bounds = array<i64: 32, 512>}, {transform_indices = @transform_2, window_bounds = array<i64: 1, 512>}, {transform_indices = @transform_3, window_bounds = array<i64: 16, 512>}]} {
    %c0 = arith.constant 0 : index
    %c0_0 = arith.constant 0 : index
    %0 = vector.load %arg2[%c0, %c0_0] : memref<16x32xf32, #tpu.memory_space<vmem>>, vector<16x32xf32>
    %1 = arith.truncf %0 : vector<16x32xf32> to vector<16x32xbf16>
    %c0_1 = arith.constant 0 : index
    %c0_2 = arith.constant 0 : index
    %2 = vector.load %arg3[%c0_1, %c0_2] : memref<32x512xbf16, #tpu.memory_space<vmem>>, vector<32x512xbf16>
    %cst = arith.constant dense<0.000000e+00> : vector<16x512xf32>
    %3 = tpu.matmul %1, %2, %cst {dimension_numbers = #tpu.dot_dimension_numbers<[1], [0], [0], [1], [0, 0, 1, 1], [], []>} : vector<16x32xbf16>, vector<32x512xbf16>, vector<16x512xf32> -> vector<16x512xf32>
    %c0_3 = arith.constant 0 : index
    %c0_4 = arith.constant 0 : index
    %4 = vector.load %arg4[%c0_3, %c0_4] : memref<1x512xf32, #tpu.memory_space<vmem>>, vector<1x512xf32>
    %5 = vector.broadcast %4 : vector<1x512xf32> to vector<16x512xf32>
    %6 = arith.addf %3, %5 : vector<16x512xf32>
    %cst_5 = arith.constant 0.000000e+00 : f32
    %7 = vector.broadcast %cst_5 : f32 to vector<16x512xf32>
    %8 = arith.maximumf %6, %7 : vector<16x512xf32>
    %c0_6 = arith.constant 0 : index
    %c0_7 = arith.constant 0 : index
    %9 = vector.load %arg5[%c0_6, %c0_7] : memref<16x512xf32, #tpu.memory_space<vmem>>, vector<16x512xf32>
    tpu.vector_store %arg5[%c0_6, %c0_7], %8 {strides = array<i32>} : memref<16x512xf32, #tpu.memory_space<vmem>>, vector<16x512xf32>,
    return
  }
  func.func @transform_0(%arg0: i32, %arg1: i32) -> (i32, i32) {
    %c0_i32 = arith.constant 0 : i32
    %c0_i32_0 = arith.constant 0 : i32
    return %arg0, %c0_i32 : i32, i32
  }
  func.func @transform_1(%arg0: i32, %arg1: i32) -> (i32, i32) {
    %c0_i32 = arith.constant 0 : i32
    %c0_i32_0 = arith.constant 0 : i32
    return %c0_i32, %arg1 : i32, i32
  }
  func.func @transform_2(%arg0: i32, %arg1: i32) -> (i32, i32) {
    %c0_i32 = arith.constant 0 : i32
    %c0_i32_0 = arith.constant 0 : i32
    return %c0_i32, %arg1 : i32, i32
  }
  func.func @transform_3(%arg0: i32, %arg1: i32) -> (i32, i32) {
    %c0_i32 = arith.constant 0 : i32
    return %arg0, %arg1 : i32, i32
  }
}

module attributes {stable_mosaic.version = 11 : i64} {
  func.func @_linear_kernel(%arg0: i32, %arg1: i32, %arg2: memref<16x2048xf32, #tpu.memory_space<vmem>>, %arg3: memref<2048x32xbf16, #tpu.memory_space<vmem>>, %arg4: memref<1x32xf32, #tpu.memory_space<vmem>>, %arg5: memref<16x32xf32, #tpu.memory_space<vmem>>) attributes {dimension_semantics = [#tpu.dimension_semantics<parallel>, #tpu.dimension_semantics<parallel>], iteration_bounds = array<i64: 1, 1>, scalar_prefetch = 0 : i64, scratch_operands = 0 : i64, tpu.core_type = #tpu.core_type<tc>, window_params = [{transform_indices = @transform_0, window_bounds = array<i64: 16, 2048>}, {transform_indices = @transform_1, window_bounds = array<i64: 2048, 32>}, {transform_indices = @transform_2, window_bounds = array<i64: 1, 32>}, {transform_indices = @transform_3, window_bounds = array<i64: 16, 32>}]} {
    %c0 = arith.constant 0 : index
    %c0_0 = arith.constant 0 : index
    %0 = vector.load %arg2[%c0, %c0_0] : memref<16x2048xf32, #tpu.memory_space<vmem>>, vector<16x2048xf32>
    %1 = arith.truncf %0 : vector<16x2048xf32> to vector<16x2048xbf16>
    %c0_1 = arith.constant 0 : index
    %c0_2 = arith.constant 0 : index
    %2 = vector.load %arg3[%c0_1, %c0_2] : memref<2048x32xbf16, #tpu.memory_space<vmem>>, vector<2048x32xbf16>
    %cst = arith.constant dense<0.000000e+00> : vector<16x32xf32>
    %3 = tpu.matmul %1, %2, %cst {dimension_numbers = #tpu.dot_dimension_numbers<[1], [0], [0], [1], [0, 0, 1, 1], [], []>} : vector<16x2048xbf16>, vector<2048x32xbf16>, vector<16x32xf32> -> vector<16x32xf32>
    %c0_3 = arith.constant 0 : index
    %c0_4 = arith.constant 0 : index
    %4 = vector.load %arg4[%c0_3, %c0_4] : memref<1x32xf32, #tpu.memory_space<vmem>>, vector<1x32xf32>
    %5 = vector.broadcast %4 : vector<1x32xf32> to vector<16x32xf32>
    %6 = arith.addf %3, %5 : vector<16x32xf32>
    %c0_5 = arith.constant 0 : index
    %c0_6 = arith.constant 0 : index
    %7 = vector.load %arg5[%c0_5, %c0_6] : memref<16x32xf32, #tpu.memory_space<vmem>>, vector<16x32xf32>
    tpu.vector_store %arg5[%c0_5, %c0_6], %6 {strides = array<i32>} : memref<16x32xf32, #tpu.memory_space<vmem>>, vector<16x32xf32>,
    return
  }
  func.func @transform_0(%arg0: i32, %arg1: i32) -> (i32, i32) {
    %c0_i32 = arith.constant 0 : i32
    %c0_i32_0 = arith.constant 0 : i32
    return %arg0, %c0_i32 : i32, i32
  }
  func.func @transform_1(%arg0: i32, %arg1: i32) -> (i32, i32) {
    %c0_i32 = arith.constant 0 : i32
    %c0_i32_0 = arith.constant 0 : i32
    return %c0_i32, %arg1 : i32, i32
  }
  func.func @transform_2(%arg0: i32, %arg1: i32) -> (i32, i32) {
    %c0_i32 = arith.constant 0 : i32
    %c0_i32_0 = arith.constant 0 : i32
    return %c0_i32, %arg1 : i32, i32
  }
  func.func @transform_3(%arg0: i32, %arg1: i32) -> (i32, i32) {
    %c0_i32 = arith.constant 0 : i32
    return %arg0, %arg1 : i32, i32
  }
}

module attributes {stable_mosaic.version = 11 : i64} {
  func.func @_linear_kernel(%arg0: i32, %arg1: i32, %arg2: memref<16x32xf32, #tpu.memory_space<vmem>>, %arg3: memref<32x128xbf16, #tpu.memory_space<vmem>>, %arg4: memref<1x128xf32, #tpu.memory_space<vmem>>, %arg5: memref<16x128xf32, #tpu.memory_space<vmem>>) attributes {dimension_semantics = [#tpu.dimension_semantics<parallel>, #tpu.dimension_semantics<parallel>], iteration_bounds = array<i64: 1, 1>, scalar_prefetch = 0 : i64, scratch_operands = 0 : i64, tpu.core_type = #tpu.core_type<tc>, window_params = [{transform_indices = @transform_0, window_bounds = array<i64: 16, 32>}, {transform_indices = @transform_1, window_bounds = array<i64: 32, 128>}, {transform_indices = @transform_2, window_bounds = array<i64: 1, 128>}, {transform_indices = @transform_3, window_bounds = array<i64: 16, 128>}]} {
    %c0 = arith.constant 0 : index
    %c0_0 = arith.constant 0 : index
    %0 = vector.load %arg2[%c0, %c0_0] : memref<16x32xf32, #tpu.memory_space<vmem>>, vector<16x32xf32>
    %1 = arith.truncf %0 : vector<16x32xf32> to vector<16x32xbf16>
    %c0_1 = arith.constant 0 : index
    %c0_2 = arith.constant 0 : index
    %2 = vector.load %arg3[%c0_1, %c0_2] : memref<32x128xbf16, #tpu.memory_space<vmem>>, vector<32x128xbf16>
    %cst = arith.constant dense<0.000000e+00> : vector<16x128xf32>
    %3 = tpu.matmul %1, %2, %cst {dimension_numbers = #tpu.dot_dimension_numbers<[1], [0], [0], [1], [0, 0, 1, 1], [], []>} : vector<16x32xbf16>, vector<32x128xbf16>, vector<16x128xf32> -> vector<16x128xf32>
    %c0_3 = arith.constant 0 : index
    %c0_4 = arith.constant 0 : index
    %4 = vector.load %arg4[%c0_3, %c0_4] : memref<1x128xf32, #tpu.memory_space<vmem>>, vector<1x128xf32>
    %5 = vector.broadcast %4 : vector<1x128xf32> to vector<16x128xf32>
    %6 = arith.addf %3, %5 : vector<16x128xf32>
    %c0_5 = arith.constant 0 : index
    %c0_6 = arith.constant 0 : index
    %7 = vector.load %arg5[%c0_5, %c0_6] : memref<16x128xf32, #tpu.memory_space<vmem>>, vector<16x128xf32>
    tpu.vector_store %arg5[%c0_5, %c0_6], %6 {strides = array<i32>} : memref<16x128xf32, #tpu.memory_space<vmem>>, vector<16x128xf32>,
    return
  }
  func.func @transform_0(%arg0: i32, %arg1: i32) -> (i32, i32) {
    %c0_i32 = arith.constant 0 : i32
    %c0_i32_0 = arith.constant 0 : i32
    return %arg0, %c0_i32 : i32, i32
  }
  func.func @transform_1(%arg0: i32, %arg1: i32) -> (i32, i32) {
    %c0_i32 = arith.constant 0 : i32
    %c0_i32_0 = arith.constant 0 : i32
    return %c0_i32, %arg1 : i32, i32
  }
  func.func @transform_2(%arg0: i32, %arg1: i32) -> (i32, i32) {
    %c0_i32 = arith.constant 0 : i32
    %c0_i32_0 = arith.constant 0 : i32
    return %c0_i32, %arg1 : i32, i32
  }
  func.func @transform_3(%arg0: i32, %arg1: i32) -> (i32, i32) {
    %c0_i32 = arith.constant 0 : i32
    return %arg0, %arg1 : i32, i32
  }
}

</mosaic_0001>

<llo_original>
// kernel: codegen_forward.53
$region0: #{codegen_forward.53}
  #allocation0 [shape = 'u32[]', space=smem, size = 0x4, offset = 0x4, fixed_abs, tag = 'smem constant byte address 0x4 - core index']
  #allocation1 [shape = 'u32[144,128]{1,0:T(1,128)}', space=vmem, size = 0x12000, scoped, tag = 'internal scratch']
  %s0 = inlined_call_operand.vmem [shape: f32[16,32], index: 0, kind: input, shape index: {}]
  %s1 = inlined_call_operand.vmem [shape: bf16[32,96], index: 1, kind: input, shape index: {}]
  %s2 = inlined_call_operand.vmem [shape: f32[1,96], index: 2, kind: input, shape index: {}]
  %s3 = inlined_call_operand.vmem [shape: f32[16,96], index: 3, kind: output, shape index: {}]
  %s4 = sld [smem:[#allocation0]]
  $region22: #{codegen_forward.53} parent=0
    _
  %s6 = ssub.s32 1, %s4
  %s7 = scalar_select 0, %s6, %s4
  // Predicated region
  $region2: #{codegen_forward.53} parent=0 // pred_check
    _
  $region3: #{codegen_forward.53} parent=0 // pred_check_branch
    %9 = sbr.rel (0) target = $region5
  $region4: #{codegen_forward.53} parent=0 // pred_region
    _
  $region5: #{codegen_forward.53} parent=0 // pred_fallthru
    _
  // Predicated region
  $region6: #{codegen_forward.53} parent=0 // pred_check
    _
  $region7: #{codegen_forward.53} parent=0 // pred_check_branch
    %11 = sbr.rel (0) target = $region9
  $region8: #{codegen_forward.53} parent=0 // pred_region
    _
  $region9: #{codegen_forward.53} parent=0 // pred_fallthru
    _
  // Predicated region
  $region10: #{codegen_forward.53} parent=0 // pred_check
    _
  $region11: #{codegen_forward.53} parent=0 // pred_check_branch
    %13 = sbr.rel (0) target = $region13
  $region12: #{codegen_forward.53} parent=0 // pred_region
    _
  $region13: #{codegen_forward.53} parent=0 // pred_fallthru
    _
  %v15 = vld [vmem:[%s0] sm:$0xff]
  %v16 = vld [vmem:[%s0 + $0x8] sm:$0xff]
  %v17 = vpack.c.bf16 %v16, %v15
  %v18 = vld [vmem:[%s1] sm:$0xf]
  %v19 = vld [vmem:[%s1 + $0x4] sm:$0xf]
  %v20 = vld [vmem:[%s1 + $0x8] sm:$0xf]
  %v21 = vld [vmem:[%s1 + $0xc] sm:$0xf]
  %v22 = vld [vmem:[%s2] sm:$0x1]
  %v24 = vlaneseq
  %v25 = vshrl.u32 %v24, 7
  %v26 = vsub.s32 0, %v25
  %v27 = vrot.slane %v22, %v26
  %v33 = vunpack.c.l.b16 %v18
  %v34 = vunpack.c.l.b16 %v19
  %v35 = vunpack.c.l.b16 %v20
  %v36 = vunpack.c.l.b16 %v21
  %v37 = vpack.c.b16 %v34, %v33
  %v38 = vpack.c.b16 %v36, %v35
  %vm41 = vcmask 261120
  %v43 = vsel %vm41, %v17, 0
  %45 = vmatprep.subr.bf16.mxu0 0
  %46 = vmatpush1.bf16.msra.mxu0 %v37
  %47 = vmatprep.subr.bf16.mxu0 0
  %48 = vmatpush1.bf16.msra.mxu0 %v38
  %49 = vmatprep.subr.bf16.mxu0 0
  %50 = vmatpush1.bf16.msra.mxu0 0
  %51 = vmatprep.subr.bf16.mxu0 0
  %52 = vmatpush1.bf16.msra.mxu0 0
  %53 = vmatprep.subr.bf16.mxu0 0
  %54 = vmatpush1.bf16.msra.mxu0 0
  %55 = vmatprep.subr.bf16.mxu0 0
  %56 = vmatpush1.bf16.msra.mxu0 0
  %57 = vmatprep.subr.bf16.mxu0 0
  %58 = vmatpush1.bf16.msra.mxu0 0
  %59 = vmatprep.subr.bf16.mxu0 0
  %60 = vmatpush1.bf16.msra.mxu0 0
  %61 = vmatprep.subr.bf16.mxu0 0
  %62 = vmatpush1.bf16.msra.mxu0 0
  %63 = vmatprep.subr.bf16.mxu0 0
  %64 = vmatpush1.bf16.msra.mxu0 0
  %65 = vmatprep.subr.bf16.mxu0 0
  %66 = vmatpush1.bf16.msra.mxu0 0
  %67 = vmatprep.subr.bf16.mxu0 0
  %68 = vmatpush1.bf16.msra.mxu0 0
  %69 = vmatprep.subr.bf16.mxu0 0
  %70 = vmatpush1.bf16.msra.mxu0 0
  %71 = vmatprep.subr.bf16.mxu0 0
  %72 = vmatpush1.bf16.msra.mxu0 0
  %73 = vmatprep.subr.bf16.mxu0 0
  %74 = vmatpush1.bf16.msra.mxu0 0
  %75 = vmatprep.subr.bf16.mxu0 0
  %76 = vmatpush1.bf16.msra.mxu0 0
  %77 = vmatprep.mubr.bf16.mxu0 0
  %78 = vmatmul.mubr.bf16.gmra.mrb[0].mxu0 %v43
  %v79 = vpop.f32.mrb[0].mxu0
  %v80 = vadd.f32 %v27, %v79
  %v81 = vpop.f32.mrb[0].mxu0
  %v82 = vpop.f32.mrb[0].mxu0
  %v83 = vadd.f32 %v27, %v82
  %v84 = vpop.f32.mrb[0].mxu0
  %85 = vdwg.mxu0
  %vm86 = vcmask 785408
  %87 = vst.msk [vmem:[%s3] sm:$0xff] %vm86, %v80
  %88 = vst.msk [vmem:[%s3 + $0x8] sm:$0xff] %vm86, %v83
  // Predicated region
  $region14: #{codegen_forward.53} parent=0 // pred_check
    _
  $region15: #{codegen_forward.53} parent=0 // pred_check_branch
    %90 = sbr.rel (0) target = $region17
  $region16: #{codegen_forward.53} parent=0 // pred_region
    _
  $region17: #{codegen_forward.53} parent=0 // pred_fallthru
    _
  // Predicated region
  $region18: #{codegen_forward.53} parent=0 // pred_check
    _
  $region19: #{codegen_forward.53} parent=0 // pred_check_branch
    %92 = sbr.rel (0) target = $region21
  $region20: #{codegen_forward.53} parent=0 // pred_region
    _
  $region21: #{codegen_forward.53} parent=0 // pred_fallthru
    _

// kernel: codegen_forward.56
$region0: #{codegen_forward.56}
  #allocation0 [shape = 'u32[]', space=smem, size = 0x4, offset = 0x4, fixed_abs, tag = 'smem constant byte address 0x4 - core index']
  #allocation1 [shape = 'u32[144,128]{1,0:T(1,128)}', space=vmem, size = 0x12000, scoped, tag = 'internal scratch']
  %s0 = inlined_call_operand.vmem [shape: f32[16,32], index: 0, kind: input, shape index: {}]
  %s1 = inlined_call_operand.vmem [shape: f32[16,32], index: 1, kind: input, shape index: {}]
  %s2 = inlined_call_operand.vmem [shape: f32[1,32], index: 2, kind: input, shape index: {}]
  %s3 = inlined_call_operand.vmem [shape: f32[1,32], index: 3, kind: input, shape index: {}]
  %s4 = inlined_call_operand.vmem [shape: f32[16,32], index: 4, kind: output, shape index: {}]
  %s5 = sld [smem:[#allocation0]]
  $region26: #{codegen_forward.56} parent=0
    _
  %s7 = ssub.s32 1, %s5
  %s8 = scalar_select 0, %s7, %s5
  // Predicated region
  $region2: #{codegen_forward.56} parent=0 // pred_check
    _
  $region3: #{codegen_forward.56} parent=0 // pred_check_branch
    %10 = sbr.rel (0) target = $region5
  $region4: #{codegen_forward.56} parent=0 // pred_region
    _
  $region5: #{codegen_forward.56} parent=0 // pred_fallthru
    _
  // Predicated region
  $region6: #{codegen_forward.56} parent=0 // pred_check
    _
  $region7: #{codegen_forward.56} parent=0 // pred_check_branch
    %12 = sbr.rel (0) target = $region9
  $region8: #{codegen_forward.56} parent=0 // pred_region
    _
  $region9: #{codegen_forward.56} parent=0 // pred_fallthru
    _
  // Predicated region
  $region10: #{codegen_forward.56} parent=0 // pred_check
    _
  $region11: #{codegen_forward.56} parent=0 // pred_check_branch
    %14 = sbr.rel (0) target = $region13
  $region12: #{codegen_forward.56} parent=0 // pred_region
    _
  $region13: #{codegen_forward.56} parent=0 // pred_fallthru
    _
  // Predicated region
  $region14: #{codegen_forward.56} parent=0 // pred_check
    _
  $region15: #{codegen_forward.56} parent=0 // pred_check_branch
    %16 = sbr.rel (0) target = $region17
  $region16: #{codegen_forward.56} parent=0 // pred_region
    _
  $region17: #{codegen_forward.56} parent=0 // pred_fallthru
    _
  %v17 = vld [vmem:[%s0] sm:$0xff]
  %v18 = vld [vmem:[%s0 + $0x8] sm:$0xff]
  %v19 = vld [vmem:[%s1] sm:$0xff]
  %v20 = vld [vmem:[%s1 + $0x8] sm:$0xff]
  %v21 = vadd.f32 %v17, %v19
  %v22 = vadd.f32 %v18, %v20
  %vm23 = vcmask 261120
  %v24 = vsel %vm23, %v21, 0.0
  %25 = vadd.xlane.f32.xlu0 %v24
  %v26 = vpop.xlane.xlu0 %25
  %v27 = vsel %vm23, %v22, 0.0
  %28 = vadd.xlane.f32.xlu0 %v27
  %v29 = vpop.xlane.xlu0 %28
  %v30 = vrcp.pop 32.0
  %v31 = vmul.f32 %v26, %v30
  %v32 = vmul.f32 %v29, %v30
  %v33 = vsub.f32 %v21, %v31
  %v34 = vsub.f32 %v22, %v32
  %v35 = vmul.f32 %v33, %v33
  %v36 = vmul.f32 %v34, %v34
  %v37 = vsel %vm23, %v35, 0.0
  %38 = vadd.xlane.f32.xlu0 %v37
  %v39 = vpop.xlane.xlu0 %38
  %v40 = vsel %vm23, %v36, 0.0
  %41 = vadd.xlane.f32.xlu0 %v40
  %v42 = vpop.xlane.xlu0 %41
  %v43 = vmul.f32 %v39, %v30
  %v44 = vmul.f32 %v42, %v30
  %v45 = vadd.f32 %v43, 1e-05
  %v46 = vadd.f32 %v44, 1e-05
  %v47 = vrsqrt.pop %v45
  %v48 = vrsqrt.pop %v46
  %v49 = vmul.f32 %v33, %v47
  %v50 = vmul.f32 %v34, %v48
  %v51 = vld [vmem:[%s2] sm:$0x1]
  %v53 = vlaneseq
  %v54 = vshrl.u32 %v53, 7
  %v55 = vsub.s32 0, %v54
  %v56 = vrot.slane %v51, %v55
  %v58 = vmul.f32 %v49, %v56
  %v59 = vmul.f32 %v50, %v56
  %v60 = vld [vmem:[%s3] sm:$0x1]
  %v62 = vlaneseq
  %v63 = vshrl.u32 %v62, 7
  %v64 = vsub.s32 0, %v63
  %v65 = vrot.slane %v60, %v64
  %v67 = vadd.f32 %v58, %v65
  %v68 = vadd.f32 %v59, %v65
  %69 = vst.msk [vmem:[%s4] sm:$0xff] %vm23, %v67
  %70 = vst.msk [vmem:[%s4 + $0x8] sm:$0xff] %vm23, %v68
  // Predicated region
  $region18: #{codegen_forward.56} parent=0 // pred_check
    _
  $region19: #{codegen_forward.56} parent=0 // pred_check_branch
    %72 = sbr.rel (0) target = $region21
  $region20: #{codegen_forward.56} parent=0 // pred_region
    _
  $region21: #{codegen_forward.56} parent=0 // pred_fallthru
    _
  // Predicated region
  $region22: #{codegen_forward.56} parent=0 // pred_check
    _
  $region23: #{codegen_forward.56} parent=0 // pred_check_branch
    %74 = sbr.rel (0) target = $region25
  $region24: #{codegen_forward.56} parent=0 // pred_region
    _
  $region25: #{codegen_forward.56} parent=0 // pred_fallthru
    _

// kernel: codegen_forward.55
$region0: #{codegen_forward.55}
  #allocation0 [shape = 'u32[]', space=smem, size = 0x4, offset = 0x4, fixed_abs, tag = 'smem constant byte address 0x4 - core index']
  #allocation1 [shape = 'u32[144,128]{1,0:T(1,128)}', space=vmem, size = 0x12000, scoped, tag = 'internal scratch']
  %s0 = inlined_call_operand.vmem [shape: f32[16,32], index: 0, kind: input, shape index: {}]
  %s1 = inlined_call_operand.vmem [shape: bf16[32,32], index: 1, kind: input, shape index: {}]
  %s2 = inlined_call_operand.vmem [shape: f32[1,32], index: 2, kind: input, shape index: {}]
  %s3 = inlined_call_operand.vmem [shape: f32[16,32], index: 3, kind: output, shape index: {}]
  %s4 = sld [smem:[#allocation0]]
  $region22: #{codegen_forward.55} parent=0
    _
  %s6 = ssub.s32 1, %s4
  %s7 = scalar_select 0, %s6, %s4
  // Predicated region
  $region2: #{codegen_forward.55} parent=0 // pred_check
    _
  $region3: #{codegen_forward.55} parent=0 // pred_check_branch
    %9 = sbr.rel (0) target = $region5
  $region4: #{codegen_forward.55} parent=0 // pred_region
    _
  $region5: #{codegen_forward.55} parent=0 // pred_fallthru
    _
  // Predicated region
  $region6: #{codegen_forward.55} parent=0 // pred_check
    _
  $region7: #{codegen_forward.55} parent=0 // pred_check_branch
    %11 = sbr.rel (0) target = $region9
  $region8: #{codegen_forward.55} parent=0 // pred_region
    _
  $region9: #{codegen_forward.55} parent=0 // pred_fallthru
    _
  // Predicated region
  $region10: #{codegen_forward.55} parent=0 // pred_check
    _
  $region11: #{codegen_forward.55} parent=0 // pred_check_branch
    %13 = sbr.rel (0) target = $region13
  $region12: #{codegen_forward.55} parent=0 // pred_region
    _
  $region13: #{codegen_forward.55} parent=0 // pred_fallthru
    _
  %v15 = vld [vmem:[%s0] sm:$0xff]
  %v16 = vld [vmem:[%s0 + $0x8] sm:$0xff]
  %v17 = vpack.c.bf16 %v16, %v15
  %v18 = vld [vmem:[%s1] sm:$0xf]
  %v19 = vld [vmem:[%s1 + $0x4] sm:$0xf]
  %v20 = vld [vmem:[%s1 + $0x8] sm:$0xf]
  %v21 = vld [vmem:[%s1 + $0xc] sm:$0xf]
  %v22 = vld [vmem:[%s2] sm:$0x1]
  %v24 = vlaneseq
  %v25 = vshrl.u32 %v24, 7
  %v26 = vsub.s32 0, %v25
  %v27 = vrot.slane %v22, %v26
  %v33 = vunpack.c.l.b16 %v18
  %v34 = vunpack.c.l.b16 %v19
  %v35 = vunpack.c.l.b16 %v20
  %v36 = vunpack.c.l.b16 %v21
  %v37 = vpack.c.b16 %v34, %v33
  %v38 = vpack.c.b16 %v36, %v35
  %vm41 = vcmask 261120
  %v43 = vsel %vm41, %v17, 0
  %45 = vmatprep.subr.bf16.mxu0 0
  %46 = vmatpush1.bf16.msra.mxu0 %v37
  %47 = vmatprep.subr.bf16.mxu0 0
  %48 = vmatpush1.bf16.msra.mxu0 %v38
  %49 = vmatprep.subr.bf16.mxu0 0
  %50 = vmatpush1.bf16.msra.mxu0 0
  %51 = vmatprep.subr.bf16.mxu0 0
  %52 = vmatpush1.bf16.msra.mxu0 0
  %53 = vmatprep.subr.bf16.mxu0 0
  %54 = vmatpush1.bf16.msra.mxu0 0
  %55 = vmatprep.subr.bf16.mxu0 0
  %56 = vmatpush1.bf16.msra.mxu0 0
  %57 = vmatprep.subr.bf16.mxu0 0
  %58 = vmatpush1.bf16.msra.mxu0 0
  %59 = vmatprep.subr.bf16.mxu0 0
  %60 = vmatpush1.bf16.msra.mxu0 0
  %61 = vmatprep.subr.bf16.mxu0 0
  %62 = vmatpush1.bf16.msra.mxu0 0
  %63 = vmatprep.subr.bf16.mxu0 0
  %64 = vmatpush1.bf16.msra.mxu0 0
  %65 = vmatprep.subr.bf16.mxu0 0
  %66 = vmatpush1.bf16.msra.mxu0 0
  %67 = vmatprep.subr.bf16.mxu0 0
  %68 = vmatpush1.bf16.msra.mxu0 0
  %69 = vmatprep.subr.bf16.mxu0 0
  %70 = vmatpush1.bf16.msra.mxu0 0
  %71 = vmatprep.subr.bf16.mxu0 0
  %72 = vmatpush1.bf16.msra.mxu0 0
  %73 = vmatprep.subr.bf16.mxu0 0
  %74 = vmatpush1.bf16.msra.mxu0 0
  %75 = vmatprep.subr.bf16.mxu0 0
  %76 = vmatpush1.bf16.msra.mxu0 0
  %77 = vmatprep.mubr.bf16.mxu0 0
  %78 = vmatmul.mubr.bf16.gmra.mrb[0].mxu0 %v43
  %v79 = vpop.f32.mrb[0].mxu0
  %v80 = vadd.f32 %v27, %v79
  %v81 = vpop.f32.mrb[0].mxu0
  %v82 = vpop.f32.mrb[0].mxu0
  %v83 = vadd.f32 %v27, %v82
  %v84 = vpop.f32.mrb[0].mxu0
  %85 = vdwg.mxu0
  %86 = vst.msk [vmem:[%s3] sm:$0xff] %vm41, %v80
  %87 = vst.msk [vmem:[%s3 + $0x8] sm:$0xff] %vm41, %v83
  // Predicated region
  $region14: #{codegen_forward.55} parent=0 // pred_check
    _
  $region15: #{codegen_forward.55} parent=0 // pred_check_branch
    %89 = sbr.rel (0) target = $region17
  $region16: #{codegen_forward.55} parent=0 // pred_region
    _
  $region17: #{codegen_forward.55} parent=0 // pred_fallthru
    _
  // Predicated region
  $region18: #{codegen_forward.55} parent=0 // pred_check
    _
  $region19: #{codegen_forward.55} parent=0 // pred_check_branch
    %91 = sbr.rel (0) target = $region21
  $region20: #{codegen_forward.55} parent=0 // pred_region
    _
  $region21: #{codegen_forward.55} parent=0 // pred_fallthru
    _

// kernel: codegen_forward.54
$region0: #{codegen_forward.54}
  #allocation0 [shape = 'u32[]', space=smem, size = 0x4, offset = 0x4, fixed_abs, tag = 'smem constant byte address 0x4 - core index']
  #allocation1 [shape = 'u32[144,128]{1,0:T(1,128)}', space=vmem, size = 0x12000, scoped, tag = 'internal scratch']
  %s0 = inlined_call_operand.vmem [shape: f32[2,8,96], index: 0, kind: input, shape index: {}]
  %s1 = inlined_call_operand.vmem [shape: f32[2,8,32], index: 1, kind: output, shape index: {}]
  %s2 = sld [smem:[#allocation0]]
  $region37: #{codegen_forward.54} parent=0
    _
  %s4 = ssub.s32 1, %s2
  %s5 = scalar_select 0, %s4, %s2
  loop: start=0, step=1, limit=4
  $region2: #{codegen_forward.54} parent=0 // loop_pre_header
    _
  $region3: #{codegen_forward.54} parent=0 // loop_header
    %s7 = sphi 0, %s11
    %p8 = scmp.ge.s32.totalorder %s7, 4
    %s17 = sphi 0, %s19
    %s20 = sphi 0, %s17
    %s21 = sphi 0, %s20
    %s37 = sphi 0, %s21
    %s43 = sphi 0, %s45
    %s46 = sphi 0, %s43
    %s47 = sphi 0, %s46
    %s63 = sphi 0, %s47
  $region4: #{codegen_forward.54} parent=0 // loop_header_branch
    %10 = sbr.rel (%p8) target = $region8
  $region5: #{codegen_forward.54} parent=0 // loop_body
    %s12 = ssub.s32 %s7, 1
    %s13 = ssub.s32 %s7, 2
    %s14 = sadd.s32 %s7, 1
    %s15 = ssub.s32 %s7, %s14
    %p16 = scmp.eq.s32.totalorder %s15, 0
    %s18 = sadd.s32 %s17, 1
    %s19 = scalar_select %p16, %s17, %s18
    %p22 = pneg %p16
    %p23 = scmp.eq.s32.totalorder %s7, 1
    %p24 = por %p22, %p23
    %p25 = scmp.ne.s32.totalorder %s17, %s20
    %p26 = scmp.eq.s32.totalorder %s7, 0
    %p27 = por %p25, %p26
    %p28 = scmp.ne.s32.totalorder %s17, %s20
    %p29 = scmp.eq.s32.totalorder %s12, 1
    %p30 = por %p28, %p29
    %p31 = scmp.ne.s32.totalorder %s20, %s21
    %p32 = scmp.eq.s32.totalorder %s12, 0
    %p33 = por %p31, %p32
    %p34 = scmp.ne.s32.totalorder %s20, %s21
    %p35 = scmp.eq.s32.totalorder %s13, 1
    %p36 = por %p34, %p35
    %p38 = scmp.ne.s32.totalorder %s21, %s37
    %p39 = scmp.eq.s32.totalorder %s13, 0
    %p40 = por %p38, %p39
    %s41 = ssub.s32 %s7, %s14
    %p42 = scmp.eq.s32.totalorder %s41, 0
    %s44 = sadd.s32 %s43, 1
    %s45 = scalar_select %p42, %s43, %s44
    %p48 = pneg %p42
    %p49 = scmp.eq.s32.totalorder %s7, 1
    %p50 = por %p48, %p49
    %p51 = scmp.ne.s32.totalorder %s43, %s46
    %p52 = scmp.eq.s32.totalorder %s7, 0
    %p53 = por %p51, %p52
    %p54 = scmp.ne.s32.totalorder %s43, %s46
    %p55 = scmp.eq.s32.totalorder %s12, 1
    %p56 = por %p54, %p55
    %p57 = scmp.ne.s32.totalorder %s46, %s47
    %p58 = scmp.eq.s32.totalorder %s12, 0
    %p59 = por %p57, %p58
    %p60 = scmp.ne.s32.totalorder %s46, %s47
    %p61 = scmp.eq.s32.totalorder %s13, 1
    %p62 = por %p60, %p61
    %p64 = scmp.ne.s32.totalorder %s47, %s63
    %p65 = scmp.eq.s32.totalorder %s13, 0
    %p66 = por %p64, %p65
    %p67 = scmp.le.s32.totalorder 1, %s7
    %p68 = scmp.lt.s32.totalorder %s7, 3
    %p69 = pnand %p67, %p68
    %p70 = pneg %p69
    // Predicated region
    $region9: #{codegen_forward.54} parent=5 // pred_check
      _
    $region10: #{codegen_forward.54} parent=5 // pred_check_branch
      %72 = sbr.rel (%p69) target = $region12
    $region11: #{codegen_forward.54} parent=5 // pred_region
      %s73 = ssub.s32 %s7, 1
    $region12: #{codegen_forward.54} parent=5 // pred_fallthru
      _
    %p74 = scmp.lt.s32.totalorder %s7, 2
    // Predicated region
    $region13: #{codegen_forward.54} parent=5 // pred_check
      %p75 = pneg %p74
    $region14: #{codegen_forward.54} parent=5 // pred_check_branch
      %77 = sbr.rel (%p75) target = $region16
    $region15: #{codegen_forward.54} parent=5 // pred_region
      // Predicated region
      $region17: #{codegen_forward.54} parent=15 // pred_check
        %p78 = pneg %p27
      $region18: #{codegen_forward.54} parent=15 // pred_check_branch
        %80 = sbr.rel (%p78) target = $region20
      $region19: #{codegen_forward.54} parent=15 // pred_region
        %p81 = scmp.lt.s32.totalorder %s7, 1
        %s82 = scalar_select %p81, %s7, 1
        %s83 = smul.addr %s82, 8
        %s84 = scalar_lea.vmem %s0, %s83
      $region20: #{codegen_forward.54} parent=15 // pred_fallthru
        _
    $region16: #{codegen_forward.54} parent=5 // pred_fallthru
      _
    %p85 = scmp.le.s32.totalorder 1, %s7
    %p86 = scmp.lt.s32.totalorder %s7, 3
    %p87 = pnand %p85, %p86
    %p88 = pneg %p87
    // Predicated region
    $region21: #{codegen_forward.54} parent=5 // pred_check
      _
    $region22: #{codegen_forward.54} parent=5 // pred_check_branch
      %90 = sbr.rel (%p87) target = $region24
    $region23: #{codegen_forward.54} parent=5 // pred_region
      %s91 = ssub.s32 %s7, 1
      %p92 = scmp.lt.s32.totalorder %s12, 1
      %s93 = scalar_select %p92, %s12, 1
      %s94 = smul.addr %s93, 8
      %s95 = scalar_lea.vmem %s0, %s94
      %p96 = pneg %p33
      %p97 = pneg %p30
      %p98 = pneg %p59
      %p99 = pneg %p56
      %p100 = scmp.lt.s32.totalorder %s12, 1
      %s101 = scalar_select %p100, %s12, 1
      %s102 = smul.addr %s101, 8
      %s103 = scalar_lea.vmem %s1, %s102
      %p104 = scmp.lt.s32.totalorder %s12, 1
      %s105 = scalar_select %p104, %s12, 1
      %s106 = smul.addr %s105, 8
      %s107 = scalar_lea.vmem %s0, %s106
      %p108 = scmp.lt.s32.totalorder %s12, 1
      %s109 = scalar_select %p108, %s12, 1
      %s110 = smul.addr %s109, 8
      %s111 = scalar_lea.vmem %s1, %s110
      %v113 = vld [vmem:[%s107] sm:$0xff]
      %v114 = vlaneseq
      %v115 = vshrl.u32 %v114, 7
      %v116 = vlaneseq
      %v117 = vand.u32 %v116, 127
      %vm118 = vcmp.gt.s32.totalorder %v117, %v115
      %v119 = vsel %vm118, -1e+30, 0.0
      %v120 = vpack.c.bf16 %v113, %v113
      %122 = vrot.lane.b32.xlu0 %v120, 96
      %v123 = vpop.permute.xlu0 %122
      %vm124 = vcmask 64512
      %v126 = vsel %vm124, %v120, 0
      %v129 = vsel %vm124, %v123, 0
      %131 = vmatprep.subr.bf16.mxu0 0
      %132 = vmatpush1.bf16.xpose.msra.mxu0 %v129
      %133 = vmatprep.subr.bf16.mxu0 0
      %134 = vmatpush1.bf16.xpose.msra.mxu0 0
      %135 = vmatprep.subr.bf16.mxu0 0
      %136 = vmatpush1.bf16.xpose.msra.mxu0 0
      %137 = vmatprep.subr.bf16.mxu0 0
      %138 = vmatpush1.bf16.xpose.msra.mxu0 0
      %139 = vmatprep.subr.bf16.mxu0 0
      %140 = vmatpush1.bf16.xpose.msra.mxu0 0
      %141 = vmatprep.subr.bf16.mxu0 0
      %142 = vmatpush1.bf16.xpose.msra.mxu0 0
      %143 = vmatprep.subr.bf16.mxu0 0
      %144 = vmatpush1.bf16.xpose.msra.mxu0 0
      %145 = vmatprep.subr.bf16.mxu0 0
      %146 = vmatpush1.bf16.xpose.msra.mxu0 0
      %147 = vmatprep.subr.bf16.mxu0 0
      %148 = vmatpush1.bf16.xpose.msra.mxu0 0
      %149 = vmatprep.subr.bf16.mxu0 0
      %150 = vmatpush1.bf16.xpose.msra.mxu0 0
      %151 = vmatprep.subr.bf16.mxu0 0
      %152 = vmatpush1.bf16.xpose.msra.mxu0 0
      %153 = vmatprep.subr.bf16.mxu0 0
      %154 = vmatpush1.bf16.xpose.msra.mxu0 0
      %155 = vmatprep.subr.bf16.mxu0 0
      %156 = vmatpush1.bf16.xpose.msra.mxu0 0
      %157 = vmatprep.subr.bf16.mxu0 0
      %158 = vmatpush1.bf16.xpose.msra.mxu0 0
      %159 = vmatprep.subr.bf16.mxu0 0
      %160 = vmatpush1.bf16.xpose.msra.mxu0 0
      %161 = vmatprep.subr.bf16.mxu0 0
      %162 = vmatpush1.bf16.xpose.msra.mxu0 0
      %163 = vmatprep.mubr.bf16.mxu0 0
      %164 = vmatmul.mubr.bf16.gmra.mrb[0].mxu0 %v126
      %v165 = vpop.f32.mrb[0].mxu0
      %v166 = vadd.f32 0.0, %v165
      %v167 = vpop.f32.mrb[0].mxu0
      %v168 = vpop.f32.mrb[0].mxu0
      %v169 = vpop.f32.mrb[0].mxu0
      %170 = vdwg.mxu0
      %v171 = vmul.f32 %v166, 0.35355338
      %v172 = vadd.f32 %v171, %v119
      %v173 = vsel %vm124, %v172, -inf
      %174 = vmax.xlane.f32.xlu0 %v173
      %v175 = vpop.xlane.xlu0 %174
      %v176 = vsub.f32 %v172, %v175
      %v177 = vmul.f32 %v176, 1.442695
      %v178 = vpow.pop %v177
      %v179 = vsel %vm124, %v178, 0.0
      %180 = vadd.xlane.f32.xlu0 %v179
      %v181 = vpop.xlane.xlu0 %180
      %v182 = vrcp.pop %v181
      %v183 = vmul.f32 %v178, %v182
      %v184 = vpack.c.bf16 %v183, %v183
      %185 = vrot.lane.b32.xlu0 %v120, 64
      %v186 = vpop.permute.xlu0 %185
      %v188 = vsel %vm124, %v184, 0
      %vm190 = vcmask 1043456
      %v192 = vsel %vm190, %v186, 0
      %194 = vmatprep.subr.bf16.mxu0 0
      %195 = vmatpush1.bf16.msra.mxu0 %v192
      %196 = vmatprep.subr.bf16.mxu0 0
      %197 = vmatpush1.bf16.msra.mxu0 0
      %198 = vmatprep.subr.bf16.mxu0 0
      %199 = vmatpush1.bf16.msra.mxu0 0
      %200 = vmatprep.subr.bf16.mxu0 0
      %201 = vmatpush1.bf16.msra.mxu0 0
      %202 = vmatprep.subr.bf16.mxu0 0
      %203 = vmatpush1.bf16.msra.mxu0 0
      %204 = vmatprep.subr.bf16.mxu0 0
      %205 = vmatpush1.bf16.msra.mxu0 0
      %206 = vmatprep.subr.bf16.mxu0 0
      %207 = vmatpush1.bf16.msra.mxu0 0
      %208 = vmatprep.subr.bf16.mxu0 0
      %209 = vmatpush1.bf16.msra.mxu0 0
      %210 = vmatprep.subr.bf16.mxu0 0
      %211 = vmatpush1.bf16.msra.mxu0 0
      %212 = vmatprep.subr.bf16.mxu0 0
      %213 = vmatpush1.bf16.msra.mxu0 0
      %214 = vmatprep.subr.bf16.mxu0 0
      %215 = vmatpush1.bf16.msra.mxu0 0
      %216 = vmatprep.subr.bf16.mxu0 0
      %217 = vmatpush1.bf16.msra.mxu0 0
      %218 = vmatprep.subr.bf16.mxu0 0
      %219 = vmatpush1.bf16.msra.mxu0 0
      %220 = vmatprep.subr.bf16.mxu0 0
      %221 = vmatpush1.bf16.msra.mxu0 0
      %222 = vmatprep.subr.bf16.mxu0 0
      %223 = vmatpush1.bf16.msra.mxu0 0
      %224 = vmatprep.subr.bf16.mxu0 0
      %225 = vmatpush1.bf16.msra.mxu0 0
      %226 = vmatprep.mubr.bf16.mxu0 0
      %227 = vmatmul.mubr.bf16.gmra.mrb[0].mxu0 %v188
      %v228 = vpop.f32.mrb[0].mxu0
      %v229 = vadd.f32 0.0, %v228
      %v230 = vpop.f32.mrb[0].mxu0
      %v231 = vpop.f32.mrb[0].mxu0
      %v232 = vpop.f32.mrb[0].mxu0
      %233 = vdwg.mxu0
      %234 = vrot.lane.b32.xlu0 %v120, 120
      %v235 = vpop.permute.xlu0 %234
      %236 = vrot.lane.b32.xlu0 %v120, 88
      %v237 = vpop.permute.xlu0 %236
      %v239 = vsel %vm124, %v235, 0
      %v242 = vsel %vm124, %v237, 0
      %244 = vmatprep.subr.bf16.mxu0 0
      %245 = vmatpush1.bf16.xpose.msra.mxu0 %v242
      %246 = vmatprep.subr.bf16.mxu0 0
      %247 = vmatpush1.bf16.xpose.msra.mxu0 0
      %248 = vmatprep.subr.bf16.mxu0 0
      %249 = vmatpush1.bf16.xpose.msra.mxu0 0
      %250 = vmatprep.subr.bf16.mxu0 0
      %251 = vmatpush1.bf16.xpose.msra.mxu0 0
      %252 = vmatprep.subr.bf16.mxu0 0
      %253 = vmatpush1.bf16.xpose.msra.mxu0 0
      %254 = vmatprep.subr.bf16.mxu0 0
      %255 = vmatpush1.bf16.xpose.msra.mxu0 0
      %256 = vmatprep.subr.bf16.mxu0 0
      %257 = vmatpush1.bf16.xpose.msra.mxu0 0
      %258 = vmatprep.subr.bf16.mxu0 0
      %259 = vmatpush1.bf16.xpose.msra.mxu0 0
      %260 = vmatprep.subr.bf16.mxu0 0
      %261 = vmatpush1.bf16.xpose.msra.mxu0 0
      %262 = vmatprep.subr.bf16.mxu0 0
      %263 = vmatpush1.bf16.xpose.msra.mxu0 0
      %264 = vmatprep.subr.bf16.mxu0 0
      %265 = vmatpush1.bf16.xpose.msra.mxu0 0
      %266 = vmatprep.subr.bf16.mxu0 0
      %267 = vmatpush1.bf16.xpose.msra.mxu0 0
      %268 = vmatprep.subr.bf16.mxu0 0
      %269 = vmatpush1.bf16.xpose.msra.mxu0 0
      %270 = vmatprep.subr.bf16.mxu0 0
      %271 = vmatpush1.bf16.xpose.msra.mxu0 0
      %272 = vmatprep.subr.bf16.mxu0 0
      %273 = vmatpush1.bf16.xpose.msra.mxu0 0
      %274 = vmatprep.subr.bf16.mxu0 0
      %275 = vmatpush1.bf16.xpose.msra.mxu0 0
      %276 = vmatprep.mubr.bf16.mxu0 0
      %277 = vmatmul.mubr.bf16.gmra.mrb[0].mxu0 %v239
      %v278 = vpop.f32.mrb[0].mxu0
      %v279 = vadd.f32 0.0, %v278
      %v280 = vpop.f32.mrb[0].mxu0
      %v281 = vpop.f32.mrb[0].mxu0
      %v282 = vpop.f32.mrb[0].mxu0
      %283 = vdwg.mxu0
      %v284 = vmul.f32 %v279, 0.35355338
      %v285 = vadd.f32 %v284, %v119
      %v286 = vsel %vm124, %v285, -inf
      %287 = vmax.xlane.f32.xlu0 %v286
      %v288 = vpop.xlane.xlu0 %287
      %v289 = vsub.f32 %v285, %v288
      %v290 = vmul.f32 %v289, 1.442695
      %v291 = vpow.pop %v290
      %v292 = vsel %vm124, %v291, 0.0
      %293 = vadd.xlane.f32.xlu0 %v292
      %v294 = vpop.xlane.xlu0 %293
      %v295 = vrcp.pop %v294
      %v296 = vmul.f32 %v291, %v295
      %v297 = vpack.c.bf16 %v296, %v296
      %298 = vrot.lane.b32.xlu0 %v120, 56
      %v299 = vpop.permute.xlu0 %298
      %v301 = vsel %vm124, %v297, 0
      %v304 = vsel %vm190, %v299, 0
      %306 = vmatprep.subr.bf16.mxu0 0
      %307 = vmatpush1.bf16.msra.mxu0 %v304
      %308 = vmatprep.subr.bf16.mxu0 0
      %309 = vmatpush1.bf16.msra.mxu0 0
      %310 = vmatprep.subr.bf16.mxu0 0
      %311 = vmatpush1.bf16.msra.mxu0 0
      %312 = vmatprep.subr.bf16.mxu0 0
      %313 = vmatpush1.bf16.msra.mxu0 0
      %314 = vmatprep.subr.bf16.mxu0 0
      %315 = vmatpush1.bf16.msra.mxu0 0
      %316 = vmatprep.subr.bf16.mxu0 0
      %317 = vmatpush1.bf16.msra.mxu0 0
      %318 = vmatprep.subr.bf16.mxu0 0
      %319 = vmatpush1.bf16.msra.mxu0 0
      %320 = vmatprep.subr.bf16.mxu0 0
      %321 = vmatpush1.bf16.msra.mxu0 0
      %322 = vmatprep.subr.bf16.mxu0 0
      %323 = vmatpush1.bf16.msra.mxu0 0
      %324 = vmatprep.subr.bf16.mxu0 0
      %325 = vmatpush1.bf16.msra.mxu0 0
      %326 = vmatprep.subr.bf16.mxu0 0
      %327 = vmatpush1.bf16.msra.mxu0 0
      %328 = vmatprep.subr.bf16.mxu0 0
      %329 = vmatpush1.bf16.msra.mxu0 0
      %330 = vmatprep.subr.bf16.mxu0 0
      %331 = vmatpush1.bf16.msra.mxu0 0
      %332 = vmatprep.subr.bf16.mxu0 0
      %333 = vmatpush1.bf16.msra.mxu0 0
      %334 = vmatprep.subr.bf16.mxu0 0
      %335 = vmatpush1.bf16.msra.mxu0 0
      %336 = vmatprep.subr.bf16.mxu0 0
      %337 = vmatpush1.bf16.msra.mxu0 0
      %338 = vmatprep.mubr.bf16.mxu0 0
      %339 = vmatmul.mubr.bf16.gmra.mrb[0].mxu0 %v301
      %v340 = vpop.f32.mrb[0].mxu0
      %v341 = vadd.f32 0.0, %v340
      %v342 = vpop.f32.mrb[0].mxu0
      %v343 = vpop.f32.mrb[0].mxu0
      %v344 = vpop.f32.mrb[0].mxu0
      %345 = vdwg.mxu0
      %346 = vrot.lane.b32.xlu0 %v120, 112
      %v347 = vpop.permute.xlu0 %346
      %348 = vrot.lane.b32.xlu0 %v120, 80
      %v349 = vpop.permute.xlu0 %348
      %v351 = vsel %vm124, %v347, 0
      %v354 = vsel %vm124, %v349, 0
      %356 = vmatprep.subr.bf16.mxu0 0
      %357 = vmatpush1.bf16.xpose.msra.mxu0 %v354
      %358 = vmatprep.subr.bf16.mxu0 0
      %359 = vmatpush1.bf16.xpose.msra.mxu0 0
      %360 = vmatprep.subr.bf16.mxu0 0
      %361 = vmatpush1.bf16.xpose.msra.mxu0 0
      %362 = vmatprep.subr.bf16.mxu0 0
      %363 = vmatpush1.bf16.xpose.msra.mxu0 0
      %364 = vmatprep.subr.bf16.mxu0 0
      %365 = vmatpush1.bf16.xpose.msra.mxu0 0
      %366 = vmatprep.subr.bf16.mxu0 0
      %367 = vmatpush1.bf16.xpose.msra.mxu0 0
      %368 = vmatprep.subr.bf16.mxu0 0
      %369 = vmatpush1.bf16.xpose.msra.mxu0 0
      %370 = vmatprep.subr.bf16.mxu0 0
      %371 = vmatpush1.bf16.xpose.msra.mxu0 0
      %372 = vmatprep.subr.bf16.mxu0 0
      %373 = vmatpush1.bf16.xpose.msra.mxu0 0
      %374 = vmatprep.subr.bf16.mxu0 0
      %375 = vmatpush1.bf16.xpose.msra.mxu0 0
      %376 = vmatprep.subr.bf16.mxu0 0
      %377 = vmatpush1.bf16.xpose.msra.mxu0 0
      %378 = vmatprep.subr.bf16.mxu0 0
      %379 = vmatpush1.bf16.xpose.msra.mxu0 0
      %380 = vmatprep.subr.bf16.mxu0 0
      %381 = vmatpush1.bf16.xpose.msra.mxu0 0
      %382 = vmatprep.subr.bf16.mxu0 0
      %383 = vmatpush1.bf16.xpose.msra.mxu0 0
      %384 = vmatprep.subr.bf16.mxu0 0
      %385 = vmatpush1.bf16.xpose.msra.mxu0 0
      %386 = vmatprep.subr.bf16.mxu0 0
      %387 = vmatpush1.bf16.xpose.msra.mxu0 0
      %388 = vmatprep.mubr.bf16.mxu0 0
      %389 = vmatmul.mubr.bf16.gmra.mrb[0].mxu0 %v351
      %v390 = vpop.f32.mrb[0].mxu0
      %v391 = vadd.f32 0.0, %v390
      %v392 = vpop.f32.mrb[0].mxu0
      %v393 = vpop.f32.mrb[0].mxu0
      %v394 = vpop.f32.mrb[0].mxu0
      %395 = vdwg.mxu0
      %v396 = vmul.f32 %v391, 0.35355338
      %v397 = vadd.f32 %v396, %v119
      %v398 = vsel %vm124, %v397, -inf
      %399 = vmax.xlane.f32.xlu0 %v398
      %v400 = vpop.xlane.xlu0 %399
      %v401 = vsub.f32 %v397, %v400
      %v402 = vmul.f32 %v401, 1.442695
      %v403 = vpow.pop %v402
      %v404 = vsel %vm124, %v403, 0.0
      %405 = vadd.xlane.f32.xlu0 %v404
      %v406 = vpop.xlane.xlu0 %405
      %v407 = vrcp.pop %v406
      %v408 = vmul.f32 %v403, %v407
      %v409 = vpack.c.bf16 %v408, %v408
      %410 = vrot.lane.b32.xlu0 %v120, 48
      %v411 = vpop.permute.xlu0 %410
      %v413 = vsel %vm124, %v409, 0
      %v416 = vsel %vm190, %v411, 0
      %418 = vmatprep.subr.bf16.mxu0 0
      %419 = vmatpush1.bf16.msra.mxu0 %v416
      %420 = vmatprep.subr.bf16.mxu0 0
      %421 = vmatpush1.bf16.msra.mxu0 0
      %422 = vmatprep.subr.bf16.mxu0 0
      %423 = vmatpush1.bf16.msra.mxu0 0
      %424 = vmatprep.subr.bf16.mxu0 0
      %425 = vmatpush1.bf16.msra.mxu0 0
      %426 = vmatprep.subr.bf16.mxu0 0
      %427 = vmatpush1.bf16.msra.mxu0 0
      %428 = vmatprep.subr.bf16.mxu0 0
      %429 = vmatpush1.bf16.msra.mxu0 0
      %430 = vmatprep.subr.bf16.mxu0 0
      %431 = vmatpush1.bf16.msra.mxu0 0
      %432 = vmatprep.subr.bf16.mxu0 0
      %433 = vmatpush1.bf16.msra.mxu0 0
      %434 = vmatprep.subr.bf16.mxu0 0
      %435 = vmatpush1.bf16.msra.mxu0 0
      %436 = vmatprep.subr.bf16.mxu0 0
      %437 = vmatpush1.bf16.msra.mxu0 0
      %438 = vmatprep.subr.bf16.mxu0 0
      %439 = vmatpush1.bf16.msra.mxu0 0
      %440 = vmatprep.subr.bf16.mxu0 0
      %441 = vmatpush1.bf16.msra.mxu0 0
      %442 = vmatprep.subr.bf16.mxu0 0
      %443 = vmatpush1.bf16.msra.mxu0 0
      %444 = vmatprep.subr.bf16.mxu0 0
      %445 = vmatpush1.bf16.msra.mxu0 0
      %446 = vmatprep.subr.bf16.mxu0 0
      %447 = vmatpush1.bf16.msra.mxu0 0
      %448 = vmatprep.subr.bf16.mxu0 0
      %449 = vmatpush1.bf16.msra.mxu0 0
      %450 = vmatprep.mubr.bf16.mxu0 0
      %451 = vmatmul.mubr.bf16.gmra.mrb[0].mxu0 %v413
      %v452 = vpop.f32.mrb[0].mxu0
      %v453 = vadd.f32 0.0, %v452
      %v454 = vpop.f32.mrb[0].mxu0
      %v455 = vpop.f32.mrb[0].mxu0
      %v456 = vpop.f32.mrb[0].mxu0
      %457 = vdwg.mxu0
      %458 = vrot.lane.b32.xlu0 %v120, 104
      %v459 = vpop.permute.xlu0 %458
      %460 = vrot.lane.b32.xlu0 %v120, 72
      %v461 = vpop.permute.xlu0 %460
      %v463 = vsel %vm124, %v459, 0
      %v466 = vsel %vm124, %v461, 0
      %468 = vmatprep.subr.bf16.mxu0 0
      %469 = vmatpush1.bf16.xpose.msra.mxu0 %v466
      %470 = vmatprep.subr.bf16.mxu0 0
      %471 = vmatpush1.bf16.xpose.msra.mxu0 0
      %472 = vmatprep.subr.bf16.mxu0 0
      %473 = vmatpush1.bf16.xpose.msra.mxu0 0
      %474 = vmatprep.subr.bf16.mxu0 0
      %475 = vmatpush1.bf16.xpose.msra.mxu0 0
      %476 = vmatprep.subr.bf16.mxu0 0
      %477 = vmatpush1.bf16.xpose.msra.mxu0 0
      %478 = vmatprep.subr.bf16.mxu0 0
      %479 = vmatpush1.bf16.xpose.msra.mxu0 0
      %480 = vmatprep.subr.bf16.mxu0 0
      %481 = vmatpush1.bf16.xpose.msra.mxu0 0
      %482 = vmatprep.subr.bf16.mxu0 0
      %483 = vmatpush1.bf16.xpose.msra.mxu0 0
      %484 = vmatprep.subr.bf16.mxu0 0
      %485 = vmatpush1.bf16.xpose.msra.mxu0 0
      %486 = vmatprep.subr.bf16.mxu0 0
      %487 = vmatpush1.bf16.xpose.msra.mxu0 0
      %488 = vmatprep.subr.bf16.mxu0 0
      %489 = vmatpush1.bf16.xpose.msra.mxu0 0
      %490 = vmatprep.subr.bf16.mxu0 0
      %491 = vmatpush1.bf16.xpose.msra.mxu0 0
      %492 = vmatprep.subr.bf16.mxu0 0
      %493 = vmatpush1.bf16.xpose.msra.mxu0 0
      %494 = vmatprep.subr.bf16.mxu0 0
      %495 = vmatpush1.bf16.xpose.msra.mxu0 0
      %496 = vmatprep.subr.bf16.mxu0 0
      %497 = vmatpush1.bf16.xpose.msra.mxu0 0
      %498 = vmatprep.subr.bf16.mxu0 0
      %499 = vmatpush1.bf16.xpose.msra.mxu0 0
      %500 = vmatprep.mubr.bf16.mxu0 0
      %501 = vmatmul.mubr.bf16.gmra.mrb[0].mxu0 %v463
      %v502 = vpop.f32.mrb[0].mxu0
      %v503 = vadd.f32 0.0, %v502
      %v504 = vpop.f32.mrb[0].mxu0
      %v505 = vpop.f32.mrb[0].mxu0
      %v506 = vpop.f32.mrb[0].mxu0
      %507 = vdwg.mxu0
      %v508 = vmul.f32 %v503, 0.35355338
      %v509 = vadd.f32 %v508, %v119
      %v510 = vsel %vm124, %v509, -inf
      %511 = vmax.xlane.f32.xlu0 %v510
      %v512 = vpop.xlane.xlu0 %511
      %v513 = vsub.f32 %v509, %v512
      %v514 = vmul.f32 %v513, 1.442695
      %v515 = vpow.pop %v514
      %v516 = vsel %vm124, %v515, 0.0
      %517 = vadd.xlane.f32.xlu0 %v516
      %v518 = vpop.xlane.xlu0 %517
      %v519 = vrcp.pop %v518
      %v520 = vmul.f32 %v515, %v519
      %v521 = vpack.c.bf16 %v520, %v520
      %522 = vrot.lane.b32.xlu0 %v120, 40
      %v523 = vpop.permute.xlu0 %522
      %v525 = vsel %vm124, %v521, 0
      %v528 = vsel %vm190, %v523, 0
      %530 = vmatprep.subr.bf16.mxu0 0
      %531 = vmatpush1.bf16.msra.mxu0 %v528
      %532 = vmatprep.subr.bf16.mxu0 0
      %533 = vmatpush1.bf16.msra.mxu0 0
      %534 = vmatprep.subr.bf16.mxu0 0
      %535 = vmatpush1.bf16.msra.mxu0 0
      %536 = vmatprep.subr.bf16.mxu0 0
      %537 = vmatpush1.bf16.msra.mxu0 0
      %538 = vmatprep.subr.bf16.mxu0 0
      %539 = vmatpush1.bf16.msra.mxu0 0
      %540 = vmatprep.subr.bf16.mxu0 0
      %541 = vmatpush1.bf16.msra.mxu0 0
      %542 = vmatprep.subr.bf16.mxu0 0
      %543 = vmatpush1.bf16.msra.mxu0 0
      %544 = vmatprep.subr.bf16.mxu0 0
      %545 = vmatpush1.bf16.msra.mxu0 0
      %546 = vmatprep.subr.bf16.mxu0 0
      %547 = vmatpush1.bf16.msra.mxu0 0
      %548 = vmatprep.subr.bf16.mxu0 0
      %549 = vmatpush1.bf16.msra.mxu0 0
      %550 = vmatprep.subr.bf16.mxu0 0
      %551 = vmatpush1.bf16.msra.mxu0 0
      %552 = vmatprep.subr.bf16.mxu0 0
      %553 = vmatpush1.bf16.msra.mxu0 0
      %554 = vmatprep.subr.bf16.mxu0 0
      %555 = vmatpush1.bf16.msra.mxu0 0
      %556 = vmatprep.subr.bf16.mxu0 0
      %557 = vmatpush1.bf16.msra.mxu0 0
      %558 = vmatprep.subr.bf16.mxu0 0
      %559 = vmatpush1.bf16.msra.mxu0 0
      %560 = vmatprep.subr.bf16.mxu0 0
      %561 = vmatpush1.bf16.msra.mxu0 0
      %562 = vmatprep.mubr.bf16.mxu0 0
      %563 = vmatmul.mubr.bf16.gmra.mrb[0].mxu0 %v525
      %v564 = vpop.f32.mrb[0].mxu0
      %v565 = vadd.f32 0.0, %v564
      %v566 = vpop.f32.mrb[0].mxu0
      %v567 = vpop.f32.mrb[0].mxu0
      %v568 = vpop.f32.mrb[0].mxu0
      %569 = vdwg.mxu0
      %571 = vrot.lane.b32.xlu0 %v341, 8
      %v572 = vpop.permute.xlu0 %571
      %575 = vrot.lane.b32.xlu0 %v453, 16
      %v576 = vpop.permute.xlu0 %575
      %579 = vrot.lane.b32.xlu0 %v565, 24
      %v580 = vpop.permute.xlu0 %579
      %v582 = vsel %vm124, %v229, %v572
      %vm583 = vcmask 130048
      %v584 = vsel %vm583, %v582, %v576
      %vm585 = vcmask 195584
      %v586 = vsel %vm585, %v584, %v580
      %vm587 = vcmask 261120
      %588 = vst.msk [vmem:[%s111] sm:$0xff] %vm587, %v586
      %p589 = scmp.lt.s32.totalorder %s12, 1
      %s590 = scalar_select %p589, %s12, 1
      %s591 = smul.addr %s590, 8
      %s592 = scalar_lea.vmem %s1, %s591
      // Predicated region
      $region25: #{codegen_forward.54} parent=23 // pred_check
        %p593 = pneg %p56
      $region26: #{codegen_forward.54} parent=23 // pred_check_branch
        %595 = sbr.rel (%p593) target = $region28
      $region27: #{codegen_forward.54} parent=23 // pred_region
        _
      $region28: #{codegen_forward.54} parent=23 // pred_fallthru
        _
    $region24: #{codegen_forward.54} parent=5 // pred_fallthru
      _
    %p596 = scmp.le.s32.totalorder 2, %s7
    // Predicated region
    $region29: #{codegen_forward.54} parent=5 // pred_check
      %p597 = pneg %p596
    $region30: #{codegen_forward.54} parent=5 // pred_check_branch
      %599 = sbr.rel (%p597) target = $region32
    $region31: #{codegen_forward.54} parent=5 // pred_region
      %s600 = ssub.s32 %s7, 2
      // Predicated region
      $region33: #{codegen_forward.54} parent=31 // pred_check
        %p601 = pneg %p62
      $region34: #{codegen_forward.54} parent=31 // pred_check_branch
        %603 = sbr.rel (%p601) target = $region36
      $region35: #{codegen_forward.54} parent=31 // pred_region
        %p604 = scmp.lt.s32.totalorder %s13, 1
        %s605 = scalar_select %p604, %s13, 1
        %s606 = smul.addr %s605, 8
        %s607 = scalar_lea.vmem %s1, %s606
      $region36: #{codegen_forward.54} parent=31 // pred_fallthru
        _
    $region32: #{codegen_forward.54} parent=5 // pred_fallthru
      _
  $region6: #{codegen_forward.54} parent=0 // loop_footer
    %s11 = sadd.s32 1, %s7
  $region7: #{codegen_forward.54} parent=0 // loop_footer_branch
    %6 = sbr.rel target = $region3
  $region8: #{codegen_forward.54} parent=0 // loop_exit
    _

// kernel: codegen_forward.39
$region0: #{codegen_forward.39}
  #allocation0 [shape = 'u32[]', space=smem, size = 0x4, offset = 0x4, fixed_abs, tag = 'smem constant byte address 0x4 - core index']
  #allocation1 [shape = 'u32[144,128]{1,0:T(1,128)}', space=vmem, size = 0x12000, scoped, tag = 'internal scratch']
  %s0 = inlined_call_operand.vmem [shape: f32[24,32], index: 0, kind: input, shape index: {}]
  %s1 = inlined_call_operand.vmem [shape: bf16[32,96], index: 1, kind: input, shape index: {}]
  %s2 = inlined_call_operand.vmem [shape: f32[1,96], index: 2, kind: input, shape index: {}]
  %s3 = inlined_call_operand.vmem [shape: f32[24,96], index: 3, kind: output, shape index: {}]
  %s4 = sld [smem:[#allocation0]]
  $region22: #{codegen_forward.39} parent=0
    _
  %s6 = ssub.s32 1, %s4
  %s7 = scalar_select 0, %s6, %s4
  // Predicated region
  $region2: #{codegen_forward.39} parent=0 // pred_check
    _
  $region3: #{codegen_forward.39} parent=0 // pred_check_branch
    %9 = sbr.rel (0) target = $region5
  $region4: #{codegen_forward.39} parent=0 // pred_region
    _
  $region5: #{codegen_forward.39} parent=0 // pred_fallthru
    _
  // Predicated region
  $region6: #{codegen_forward.39} parent=0 // pred_check
    _
  $region7: #{codegen_forward.39} parent=0 // pred_check_branch
    %11 = sbr.rel (0) target = $region9
  $region8: #{codegen_forward.39} parent=0 // pred_region
    _
  $region9: #{codegen_forward.39} parent=0 // pred_fallthru
    _
  // Predicated region
  $region10: #{codegen_forward.39} parent=0 // pred_check
    _
  $region11: #{codegen_forward.39} parent=0 // pred_check_branch
    %13 = sbr.rel (0) target = $region13
  $region12: #{codegen_forward.39} parent=0 // pred_region
    _
  $region13: #{codegen_forward.39} parent=0 // pred_fallthru
    _
  %v15 = vld [vmem:[%s0] sm:$0xff]
  %v16 = vld [vmem:[%s0 + $0x8] sm:$0xff]
  %v17 = vld [vmem:[%s0 + $0x10] sm:$0xff]
  %v18 = vpack.c.bf16 %v16, %v15
  %v19 = vpack.c.bf16 %v17, %v17
  %v20 = vld [vmem:[%s1] sm:$0xf]
  %v21 = vld [vmem:[%s1 + $0x4] sm:$0xf]
  %v22 = vld [vmem:[%s1 + $0x8] sm:$0xf]
  %v23 = vld [vmem:[%s1 + $0xc] sm:$0xf]
  %v24 = vld [vmem:[%s2] sm:$0x1]
  %v26 = vlaneseq
  %v27 = vshrl.u32 %v26, 7
  %v28 = vsub.s32 0, %v27
  %v29 = vrot.slane %v24, %v28
  %v35 = vunpack.c.l.b16 %v20
  %v36 = vunpack.c.l.b16 %v21
  %v37 = vunpack.c.l.b16 %v22
  %v38 = vunpack.c.l.b16 %v23
  %v39 = vpack.c.b16 %v36, %v35
  %v40 = vpack.c.b16 %v38, %v37
  %vm43 = vcmask 261120
  %v45 = vsel %vm43, %v18, 0
  %v48 = vsel %vm43, %v19, 0
  %50 = vmatprep.subr.bf16.mxu0 0
  %51 = vmatpush1.bf16.msra.mxu0 %v39
  %52 = vmatprep.subr.bf16.mxu0 0
  %53 = vmatpush1.bf16.msra.mxu0 %v40
  %54 = vmatprep.subr.bf16.mxu0 0
  %55 = vmatpush1.bf16.msra.mxu0 0
  %56 = vmatprep.subr.bf16.mxu0 0
  %57 = vmatpush1.bf16.msra.mxu0 0
  %58 = vmatprep.subr.bf16.mxu0 0
  %59 = vmatpush1.bf16.msra.mxu0 0
  %60 = vmatprep.subr.bf16.mxu0 0
  %61 = vmatpush1.bf16.msra.mxu0 0
  %62 = vmatprep.subr.bf16.mxu0 0
  %63 = vmatpush1.bf16.msra.mxu0 0
  %64 = vmatprep.subr.bf16.mxu0 0
  %65 = vmatpush1.bf16.msra.mxu0 0
  %66 = vmatprep.subr.bf16.mxu0 0
  %67 = vmatpush1.bf16.msra.mxu0 0
  %68 = vmatprep.subr.bf16.mxu0 0
  %69 = vmatpush1.bf16.msra.mxu0 0
  %70 = vmatprep.subr.bf16.mxu0 0
  %71 = vmatpush1.bf16.msra.mxu0 0
  %72 = vmatprep.subr.bf16.mxu0 0
  %73 = vmatpush1.bf16.msra.mxu0 0
  %74 = vmatprep.subr.bf16.mxu0 0
  %75 = vmatpush1.bf16.msra.mxu0 0
  %76 = vmatprep.subr.bf16.mxu0 0
  %77 = vmatpush1.bf16.msra.mxu0 0
  %78 = vmatprep.subr.bf16.mxu0 0
  %79 = vmatpush1.bf16.msra.mxu0 0
  %80 = vmatprep.subr.bf16.mxu0 0
  %81 = vmatpush1.bf16.msra.mxu0 0
  %82 = vmatprep.mubr.bf16.mxu0 0
  %83 = vmatmul.mubr.bf16.gmra.mrb[0].mxu0 %v45
  %v84 = vpop.f32.mrb[0].mxu0
  %v85 = vadd.f32 %v29, %v84
  %v86 = vpop.f32.mrb[0].mxu0
  %v87 = vpop.f32.mrb[0].mxu0
  %v88 = vadd.f32 %v29, %v87
  %v89 = vpop.f32.mrb[0].mxu0
  %90 = vmatprep.mubr.bf16.mxu0 0
  %91 = vmatmul.mubr.bf16.gmra.mrb[0].mxu0 %v48
  %v92 = vpop.f32.mrb[0].mxu0
  %v93 = vadd.f32 %v29, %v92
  %v94 = vpop.f32.mrb[0].mxu0
  %v95 = vpop.f32.mrb[0].mxu0
  %v96 = vpop.f32.mrb[0].mxu0
  %97 = vdwg.mxu0
  %vm98 = vcmask 785408
  %99 = vst.msk [vmem:[%s3] sm:$0xff] %vm98, %v85
  %100 = vst.msk [vmem:[%s3 + $0x8] sm:$0xff] %vm98, %v88
  %101 = vst.msk [vmem:[%s3 + $0x10] sm:$0xff] %vm98, %v93
  // Predicated region
  $region14: #{codegen_forward.39} parent=0 // pred_check
    _
  $region15: #{codegen_forward.39} parent=0 // pred_check_branch
    %103 = sbr.rel (0) target = $region17
  $region16: #{codegen_forward.39} parent=0 // pred_region
    _
  $region17: #{codegen_forward.39} parent=0 // pred_fallthru
    _
  // Predicated region
  $region18: #{codegen_forward.39} parent=0 // pred_check
    _
  $region19: #{codegen_forward.39} parent=0 // pred_check_branch
    %105 = sbr.rel (0) target = $region21
  $region20: #{codegen_forward.39} parent=0 // pred_region
    _
  $region21: #{codegen_forward.39} parent=0 // pred_fallthru
    _

// kernel: codegen_forward.42
$region0: #{codegen_forward.42}
  #allocation0 [shape = 'u32[]', space=smem, size = 0x4, offset = 0x4, fixed_abs, tag = 'smem constant byte address 0x4 - core index']
  #allocation1 [shape = 'u32[144,128]{1,0:T(1,128)}', space=vmem, size = 0x12000, scoped, tag = 'internal scratch']
  %s0 = inlined_call_operand.vmem [shape: f32[24,32], index: 0, kind: input, shape index: {}]
  %s1 = inlined_call_operand.vmem [shape: f32[24,32], index: 1, kind: input, shape index: {}]
  %s2 = inlined_call_operand.vmem [shape: f32[1,32], index: 2, kind: input, shape index: {}]
  %s3 = inlined_call_operand.vmem [shape: f32[1,32], index: 3, kind: input, shape index: {}]
  %s4 = inlined_call_operand.vmem [shape: f32[24,32], index: 4, kind: output, shape index: {}]
  %s5 = sld [smem:[#allocation0]]
  $region26: #{codegen_forward.42} parent=0
    _
  %s7 = ssub.s32 1, %s5
  %s8 = scalar_select 0, %s7, %s5
  // Predicated region
  $region2: #{codegen_forward.42} parent=0 // pred_check
    _
  $region3: #{codegen_forward.42} parent=0 // pred_check_branch
    %10 = sbr.rel (0) target = $region5
  $region4: #{codegen_forward.42} parent=0 // pred_region
    _
  $region5: #{codegen_forward.42} parent=0 // pred_fallthru
    _
  // Predicated region
  $region6: #{codegen_forward.42} parent=0 // pred_check
    _
  $region7: #{codegen_forward.42} parent=0 // pred_check_branch
    %12 = sbr.rel (0) target = $region9
  $region8: #{codegen_forward.42} parent=0 // pred_region
    _
  $region9: #{codegen_forward.42} parent=0 // pred_fallthru
    _
  // Predicated region
  $region10: #{codegen_forward.42} parent=0 // pred_check
    _
  $region11: #{codegen_forward.42} parent=0 // pred_check_branch
    %14 = sbr.rel (0) target = $region13
  $region12: #{codegen_forward.42} parent=0 // pred_region
    _
  $region13: #{codegen_forward.42} parent=0 // pred_fallthru
    _
  // Predicated region
  $region14: #{codegen_forward.42} parent=0 // pred_check
    _
  $region15: #{codegen_forward.42} parent=0 // pred_check_branch
    %16 = sbr.rel (0) target = $region17
  $region16: #{codegen_forward.42} parent=0 // pred_region
    _
  $region17: #{codegen_forward.42} parent=0 // pred_fallthru
    _
  %v17 = vld [vmem:[%s0] sm:$0xff]
  %v18 = vld [vmem:[%s0 + $0x8] sm:$0xff]
  %v19 = vld [vmem:[%s0 + $0x10] sm:$0xff]
  %v20 = vld [vmem:[%s1] sm:$0xff]
  %v21 = vld [vmem:[%s1 + $0x8] sm:$0xff]
  %v22 = vld [vmem:[%s1 + $0x10] sm:$0xff]
  %v23 = vadd.f32 %v17, %v20
  %v24 = vadd.f32 %v18, %v21
  %v25 = vadd.f32 %v19, %v22
  %vm26 = vcmask 261120
  %v27 = vsel %vm26, %v23, 0.0
  %28 = vadd.xlane.f32.xlu0 %v27
  %v29 = vpop.xlane.xlu0 %28
  %v30 = vsel %vm26, %v24, 0.0
  %31 = vadd.xlane.f32.xlu0 %v30
  %v32 = vpop.xlane.xlu0 %31
  %v33 = vsel %vm26, %v25, 0.0
  %34 = vadd.xlane.f32.xlu0 %v33
  %v35 = vpop.xlane.xlu0 %34
  %v36 = vrcp.pop 32.0
  %v37 = vmul.f32 %v29, %v36
  %v38 = vmul.f32 %v32, %v36
  %v39 = vmul.f32 %v35, %v36
  %v40 = vsub.f32 %v23, %v37
  %v41 = vsub.f32 %v24, %v38
  %v42 = vsub.f32 %v25, %v39
  %v43 = vmul.f32 %v40, %v40
  %v44 = vmul.f32 %v41, %v41
  %v45 = vmul.f32 %v42, %v42
  %v46 = vsel %vm26, %v43, 0.0
  %47 = vadd.xlane.f32.xlu0 %v46
  %v48 = vpop.xlane.xlu0 %47
  %v49 = vsel %vm26, %v44, 0.0
  %50 = vadd.xlane.f32.xlu0 %v49
  %v51 = vpop.xlane.xlu0 %50
  %v52 = vsel %vm26, %v45, 0.0
  %53 = vadd.xlane.f32.xlu0 %v52
  %v54 = vpop.xlane.xlu0 %53
  %v55 = vmul.f32 %v48, %v36
  %v56 = vmul.f32 %v51, %v36
  %v57 = vmul.f32 %v54, %v36
  %v58 = vadd.f32 %v55, 1e-05
  %v59 = vadd.f32 %v56, 1e-05
  %v60 = vadd.f32 %v57, 1e-05
  %v61 = vrsqrt.pop %v58
  %v62 = vrsqrt.pop %v59
  %v63 = vrsqrt.pop %v60
  %v64 = vmul.f32 %v40, %v61
  %v65 = vmul.f32 %v41, %v62
  %v66 = vmul.f32 %v42, %v63
  %v67 = vld [vmem:[%s2] sm:$0x1]
  %v69 = vlaneseq
  %v70 = vshrl.u32 %v69, 7
  %v71 = vsub.s32 0, %v70
  %v72 = vrot.slane %v67, %v71
  %v74 = vmul.f32 %v64, %v72
  %v75 = vmul.f32 %v65, %v72
  %v76 = vmul.f32 %v66, %v72
  %v77 = vld [vmem:[%s3] sm:$0x1]
  %v79 = vlaneseq
  %v80 = vshrl.u32 %v79, 7
  %v81 = vsub.s32 0, %v80
  %v82 = vrot.slane %v77, %v81
  %v84 = vadd.f32 %v74, %v82
  %v85 = vadd.f32 %v75, %v82
  %v86 = vadd.f32 %v76, %v82
  %87 = vst.msk [vmem:[%s4] sm:$0xff] %vm26, %v84
  %88 = vst.msk [vmem:[%s4 + $0x8] sm:$0xff] %vm26, %v85
  %89 = vst.msk [vmem:[%s4 + $0x10] sm:$0xff] %vm26, %v86
  // Predicated region
  $region18: #{codegen_forward.42} parent=0 // pred_check
    _
  $region19: #{codegen_forward.42} parent=0 // pred_check_branch
    %91 = sbr.rel (0) target = $region21
  $region20: #{codegen_forward.42} parent=0 // pred_region
    _
  $region21: #{codegen_forward.42} parent=0 // pred_fallthru
    _
  // Predicated region
  $region22: #{codegen_forward.42} parent=0 // pred_check
    _
  $region23: #{codegen_forward.42} parent=0 // pred_check_branch
    %93 = sbr.rel (0) target = $region25
  $region24: #{codegen_forward.42} parent=0 // pred_region
    _
  $region25: #{codegen_forward.42} parent=0 // pred_fallthru
    _

// kernel: codegen_forward.41
$region0: #{codegen_forward.41}
  #allocation0 [shape = 'u32[]', space=smem, size = 0x4, offset = 0x4, fixed_abs, tag = 'smem constant byte address 0x4 - core index']
  #allocation1 [shape = 'u32[144,128]{1,0:T(1,128)}', space=vmem, size = 0x12000, scoped, tag = 'internal scratch']
  %s0 = inlined_call_operand.vmem [shape: f32[24,32], index: 0, kind: input, shape index: {}]
  %s1 = inlined_call_operand.vmem [shape: bf16[32,32], index: 1, kind: input, shape index: {}]
  %s2 = inlined_call_operand.vmem [shape: f32[1,32], index: 2, kind: input, shape index: {}]
  %s3 = inlined_call_operand.vmem [shape: f32[24,32], index: 3, kind: output, shape index: {}]
  %s4 = sld [smem:[#allocation0]]
  $region22: #{codegen_forward.41} parent=0
    _
  %s6 = ssub.s32 1, %s4
  %s7 = scalar_select 0, %s6, %s4
  // Predicated region
  $region2: #{codegen_forward.41} parent=0 // pred_check
    _
  $region3: #{codegen_forward.41} parent=0 // pred_check_branch
    %9 = sbr.rel (0) target = $region5
  $region4: #{codegen_forward.41} parent=0 // pred_region
    _
  $region5: #{codegen_forward.41} parent=0 // pred_fallthru
    _
  // Predicated region
  $region6: #{codegen_forward.41} parent=0 // pred_check
    _
  $region7: #{codegen_forward.41} parent=0 // pred_check_branch
    %11 = sbr.rel (0) target = $region9
  $region8: #{codegen_forward.41} parent=0 // pred_region
    _
  $region9: #{codegen_forward.41} parent=0 // pred_fallthru
    _
  // Predicated region
  $region10: #{codegen_forward.41} parent=0 // pred_check
    _
  $region11: #{codegen_forward.41} parent=0 // pred_check_branch
    %13 = sbr.rel (0) target = $region13
  $region12: #{codegen_forward.41} parent=0 // pred_region
    _
  $region13: #{codegen_forward.41} parent=0 // pred_fallthru
    _
  %v15 = vld [vmem:[%s0] sm:$0xff]
  %v16 = vld [vmem:[%s0 + $0x8] sm:$0xff]
  %v17 = vld [vmem:[%s0 + $0x10] sm:$0xff]
  %v18 = vpack.c.bf16 %v16, %v15
  %v19 = vpack.c.bf16 %v17, %v17
  %v20 = vld [vmem:[%s1] sm:$0xf]
  %v21 = vld [vmem:[%s1 + $0x4] sm:$0xf]
  %v22 = vld [vmem:[%s1 + $0x8] sm:$0xf]
  %v23 = vld [vmem:[%s1 + $0xc] sm:$0xf]
  %v24 = vld [vmem:[%s2] sm:$0x1]
  %v26 = vlaneseq
  %v27 = vshrl.u32 %v26, 7
  %v28 = vsub.s32 0, %v27
  %v29 = vrot.slane %v24, %v28
  %v35 = vunpack.c.l.b16 %v20
  %v36 = vunpack.c.l.b16 %v21
  %v37 = vunpack.c.l.b16 %v22
  %v38 = vunpack.c.l.b16 %v23
  %v39 = vpack.c.b16 %v36, %v35
  %v40 = vpack.c.b16 %v38, %v37
  %vm43 = vcmask 261120
  %v45 = vsel %vm43, %v18, 0
  %v48 = vsel %vm43, %v19, 0
  %50 = vmatprep.subr.bf16.mxu0 0
  %51 = vmatpush1.bf16.msra.mxu0 %v39
  %52 = vmatprep.subr.bf16.mxu0 0
  %53 = vmatpush1.bf16.msra.mxu0 %v40
  %54 = vmatprep.subr.bf16.mxu0 0
  %55 = vmatpush1.bf16.msra.mxu0 0
  %56 = vmatprep.subr.bf16.mxu0 0
  %57 = vmatpush1.bf16.msra.mxu0 0
  %58 = vmatprep.subr.bf16.mxu0 0
  %59 = vmatpush1.bf16.msra.mxu0 0
  %60 = vmatprep.subr.bf16.mxu0 0
  %61 = vmatpush1.bf16.msra.mxu0 0
  %62 = vmatprep.subr.bf16.mxu0 0
  %63 = vmatpush1.bf16.msra.mxu0 0
  %64 = vmatprep.subr.bf16.mxu0 0
  %65 = vmatpush1.bf16.msra.mxu0 0
  %66 = vmatprep.subr.bf16.mxu0 0
  %67 = vmatpush1.bf16.msra.mxu0 0
  %68 = vmatprep.subr.bf16.mxu0 0
  %69 = vmatpush1.bf16.msra.mxu0 0
  %70 = vmatprep.subr.bf16.mxu0 0
  %71 = vmatpush1.bf16.msra.mxu0 0
  %72 = vmatprep.subr.bf16.mxu0 0
  %73 = vmatpush1.bf16.msra.mxu0 0
  %74 = vmatprep.subr.bf16.mxu0 0
  %75 = vmatpush1.bf16.msra.mxu0 0
  %76 = vmatprep.subr.bf16.mxu0 0
  %77 = vmatpush1.bf16.msra.mxu0 0
  %78 = vmatprep.subr.bf16.mxu0 0
  %79 = vmatpush1.bf16.msra.mxu0 0
  %80 = vmatprep.subr.bf16.mxu0 0
  %81 = vmatpush1.bf16.msra.mxu0 0
  %82 = vmatprep.mubr.bf16.mxu0 0
  %83 = vmatmul.mubr.bf16.gmra.mrb[0].mxu0 %v45
  %v84 = vpop.f32.mrb[0].mxu0
  %v85 = vadd.f32 %v29, %v84
  %v86 = vpop.f32.mrb[0].mxu0
  %v87 = vpop.f32.mrb[0].mxu0
  %v88 = vadd.f32 %v29, %v87
  %v89 = vpop.f32.mrb[0].mxu0
  %90 = vmatprep.mubr.bf16.mxu0 0
  %91 = vmatmul.mubr.bf16.gmra.mrb[0].mxu0 %v48
  %v92 = vpop.f32.mrb[0].mxu0
  %v93 = vadd.f32 %v29, %v92
  %v94 = vpop.f32.mrb[0].mxu0
  %v95 = vpop.f32.mrb[0].mxu0
  %v96 = vpop.f32.mrb[0].mxu0
  %97 = vdwg.mxu0
  %98 = vst.msk [vmem:[%s3] sm:$0xff] %vm43, %v85
  %99 = vst.msk [vmem:[%s3 + $0x8] sm:$0xff] %vm43, %v88
  %100 = vst.msk [vmem:[%s3 + $0x10] sm:$0xff] %vm43, %v93
  // Predicated region
  $region14: #{codegen_forward.41} parent=0 // pred_check
    _
  $region15: #{codegen_forward.41} parent=0 // pred_check_branch
    %102 = sbr.rel (0) target = $region17
  $region16: #{codegen_forward.41} parent=0 // pred_region
    _
  $region17: #{codegen_forward.41} parent=0 // pred_fallthru
    _
  // Predicated region
  $region18: #{codegen_forward.41} parent=0 // pred_check
    _
  $region19: #{codegen_forward.41} parent=0 // pred_check_branch
    %104 = sbr.rel (0) target = $region21
  $region20: #{codegen_forward.41} parent=0 // pred_region
    _
  $region21: #{codegen_forward.41} parent=0 // pred_fallthru
    _

// kernel: codegen_forward.40
$region0: #{codegen_forward.40}
  #allocation0 [shape = 'u32[]', space=smem, size = 0x4, offset = 0x4, fixed_abs, tag = 'smem constant byte address 0x4 - core index']
  #allocation1 [shape = 'u32[144,128]{1,0:T(1,128)}', space=vmem, size = 0x12000, scoped, tag = 'internal scratch']
  %s0 = inlined_call_operand.vmem [shape: f32[2,12,96], index: 0, kind: input, shape index: {}]
  %s1 = inlined_call_operand.vmem [shape: f32[2,12,32], index: 1, kind: output, shape index: {}]
  %s2 = sld [smem:[#allocation0]]
  $region37: #{codegen_forward.40} parent=0
    _
  %s4 = ssub.s32 1, %s2
  %s5 = scalar_select 0, %s4, %s2
  loop: start=0, step=1, limit=4
  $region2: #{codegen_forward.40} parent=0 // loop_pre_header
    _
  $region3: #{codegen_forward.40} parent=0 // loop_header
    %s7 = sphi 0, %s11
    %p8 = scmp.ge.s32.totalorder %s7, 4
    %s17 = sphi 0, %s19
    %s20 = sphi 0, %s17
    %s21 = sphi 0, %s20
    %s37 = sphi 0, %s21
    %s43 = sphi 0, %s45
    %s46 = sphi 0, %s43
    %s47 = sphi 0, %s46
    %s63 = sphi 0, %s47
  $region4: #{codegen_forward.40} parent=0 // loop_header_branch
    %10 = sbr.rel (%p8) target = $region8
  $region5: #{codegen_forward.40} parent=0 // loop_body
    %s12 = ssub.s32 %s7, 1
    %s13 = ssub.s32 %s7, 2
    %s14 = sadd.s32 %s7, 1
    %s15 = ssub.s32 %s7, %s14
    %p16 = scmp.eq.s32.totalorder %s15, 0
    %s18 = sadd.s32 %s17, 1
    %s19 = scalar_select %p16, %s17, %s18
    %p22 = pneg %p16
    %p23 = scmp.eq.s32.totalorder %s7, 1
    %p24 = por %p22, %p23
    %p25 = scmp.ne.s32.totalorder %s17, %s20
    %p26 = scmp.eq.s32.totalorder %s7, 0
    %p27 = por %p25, %p26
    %p28 = scmp.ne.s32.totalorder %s17, %s20
    %p29 = scmp.eq.s32.totalorder %s12, 1
    %p30 = por %p28, %p29
    %p31 = scmp.ne.s32.totalorder %s20, %s21
    %p32 = scmp.eq.s32.totalorder %s12, 0
    %p33 = por %p31, %p32
    %p34 = scmp.ne.s32.totalorder %s20, %s21
    %p35 = scmp.eq.s32.totalorder %s13, 1
    %p36 = por %p34, %p35
    %p38 = scmp.ne.s32.totalorder %s21, %s37
    %p39 = scmp.eq.s32.totalorder %s13, 0
    %p40 = por %p38, %p39
    %s41 = ssub.s32 %s7, %s14
    %p42 = scmp.eq.s32.totalorder %s41, 0
    %s44 = sadd.s32 %s43, 1
    %s45 = scalar_select %p42, %s43, %s44
    %p48 = pneg %p42
    %p49 = scmp.eq.s32.totalorder %s7, 1
    %p50 = por %p48, %p49
    %p51 = scmp.ne.s32.totalorder %s43, %s46
    %p52 = scmp.eq.s32.totalorder %s7, 0
    %p53 = por %p51, %p52
    %p54 = scmp.ne.s32.totalorder %s43, %s46
    %p55 = scmp.eq.s32.totalorder %s12, 1
    %p56 = por %p54, %p55
    %p57 = scmp.ne.s32.totalorder %s46, %s47
    %p58 = scmp.eq.s32.totalorder %s12, 0
    %p59 = por %p57, %p58
    %p60 = scmp.ne.s32.totalorder %s46, %s47
    %p61 = scmp.eq.s32.totalorder %s13, 1
    %p62 = por %p60, %p61
    %p64 = scmp.ne.s32.totalorder %s47, %s63
    %p65 = scmp.eq.s32.totalorder %s13, 0
    %p66 = por %p64, %p65
    %p67 = scmp.le.s32.totalorder 1, %s7
    %p68 = scmp.lt.s32.totalorder %s7, 3
    %p69 = pnand %p67, %p68
    %p70 = pneg %p69
    // Predicated region
    $region9: #{codegen_forward.40} parent=5 // pred_check
      _
    $region10: #{codegen_forward.40} parent=5 // pred_check_branch
      %72 = sbr.rel (%p69) target = $region12
    $region11: #{codegen_forward.40} parent=5 // pred_region
      %s73 = ssub.s32 %s7, 1
    $region12: #{codegen_forward.40} parent=5 // pred_fallthru
      _
    %p74 = scmp.lt.s32.totalorder %s7, 2
    // Predicated region
    $region13: #{codegen_forward.40} parent=5 // pred_check
      %p75 = pneg %p74
    $region14: #{codegen_forward.40} parent=5 // pred_check_branch
      %77 = sbr.rel (%p75) target = $region16
    $region15: #{codegen_forward.40} parent=5 // pred_region
      // Predicated region
      $region17: #{codegen_forward.40} parent=15 // pred_check
        %p78 = pneg %p27
      $region18: #{codegen_forward.40} parent=15 // pred_check_branch
        %80 = sbr.rel (%p78) target = $region20
      $region19: #{codegen_forward.40} parent=15 // pred_region
        %p81 = scmp.lt.s32.totalorder %s7, 1
        %s82 = scalar_select %p81, %s7, 1
        %s83 = smul.addr %s82, 2
        %s84 = smul.addr %s83, 8
        %s85 = scalar_lea.vmem %s0, %s84
      $region20: #{codegen_forward.40} parent=15 // pred_fallthru
        _
    $region16: #{codegen_forward.40} parent=5 // pred_fallthru
      _
    %p86 = scmp.le.s32.totalorder 1, %s7
    %p87 = scmp.lt.s32.totalorder %s7, 3
    %p88 = pnand %p86, %p87
    %p89 = pneg %p88
    // Predicated region
    $region21: #{codegen_forward.40} parent=5 // pred_check
      _
    $region22: #{codegen_forward.40} parent=5 // pred_check_branch
      %91 = sbr.rel (%p88) target = $region24
    $region23: #{codegen_forward.40} parent=5 // pred_region
      %s92 = ssub.s32 %s7, 1
      %p93 = scmp.lt.s32.totalorder %s12, 1
      %s94 = scalar_select %p93, %s12, 1
      %s95 = smul.addr %s94, 2
      %s96 = smul.addr %s95, 8
      %s97 = scalar_lea.vmem %s0, %s96
      %p98 = pneg %p33
      %p99 = pneg %p30
      %p100 = pneg %p59
      %p101 = pneg %p56
      %p102 = scmp.lt.s32.totalorder %s12, 1
      %s103 = scalar_select %p102, %s12, 1
      %s104 = smul.addr %s103, 2
      %s105 = smul.addr %s104, 8
      %s106 = scalar_lea.vmem %s1, %s105
      %p107 = scmp.lt.s32.totalorder %s12, 1
      %s108 = scalar_select %p107, %s12, 1
      %s109 = smul.addr %s108, 2
      %s110 = smul.addr %s109, 8
      %s111 = scalar_lea.vmem %s0, %s110
      %p112 = scmp.lt.s32.totalorder %s12, 1
      %s113 = scalar_select %p112, %s12, 1
      %s114 = smul.addr %s113, 2
      %s115 = smul.addr %s114, 8
      %s116 = scalar_lea.vmem %s1, %s115
      %v118 = vld [vmem:[%s111] sm:$0xff]
      %v119 = vld [vmem:[%s111 + $0x8] sm:$0xf]
      %v120 = vpack.c.bf16 %v119, %v118
      %122 = vrot.lane.b32.xlu0 %v120, 96
      %v123 = vpop.permute.xlu0 %122
      %vm124 = vcmask 64512
      %v126 = vsel %vm124, %v120, 0
      %v129 = vsel %vm124, %v123, 0
      %131 = vmatprep.subr.bf16.mxu0 0
      %132 = vmatpush1.bf16.xpose.msra.mxu0 %v129
      %133 = vmatprep.subr.bf16.mxu0 0
      %134 = vmatpush1.bf16.xpose.msra.mxu0 0
      %135 = vmatprep.subr.bf16.mxu0 0
      %136 = vmatpush1.bf16.xpose.msra.mxu0 0
      %137 = vmatprep.subr.bf16.mxu0 0
      %138 = vmatpush1.bf16.xpose.msra.mxu0 0
      %139 = vmatprep.subr.bf16.mxu0 0
      %140 = vmatpush1.bf16.xpose.msra.mxu0 0
      %141 = vmatprep.subr.bf16.mxu0 0
      %142 = vmatpush1.bf16.xpose.msra.mxu0 0
      %143 = vmatprep.subr.bf16.mxu0 0
      %144 = vmatpush1.bf16.xpose.msra.mxu0 0
      %145 = vmatprep.subr.bf16.mxu0 0
      %146 = vmatpush1.bf16.xpose.msra.mxu0 0
      %147 = vmatprep.subr.bf16.mxu0 0
      %148 = vmatpush1.bf16.xpose.msra.mxu0 0
      %149 = vmatprep.subr.bf16.mxu0 0
      %150 = vmatpush1.bf16.xpose.msra.mxu0 0
      %151 = vmatprep.subr.bf16.mxu0 0
      %152 = vmatpush1.bf16.xpose.msra.mxu0 0
      %153 = vmatprep.subr.bf16.mxu0 0
      %154 = vmatpush1.bf16.xpose.msra.mxu0 0
      %155 = vmatprep.subr.bf16.mxu0 0
      %156 = vmatpush1.bf16.xpose.msra.mxu0 0
      %157 = vmatprep.subr.bf16.mxu0 0
      %158 = vmatpush1.bf16.xpose.msra.mxu0 0
      %159 = vmatprep.subr.bf16.mxu0 0
      %160 = vmatpush1.bf16.xpose.msra.mxu0 0
      %161 = vmatprep.subr.bf16.mxu0 0
      %162 = vmatpush1.bf16.xpose.msra.mxu0 0
      %163 = vmatprep.mubr.bf16.mxu0 0
      %164 = vmatmul.mubr.bf16.gmra.mrb[0].mxu0 %v126
      %v165 = vpop.f32.mrb[0].mxu0
      %v166 = vadd.f32 0.0, %v165
      %v167 = vpop.f32.mrb[0].mxu0
      %v168 = vpop.f32.mrb[0].mxu0
      %v169 = vadd.f32 0.0, %v168
      %v170 = vpop.f32.mrb[0].mxu0
      %171 = vdwg.mxu0
      %v172 = vmul.f32 %v166, 0.35355338
      %v173 = vmul.f32 %v169, 0.35355338
      %vm174 = vcmask 97280
      %v175 = vsel %vm174, %v172, -inf
      %176 = vmax.xlane.f32.xlu0 %v175
      %v177 = vpop.xlane.xlu0 %176
      %vm178 = vcmask 93184
      %v179 = vsel %vm178, %v173, -inf
      %180 = vmax.xlane.f32.xlu0 %v179
      %v181 = vpop.xlane.xlu0 %180
      %v182 = vsub.f32 %v172, %v177
      %v183 = vsub.f32 %v173, %v181
      %v184 = vmul.f32 %v182, 1.442695
      %v185 = vpow.pop %v184
      %v186 = vmul.f32 %v183, 1.442695
      %v187 = vpow.pop %v186
      %v188 = vsel %vm174, %v185, 0.0
      %189 = vadd.xlane.f32.xlu0 %v188
      %v190 = vpop.xlane.xlu0 %189
      %v191 = vsel %vm178, %v187, 0.0
      %192 = vadd.xlane.f32.xlu0 %v191
      %v193 = vpop.xlane.xlu0 %192
      %v194 = vrcp.pop %v190
      %v195 = vmul.f32 %v185, %v194
      %v196 = vrcp.pop %v193
      %v197 = vmul.f32 %v187, %v196
      %v198 = vpack.c.bf16 %v197, %v195
      %199 = vrot.lane.b32.xlu0 %v120, 64
      %v200 = vpop.permute.xlu0 %199
      %v202 = vsel %vm174, %v198, 0
      %vm204 = vcmask 1045504
      %v206 = vsel %vm204, %v200, 0
      %208 = vmatprep.subr.bf16.mxu0 0
      %209 = vmatpush1.bf16.msra.mxu0 %v206
      %210 = vmatprep.subr.bf16.mxu0 0
      %211 = vmatpush1.bf16.msra.mxu0 0
      %212 = vmatprep.subr.bf16.mxu0 0
      %213 = vmatpush1.bf16.msra.mxu0 0
      %214 = vmatprep.subr.bf16.mxu0 0
      %215 = vmatpush1.bf16.msra.mxu0 0
      %216 = vmatprep.subr.bf16.mxu0 0
      %217 = vmatpush1.bf16.msra.mxu0 0
      %218 = vmatprep.subr.bf16.mxu0 0
      %219 = vmatpush1.bf16.msra.mxu0 0
      %220 = vmatprep.subr.bf16.mxu0 0
      %221 = vmatpush1.bf16.msra.mxu0 0
      %222 = vmatprep.subr.bf16.mxu0 0
      %223 = vmatpush1.bf16.msra.mxu0 0
      %224 = vmatprep.subr.bf16.mxu0 0
      %225 = vmatpush1.bf16.msra.mxu0 0
      %226 = vmatprep.subr.bf16.mxu0 0
      %227 = vmatpush1.bf16.msra.mxu0 0
      %228 = vmatprep.subr.bf16.mxu0 0
      %229 = vmatpush1.bf16.msra.mxu0 0
      %230 = vmatprep.subr.bf16.mxu0 0
      %231 = vmatpush1.bf16.msra.mxu0 0
      %232 = vmatprep.subr.bf16.mxu0 0
      %233 = vmatpush1.bf16.msra.mxu0 0
      %234 = vmatprep.subr.bf16.mxu0 0
      %235 = vmatpush1.bf16.msra.mxu0 0
      %236 = vmatprep.subr.bf16.mxu0 0
      %237 = vmatpush1.bf16.msra.mxu0 0
      %238 = vmatprep.subr.bf16.mxu0 0
      %239 = vmatpush1.bf16.msra.mxu0 0
      %240 = vmatprep.mubr.bf16.mxu0 0
      %241 = vmatmul.mubr.bf16.gmra.mrb[0].mxu0 %v202
      %v242 = vpop.f32.mrb[0].mxu0
      %v243 = vadd.f32 0.0, %v242
      %v244 = vpop.f32.mrb[0].mxu0
      %v245 = vpop.f32.mrb[0].mxu0
      %v246 = vadd.f32 0.0, %v245
      %v247 = vpop.f32.mrb[0].mxu0
      %248 = vdwg.mxu0
      %249 = vrot.lane.b32.xlu0 %v120, 120
      %v250 = vpop.permute.xlu0 %249
      %251 = vrot.lane.b32.xlu0 %v120, 88
      %v252 = vpop.permute.xlu0 %251
      %v254 = vsel %vm124, %v250, 0
      %v257 = vsel %vm124, %v252, 0
      %259 = vmatprep.subr.bf16.mxu0 0
      %260 = vmatpush1.bf16.xpose.msra.mxu0 %v257
      %261 = vmatprep.subr.bf16.mxu0 0
      %262 = vmatpush1.bf16.xpose.msra.mxu0 0
      %263 = vmatprep.subr.bf16.mxu0 0
      %264 = vmatpush1.bf16.xpose.msra.mxu0 0
      %265 = vmatprep.subr.bf16.mxu0 0
      %266 = vmatpush1.bf16.xpose.msra.mxu0 0
      %267 = vmatprep.subr.bf16.mxu0 0
      %268 = vmatpush1.bf16.xpose.msra.mxu0 0
      %269 = vmatprep.subr.bf16.mxu0 0
      %270 = vmatpush1.bf16.xpose.msra.mxu0 0
      %271 = vmatprep.subr.bf16.mxu0 0
      %272 = vmatpush1.bf16.xpose.msra.mxu0 0
      %273 = vmatprep.subr.bf16.mxu0 0
      %274 = vmatpush1.bf16.xpose.msra.mxu0 0
      %275 = vmatprep.subr.bf16.mxu0 0
      %276 = vmatpush1.bf16.xpose.msra.mxu0 0
      %277 = vmatprep.subr.bf16.mxu0 0
      %278 = vmatpush1.bf16.xpose.msra.mxu0 0
      %279 = vmatprep.subr.bf16.mxu0 0
      %280 = vmatpush1.bf16.xpose.msra.mxu0 0
      %281 = vmatprep.subr.bf16.mxu0 0
      %282 = vmatpush1.bf16.xpose.msra.mxu0 0
      %283 = vmatprep.subr.bf16.mxu0 0
      %284 = vmatpush1.bf16.xpose.msra.mxu0 0
      %285 = vmatprep.subr.bf16.mxu0 0
      %286 = vmatpush1.bf16.xpose.msra.mxu0 0
      %287 = vmatprep.subr.bf16.mxu0 0
      %288 = vmatpush1.bf16.xpose.msra.mxu0 0
      %289 = vmatprep.subr.bf16.mxu0 0
      %290 = vmatpush1.bf16.xpose.msra.mxu0 0
      %291 = vmatprep.mubr.bf16.mxu0 0
      %292 = vmatmul.mubr.bf16.gmra.mrb[0].mxu0 %v254
      %v293 = vpop.f32.mrb[0].mxu0
      %v294 = vadd.f32 0.0, %v293
      %v295 = vpop.f32.mrb[0].mxu0
      %v296 = vpop.f32.mrb[0].mxu0
      %v297 = vadd.f32 0.0, %v296
      %v298 = vpop.f32.mrb[0].mxu0
      %299 = vdwg.mxu0
      %v300 = vmul.f32 %v294, 0.35355338
      %v301 = vmul.f32 %v297, 0.35355338
      %v302 = vsel %vm174, %v300, -inf
      %303 = vmax.xlane.f32.xlu0 %v302
      %v304 = vpop.xlane.xlu0 %303
      %v305 = vsel %vm178, %v301, -inf
      %306 = vmax.xlane.f32.xlu0 %v305
      %v307 = vpop.xlane.xlu0 %306
      %v308 = vsub.f32 %v300, %v304
      %v309 = vsub.f32 %v301, %v307
      %v310 = vmul.f32 %v308, 1.442695
      %v311 = vpow.pop %v310
      %v312 = vmul.f32 %v309, 1.442695
      %v313 = vpow.pop %v312
      %v314 = vsel %vm174, %v311, 0.0
      %315 = vadd.xlane.f32.xlu0 %v314
      %v316 = vpop.xlane.xlu0 %315
      %v317 = vsel %vm178, %v313, 0.0
      %318 = vadd.xlane.f32.xlu0 %v317
      %v319 = vpop.xlane.xlu0 %318
      %v320 = vrcp.pop %v316
      %v321 = vmul.f32 %v311, %v320
      %v322 = vrcp.pop %v319
      %v323 = vmul.f32 %v313, %v322
      %v324 = vpack.c.bf16 %v323, %v321
      %325 = vrot.lane.b32.xlu0 %v120, 56
      %v326 = vpop.permute.xlu0 %325
      %v328 = vsel %vm174, %v324, 0
      %v331 = vsel %vm204, %v326, 0
      %333 = vmatprep.subr.bf16.mxu0 0
      %334 = vmatpush1.bf16.msra.mxu0 %v331
      %335 = vmatprep.subr.bf16.mxu0 0
      %336 = vmatpush1.bf16.msra.mxu0 0
      %337 = vmatprep.subr.bf16.mxu0 0
      %338 = vmatpush1.bf16.msra.mxu0 0
      %339 = vmatprep.subr.bf16.mxu0 0
      %340 = vmatpush1.bf16.msra.mxu0 0
      %341 = vmatprep.subr.bf16.mxu0 0
      %342 = vmatpush1.bf16.msra.mxu0 0
      %343 = vmatprep.subr.bf16.mxu0 0
      %344 = vmatpush1.bf16.msra.mxu0 0
      %345 = vmatprep.subr.bf16.mxu0 0
      %346 = vmatpush1.bf16.msra.mxu0 0
      %347 = vmatprep.subr.bf16.mxu0 0
      %348 = vmatpush1.bf16.msra.mxu0 0
      %349 = vmatprep.subr.bf16.mxu0 0
      %350 = vmatpush1.bf16.msra.mxu0 0
      %351 = vmatprep.subr.bf16.mxu0 0
      %352 = vmatpush1.bf16.msra.mxu0 0
      %353 = vmatprep.subr.bf16.mxu0 0
      %354 = vmatpush1.bf16.msra.mxu0 0
      %355 = vmatprep.subr.bf16.mxu0 0
      %356 = vmatpush1.bf16.msra.mxu0 0
      %357 = vmatprep.subr.bf16.mxu0 0
      %358 = vmatpush1.bf16.msra.mxu0 0
      %359 = vmatprep.subr.bf16.mxu0 0
      %360 = vmatpush1.bf16.msra.mxu0 0
      %361 = vmatprep.subr.bf16.mxu0 0
      %362 = vmatpush1.bf16.msra.mxu0 0
      %363 = vmatprep.subr.bf16.mxu0 0
      %364 = vmatpush1.bf16.msra.mxu0 0
      %365 = vmatprep.mubr.bf16.mxu0 0
      %366 = vmatmul.mubr.bf16.gmra.mrb[0].mxu0 %v328
      %v367 = vpop.f32.mrb[0].mxu0
      %v368 = vadd.f32 0.0, %v367
      %v369 = vpop.f32.mrb[0].mxu0
      %v370 = vpop.f32.mrb[0].mxu0
      %v371 = vadd.f32 0.0, %v370
      %v372 = vpop.f32.mrb[0].mxu0
      %373 = vdwg.mxu0
      %374 = vrot.lane.b32.xlu0 %v120, 112
      %v375 = vpop.permute.xlu0 %374
      %376 = vrot.lane.b32.xlu0 %v120, 80
      %v377 = vpop.permute.xlu0 %376
      %v379 = vsel %vm124, %v375, 0
      %v382 = vsel %vm124, %v377, 0
      %384 = vmatprep.subr.bf16.mxu0 0
      %385 = vmatpush1.bf16.xpose.msra.mxu0 %v382
      %386 = vmatprep.subr.bf16.mxu0 0
      %387 = vmatpush1.bf16.xpose.msra.mxu0 0
      %388 = vmatprep.subr.bf16.mxu0 0
      %389 = vmatpush1.bf16.xpose.msra.mxu0 0
      %390 = vmatprep.subr.bf16.mxu0 0
      %391 = vmatpush1.bf16.xpose.msra.mxu0 0
      %392 = vmatprep.subr.bf16.mxu0 0
      %393 = vmatpush1.bf16.xpose.msra.mxu0 0
      %394 = vmatprep.subr.bf16.mxu0 0
      %395 = vmatpush1.bf16.xpose.msra.mxu0 0
      %396 = vmatprep.subr.bf16.mxu0 0
      %397 = vmatpush1.bf16.xpose.msra.mxu0 0
      %398 = vmatprep.subr.bf16.mxu0 0
      %399 = vmatpush1.bf16.xpose.msra.mxu0 0
      %400 = vmatprep.subr.bf16.mxu0 0
      %401 = vmatpush1.bf16.xpose.msra.mxu0 0
      %402 = vmatprep.subr.bf16.mxu0 0
      %403 = vmatpush1.bf16.xpose.msra.mxu0 0
      %404 = vmatprep.subr.bf16.mxu0 0
      %405 = vmatpush1.bf16.xpose.msra.mxu0 0
      %406 = vmatprep.subr.bf16.mxu0 0
      %407 = vmatpush1.bf16.xpose.msra.mxu0 0
      %408 = vmatprep.subr.bf16.mxu0 0
      %409 = vmatpush1.bf16.xpose.msra.mxu0 0
      %410 = vmatprep.subr.bf16.mxu0 0
      %411 = vmatpush1.bf16.xpose.msra.mxu0 0
      %412 = vmatprep.subr.bf16.mxu0 0
      %413 = vmatpush1.bf16.xpose.msra.mxu0 0
      %414 = vmatprep.subr.bf16.mxu0 0
      %415 = vmatpush1.bf16.xpose.msra.mxu0 0
      %416 = vmatprep.mubr.bf16.mxu0 0
      %417 = vmatmul.mubr.bf16.gmra.mrb[0].mxu0 %v379
      %v418 = vpop.f32.mrb[0].mxu0
      %v419 = vadd.f32 0.0, %v418
      %v420 = vpop.f32.mrb[0].mxu0
      %v421 = vpop.f32.mrb[0].mxu0
      %v422 = vadd.f32 0.0, %v421
      %v423 = vpop.f32.mrb[0].mxu0
      %424 = vdwg.mxu0
      %v425 = vmul.f32 %v419, 0.35355338
      %v426 = vmul.f32 %v422, 0.35355338
      %v427 = vsel %vm174, %v425, -inf
      %428 = vmax.xlane.f32.xlu0 %v427
      %v429 = vpop.xlane.xlu0 %428
      %v430 = vsel %vm178, %v426, -inf
      %431 = vmax.xlane.f32.xlu0 %v430
      %v432 = vpop.xlane.xlu0 %431
      %v433 = vsub.f32 %v425, %v429
      %v434 = vsub.f32 %v426, %v432
      %v435 = vmul.f32 %v433, 1.442695
      %v436 = vpow.pop %v435
      %v437 = vmul.f32 %v434, 1.442695
      %v438 = vpow.pop %v437
      %v439 = vsel %vm174, %v436, 0.0
      %440 = vadd.xlane.f32.xlu0 %v439
      %v441 = vpop.xlane.xlu0 %440
      %v442 = vsel %vm178, %v438, 0.0
      %443 = vadd.xlane.f32.xlu0 %v442
      %v444 = vpop.xlane.xlu0 %443
      %v445 = vrcp.pop %v441
      %v446 = vmul.f32 %v436, %v445
      %v447 = vrcp.pop %v444
      %v448 = vmul.f32 %v438, %v447
      %v449 = vpack.c.bf16 %v448, %v446
      %450 = vrot.lane.b32.xlu0 %v120, 48
      %v451 = vpop.permute.xlu0 %450
      %v453 = vsel %vm174, %v449, 0
      %v456 = vsel %vm204, %v451, 0
      %458 = vmatprep.subr.bf16.mxu0 0
      %459 = vmatpush1.bf16.msra.mxu0 %v456
      %460 = vmatprep.subr.bf16.mxu0 0
      %461 = vmatpush1.bf16.msra.mxu0 0
      %462 = vmatprep.subr.bf16.mxu0 0
      %463 = vmatpush1.bf16.msra.mxu0 0
      %464 = vmatprep.subr.bf16.mxu0 0
      %465 = vmatpush1.bf16.msra.mxu0 0
      %466 = vmatprep.subr.bf16.mxu0 0
      %467 = vmatpush1.bf16.msra.mxu0 0
      %468 = vmatprep.subr.bf16.mxu0 0
      %469 = vmatpush1.bf16.msra.mxu0 0
      %470 = vmatprep.subr.bf16.mxu0 0
      %471 = vmatpush1.bf16.msra.mxu0 0
      %472 = vmatprep.subr.bf16.mxu0 0
      %473 = vmatpush1.bf16.msra.mxu0 0
      %474 = vmatprep.subr.bf16.mxu0 0
      %475 = vmatpush1.bf16.msra.mxu0 0
      %476 = vmatprep.subr.bf16.mxu0 0
      %477 = vmatpush1.bf16.msra.mxu0 0
      %478 = vmatprep.subr.bf16.mxu0 0
      %479 = vmatpush1.bf16.msra.mxu0 0
      %480 = vmatprep.subr.bf16.mxu0 0
      %481 = vmatpush1.bf16.msra.mxu0 0
      %482 = vmatprep.subr.bf16.mxu0 0
      %483 = vmatpush1.bf16.msra.mxu0 0
      %484 = vmatprep.subr.bf16.mxu0 0
      %485 = vmatpush1.bf16.msra.mxu0 0
      %486 = vmatprep.subr.bf16.mxu0 0
      %487 = vmatpush1.bf16.msra.mxu0 0
      %488 = vmatprep.subr.bf16.mxu0 0
      %489 = vmatpush1.bf16.msra.mxu0 0
      %490 = vmatprep.mubr.bf16.mxu0 0
      %491 = vmatmul.mubr.bf16.gmra.mrb[0].mxu0 %v453
      %v492 = vpop.f32.mrb[0].mxu0
      %v493 = vadd.f32 0.0, %v492
      %v494 = vpop.f32.mrb[0].mxu0
      %v495 = vpop.f32.mrb[0].mxu0
      %v496 = vadd.f32 0.0, %v495
      %v497 = vpop.f32.mrb[0].mxu0
      %498 = vdwg.mxu0
      %499 = vrot.lane.b32.xlu0 %v120, 104
      %v500 = vpop.permute.xlu0 %499
      %501 = vrot.lane.b32.xlu0 %v120, 72
      %v502 = vpop.permute.xlu0 %501
      %v504 = vsel %vm124, %v500, 0
      %v507 = vsel %vm124, %v502, 0
      %509 = vmatprep.subr.bf16.mxu0 0
      %510 = vmatpush1.bf16.xpose.msra.mxu0 %v507
      %511 = vmatprep.subr.bf16.mxu0 0
      %512 = vmatpush1.bf16.xpose.msra.mxu0 0
      %513 = vmatprep.subr.bf16.mxu0 0
      %514 = vmatpush1.bf16.xpose.msra.mxu0 0
      %515 = vmatprep.subr.bf16.mxu0 0
      %516 = vmatpush1.bf16.xpose.msra.mxu0 0
      %517 = vmatprep.subr.bf16.mxu0 0
      %518 = vmatpush1.bf16.xpose.msra.mxu0 0
      %519 = vmatprep.subr.bf16.mxu0 0
      %520 = vmatpush1.bf16.xpose.msra.mxu0 0
      %521 = vmatprep.subr.bf16.mxu0 0
      %522 = vmatpush1.bf16.xpose.msra.mxu0 0
      %523 = vmatprep.subr.bf16.mxu0 0
      %524 = vmatpush1.bf16.xpose.msra.mxu0 0
      %525 = vmatprep.subr.bf16.mxu0 0
      %526 = vmatpush1.bf16.xpose.msra.mxu0 0
      %527 = vmatprep.subr.bf16.mxu0 0
      %528 = vmatpush1.bf16.xpose.msra.mxu0 0
      %529 = vmatprep.subr.bf16.mxu0 0
      %530 = vmatpush1.bf16.xpose.msra.mxu0 0
      %531 = vmatprep.subr.bf16.mxu0 0
      %532 = vmatpush1.bf16.xpose.msra.mxu0 0
      %533 = vmatprep.subr.bf16.mxu0 0
      %534 = vmatpush1.bf16.xpose.msra.mxu0 0
      %535 = vmatprep.subr.bf16.mxu0 0
      %536 = vmatpush1.bf16.xpose.msra.mxu0 0
      %537 = vmatprep.subr.bf16.mxu0 0
      %538 = vmatpush1.bf16.xpose.msra.mxu0 0
      %539 = vmatprep.subr.bf16.mxu0 0
      %540 = vmatpush1.bf16.xpose.msra.mxu0 0
      %541 = vmatprep.mubr.bf16.mxu0 0
      %542 = vmatmul.mubr.bf16.gmra.mrb[0].mxu0 %v504
      %v543 = vpop.f32.mrb[0].mxu0
      %v544 = vadd.f32 0.0, %v543
      %v545 = vpop.f32.mrb[0].mxu0
      %v546 = vpop.f32.mrb[0].mxu0
      %v547 = vadd.f32 0.0, %v546
      %v548 = vpop.f32.mrb[0].mxu0
      %549 = vdwg.mxu0
      %v550 = vmul.f32 %v544, 0.35355338
      %v551 = vmul.f32 %v547, 0.35355338
      %v552 = vsel %vm174, %v550, -inf
      %553 = vmax.xlane.f32.xlu0 %v552
      %v554 = vpop.xlane.xlu0 %553
      %v555 = vsel %vm178, %v551, -inf
      %556 = vmax.xlane.f32.xlu0 %v555
      %v557 = vpop.xlane.xlu0 %556
      %v558 = vsub.f32 %v550, %v554
      %v559 = vsub.f32 %v551, %v557
      %v560 = vmul.f32 %v558, 1.442695
      %v561 = vpow.pop %v560
      %v562 = vmul.f32 %v559, 1.442695
      %v563 = vpow.pop %v562
      %v564 = vsel %vm174, %v561, 0.0
      %565 = vadd.xlane.f32.xlu0 %v564
      %v566 = vpop.xlane.xlu0 %565
      %v567 = vsel %vm178, %v563, 0.0
      %568 = vadd.xlane.f32.xlu0 %v567
      %v569 = vpop.xlane.xlu0 %568
      %v570 = vrcp.pop %v566
      %v571 = vmul.f32 %v561, %v570
      %v572 = vrcp.pop %v569
      %v573 = vmul.f32 %v563, %v572
      %v574 = vpack.c.bf16 %v573, %v571
      %575 = vrot.lane.b32.xlu0 %v120, 40
      %v576 = vpop.permute.xlu0 %575
      %v578 = vsel %vm174, %v574, 0
      %v581 = vsel %vm204, %v576, 0
      %583 = vmatprep.subr.bf16.mxu0 0
      %584 = vmatpush1.bf16.msra.mxu0 %v581
      %585 = vmatprep.subr.bf16.mxu0 0
      %586 = vmatpush1.bf16.msra.mxu0 0
      %587 = vmatprep.subr.bf16.mxu0 0
      %588 = vmatpush1.bf16.msra.mxu0 0
      %589 = vmatprep.subr.bf16.mxu0 0
      %590 = vmatpush1.bf16.msra.mxu0 0
      %591 = vmatprep.subr.bf16.mxu0 0
      %592 = vmatpush1.bf16.msra.mxu0 0
      %593 = vmatprep.subr.bf16.mxu0 0
      %594 = vmatpush1.bf16.msra.mxu0 0
      %595 = vmatprep.subr.bf16.mxu0 0
      %596 = vmatpush1.bf16.msra.mxu0 0
      %597 = vmatprep.subr.bf16.mxu0 0
      %598 = vmatpush1.bf16.msra.mxu0 0
      %599 = vmatprep.subr.bf16.mxu0 0
      %600 = vmatpush1.bf16.msra.mxu0 0
      %601 = vmatprep.subr.bf16.mxu0 0
      %602 = vmatpush1.bf16.msra.mxu0 0
      %603 = vmatprep.subr.bf16.mxu0 0
      %604 = vmatpush1.bf16.msra.mxu0 0
      %605 = vmatprep.subr.bf16.mxu0 0
      %606 = vmatpush1.bf16.msra.mxu0 0
      %607 = vmatprep.subr.bf16.mxu0 0
      %608 = vmatpush1.bf16.msra.mxu0 0
      %609 = vmatprep.subr.bf16.mxu0 0
      %610 = vmatpush1.bf16.msra.mxu0 0
      %611 = vmatprep.subr.bf16.mxu0 0
      %612 = vmatpush1.bf16.msra.mxu0 0
      %613 = vmatprep.subr.bf16.mxu0 0
      %614 = vmatpush1.bf16.msra.mxu0 0
      %615 = vmatprep.mubr.bf16.mxu0 0
      %616 = vmatmul.mubr.bf16.gmra.mrb[0].mxu0 %v578
      %v617 = vpop.f32.mrb[0].mxu0
      %v618 = vadd.f32 0.0, %v617
      %v619 = vpop.f32.mrb[0].mxu0
      %v620 = vpop.f32.mrb[0].mxu0
      %v621 = vadd.f32 0.0, %v620
      %v622 = vpop.f32.mrb[0].mxu0
      %623 = vdwg.mxu0
      %626 = vrot.lane.b32.xlu0 %v368, 8
      %v627 = vpop.permute.xlu0 %626
      %628 = vrot.lane.b32.xlu0 %v371, 8
      %v629 = vpop.permute.xlu0 %628
      %634 = vrot.lane.b32.xlu0 %v493, 16
      %v635 = vpop.permute.xlu0 %634
      %636 = vrot.lane.b32.xlu0 %v496, 16
      %v637 = vpop.permute.xlu0 %636
      %642 = vrot.lane.b32.xlu0 %v618, 24
      %v643 = vpop.permute.xlu0 %642
      %644 = vrot.lane.b32.xlu0 %v621, 24
      %v645 = vpop.permute.xlu0 %644
      %v648 = vsel %vm124, %v243, %v627
      %v649 = vsel %vm124, %v246, %v629
      %vm650 = vcmask 130048
      %v651 = vsel %vm650, %v648, %v635
      %v652 = vsel %vm650, %v649, %v637
      %vm653 = vcmask 195584
      %v654 = vsel %vm653, %v651, %v643
      %v655 = vsel %vm653, %v652, %v645
      %vm656 = vcmask 261120
      %657 = vst.msk [vmem:[%s116] sm:$0xff] %vm656, %v654
      %vm658 = vcmask 257024
      %659 = vst.msk [vmem:[%s116 + $0x8] sm:$0xf] %vm658, %v655
      %p660 = scmp.lt.s32.totalorder %s12, 1
      %s661 = scalar_select %p660, %s12, 1
      %s662 = smul.addr %s661, 2
      %s663 = smul.addr %s662, 8
      %s664 = scalar_lea.vmem %s1, %s663
      // Predicated region
      $region25: #{codegen_forward.40} parent=23 // pred_check
        %p665 = pneg %p56
      $region26: #{codegen_forward.40} parent=23 // pred_check_branch
        %667 = sbr.rel (%p665) target = $region28
      $region27: #{codegen_forward.40} parent=23 // pred_region
        _
      $region28: #{codegen_forward.40} parent=23 // pred_fallthru
        _
    $region24: #{codegen_forward.40} parent=5 // pred_fallthru
      _
    %p668 = scmp.le.s32.totalorder 2, %s7
    // Predicated region
    $region29: #{codegen_forward.40} parent=5 // pred_check
      %p669 = pneg %p668
    $region30: #{codegen_forward.40} parent=5 // pred_check_branch
      %671 = sbr.rel (%p669) target = $region32
    $region31: #{codegen_forward.40} parent=5 // pred_region
      %s672 = ssub.s32 %s7, 2
      // Predicated region
      $region33: #{codegen_forward.40} parent=31 // pred_check
        %p673 = pneg %p62
      $region34: #{codegen_forward.40} parent=31 // pred_check_branch
        %675 = sbr.rel (%p673) target = $region36
      $region35: #{codegen_forward.40} parent=31 // pred_region
        %p676 = scmp.lt.s32.totalorder %s13, 1
        %s677 = scalar_select %p676, %s13, 1
        %s678 = smul.addr %s677, 2
        %s679 = smul.addr %s678, 8
        %s680 = scalar_lea.vmem %s1, %s679
      $region36: #{codegen_forward.40} parent=31 // pred_fallthru
        _
    $region32: #{codegen_forward.40} parent=5 // pred_fallthru
      _
  $region6: #{codegen_forward.40} parent=0 // loop_footer
    %s11 = sadd.s32 1, %s7
  $region7: #{codegen_forward.40} parent=0 // loop_footer_branch
    %6 = sbr.rel target = $region3
  $region8: #{codegen_forward.40} parent=0 // loop_exit
    _

// kernel: codegen_forward.43
$region0: #{codegen_forward.43}
  #allocation0 [shape = 'u32[]', space=smem, size = 0x4, offset = 0x4, fixed_abs, tag = 'smem constant byte address 0x4 - core index']
  #allocation1 [shape = 'u32[144,128]{1,0:T(1,128)}', space=vmem, size = 0x12000, scoped, tag = 'internal scratch']
  %s0 = inlined_call_operand.vmem [shape: f32[24,32], index: 0, kind: input, shape index: {}]
  %s1 = inlined_call_operand.vmem [shape: bf16[32,2048], index: 1, kind: input, shape index: {}]
  %s2 = inlined_call_operand.vmem [shape: f32[1,2048], index: 2, kind: input, shape index: {}]
  %s3 = inlined_call_operand.vmem [shape: f32[24,2048], index: 3, kind: output, shape index: {}]
  %s4 = sld [smem:[#allocation0]]
  $region87: #{codegen_forward.43} parent=0
    _
  %s6 = ssub.s32 1, %s4
  %s7 = scalar_select 0, %s6, %s4
  $region1: #{codegen_forward.43} parent=0
    #allocation2 [shape = 'u8[65536]{0}', space=vmem, size = 0x10000, scoped, tag = 'input window, operand 1']
    #allocation3 [shape = 'u8[98304]{0}', space=vmem, size = 0x18000, scoped, tag = 'output window, operand 0']
    loop: start=0, step=1, limit=6
    $region2: #{codegen_forward.43} parent=1 // loop_pre_header
      _
    $region3: #{codegen_forward.43} parent=1 // loop_header
      %s9 = sphi 0, %s13
      %p10 = scmp.ge.s32.totalorder %s9, 6
      %s16 = sphi 0, %s28
      %s17 = sphi 0, %s24
      %s18 = sphi 0, %s16
      %s19 = sphi 0, %s17
      %s20 = sphi 0, %s18
      %s21 = sphi 0, %s19
      %s31 = sphi 0, %s33
      %s34 = sphi 0, %s31
      %s35 = sphi 0, %s34
      %s51 = sphi 0, %s35
      %s57 = sphi 0, %s59
      %s60 = sphi 0, %s57
      %s61 = sphi 0, %s60
      %s77 = sphi 0, %s61
      %s83 = sphi 0, %s85
      %s86 = sphi 0, %s83
      %s87 = sphi 0, %s86
      %s103 = sphi 0, %s87
      %s111 = sphi 0, %s113
      %s114 = sphi 0, %s111
      %s115 = sphi 0, %s114
      %s131 = sphi 0, %s115
    $region4: #{codegen_forward.43} parent=1 // loop_header_branch
      %12 = sbr.rel (%p10) target = $region8
    $region5: #{codegen_forward.43} parent=1 // loop_body
      %s14 = ssub.s32 %s9, 1
      %s15 = ssub.s32 %s9, 2
      %s22 = sadd.s32 1, %s17
      %p23 = scmp.ge.s32.totalorder %s22, 4
      %s24 = scalar_select %p23, 0, %s22
      %s25 = sadd.s32 1, %s16
      %s26 = scalar_select %p23, %s25, %s16
      %p27 = scmp.ge.s32.totalorder %s26, 1
      %s28 = scalar_select %p27, 0, %s26
      %s29 = ssub.s32 %s16, %s28
      %p30 = scmp.eq.s32.totalorder %s29, 0
      %s32 = sadd.s32 %s31, 1
      %s33 = scalar_select %p30, %s31, %s32
      %p36 = pneg %p30
      %p37 = scmp.eq.s32.totalorder %s9, 3
      %p38 = por %p36, %p37
      %p39 = scmp.ne.s32.totalorder %s31, %s34
      %p40 = scmp.eq.s32.totalorder %s9, 0
      %p41 = por %p39, %p40
      %p42 = scmp.ne.s32.totalorder %s31, %s34
      %p43 = scmp.eq.s32.totalorder %s14, 3
      %p44 = por %p42, %p43
      %p45 = scmp.ne.s32.totalorder %s34, %s35
      %p46 = scmp.eq.s32.totalorder %s14, 0
      %p47 = por %p45, %p46
      %p48 = scmp.ne.s32.totalorder %s34, %s35
      %p49 = scmp.eq.s32.totalorder %s15, 3
      %p50 = por %p48, %p49
      %p52 = scmp.ne.s32.totalorder %s35, %s51
      %p53 = scmp.eq.s32.totalorder %s15, 0
      %p54 = por %p52, %p53
      %s55 = ssub.s32 %s17, %s24
      %p56 = scmp.eq.s32.totalorder %s55, 0
      %s58 = sadd.s32 %s57, 1
      %s59 = scalar_select %p56, %s57, %s58
      %p62 = pneg %p56
      %p63 = scmp.eq.s32.totalorder %s9, 3
      %p64 = por %p62, %p63
      %p65 = scmp.ne.s32.totalorder %s57, %s60
      %p66 = scmp.eq.s32.totalorder %s9, 0
      %p67 = por %p65, %p66
      %p68 = scmp.ne.s32.totalorder %s57, %s60
      %p69 = scmp.eq.s32.totalorder %s14, 3
      %p70 = por %p68, %p69
      %p71 = scmp.ne.s32.totalorder %s60, %s61
      %p72 = scmp.eq.s32.totalorder %s14, 0
      %p73 = por %p71, %p72
      %p74 = scmp.ne.s32.totalorder %s60, %s61
      %p75 = scmp.eq.s32.totalorder %s15, 3
      %p76 = por %p74, %p75
      %p78 = scmp.ne.s32.totalorder %s61, %s77
      %p79 = scmp.eq.s32.totalorder %s15, 0
      %p80 = por %p78, %p79
      %s81 = ssub.s32 %s17, %s24
      %p82 = scmp.eq.s32.totalorder %s81, 0
      %s84 = sadd.s32 %s83, 1
      %s85 = scalar_select %p82, %s83, %s84
      %p88 = pneg %p82
      %p89 = scmp.eq.s32.totalorder %s9, 3
      %p90 = por %p88, %p89
      %p91 = scmp.ne.s32.totalorder %s83, %s86
      %p92 = scmp.eq.s32.totalorder %s9, 0
      %p93 = por %p91, %p92
      %p94 = scmp.ne.s32.totalorder %s83, %s86
      %p95 = scmp.eq.s32.totalorder %s14, 3
      %p96 = por %p94, %p95
      %p97 = scmp.ne.s32.totalorder %s86, %s87
      %p98 = scmp.eq.s32.totalorder %s14, 0
      %p99 = por %p97, %p98
      %p100 = scmp.ne.s32.totalorder %s86, %s87
      %p101 = scmp.eq.s32.totalorder %s15, 3
      %p102 = por %p100, %p101
      %p104 = scmp.ne.s32.totalorder %s87, %s103
      %p105 = scmp.eq.s32.totalorder %s15, 0
      %p106 = por %p104, %p105
      %s107 = ssub.s32 %s16, %s28
      %s108 = ssub.s32 %s17, %s24
      %s109 = sor.u32 %s107, %s108
      %p110 = scmp.eq.s32.totalorder %s109, 0
      %s112 = sadd.s32 %s111, 1
      %s113 = scalar_select %p110, %s111, %s112
      %p116 = pneg %p110
      %p117 = scmp.eq.s32.totalorder %s9, 3
      %p118 = por %p116, %p117
      %p119 = scmp.ne.s32.totalorder %s111, %s114
      %p120 = scmp.eq.s32.totalorder %s9, 0
      %p121 = por %p119, %p120
      %p122 = scmp.ne.s32.totalorder %s111, %s114
      %p123 = scmp.eq.s32.totalorder %s14, 3
      %p124 = por %p122, %p123
      %p125 = scmp.ne.s32.totalorder %s114, %s115
      %p126 = scmp.eq.s32.totalorder %s14, 0
      %p127 = por %p125, %p126
      %p128 = scmp.ne.s32.totalorder %s114, %s115
      %p129 = scmp.eq.s32.totalorder %s15, 3
      %p130 = por %p128, %p129
      %p132 = scmp.ne.s32.totalorder %s115, %s131
      %p133 = scmp.eq.s32.totalorder %s15, 0
      %p134 = por %p132, %p133
      %p135 = scmp.le.s32.totalorder 1, %s9
      %p136 = scmp.lt.s32.totalorder %s9, 5
      %p137 = pnand %p135, %p136
      %p138 = pneg %p137
      // Predicated region
      $region9: #{codegen_forward.43} parent=5 // pred_check
        _
      $region10: #{codegen_forward.43} parent=5 // pred_check_branch
        %140 = sbr.rel (%p137) target = $region12
      $region11: #{codegen_forward.43} parent=5 // pred_region
        %s141 = ssub.s32 %s9, 1
        // Predicated region
        $region13: #{codegen_forward.43} parent=11 // pred_check
          %p142 = pneg %p47
        $region14: #{codegen_forward.43} parent=11 // pred_check_branch
          %144 = sbr.rel (%p142) target = $region16
        $region15: #{codegen_forward.43} parent=11 // pred_region
          %s145 = smul.u32 3, %s18
          %p146 = scmp.lt.s32.totalorder %s145, 2
          %s147 = scalar_select %p146, %s145, 2
          %s148 = smul.addr %s147, 8
          %s149 = scalar_lea.vmem %s0, %s148
          %s150 = smul.u32 3, %s18
        $region16: #{codegen_forward.43} parent=11 // pred_fallthru
          _
      $region12: #{codegen_forward.43} parent=5 // pred_fallthru
        _
      %p151 = scmp.lt.s32.totalorder %s9, 4
      // Predicated region
      $region17: #{codegen_forward.43} parent=5 // pred_check
        %p152 = pneg %p151
      $region18: #{codegen_forward.43} parent=5 // pred_check_branch
        %154 = sbr.rel (%p152) target = $region20
      $region19: #{codegen_forward.43} parent=5 // pred_region
        // Predicated region
        $region21: #{codegen_forward.43} parent=19 // pred_check
          %p155 = pneg %p67
        $region22: #{codegen_forward.43} parent=19 // pred_check_branch
          %157 = sbr.rel (%p155) target = $region24
        $region23: #{codegen_forward.43} parent=19 // pred_region
          %s158 = sand.u32 %s57, 1
          %s159 = sand.u32 %s57, 1
          %s160 = smul.addr %s159, 64
          %s161 = scalar_lea.vmem [#allocation2], %s160
          %s162 = smul.u32 4, %s17
          %s163 = smul.addr %s162, 4
          %s164 = scalar_lea.vmem %s1, %s163
          // Predicated region
          $region25: #{codegen_forward.43} parent=23 // pred_check
            _
          $region26: #{codegen_forward.43} parent=23 // pred_check_branch
            %166 = sbr.rel (0) target = $region28
          $region27: #{codegen_forward.43} parent=23 // pred_region
            // Predicated region
            $region29: #{codegen_forward.43} parent=27 // pred_check
              _
            $region30: #{codegen_forward.43} parent=27 // pred_check_branch
              %168 = sbr.rel (0) target = $region32
            $region31: #{codegen_forward.43} parent=27 // pred_region
              loop: start=0, step=1, limit=1
              $region33: #{codegen_forward.43} parent=31 // loop_pre_header
                _
              $region34: #{codegen_forward.43} parent=31 // loop_header
                %s170 = sphi 0, %s174
                %p171 = scmp.ge.s32.totalorder %s170, 1
                %s175 = sphi %s164, %s164
                %s176 = sphi %s161, %s161
              $region35: #{codegen_forward.43} parent=31 // loop_header_branch
                %173 = sbr.rel (%p171) target = $region39
              $region36: #{codegen_forward.43} parent=31 // loop_body
                %v177 = vld [vmem:[%s175] sm:$0xff]
                %178 = vst [vmem:[%s176] sm:$0xff] %v177
                %v179 = vld [vmem:[%s175 + $0x8] sm:$0xff]
                %180 = vst [vmem:[%s176 + $0x8] sm:$0xff] %v179
                %v181 = vld [vmem:[%s175 + $0x40] sm:$0xff]
                %182 = vst [vmem:[%s176 + $0x10] sm:$0xff] %v181
                %v183 = vld [vmem:[%s175 + $0x48] sm:$0xff]
                %184 = vst [vmem:[%s176 + $0x18] sm:$0xff] %v183
                %v185 = vld [vmem:[%s175 + $0x80] sm:$0xff]
                %186 = vst [vmem:[%s176 + $0x20] sm:$0xff] %v185
                %v187 = vld [vmem:[%s175 + $0x88] sm:$0xff]
                %188 = vst [vmem:[%s176 + $0x28] sm:$0xff] %v187
                %v189 = vld [vmem:[%s175 + $0xc0] sm:$0xff]
                %190 = vst [vmem:[%s176 + $0x30] sm:$0xff] %v189
                %v191 = vld [vmem:[%s175 + $0xc8] sm:$0xff]
                %192 = vst [vmem:[%s176 + $0x38] sm:$0xff] %v191
              $region37: #{codegen_forward.43} parent=31 // loop_footer
                %s174 = sadd.s32 1, %s170
              $region38: #{codegen_forward.43} parent=31 // loop_footer_branch
                %169 = sbr.rel target = $region34
              $region39: #{codegen_forward.43} parent=31 // loop_exit
                _
            $region32: #{codegen_forward.43} parent=27 // pred_fallthru
              _
            // Predicated region
            $region40: #{codegen_forward.43} parent=27 // pred_check
              _
            $region41: #{codegen_forward.43} parent=27 // pred_check_branch
              %194 = sbr.rel target = $region43
            $region42: #{codegen_forward.43} parent=27 // pred_region
              _
            $region43: #{codegen_forward.43} parent=27 // pred_fallthru
              _
          $region28: #{codegen_forward.43} parent=23 // pred_fallthru
            _
          %195 = vnop
        $region24: #{codegen_forward.43} parent=19 // pred_fallthru
          _
        // Predicated region
        $region44: #{codegen_forward.43} parent=19 // pred_check
          %p196 = pneg %p93
        $region45: #{codegen_forward.43} parent=19 // pred_check_branch
          %198 = sbr.rel (%p196) target = $region47
        $region46: #{codegen_forward.43} parent=19 // pred_region
          %s199 = smul.u32 4, %s17
          %p200 = scmp.lt.s32.totalorder %s199, 15
          %s201 = scalar_select %p200, %s199, 15
          %s202 = scalar_lea.vmem %s2, %s201
          %s203 = smul.u32 4, %s17
        $region47: #{codegen_forward.43} parent=19 // pred_fallthru
          _
      $region20: #{codegen_forward.43} parent=5 // pred_fallthru
        _
      %p204 = scmp.le.s32.totalorder 1, %s9
      %p205 = scmp.lt.s32.totalorder %s9, 5
      %p206 = pnand %p204, %p205
      %p207 = pneg %p206
      // Predicated region
      $region48: #{codegen_forward.43} parent=5 // pred_check
        _
      $region49: #{codegen_forward.43} parent=5 // pred_check_branch
        %209 = sbr.rel (%p206) target = $region51
      $region50: #{codegen_forward.43} parent=5 // pred_region
        %s210 = ssub.s32 %s9, 1
        %s211 = sand.u32 %s60, 1
        %s212 = sand.u32 %s60, 1
        %s213 = smul.addr %s212, 64
        %s214 = scalar_lea.vmem [#allocation2], %s213
        // Predicated region
        $region52: #{codegen_forward.43} parent=50 // pred_check
          %p215 = pneg %p73
        $region53: #{codegen_forward.43} parent=50 // pred_check_branch
          %217 = sbr.rel (%p215) target = $region55
        $region54: #{codegen_forward.43} parent=50 // pred_region
          _
        $region55: #{codegen_forward.43} parent=50 // pred_fallthru
          _
        %s218 = smul.u32 3, %s18
        %p219 = scmp.lt.s32.totalorder %s218, 2
        %s220 = scalar_select %p219, %s218, 2
        %s221 = smul.addr %s220, 8
        %s222 = scalar_lea.vmem %s0, %s221
        %p223 = pneg %p47
        %p224 = pneg %p44
        %s225 = sand.u32 %s60, 1
        %s226 = sand.u32 %s60, 1
        %s227 = smul.addr %s226, 64
        %s228 = scalar_lea.vmem [#allocation2], %s227
        %p229 = pneg %p73
        %p230 = pneg %p70
        %s231 = smul.u32 4, %s19
        %p232 = scmp.lt.s32.totalorder %s231, 15
        %s233 = scalar_select %p232, %s231, 15
        %s234 = scalar_lea.vmem %s2, %s233
        %p235 = pneg %p99
        %p236 = pneg %p96
        %p237 = pneg %p127
        %p238 = pneg %p124
        %s239 = sand.u32 %s114, 1
        %s240 = sand.u32 %s114, 1
        %s241 = smul.addr %s240, 96
        %s242 = scalar_lea.vmem [#allocation3], %s241
        %s243 = smul.u32 3, %s18
        %p244 = scmp.lt.s32.totalorder %s243, 2
        %s245 = scalar_select %p244, %s243, 2
        %s246 = smul.addr %s245, 8
        %s247 = scalar_lea.vmem %s0, %s246
        %s248 = smul.u32 3, %s18
        %s249 = smul.u32 4, %s19
        %s250 = smul.u32 4, %s19
        %p251 = scmp.lt.s32.totalorder %s250, 15
        %s252 = scalar_select %p251, %s250, 15
        %s253 = scalar_lea.vmem %s2, %s252
        %s254 = smul.u32 4, %s19
        %s255 = smul.u32 3, %s18
        %s256 = smul.u32 4, %s19
        %v258 = vld [vmem:[%s247] sm:$0xff]
        %v259 = vld [vmem:[%s247 + $0x8] sm:$0xff]
        %v260 = vld [vmem:[%s247 + $0x10] sm:$0xff]
        %v261 = vpack.c.bf16 %v259, %v258
        %v262 = vpack.c.bf16 %v260, %v260
        %v263 = vld [vmem:[%s214] sm:$0xff]
        %v264 = vld [vmem:[%s214 + $0x8] sm:$0xff]
        %v265 = vld [vmem:[%s214 + $0x10] sm:$0xff]
        %v266 = vld [vmem:[%s214 + $0x18] sm:$0xff]
        %v267 = vld [vmem:[%s214 + $0x20] sm:$0xff]
        %v268 = vld [vmem:[%s214 + $0x28] sm:$0xff]
        %v269 = vld [vmem:[%s214 + $0x30] sm:$0xff]
        %v270 = vld [vmem:[%s214 + $0x38] sm:$0xff]
        %v271 = vld [vmem:[%s253] sm:$0xf]
        %v273 = vlaneseq
        %v274 = vshrl.u32 %v273, 7
        %v275 = vsub.s32 0, %v274
        %v276 = vrot.slane %v271, %v275
        %v277 = vlaneseq
        %v278 = vshrl.u32 %v277, 7
        %v279 = vsub.s32 1, %v278
        %v280 = vrot.slane %v271, %v279
        %v281 = vlaneseq
        %v282 = vshrl.u32 %v281, 7
        %v283 = vsub.s32 2, %v282
        %v284 = vrot.slane %v271, %v283
        %v285 = vlaneseq
        %v286 = vshrl.u32 %v285, 7
        %v287 = vsub.s32 3, %v286
        %v288 = vrot.slane %v271, %v287
        %v301 = vunpack.c.l.b16 %v263
        %v302 = vunpack.c.h.b16 %v263
        %v303 = vunpack.c.l.b16 %v264
        %v304 = vunpack.c.h.b16 %v264
        %v305 = vunpack.c.l.b16 %v265
        %v306 = vunpack.c.h.b16 %v265
        %v307 = vunpack.c.l.b16 %v266
        %v308 = vunpack.c.h.b16 %v266
        %v309 = vunpack.c.l.b16 %v267
        %v310 = vunpack.c.h.b16 %v267
        %v311 = vunpack.c.l.b16 %v268
        %v312 = vunpack.c.h.b16 %v268
        %v313 = vunpack.c.l.b16 %v269
        %v314 = vunpack.c.h.b16 %v269
        %v315 = vunpack.c.l.b16 %v270
        %v316 = vunpack.c.h.b16 %v270
        %v317 = vpack.c.b16 %v305, %v301
        %v318 = vpack.c.b16 %v306, %v302
        %v319 = vpack.c.b16 %v307, %v303
        %v320 = vpack.c.b16 %v308, %v304
        %v321 = vpack.c.b16 %v313, %v309
        %v322 = vpack.c.b16 %v314, %v310
        %v323 = vpack.c.b16 %v315, %v311
        %v324 = vpack.c.b16 %v316, %v312
        %vm333 = vcmask 261120
        %v335 = vsel %vm333, %v261, 0
        %v338 = vsel %vm333, %v262, 0
        %340 = vmatprep.subr.bf16.mxu0 %v318
        %341 = vmatpush1.bf16.msra.mxu0 %v317
        %342 = vmatprep.subr.bf16.mxu0 %v322
        %343 = vmatpush1.bf16.msra.mxu0 %v321
        %344 = vmatprep.subr.bf16.mxu0 0
        %345 = vmatpush1.bf16.msra.mxu0 0
        %346 = vmatprep.subr.bf16.mxu0 0
        %347 = vmatpush1.bf16.msra.mxu0 0
        %348 = vmatprep.subr.bf16.mxu0 0
        %349 = vmatpush1.bf16.msra.mxu0 0
        %350 = vmatprep.subr.bf16.mxu0 0
        %351 = vmatpush1.bf16.msra.mxu0 0
        %352 = vmatprep.subr.bf16.mxu0 0
        %353 = vmatpush1.bf16.msra.mxu0 0
        %354 = vmatprep.subr.bf16.mxu0 0
        %355 = vmatpush1.bf16.msra.mxu0 0
        %356 = vmatprep.subr.bf16.mxu0 0
        %357 = vmatpush1.bf16.msra.mxu0 0
        %358 = vmatprep.subr.bf16.mxu0 0
        %359 = vmatpush1.bf16.msra.mxu0 0
        %360 = vmatprep.subr.bf16.mxu0 0
        %361 = vmatpush1.bf16.msra.mxu0 0
        %362 = vmatprep.subr.bf16.mxu0 0
        %363 = vmatpush1.bf16.msra.mxu0 0
        %364 = vmatprep.subr.bf16.mxu0 0
        %365 = vmatpush1.bf16.msra.mxu0 0
        %366 = vmatprep.subr.bf16.mxu0 0
        %367 = vmatpush1.bf16.msra.mxu0 0
        %368 = vmatprep.subr.bf16.mxu0 0
        %369 = vmatpush1.bf16.msra.mxu0 0
        %370 = vmatprep.subr.bf16.mxu0 0
        %371 = vmatpush1.bf16.msra.mxu0 0
        %372 = vmatprep.mubr.bf16.mxu0 0
        %373 = vmatmul.mubr.bf16.gmra.mrb[0].mxu0 %v335
        %v374 = vpop.f32.mrb[0].mxu0
        %v375 = vadd.f32 %v276, %v374
        %v376 = vpop.f32.mrb[0].mxu0
        %v377 = vadd.f32 %v280, %v376
        %v378 = vpop.f32.mrb[0].mxu0
        %v379 = vadd.f32 %v276, %v378
        %v380 = vpop.f32.mrb[0].mxu0
        %v381 = vadd.f32 %v280, %v380
        %382 = vmatprep.mubr.bf16.mxu0 0
        %383 = vmatmul.mubr.bf16.gmra.mrb[0].mxu0 %v338
        %v384 = vpop.f32.mrb[0].mxu0
        %v385 = vadd.f32 %v276, %v384
        %v386 = vpop.f32.mrb[0].mxu0
        %v387 = vadd.f32 %v280, %v386
        %v388 = vpop.f32.mrb[0].mxu0
        %v389 = vpop.f32.mrb[0].mxu0
        %390 = vdwg.mxu0
        %391 = vmatprep.subr.bf16.mxu0 %v320
        %392 = vmatpush1.bf16.msra.mxu0 %v319
        %393 = vmatprep.subr.bf16.mxu0 %v324
        %394 = vmatpush1.bf16.msra.mxu0 %v323
        %395 = vmatprep.subr.bf16.mxu0 0
        %396 = vmatpush1.bf16.msra.mxu0 0
        %397 = vmatprep.subr.bf16.mxu0 0
        %398 = vmatpush1.bf16.msra.mxu0 0
        %399 = vmatprep.subr.bf16.mxu0 0
        %400 = vmatpush1.bf16.msra.mxu0 0
        %401 = vmatprep.subr.bf16.mxu0 0
        %402 = vmatpush1.bf16.msra.mxu0 0
        %403 = vmatprep.subr.bf16.mxu0 0
        %404 = vmatpush1.bf16.msra.mxu0 0
        %405 = vmatprep.subr.bf16.mxu0 0
        %406 = vmatpush1.bf16.msra.mxu0 0
        %407 = vmatprep.subr.bf16.mxu0 0
        %408 = vmatpush1.bf16.msra.mxu0 0
        %409 = vmatprep.subr.bf16.mxu0 0
        %410 = vmatpush1.bf16.msra.mxu0 0
        %411 = vmatprep.subr.bf16.mxu0 0
        %412 = vmatpush1.bf16.msra.mxu0 0
        %413 = vmatprep.subr.bf16.mxu0 0
        %414 = vmatpush1.bf16.msra.mxu0 0
        %415 = vmatprep.subr.bf16.mxu0 0
        %416 = vmatpush1.bf16.msra.mxu0 0
        %417 = vmatprep.subr.bf16.mxu0 0
        %418 = vmatpush1.bf16.msra.mxu0 0
        %419 = vmatprep.subr.bf16.mxu0 0
        %420 = vmatpush1.bf16.msra.mxu0 0
        %421 = vmatprep.subr.bf16.mxu0 0
        %422 = vmatpush1.bf16.msra.mxu0 0
        %423 = vmatprep.mubr.bf16.mxu0 0
        %424 = vmatmul.mubr.bf16.gmra.mrb[0].mxu0 %v335
        %v425 = vpop.f32.mrb[0].mxu0
        %v426 = vadd.f32 %v284, %v425
        %v427 = vpop.f32.mrb[0].mxu0
        %v428 = vadd.f32 %v288, %v427
        %v429 = vpop.f32.mrb[0].mxu0
        %v430 = vadd.f32 %v284, %v429
        %v431 = vpop.f32.mrb[0].mxu0
        %v432 = vadd.f32 %v288, %v431
        %433 = vmatprep.mubr.bf16.mxu0 0
        %434 = vmatmul.mubr.bf16.gmra.mrb[0].mxu0 %v338
        %v435 = vpop.f32.mrb[0].mxu0
        %v436 = vadd.f32 %v284, %v435
        %v437 = vpop.f32.mrb[0].mxu0
        %v438 = vadd.f32 %v288, %v437
        %v439 = vpop.f32.mrb[0].mxu0
        %v440 = vpop.f32.mrb[0].mxu0
        %441 = vdwg.mxu0
        %v442 = vmax.f32 %v375, 0.0
        %v443 = vmax.f32 %v377, 0.0
        %v444 = vmax.f32 %v426, 0.0
        %v445 = vmax.f32 %v428, 0.0
        %v446 = vmax.f32 %v379, 0.0
        %v447 = vmax.f32 %v381, 0.0
        %v448 = vmax.f32 %v430, 0.0
        %v449 = vmax.f32 %v432, 0.0
        %v450 = vmax.f32 %v385, 0.0
        %v451 = vmax.f32 %v387, 0.0
        %v452 = vmax.f32 %v436, 0.0
        %v453 = vmax.f32 %v438, 0.0
        %454 = vst [vmem:[%s242] sm:$0xff] %v442
        %455 = vst [vmem:[%s242 + $0x8] sm:$0xff] %v443
        %456 = vst [vmem:[%s242 + $0x10] sm:$0xff] %v444
        %457 = vst [vmem:[%s242 + $0x18] sm:$0xff] %v445
        %458 = vst [vmem:[%s242 + $0x20] sm:$0xff] %v446
        %459 = vst [vmem:[%s242 + $0x28] sm:$0xff] %v447
        %460 = vst [vmem:[%s242 + $0x30] sm:$0xff] %v448
        %461 = vst [vmem:[%s242 + $0x38] sm:$0xff] %v449
        %462 = vst [vmem:[%s242 + $0x40] sm:$0xff] %v450
        %463 = vst [vmem:[%s242 + $0x48] sm:$0xff] %v451
        %464 = vst [vmem:[%s242 + $0x50] sm:$0xff] %v452
        %465 = vst [vmem:[%s242 + $0x58] sm:$0xff] %v453
        %s466 = sand.u32 %s114, 1
        %s467 = sand.u32 %s114, 1
        %s468 = smul.addr %s467, 96
        %s469 = scalar_lea.vmem [#allocation3], %s468
        // Predicated region
        $region56: #{codegen_forward.43} parent=50 // pred_check
          %p470 = pneg %p124
        $region57: #{codegen_forward.43} parent=50 // pred_check_branch
          %472 = sbr.rel (%p470) target = $region59
        $region58: #{codegen_forward.43} parent=50 // pred_region
          %s473 = smul.u32 3, %s18
          %s474 = smul.u32 4, %s19
          %s475 = smul.addr %s473, 16
          %s476 = sadd.s32 %s474, %s475
          %s477 = smul.addr %s476, 8
          %s478 = scalar_lea.vmem %s3, %s477
          // Predicated region
          $region60: #{codegen_forward.43} parent=58 // pred_check
            _
          $region61: #{codegen_forward.43} parent=58 // pred_check_branch
            %480 = sbr.rel (0) target = $region63
          $region62: #{codegen_forward.43} parent=58 // pred_region
            // Predicated region
            $region64: #{codegen_forward.43} parent=62 // pred_check
              _
            $region65: #{codegen_forward.43} parent=62 // pred_check_branch
              %482 = sbr.rel (0) target = $region67
            $region66: #{codegen_forward.43} parent=62 // pred_region
              loop: start=0, step=1, limit=1
              $region68: #{codegen_forward.43} parent=66 // loop_pre_header
                _
              $region69: #{codegen_forward.43} parent=66 // loop_header
                %s484 = sphi 0, %s488
                %p485 = scmp.ge.s32.totalorder %s484, 1
                %s489 = sphi %s469, %s469
                %s490 = sphi %s478, %s478
              $region70: #{codegen_forward.43} parent=66 // loop_header_branch
                %487 = sbr.rel (%p485) target = $region74
              $region71: #{codegen_forward.43} parent=66 // loop_body
                %v491 = vld [vmem:[%s489] sm:$0xff]
                %492 = vst [vmem:[%s490] sm:$0xff] %v491
                %v493 = vld [vmem:[%s489 + $0x8] sm:$0xff]
                %494 = vst [vmem:[%s490 + $0x8] sm:$0xff] %v493
                %v495 = vld [vmem:[%s489 + $0x10] sm:$0xff]
                %496 = vst [vmem:[%s490 + $0x10] sm:$0xff] %v495
                %v497 = vld [vmem:[%s489 + $0x18] sm:$0xff]
                %498 = vst [vmem:[%s490 + $0x18] sm:$0xff] %v497
                %v499 = vld [vmem:[%s489 + $0x20] sm:$0xff]
                %500 = vst [vmem:[%s490 + $0x80] sm:$0xff] %v499
                %v501 = vld [vmem:[%s489 + $0x28] sm:$0xff]
                %502 = vst [vmem:[%s490 + $0x88] sm:$0xff] %v501
                %v503 = vld [vmem:[%s489 + $0x30] sm:$0xff]
                %504 = vst [vmem:[%s490 + $0x90] sm:$0xff] %v503
                %v505 = vld [vmem:[%s489 + $0x38] sm:$0xff]
                %506 = vst [vmem:[%s490 + $0x98] sm:$0xff] %v505
                %v507 = vld [vmem:[%s489 + $0x40] sm:$0xff]
                %508 = vst [vmem:[%s490 + $0x100] sm:$0xff] %v507
                %v509 = vld [vmem:[%s489 + $0x48] sm:$0xff]
                %510 = vst [vmem:[%s490 + $0x108] sm:$0xff] %v509
                %v511 = vld [vmem:[%s489 + $0x50] sm:$0xff]
                %512 = vst [vmem:[%s490 + $0x110] sm:$0xff] %v511
                %v513 = vld [vmem:[%s489 + $0x58] sm:$0xff]
                %514 = vst [vmem:[%s490 + $0x118] sm:$0xff] %v513
              $region72: #{codegen_forward.43} parent=66 // loop_footer
                %s488 = sadd.s32 1, %s484
              $region73: #{codegen_forward.43} parent=66 // loop_footer_branch
                %483 = sbr.rel target = $region69
              $region74: #{codegen_forward.43} parent=66 // loop_exit
                _
            $region67: #{codegen_forward.43} parent=62 // pred_fallthru
              _
            // Predicated region
            $region75: #{codegen_forward.43} parent=62 // pred_check
              _
            $region76: #{codegen_forward.43} parent=62 // pred_check_branch
              %516 = sbr.rel target = $region78
            $region77: #{codegen_forward.43} parent=62 // pred_region
              _
            $region78: #{codegen_forward.43} parent=62 // pred_fallthru
              _
          $region63: #{codegen_forward.43} parent=58 // pred_fallthru
            _
          %517 = vnop
        $region59: #{codegen_forward.43} parent=50 // pred_fallthru
          _
      $region51: #{codegen_forward.43} parent=5 // pred_fallthru
        _
      %p518 = scmp.le.s32.totalorder 2, %s9
      // Predicated region
      $region79: #{codegen_forward.43} parent=5 // pred_check
        %p519 = pneg %p518
      $region80: #{codegen_forward.43} parent=5 // pred_check_branch
        %521 = sbr.rel (%p519) target = $region82
      $region81: #{codegen_forward.43} parent=5 // pred_region
        %s522 = ssub.s32 %s9, 2
        // Predicated region
        $region83: #{codegen_forward.43} parent=81 // pred_check
          %p523 = pneg %p130
        $region84: #{codegen_forward.43} parent=81 // pred_check_branch
          %525 = sbr.rel (%p523) target = $region86
        $region85: #{codegen_forward.43} parent=81 // pred_region
          %s526 = sand.u32 %s115, 1
          %s527 = sand.u32 %s115, 1
          %s528 = smul.addr %s527, 96
          %s529 = scalar_lea.vmem [#allocation3], %s528
        $region86: #{codegen_forward.43} parent=81 // pred_fallthru
          _
      $region82: #{codegen_forward.43} parent=5 // pred_fallthru
        _
    $region6: #{codegen_forward.43} parent=1 // loop_footer
      %s13 = sadd.s32 1, %s9
    $region7: #{codegen_forward.43} parent=1 // loop_footer_branch
      %8 = sbr.rel target = $region3
    $region8: #{codegen_forward.43} parent=1 // loop_exit
      _

// kernel: codegen_forward.58
$region0: #{codegen_forward.58}
  #allocation0 [shape = 'u32[]', space=smem, size = 0x4, offset = 0x4, fixed_abs, tag = 'smem constant byte address 0x4 - core index']
  #allocation1 [shape = 'u32[144,128]{1,0:T(1,128)}', space=vmem, size = 0x12000, scoped, tag = 'internal scratch']
  %s0 = inlined_call_operand.vmem [shape: f32[24,32], index: 0, kind: input, shape index: {}]
  %s1 = inlined_call_operand.vmem [shape: bf16[32,64], index: 1, kind: input, shape index: {}]
  %s2 = inlined_call_operand.vmem [shape: f32[1,64], index: 2, kind: input, shape index: {}]
  %s3 = inlined_call_operand.vmem [shape: f32[24,64], index: 3, kind: output, shape index: {}]
  %s4 = sld [smem:[#allocation0]]
  $region22: #{codegen_forward.58} parent=0
    _
  %s6 = ssub.s32 1, %s4
  %s7 = scalar_select 0, %s6, %s4
  // Predicated region
  $region2: #{codegen_forward.58} parent=0 // pred_check
    _
  $region3: #{codegen_forward.58} parent=0 // pred_check_branch
    %9 = sbr.rel (0) target = $region5
  $region4: #{codegen_forward.58} parent=0 // pred_region
    _
  $region5: #{codegen_forward.58} parent=0 // pred_fallthru
    _
  // Predicated region
  $region6: #{codegen_forward.58} parent=0 // pred_check
    _
  $region7: #{codegen_forward.58} parent=0 // pred_check_branch
    %11 = sbr.rel (0) target = $region9
  $region8: #{codegen_forward.58} parent=0 // pred_region
    _
  $region9: #{codegen_forward.58} parent=0 // pred_fallthru
    _
  // Predicated region
  $region10: #{codegen_forward.58} parent=0 // pred_check
    _
  $region11: #{codegen_forward.58} parent=0 // pred_check_branch
    %13 = sbr.rel (0) target = $region13
  $region12: #{codegen_forward.58} parent=0 // pred_region
    _
  $region13: #{codegen_forward.58} parent=0 // pred_fallthru
    _
  %v15 = vld [vmem:[%s0] sm:$0xff]
  %v16 = vld [vmem:[%s0 + $0x8] sm:$0xff]
  %v17 = vld [vmem:[%s0 + $0x10] sm:$0xff]
  %v18 = vpack.c.bf16 %v16, %v15
  %v19 = vpack.c.bf16 %v17, %v17
  %v20 = vld [vmem:[%s1] sm:$0xf]
  %v21 = vld [vmem:[%s1 + $0x4] sm:$0xf]
  %v22 = vld [vmem:[%s1 + $0x8] sm:$0xf]
  %v23 = vld [vmem:[%s1 + $0xc] sm:$0xf]
  %v24 = vld [vmem:[%s2] sm:$0x1]
  %v26 = vlaneseq
  %v27 = vshrl.u32 %v26, 7
  %v28 = vsub.s32 0, %v27
  %v29 = vrot.slane %v24, %v28
  %v35 = vunpack.c.l.b16 %v20
  %v36 = vunpack.c.l.b16 %v21
  %v37 = vunpack.c.l.b16 %v22
  %v38 = vunpack.c.l.b16 %v23
  %v39 = vpack.c.b16 %v36, %v35
  %v40 = vpack.c.b16 %v38, %v37
  %vm43 = vcmask 261120
  %v45 = vsel %vm43, %v18, 0
  %v48 = vsel %vm43, %v19, 0
  %50 = vmatprep.subr.bf16.mxu0 0
  %51 = vmatpush1.bf16.msra.mxu0 %v39
  %52 = vmatprep.subr.bf16.mxu0 0
  %53 = vmatpush1.bf16.msra.mxu0 %v40
  %54 = vmatprep.subr.bf16.mxu0 0
  %55 = vmatpush1.bf16.msra.mxu0 0
  %56 = vmatprep.subr.bf16.mxu0 0
  %57 = vmatpush1.bf16.msra.mxu0 0
  %58 = vmatprep.subr.bf16.mxu0 0
  %59 = vmatpush1.bf16.msra.mxu0 0
  %60 = vmatprep.subr.bf16.mxu0 0
  %61 = vmatpush1.bf16.msra.mxu0 0
  %62 = vmatprep.subr.bf16.mxu0 0
  %63 = vmatpush1.bf16.msra.mxu0 0
  %64 = vmatprep.subr.bf16.mxu0 0
  %65 = vmatpush1.bf16.msra.mxu0 0
  %66 = vmatprep.subr.bf16.mxu0 0
  %67 = vmatpush1.bf16.msra.mxu0 0
  %68 = vmatprep.subr.bf16.mxu0 0
  %69 = vmatpush1.bf16.msra.mxu0 0
  %70 = vmatprep.subr.bf16.mxu0 0
  %71 = vmatpush1.bf16.msra.mxu0 0
  %72 = vmatprep.subr.bf16.mxu0 0
  %73 = vmatpush1.bf16.msra.mxu0 0
  %74 = vmatprep.subr.bf16.mxu0 0
  %75 = vmatpush1.bf16.msra.mxu0 0
  %76 = vmatprep.subr.bf16.mxu0 0
  %77 = vmatpush1.bf16.msra.mxu0 0
  %78 = vmatprep.subr.bf16.mxu0 0
  %79 = vmatpush1.bf16.msra.mxu0 0
  %80 = vmatprep.subr.bf16.mxu0 0
  %81 = vmatpush1.bf16.msra.mxu0 0
  %82 = vmatprep.mubr.bf16.mxu0 0
  %83 = vmatmul.mubr.bf16.gmra.mrb[0].mxu0 %v45
  %v84 = vpop.f32.mrb[0].mxu0
  %v85 = vadd.f32 %v29, %v84
  %v86 = vpop.f32.mrb[0].mxu0
  %v87 = vpop.f32.mrb[0].mxu0
  %v88 = vadd.f32 %v29, %v87
  %v89 = vpop.f32.mrb[0].mxu0
  %90 = vmatprep.mubr.bf16.mxu0 0
  %91 = vmatmul.mubr.bf16.gmra.mrb[0].mxu0 %v48
  %v92 = vpop.f32.mrb[0].mxu0
  %v93 = vadd.f32 %v29, %v92
  %v94 = vpop.f32.mrb[0].mxu0
  %v95 = vpop.f32.mrb[0].mxu0
  %v96 = vpop.f32.mrb[0].mxu0
  %97 = vdwg.mxu0
  %vm98 = vcmask 523264
  %99 = vst.msk [vmem:[%s3] sm:$0xff] %vm98, %v85
  %100 = vst.msk [vmem:[%s3 + $0x8] sm:$0xff] %vm98, %v88
  %101 = vst.msk [vmem:[%s3 + $0x10] sm:$0xff] %vm98, %v93
  // Predicated region
  $region14: #{codegen_forward.58} parent=0 // pred_check
    _
  $region15: #{codegen_forward.58} parent=0 // pred_check_branch
    %103 = sbr.rel (0) target = $region17
  $region16: #{codegen_forward.58} parent=0 // pred_region
    _
  $region17: #{codegen_forward.58} parent=0 // pred_fallthru
    _
  // Predicated region
  $region18: #{codegen_forward.58} parent=0 // pred_check
    _
  $region19: #{codegen_forward.58} parent=0 // pred_check_branch
    %105 = sbr.rel (0) target = $region21
  $region20: #{codegen_forward.58} parent=0 // pred_region
    _
  $region21: #{codegen_forward.58} parent=0 // pred_fallthru
    _

// kernel: codegen_forward.59
$region0: #{codegen_forward.59}
  #allocation0 [shape = 'u32[]', space=smem, size = 0x4, offset = 0x4, fixed_abs, tag = 'smem constant byte address 0x4 - core index']
  #allocation1 [shape = 'u32[144,128]{1,0:T(1,128)}', space=vmem, size = 0x12000, scoped, tag = 'internal scratch']
  %s0 = inlined_call_operand.vmem [shape: f32[2,8,32], index: 0, kind: input, shape index: {}]
  %s1 = inlined_call_operand.vmem [shape: f32[2,12,64], index: 1, kind: input, shape index: {}]
  %s2 = inlined_call_operand.vmem [shape: f32[2,8,32], index: 2, kind: output, shape index: {}]
  %s3 = sld [smem:[#allocation0]]
  $region41: #{codegen_forward.59} parent=0
    _
  %s5 = ssub.s32 1, %s3
  %s6 = scalar_select 0, %s5, %s3
  loop: start=0, step=1, limit=4
  $region2: #{codegen_forward.59} parent=0 // loop_pre_header
    _
  $region3: #{codegen_forward.59} parent=0 // loop_header
    %s8 = sphi 0, %s12
    %p9 = scmp.ge.s32.totalorder %s8, 4
    %s18 = sphi 0, %s20
    %s21 = sphi 0, %s18
    %s22 = sphi 0, %s21
    %s38 = sphi 0, %s22
    %s44 = sphi 0, %s46
    %s47 = sphi 0, %s44
    %s48 = sphi 0, %s47
    %s64 = sphi 0, %s48
    %s70 = sphi 0, %s72
    %s73 = sphi 0, %s70
    %s74 = sphi 0, %s73
    %s90 = sphi 0, %s74
  $region4: #{codegen_forward.59} parent=0 // loop_header_branch
    %11 = sbr.rel (%p9) target = $region8
  $region5: #{codegen_forward.59} parent=0 // loop_body
    %s13 = ssub.s32 %s8, 1
    %s14 = ssub.s32 %s8, 2
    %s15 = sadd.s32 %s8, 1
    %s16 = ssub.s32 %s8, %s15
    %p17 = scmp.eq.s32.totalorder %s16, 0
    %s19 = sadd.s32 %s18, 1
    %s20 = scalar_select %p17, %s18, %s19
    %p23 = pneg %p17
    %p24 = scmp.eq.s32.totalorder %s8, 1
    %p25 = por %p23, %p24
    %p26 = scmp.ne.s32.totalorder %s18, %s21
    %p27 = scmp.eq.s32.totalorder %s8, 0
    %p28 = por %p26, %p27
    %p29 = scmp.ne.s32.totalorder %s18, %s21
    %p30 = scmp.eq.s32.totalorder %s13, 1
    %p31 = por %p29, %p30
    %p32 = scmp.ne.s32.totalorder %s21, %s22
    %p33 = scmp.eq.s32.totalorder %s13, 0
    %p34 = por %p32, %p33
    %p35 = scmp.ne.s32.totalorder %s21, %s22
    %p36 = scmp.eq.s32.totalorder %s14, 1
    %p37 = por %p35, %p36
    %p39 = scmp.ne.s32.totalorder %s22, %s38
    %p40 = scmp.eq.s32.totalorder %s14, 0
    %p41 = por %p39, %p40
    %s42 = ssub.s32 %s8, %s15
    %p43 = scmp.eq.s32.totalorder %s42, 0
    %s45 = sadd.s32 %s44, 1
    %s46 = scalar_select %p43, %s44, %s45
    %p49 = pneg %p43
    %p50 = scmp.eq.s32.totalorder %s8, 1
    %p51 = por %p49, %p50
    %p52 = scmp.ne.s32.totalorder %s44, %s47
    %p53 = scmp.eq.s32.totalorder %s8, 0
    %p54 = por %p52, %p53
    %p55 = scmp.ne.s32.totalorder %s44, %s47
    %p56 = scmp.eq.s32.totalorder %s13, 1
    %p57 = por %p55, %p56
    %p58 = scmp.ne.s32.totalorder %s47, %s48
    %p59 = scmp.eq.s32.totalorder %s13, 0
    %p60 = por %p58, %p59
    %p61 = scmp.ne.s32.totalorder %s47, %s48
    %p62 = scmp.eq.s32.totalorder %s14, 1
    %p63 = por %p61, %p62
    %p65 = scmp.ne.s32.totalorder %s48, %s64
    %p66 = scmp.eq.s32.totalorder %s14, 0
    %p67 = por %p65, %p66
    %s68 = ssub.s32 %s8, %s15
    %p69 = scmp.eq.s32.totalorder %s68, 0
    %s71 = sadd.s32 %s70, 1
    %s72 = scalar_select %p69, %s70, %s71
    %p75 = pneg %p69
    %p76 = scmp.eq.s32.totalorder %s8, 1
    %p77 = por %p75, %p76
    %p78 = scmp.ne.s32.totalorder %s70, %s73
    %p79 = scmp.eq.s32.totalorder %s8, 0
    %p80 = por %p78, %p79
    %p81 = scmp.ne.s32.totalorder %s70, %s73
    %p82 = scmp.eq.s32.totalorder %s13, 1
    %p83 = por %p81, %p82
    %p84 = scmp.ne.s32.totalorder %s73, %s74
    %p85 = scmp.eq.s32.totalorder %s13, 0
    %p86 = por %p84, %p85
    %p87 = scmp.ne.s32.totalorder %s73, %s74
    %p88 = scmp.eq.s32.totalorder %s14, 1
    %p89 = por %p87, %p88
    %p91 = scmp.ne.s32.totalorder %s74, %s90
    %p92 = scmp.eq.s32.totalorder %s14, 0
    %p93 = por %p91, %p92
    %p94 = scmp.le.s32.totalorder 1, %s8
    %p95 = scmp.lt.s32.totalorder %s8, 3
    %p96 = pnand %p94, %p95
    %p97 = pneg %p96
    // Predicated region
    $region9: #{codegen_forward.59} parent=5 // pred_check
      _
    $region10: #{codegen_forward.59} parent=5 // pred_check_branch
      %99 = sbr.rel (%p96) target = $region12
    $region11: #{codegen_forward.59} parent=5 // pred_region
      %s100 = ssub.s32 %s8, 1
    $region12: #{codegen_forward.59} parent=5 // pred_fallthru
      _
    %p101 = scmp.lt.s32.totalorder %s8, 2
    // Predicated region
    $region13: #{codegen_forward.59} parent=5 // pred_check
      %p102 = pneg %p101
    $region14: #{codegen_forward.59} parent=5 // pred_check_branch
      %104 = sbr.rel (%p102) target = $region16
    $region15: #{codegen_forward.59} parent=5 // pred_region
      // Predicated region
      $region17: #{codegen_forward.59} parent=15 // pred_check
        %p105 = pneg %p28
      $region18: #{codegen_forward.59} parent=15 // pred_check_branch
        %107 = sbr.rel (%p105) target = $region20
      $region19: #{codegen_forward.59} parent=15 // pred_region
        %p108 = scmp.lt.s32.totalorder %s8, 1
        %s109 = scalar_select %p108, %s8, 1
        %s110 = smul.addr %s109, 8
        %s111 = scalar_lea.vmem %s0, %s110
      $region20: #{codegen_forward.59} parent=15 // pred_fallthru
        _
      // Predicated region
      $region21: #{codegen_forward.59} parent=15 // pred_check
        %p112 = pneg %p54
      $region22: #{codegen_forward.59} parent=15 // pred_check_branch
        %114 = sbr.rel (%p112) target = $region24
      $region23: #{codegen_forward.59} parent=15 // pred_region
        %p115 = scmp.lt.s32.totalorder %s8, 1
        %s116 = scalar_select %p115, %s8, 1
        %s117 = smul.addr %s116, 2
        %s118 = smul.addr %s117, 8
        %s119 = scalar_lea.vmem %s1, %s118
      $region24: #{codegen_forward.59} parent=15 // pred_fallthru
        _
    $region16: #{codegen_forward.59} parent=5 // pred_fallthru
      _
    %p120 = scmp.le.s32.totalorder 1, %s8
    %p121 = scmp.lt.s32.totalorder %s8, 3
    %p122 = pnand %p120, %p121
    %p123 = pneg %p122
    // Predicated region
    $region25: #{codegen_forward.59} parent=5 // pred_check
      _
    $region26: #{codegen_forward.59} parent=5 // pred_check_branch
      %125 = sbr.rel (%p122) target = $region28
    $region27: #{codegen_forward.59} parent=5 // pred_region
      %s126 = ssub.s32 %s8, 1
      %p127 = scmp.lt.s32.totalorder %s13, 1
      %s128 = scalar_select %p127, %s13, 1
      %s129 = smul.addr %s128, 8
      %s130 = scalar_lea.vmem %s0, %s129
      %p131 = pneg %p34
      %p132 = pneg %p31
      %p133 = scmp.lt.s32.totalorder %s13, 1
      %s134 = scalar_select %p133, %s13, 1
      %s135 = smul.addr %s134, 2
      %s136 = smul.addr %s135, 8
      %s137 = scalar_lea.vmem %s1, %s136
      %p138 = pneg %p60
      %p139 = pneg %p57
      %p140 = pneg %p86
      %p141 = pneg %p83
      %p142 = scmp.lt.s32.totalorder %s13, 1
      %s143 = scalar_select %p142, %s13, 1
      %s144 = smul.addr %s143, 8
      %s145 = scalar_lea.vmem %s2, %s144
      %p146 = scmp.lt.s32.totalorder %s13, 1
      %s147 = scalar_select %p146, %s13, 1
      %s148 = smul.addr %s147, 8
      %s149 = scalar_lea.vmem %s0, %s148
      %p150 = scmp.lt.s32.totalorder %s13, 1
      %s151 = scalar_select %p150, %s13, 1
      %s152 = smul.addr %s151, 2
      %s153 = smul.addr %s152, 8
      %s154 = scalar_lea.vmem %s1, %s153
      %p155 = scmp.lt.s32.totalorder %s13, 1
      %s156 = scalar_select %p155, %s13, 1
      %s157 = smul.addr %s156, 8
      %s158 = scalar_lea.vmem %s2, %s157
      %v160 = vld [vmem:[%s149] sm:$0xff]
      %v161 = vld [vmem:[%s154] sm:$0xff]
      %v162 = vld [vmem:[%s154 + $0x8] sm:$0xf]
      %v163 = vpack.c.bf16 %v160, %v160
      %v164 = vpack.c.bf16 %v162, %v161
      %vm165 = vcmask 64512
      %v167 = vsel %vm165, %v163, 0
      %v170 = vsel %vm165, %v164, 0
      %172 = vmatprep.subr.bf16.mxu0 0
      %173 = vmatpush1.bf16.xpose.msra.mxu0 %v170
      %174 = vmatprep.subr.bf16.mxu0 0
      %175 = vmatpush1.bf16.xpose.msra.mxu0 0
      %176 = vmatprep.subr.bf16.mxu0 0
      %177 = vmatpush1.bf16.xpose.msra.mxu0 0
      %178 = vmatprep.subr.bf16.mxu0 0
      %179 = vmatpush1.bf16.xpose.msra.mxu0 0
      %180 = vmatprep.subr.bf16.mxu0 0
      %181 = vmatpush1.bf16.xpose.msra.mxu0 0
      %182 = vmatprep.subr.bf16.mxu0 0
      %183 = vmatpush1.bf16.xpose.msra.mxu0 0
      %184 = vmatprep.subr.bf16.mxu0 0
      %185 = vmatpush1.bf16.xpose.msra.mxu0 0
      %186 = vmatprep.subr.bf16.mxu0 0
      %187 = vmatpush1.bf16.xpose.msra.mxu0 0
      %188 = vmatprep.subr.bf16.mxu0 0
      %189 = vmatpush1.bf16.xpose.msra.mxu0 0
      %190 = vmatprep.subr.bf16.mxu0 0
      %191 = vmatpush1.bf16.xpose.msra.mxu0 0
      %192 = vmatprep.subr.bf16.mxu0 0
      %193 = vmatpush1.bf16.xpose.msra.mxu0 0
      %194 = vmatprep.subr.bf16.mxu0 0
      %195 = vmatpush1.bf16.xpose.msra.mxu0 0
      %196 = vmatprep.subr.bf16.mxu0 0
      %197 = vmatpush1.bf16.xpose.msra.mxu0 0
      %198 = vmatprep.subr.bf16.mxu0 0
      %199 = vmatpush1.bf16.xpose.msra.mxu0 0
      %200 = vmatprep.subr.bf16.mxu0 0
      %201 = vmatpush1.bf16.xpose.msra.mxu0 0
      %202 = vmatprep.subr.bf16.mxu0 0
      %203 = vmatpush1.bf16.xpose.msra.mxu0 0
      %204 = vmatprep.mubr.bf16.mxu0 0
      %205 = vmatmul.mubr.bf16.gmra.mrb[0].mxu0 %v167
      %v206 = vpop.f32.mrb[0].mxu0
      %v207 = vadd.f32 0.0, %v206
      %v208 = vpop.f32.mrb[0].mxu0
      %v209 = vpop.f32.mrb[0].mxu0
      %v210 = vpop.f32.mrb[0].mxu0
      %211 = vdwg.mxu0
      %v212 = vmul.f32 %v207, 0.35355338
      %vm213 = vcmask 97280
      %v214 = vsel %vm213, %v212, -inf
      %215 = vmax.xlane.f32.xlu0 %v214
      %v216 = vpop.xlane.xlu0 %215
      %v217 = vsub.f32 %v212, %v216
      %v218 = vmul.f32 %v217, 1.442695
      %v219 = vpow.pop %v218
      %v220 = vsel %vm213, %v219, 0.0
      %221 = vadd.xlane.f32.xlu0 %v220
      %v222 = vpop.xlane.xlu0 %221
      %v223 = vrcp.pop %v222
      %v224 = vmul.f32 %v219, %v223
      %v225 = vpack.c.bf16 %v224, %v224
      %227 = vrot.lane.b32.xlu0 %v164, 96
      %v228 = vpop.permute.xlu0 %227
      %v230 = vsel %vm213, %v225, 0
      %vm232 = vcmask 1045504
      %v234 = vsel %vm232, %v228, 0
      %236 = vmatprep.subr.bf16.mxu0 0
      %237 = vmatpush1.bf16.msra.mxu0 %v234
      %238 = vmatprep.subr.bf16.mxu0 0
      %239 = vmatpush1.bf16.msra.mxu0 0
      %240 = vmatprep.subr.bf16.mxu0 0
      %241 = vmatpush1.bf16.msra.mxu0 0
      %242 = vmatprep.subr.bf16.mxu0 0
      %243 = vmatpush1.bf16.msra.mxu0 0
      %244 = vmatprep.subr.bf16.mxu0 0
      %245 = vmatpush1.bf16.msra.mxu0 0
      %246 = vmatprep.subr.bf16.mxu0 0
      %247 = vmatpush1.bf16.msra.mxu0 0
      %248 = vmatprep.subr.bf16.mxu0 0
      %249 = vmatpush1.bf16.msra.mxu0 0
      %250 = vmatprep.subr.bf16.mxu0 0
      %251 = vmatpush1.bf16.msra.mxu0 0
      %252 = vmatprep.subr.bf16.mxu0 0
      %253 = vmatpush1.bf16.msra.mxu0 0
      %254 = vmatprep.subr.bf16.mxu0 0
      %255 = vmatpush1.bf16.msra.mxu0 0
      %256 = vmatprep.subr.bf16.mxu0 0
      %257 = vmatpush1.bf16.msra.mxu0 0
      %258 = vmatprep.subr.bf16.mxu0 0
      %259 = vmatpush1.bf16.msra.mxu0 0
      %260 = vmatprep.subr.bf16.mxu0 0
      %261 = vmatpush1.bf16.msra.mxu0 0
      %262 = vmatprep.subr.bf16.mxu0 0
      %263 = vmatpush1.bf16.msra.mxu0 0
      %264 = vmatprep.subr.bf16.mxu0 0
      %265 = vmatpush1.bf16.msra.mxu0 0
      %266 = vmatprep.subr.bf16.mxu0 0
      %267 = vmatpush1.bf16.msra.mxu0 0
      %268 = vmatprep.mubr.bf16.mxu0 0
      %269 = vmatmul.mubr.bf16.gmra.mrb[0].mxu0 %v230
      %v270 = vpop.f32.mrb[0].mxu0
      %v271 = vadd.f32 0.0, %v270
      %v272 = vpop.f32.mrb[0].mxu0
      %v273 = vpop.f32.mrb[0].mxu0
      %v274 = vpop.f32.mrb[0].mxu0
      %275 = vdwg.mxu0
      %277 = vrot.lane.b32.xlu0 %v163, 120
      %v278 = vpop.permute.xlu0 %277
      %279 = vrot.lane.b32.xlu0 %v164, 120
      %v280 = vpop.permute.xlu0 %279
      %v282 = vsel %vm165, %v278, 0
      %v285 = vsel %vm165, %v280, 0
      %287 = vmatprep.subr.bf16.mxu0 0
      %288 = vmatpush1.bf16.xpose.msra.mxu0 %v285
      %289 = vmatprep.subr.bf16.mxu0 0
      %290 = vmatpush1.bf16.xpose.msra.mxu0 0
      %291 = vmatprep.subr.bf16.mxu0 0
      %292 = vmatpush1.bf16.xpose.msra.mxu0 0
      %293 = vmatprep.subr.bf16.mxu0 0
      %294 = vmatpush1.bf16.xpose.msra.mxu0 0
      %295 = vmatprep.subr.bf16.mxu0 0
      %296 = vmatpush1.bf16.xpose.msra.mxu0 0
      %297 = vmatprep.subr.bf16.mxu0 0
      %298 = vmatpush1.bf16.xpose.msra.mxu0 0
      %299 = vmatprep.subr.bf16.mxu0 0
      %300 = vmatpush1.bf16.xpose.msra.mxu0 0
      %301 = vmatprep.subr.bf16.mxu0 0
      %302 = vmatpush1.bf16.xpose.msra.mxu0 0
      %303 = vmatprep.subr.bf16.mxu0 0
      %304 = vmatpush1.bf16.xpose.msra.mxu0 0
      %305 = vmatprep.subr.bf16.mxu0 0
      %306 = vmatpush1.bf16.xpose.msra.mxu0 0
      %307 = vmatprep.subr.bf16.mxu0 0
      %308 = vmatpush1.bf16.xpose.msra.mxu0 0
      %309 = vmatprep.subr.bf16.mxu0 0
      %310 = vmatpush1.bf16.xpose.msra.mxu0 0
      %311 = vmatprep.subr.bf16.mxu0 0
      %312 = vmatpush1.bf16.xpose.msra.mxu0 0
      %313 = vmatprep.subr.bf16.mxu0 0
      %314 = vmatpush1.bf16.xpose.msra.mxu0 0
      %315 = vmatprep.subr.bf16.mxu0 0
      %316 = vmatpush1.bf16.xpose.msra.mxu0 0
      %317 = vmatprep.subr.bf16.mxu0 0
      %318 = vmatpush1.bf16.xpose.msra.mxu0 0
      %319 = vmatprep.mubr.bf16.mxu0 0
      %320 = vmatmul.mubr.bf16.gmra.mrb[0].mxu0 %v282
      %v321 = vpop.f32.mrb[0].mxu0
      %v322 = vadd.f32 0.0, %v321
      %v323 = vpop.f32.mrb[0].mxu0
      %v324 = vpop.f32.mrb[0].mxu0
      %v325 = vpop.f32.mrb[0].mxu0
      %326 = vdwg.mxu0
      %v327 = vmul.f32 %v322, 0.35355338
      %v328 = vsel %vm213, %v327, -inf
      %329 = vmax.xlane.f32.xlu0 %v328
      %v330 = vpop.xlane.xlu0 %329
      %v331 = vsub.f32 %v327, %v330
      %v332 = vmul.f32 %v331, 1.442695
      %v333 = vpow.pop %v332
      %v334 = vsel %vm213, %v333, 0.0
      %335 = vadd.xlane.f32.xlu0 %v334
      %v336 = vpop.xlane.xlu0 %335
      %v337 = vrcp.pop %v336
      %v338 = vmul.f32 %v333, %v337
      %v339 = vpack.c.bf16 %v338, %v338
      %340 = vrot.lane.b32.xlu0 %v164, 88
      %v341 = vpop.permute.xlu0 %340
      %v343 = vsel %vm213, %v339, 0
      %v346 = vsel %vm232, %v341, 0
      %348 = vmatprep.subr.bf16.mxu0 0
      %349 = vmatpush1.bf16.msra.mxu0 %v346
      %350 = vmatprep.subr.bf16.mxu0 0
      %351 = vmatpush1.bf16.msra.mxu0 0
      %352 = vmatprep.subr.bf16.mxu0 0
      %353 = vmatpush1.bf16.msra.mxu0 0
      %354 = vmatprep.subr.bf16.mxu0 0
      %355 = vmatpush1.bf16.msra.mxu0 0
      %356 = vmatprep.subr.bf16.mxu0 0
      %357 = vmatpush1.bf16.msra.mxu0 0
      %358 = vmatprep.subr.bf16.mxu0 0
      %359 = vmatpush1.bf16.msra.mxu0 0
      %360 = vmatprep.subr.bf16.mxu0 0
      %361 = vmatpush1.bf16.msra.mxu0 0
      %362 = vmatprep.subr.bf16.mxu0 0
      %363 = vmatpush1.bf16.msra.mxu0 0
      %364 = vmatprep.subr.bf16.mxu0 0
      %365 = vmatpush1.bf16.msra.mxu0 0
      %366 = vmatprep.subr.bf16.mxu0 0
      %367 = vmatpush1.bf16.msra.mxu0 0
      %368 = vmatprep.subr.bf16.mxu0 0
      %369 = vmatpush1.bf16.msra.mxu0 0
      %370 = vmatprep.subr.bf16.mxu0 0
      %371 = vmatpush1.bf16.msra.mxu0 0
      %372 = vmatprep.subr.bf16.mxu0 0
      %373 = vmatpush1.bf16.msra.mxu0 0
      %374 = vmatprep.subr.bf16.mxu0 0
      %375 = vmatpush1.bf16.msra.mxu0 0
      %376 = vmatprep.subr.bf16.mxu0 0
      %377 = vmatpush1.bf16.msra.mxu0 0
      %378 = vmatprep.subr.bf16.mxu0 0
      %379 = vmatpush1.bf16.msra.mxu0 0
      %380 = vmatprep.mubr.bf16.mxu0 0
      %381 = vmatmul.mubr.bf16.gmra.mrb[0].mxu0 %v343
      %v382 = vpop.f32.mrb[0].mxu0
      %v383 = vadd.f32 0.0, %v382
      %v384 = vpop.f32.mrb[0].mxu0
      %v385 = vpop.f32.mrb[0].mxu0
      %v386 = vpop.f32.mrb[0].mxu0
      %387 = vdwg.mxu0
      %388 = vrot.lane.b32.xlu0 %v163, 112
      %v389 = vpop.permute.xlu0 %388
      %390 = vrot.lane.b32.xlu0 %v164, 112
      %v391 = vpop.permute.xlu0 %390
      %v393 = vsel %vm165, %v389, 0
      %v396 = vsel %vm165, %v391, 0
      %398 = vmatprep.subr.bf16.mxu0 0
      %399 = vmatpush1.bf16.xpose.msra.mxu0 %v396
      %400 = vmatprep.subr.bf16.mxu0 0
      %401 = vmatpush1.bf16.xpose.msra.mxu0 0
      %402 = vmatprep.subr.bf16.mxu0 0
      %403 = vmatpush1.bf16.xpose.msra.mxu0 0
      %404 = vmatprep.subr.bf16.mxu0 0
      %405 = vmatpush1.bf16.xpose.msra.mxu0 0
      %406 = vmatprep.subr.bf16.mxu0 0
      %407 = vmatpush1.bf16.xpose.msra.mxu0 0
      %408 = vmatprep.subr.bf16.mxu0 0
      %409 = vmatpush1.bf16.xpose.msra.mxu0 0
      %410 = vmatprep.subr.bf16.mxu0 0
      %411 = vmatpush1.bf16.xpose.msra.mxu0 0
      %412 = vmatprep.subr.bf16.mxu0 0
      %413 = vmatpush1.bf16.xpose.msra.mxu0 0
      %414 = vmatprep.subr.bf16.mxu0 0
      %415 = vmatpush1.bf16.xpose.msra.mxu0 0
      %416 = vmatprep.subr.bf16.mxu0 0
      %417 = vmatpush1.bf16.xpose.msra.mxu0 0
      %418 = vmatprep.subr.bf16.mxu0 0
      %419 = vmatpush1.bf16.xpose.msra.mxu0 0
      %420 = vmatprep.subr.bf16.mxu0 0
      %421 = vmatpush1.bf16.xpose.msra.mxu0 0
      %422 = vmatprep.subr.bf16.mxu0 0
      %423 = vmatpush1.bf16.xpose.msra.mxu0 0
      %424 = vmatprep.subr.bf16.mxu0 0
      %425 = vmatpush1.bf16.xpose.msra.mxu0 0
      %426 = vmatprep.subr.bf16.mxu0 0
      %427 = vmatpush1.bf16.xpose.msra.mxu0 0
      %428 = vmatprep.subr.bf16.mxu0 0
      %429 = vmatpush1.bf16.xpose.msra.mxu0 0
      %430 = vmatprep.mubr.bf16.mxu0 0
      %431 = vmatmul.mubr.bf16.gmra.mrb[0].mxu0 %v393
      %v432 = vpop.f32.mrb[0].mxu0
      %v433 = vadd.f32 0.0, %v432
      %v434 = vpop.f32.mrb[0].mxu0
      %v435 = vpop.f32.mrb[0].mxu0
      %v436 = vpop.f32.mrb[0].mxu0
      %437 = vdwg.mxu0
      %v438 = vmul.f32 %v433, 0.35355338
      %v439 = vsel %vm213, %v438, -inf
      %440 = vmax.xlane.f32.xlu0 %v439
      %v441 = vpop.xlane.xlu0 %440
      %v442 = vsub.f32 %v438, %v441
      %v443 = vmul.f32 %v442, 1.442695
      %v444 = vpow.pop %v443
      %v445 = vsel %vm213, %v444, 0.0
      %446 = vadd.xlane.f32.xlu0 %v445
      %v447 = vpop.xlane.xlu0 %446
      %v448 = vrcp.pop %v447
      %v449 = vmul.f32 %v444, %v448
      %v450 = vpack.c.bf16 %v449, %v449
      %451 = vrot.lane.b32.xlu0 %v164, 80
      %v452 = vpop.permute.xlu0 %451
      %v454 = vsel %vm213, %v450, 0
      %v457 = vsel %vm232, %v452, 0
      %459 = vmatprep.subr.bf16.mxu0 0
      %460 = vmatpush1.bf16.msra.mxu0 %v457
      %461 = vmatprep.subr.bf16.mxu0 0
      %462 = vmatpush1.bf16.msra.mxu0 0
      %463 = vmatprep.subr.bf16.mxu0 0
      %464 = vmatpush1.bf16.msra.mxu0 0
      %465 = vmatprep.subr.bf16.mxu0 0
      %466 = vmatpush1.bf16.msra.mxu0 0
      %467 = vmatprep.subr.bf16.mxu0 0
      %468 = vmatpush1.bf16.msra.mxu0 0
      %469 = vmatprep.subr.bf16.mxu0 0
      %470 = vmatpush1.bf16.msra.mxu0 0
      %471 = vmatprep.subr.bf16.mxu0 0
      %472 = vmatpush1.bf16.msra.mxu0 0
      %473 = vmatprep.subr.bf16.mxu0 0
      %474 = vmatpush1.bf16.msra.mxu0 0
      %475 = vmatprep.subr.bf16.mxu0 0
      %476 = vmatpush1.bf16.msra.mxu0 0
      %477 = vmatprep.subr.bf16.mxu0 0
      %478 = vmatpush1.bf16.msra.mxu0 0
      %479 = vmatprep.subr.bf16.mxu0 0
      %480 = vmatpush1.bf16.msra.mxu0 0
      %481 = vmatprep.subr.bf16.mxu0 0
      %482 = vmatpush1.bf16.msra.mxu0 0
      %483 = vmatprep.subr.bf16.mxu0 0
      %484 = vmatpush1.bf16.msra.mxu0 0
      %485 = vmatprep.subr.bf16.mxu0 0
      %486 = vmatpush1.bf16.msra.mxu0 0
      %487 = vmatprep.subr.bf16.mxu0 0
      %488 = vmatpush1.bf16.msra.mxu0 0
      %489 = vmatprep.subr.bf16.mxu0 0
      %490 = vmatpush1.bf16.msra.mxu0 0
      %491 = vmatprep.mubr.bf16.mxu0 0
      %492 = vmatmul.mubr.bf16.gmra.mrb[0].mxu0 %v454
      %v493 = vpop.f32.mrb[0].mxu0
      %v494 = vadd.f32 0.0, %v493
      %v495 = vpop.f32.mrb[0].mxu0
      %v496 = vpop.f32.mrb[0].mxu0
      %v497 = vpop.f32.mrb[0].mxu0
      %498 = vdwg.mxu0
      %499 = vrot.lane.b32.xlu0 %v163, 104
      %v500 = vpop.permute.xlu0 %499
      %501 = vrot.lane.b32.xlu0 %v164, 104
      %v502 = vpop.permute.xlu0 %501
      %v504 = vsel %vm165, %v500, 0
      %v507 = vsel %vm165, %v502, 0
      %509 = vmatprep.subr.bf16.mxu0 0
      %510 = vmatpush1.bf16.xpose.msra.mxu0 %v507
      %511 = vmatprep.subr.bf16.mxu0 0
      %512 = vmatpush1.bf16.xpose.msra.mxu0 0
      %513 = vmatprep.subr.bf16.mxu0 0
      %514 = vmatpush1.bf16.xpose.msra.mxu0 0
      %515 = vmatprep.subr.bf16.mxu0 0
      %516 = vmatpush1.bf16.xpose.msra.mxu0 0
      %517 = vmatprep.subr.bf16.mxu0 0
      %518 = vmatpush1.bf16.xpose.msra.mxu0 0
      %519 = vmatprep.subr.bf16.mxu0 0
      %520 = vmatpush1.bf16.xpose.msra.mxu0 0
      %521 = vmatprep.subr.bf16.mxu0 0
      %522 = vmatpush1.bf16.xpose.msra.mxu0 0
      %523 = vmatprep.subr.bf16.mxu0 0
      %524 = vmatpush1.bf16.xpose.msra.mxu0 0
      %525 = vmatprep.subr.bf16.mxu0 0
      %526 = vmatpush1.bf16.xpose.msra.mxu0 0
      %527 = vmatprep.subr.bf16.mxu0 0
      %528 = vmatpush1.bf16.xpose.msra.mxu0 0
      %529 = vmatprep.subr.bf16.mxu0 0
      %530 = vmatpush1.bf16.xpose.msra.mxu0 0
      %531 = vmatprep.subr.bf16.mxu0 0
      %532 = vmatpush1.bf16.xpose.msra.mxu0 0
      %533 = vmatprep.subr.bf16.mxu0 0
      %534 = vmatpush1.bf16.xpose.msra.mxu0 0
      %535 = vmatprep.subr.bf16.mxu0 0
      %536 = vmatpush1.bf16.xpose.msra.mxu0 0
      %537 = vmatprep.subr.bf16.mxu0 0
      %538 = vmatpush1.bf16.xpose.msra.mxu0 0
      %539 = vmatprep.subr.bf16.mxu0 0
      %540 = vmatpush1.bf16.xpose.msra.mxu0 0
      %541 = vmatprep.mubr.bf16.mxu0 0
      %542 = vmatmul.mubr.bf16.gmra.mrb[0].mxu0 %v504
      %v543 = vpop.f32.mrb[0].mxu0
      %v544 = vadd.f32 0.0, %v543
      %v545 = vpop.f32.mrb[0].mxu0
      %v546 = vpop.f32.mrb[0].mxu0
      %v547 = vpop.f32.mrb[0].mxu0
      %548 = vdwg.mxu0
      %v549 = vmul.f32 %v544, 0.35355338
      %v550 = vsel %vm213, %v549, -inf
      %551 = vmax.xlane.f32.xlu0 %v550
      %v552 = vpop.xlane.xlu0 %551
      %v553 = vsub.f32 %v549, %v552
      %v554 = vmul.f32 %v553, 1.442695
      %v555 = vpow.pop %v554
      %v556 = vsel %vm213, %v555, 0.0
      %557 = vadd.xlane.f32.xlu0 %v556
      %v558 = vpop.xlane.xlu0 %557
      %v559 = vrcp.pop %v558
      %v560 = vmul.f32 %v555, %v559
      %v561 = vpack.c.bf16 %v560, %v560
      %562 = vrot.lane.b32.xlu0 %v164, 72
      %v563 = vpop.permute.xlu0 %562
      %v565 = vsel %vm213, %v561, 0
      %v568 = vsel %vm232, %v563, 0
      %570 = vmatprep.subr.bf16.mxu0 0
      %571 = vmatpush1.bf16.msra.mxu0 %v568
      %572 = vmatprep.subr.bf16.mxu0 0
      %573 = vmatpush1.bf16.msra.mxu0 0
      %574 = vmatprep.subr.bf16.mxu0 0
      %575 = vmatpush1.bf16.msra.mxu0 0
      %576 = vmatprep.subr.bf16.mxu0 0
      %577 = vmatpush1.bf16.msra.mxu0 0
      %578 = vmatprep.subr.bf16.mxu0 0
      %579 = vmatpush1.bf16.msra.mxu0 0
      %580 = vmatprep.subr.bf16.mxu0 0
      %581 = vmatpush1.bf16.msra.mxu0 0
      %582 = vmatprep.subr.bf16.mxu0 0
      %583 = vmatpush1.bf16.msra.mxu0 0
      %584 = vmatprep.subr.bf16.mxu0 0
      %585 = vmatpush1.bf16.msra.mxu0 0
      %586 = vmatprep.subr.bf16.mxu0 0
      %587 = vmatpush1.bf16.msra.mxu0 0
      %588 = vmatprep.subr.bf16.mxu0 0
      %589 = vmatpush1.bf16.msra.mxu0 0
      %590 = vmatprep.subr.bf16.mxu0 0
      %591 = vmatpush1.bf16.msra.mxu0 0
      %592 = vmatprep.subr.bf16.mxu0 0
      %593 = vmatpush1.bf16.msra.mxu0 0
      %594 = vmatprep.subr.bf16.mxu0 0
      %595 = vmatpush1.bf16.msra.mxu0 0
      %596 = vmatprep.subr.bf16.mxu0 0
      %597 = vmatpush1.bf16.msra.mxu0 0
      %598 = vmatprep.subr.bf16.mxu0 0
      %599 = vmatpush1.bf16.msra.mxu0 0
      %600 = vmatprep.subr.bf16.mxu0 0
      %601 = vmatpush1.bf16.msra.mxu0 0
      %602 = vmatprep.mubr.bf16.mxu0 0
      %603 = vmatmul.mubr.bf16.gmra.mrb[0].mxu0 %v565
      %v604 = vpop.f32.mrb[0].mxu0
      %v605 = vadd.f32 0.0, %v604
      %v606 = vpop.f32.mrb[0].mxu0
      %v607 = vpop.f32.mrb[0].mxu0
      %v608 = vpop.f32.mrb[0].mxu0
      %609 = vdwg.mxu0
      %611 = vrot.lane.b32.xlu0 %v383, 8
      %v612 = vpop.permute.xlu0 %611
      %615 = vrot.lane.b32.xlu0 %v494, 16
      %v616 = vpop.permute.xlu0 %615
      %619 = vrot.lane.b32.xlu0 %v605, 24
      %v620 = vpop.permute.xlu0 %619
      %v622 = vsel %vm165, %v271, %v612
      %vm623 = vcmask 130048
      %v624 = vsel %vm623, %v622, %v616
      %vm625 = vcmask 195584
      %v626 = vsel %vm625, %v624, %v620
      %vm627 = vcmask 261120
      %628 = vst.msk [vmem:[%s158] sm:$0xff] %vm627, %v626
      %p629 = scmp.lt.s32.totalorder %s13, 1
      %s630 = scalar_select %p629, %s13, 1
      %s631 = smul.addr %s630, 8
      %s632 = scalar_lea.vmem %s2, %s631
      // Predicated region
      $region29: #{codegen_forward.59} parent=27 // pred_check
        %p633 = pneg %p83
      $region30: #{codegen_forward.59} parent=27 // pred_check_branch
        %635 = sbr.rel (%p633) target = $region32
      $region31: #{codegen_forward.59} parent=27 // pred_region
        _
      $region32: #{codegen_forward.59} parent=27 // pred_fallthru
        _
    $region28: #{codegen_forward.59} parent=5 // pred_fallthru
      _
    %p636 = scmp.le.s32.totalorder 2, %s8
    // Predicated region
    $region33: #{codegen_forward.59} parent=5 // pred_check
      %p637 = pneg %p636
    $region34: #{codegen_forward.59} parent=5 // pred_check_branch
      %639 = sbr.rel (%p637) target = $region36
    $region35: #{codegen_forward.59} parent=5 // pred_region
      %s640 = ssub.s32 %s8, 2
      // Predicated region
      $region37: #{codegen_forward.59} parent=35 // pred_check
        %p641 = pneg %p89
      $region38: #{codegen_forward.59} parent=35 // pred_check_branch
        %643 = sbr.rel (%p641) target = $region40
      $region39: #{codegen_forward.59} parent=35 // pred_region
        %p644 = scmp.lt.s32.totalorder %s14, 1
        %s645 = scalar_select %p644, %s14, 1
        %s646 = smul.addr %s645, 8
        %s647 = scalar_lea.vmem %s2, %s646
      $region40: #{codegen_forward.59} parent=35 // pred_fallthru
        _
    $region36: #{codegen_forward.59} parent=5 // pred_fallthru
      _
  $region6: #{codegen_forward.59} parent=0 // loop_footer
    %s12 = sadd.s32 1, %s8
  $region7: #{codegen_forward.59} parent=0 // loop_footer_branch
    %7 = sbr.rel target = $region3
  $region8: #{codegen_forward.59} parent=0 // loop_exit
    _

// kernel: codegen_forward.44
$region0: #{codegen_forward.44}
  #allocation0 [shape = 'u32[]', space=smem, size = 0x4, offset = 0x4, fixed_abs, tag = 'smem constant byte address 0x4 - core index']
  #allocation1 [shape = 'u32[144,128]{1,0:T(1,128)}', space=vmem, size = 0x12000, scoped, tag = 'internal scratch']
  %s0 = inlined_call_operand.vmem [shape: f32[24,2048], index: 0, kind: input, shape index: {}]
  %s1 = inlined_call_operand.vmem [shape: bf16[2048,32], index: 1, kind: input, shape index: {}]
  %s2 = inlined_call_operand.vmem [shape: f32[1,32], index: 2, kind: input, shape index: {}]
  %s3 = inlined_call_operand.vmem [shape: f32[24,32], index: 3, kind: output, shape index: {}]
  %s4 = sld [smem:[#allocation0]]
  $region22: #{codegen_forward.44} parent=0
    _
  %s6 = ssub.s32 1, %s4
  %s7 = scalar_select 0, %s6, %s4
  // Predicated region
  $region2: #{codegen_forward.44} parent=0 // pred_check
    _
  $region3: #{codegen_forward.44} parent=0 // pred_check_branch
    %9 = sbr.rel (0) target = $region5
  $region4: #{codegen_forward.44} parent=0 // pred_region
    _
  $region5: #{codegen_forward.44} parent=0 // pred_fallthru
    _
  // Predicated region
  $region6: #{codegen_forward.44} parent=0 // pred_check
    _
  $region7: #{codegen_forward.44} parent=0 // pred_check_branch
    %11 = sbr.rel (0) target = $region9
  $region8: #{codegen_forward.44} parent=0 // pred_region
    _
  $region9: #{codegen_forward.44} parent=0 // pred_fallthru
    _
  // Predicated region
  $region10: #{codegen_forward.44} parent=0 // pred_check
    _
  $region11: #{codegen_forward.44} parent=0 // pred_check_branch
    %13 = sbr.rel (0) target = $region13
  $region12: #{codegen_forward.44} parent=0 // pred_region
    _
  $region13: #{codegen_forward.44} parent=0 // pred_fallthru
    _
  %v15 = vld [vmem:[%s0] sm:$0xff]
  %v16 = vld [vmem:[%s0 + $0x8] sm:$0xff]
  %v17 = vld [vmem:[%s0 + $0x10] sm:$0xff]
  %v18 = vld [vmem:[%s0 + $0x18] sm:$0xff]
  %v19 = vld [vmem:[%s0 + $0x20] sm:$0xff]
  %v20 = vld [vmem:[%s0 + $0x28] sm:$0xff]
  %v21 = vld [vmem:[%s0 + $0x30] sm:$0xff]
  %v22 = vld [vmem:[%s0 + $0x38] sm:$0xff]
  %v23 = vld [vmem:[%s0 + $0x40] sm:$0xff]
  %v24 = vld [vmem:[%s0 + $0x48] sm:$0xff]
  %v25 = vld [vmem:[%s0 + $0x50] sm:$0xff]
  %v26 = vld [vmem:[%s0 + $0x58] sm:$0xff]
  %v27 = vld [vmem:[%s0 + $0x60] sm:$0xff]
  %v28 = vld [vmem:[%s0 + $0x68] sm:$0xff]
  %v29 = vld [vmem:[%s0 + $0x70] sm:$0xff]
  %v30 = vld [vmem:[%s0 + $0x78] sm:$0xff]
  %v31 = vld [vmem:[%s0 + $0x80] sm:$0xff]
  %v32 = vld [vmem:[%s0 + $0x88] sm:$0xff]
  %v33 = vld [vmem:[%s0 + $0x90] sm:$0xff]
  %v34 = vld [vmem:[%s0 + $0x98] sm:$0xff]
  %v35 = vld [vmem:[%s0 + $0xa0] sm:$0xff]
  %v36 = vld [vmem:[%s0 + $0xa8] sm:$0xff]
  %v37 = vld [vmem:[%s0 + $0xb0] sm:$0xff]
  %v38 = vld [vmem:[%s0 + $0xb8] sm:$0xff]
  %v39 = vld [vmem:[%s0 + $0xc0] sm:$0xff]
  %v40 = vld [vmem:[%s0 + $0xc8] sm:$0xff]
  %v41 = vld [vmem:[%s0 + $0xd0] sm:$0xff]
  %v42 = vld [vmem:[%s0 + $0xd8] sm:$0xff]
  %v43 = vld [vmem:[%s0 + $0xe0] sm:$0xff]
  %v44 = vld [vmem:[%s0 + $0xe8] sm:$0xff]
  %v45 = vld [vmem:[%s0 + $0xf0] sm:$0xff]
  %v46 = vld [vmem:[%s0 + $0xf8] sm:$0xff]
  %v47 = vld [vmem:[%s0 + $0x100] sm:$0xff]
  %v48 = vld [vmem:[%s0 + $0x108] sm:$0xff]
  %v49 = vld [vmem:[%s0 + $0x110] sm:$0xff]
  %v50 = vld [vmem:[%s0 + $0x118] sm:$0xff]
  %v51 = vld [vmem:[%s0 + $0x120] sm:$0xff]
  %v52 = vld [vmem:[%s0 + $0x128] sm:$0xff]
  %v53 = vld [vmem:[%s0 + $0x130] sm:$0xff]
  %v54 = vld [vmem:[%s0 + $0x138] sm:$0xff]
  %v55 = vld [vmem:[%s0 + $0x140] sm:$0xff]
  %v56 = vld [vmem:[%s0 + $0x148] sm:$0xff]
  %v57 = vld [vmem:[%s0 + $0x150] sm:$0xff]
  %v58 = vld [vmem:[%s0 + $0x158] sm:$0xff]
  %v59 = vld [vmem:[%s0 + $0x160] sm:$0xff]
  %v60 = vld [vmem:[%s0 + $0x168] sm:$0xff]
  %v61 = vld [vmem:[%s0 + $0x170] sm:$0xff]
  %v62 = vld [vmem:[%s0 + $0x178] sm:$0xff]
  %v63 = vpack.c.bf16 %v31, %v15
  %v64 = vpack.c.bf16 %v32, %v16
  %v65 = vpack.c.bf16 %v33, %v17
  %v66 = vpack.c.bf16 %v34, %v18
  %v67 = vpack.c.bf16 %v35, %v19
  %v68 = vpack.c.bf16 %v36, %v20
  %v69 = vpack.c.bf16 %v37, %v21
  %v70 = vpack.c.bf16 %v38, %v22
  %v71 = vpack.c.bf16 %v39, %v23
  %v72 = vpack.c.bf16 %v40, %v24
  %v73 = vpack.c.bf16 %v41, %v25
  %v74 = vpack.c.bf16 %v42, %v26
  %v75 = vpack.c.bf16 %v43, %v27
  %v76 = vpack.c.bf16 %v44, %v28
  %v77 = vpack.c.bf16 %v45, %v29
  %v78 = vpack.c.bf16 %v46, %v30
  %v79 = vpack.c.bf16 %v47, %v47
  %v80 = vpack.c.bf16 %v48, %v48
  %v81 = vpack.c.bf16 %v49, %v49
  %v82 = vpack.c.bf16 %v50, %v50
  %v83 = vpack.c.bf16 %v51, %v51
  %v84 = vpack.c.bf16 %v52, %v52
  %v85 = vpack.c.bf16 %v53, %v53
  %v86 = vpack.c.bf16 %v54, %v54
  %v87 = vpack.c.bf16 %v55, %v55
  %v88 = vpack.c.bf16 %v56, %v56
  %v89 = vpack.c.bf16 %v57, %v57
  %v90 = vpack.c.bf16 %v58, %v58
  %v91 = vpack.c.bf16 %v59, %v59
  %v92 = vpack.c.bf16 %v60, %v60
  %v93 = vpack.c.bf16 %v61, %v61
  %v94 = vpack.c.bf16 %v62, %v62
  %v95 = vld [vmem:[%s1] sm:$0xf]
  %v96 = vld [vmem:[%s1 + $0x4] sm:$0xf]
  %v97 = vld [vmem:[%s1 + $0x8] sm:$0xf]
  %v98 = vld [vmem:[%s1 + $0xc] sm:$0xf]
  %v99 = vld [vmem:[%s1 + $0x10] sm:$0xf]
  %v100 = vld [vmem:[%s1 + $0x14] sm:$0xf]
  %v101 = vld [vmem:[%s1 + $0x18] sm:$0xf]
  %v102 = vld [vmem:[%s1 + $0x1c] sm:$0xf]
  %v103 = vld [vmem:[%s1 + $0x20] sm:$0xf]
  %v104 = vld [vmem:[%s1 + $0x24] sm:$0xf]
  %v105 = vld [vmem:[%s1 + $0x28] sm:$0xf]
  %v106 = vld [vmem:[%s1 + $0x2c] sm:$0xf]
  %v107 = vld [vmem:[%s1 + $0x30] sm:$0xf]
  %v108 = vld [vmem:[%s1 + $0x34] sm:$0xf]
  %v109 = vld [vmem:[%s1 + $0x38] sm:$0xf]
  %v110 = vld [vmem:[%s1 + $0x3c] sm:$0xf]
  %v111 = vld [vmem:[%s1 + $0x40] sm:$0xf]
  %v112 = vld [vmem:[%s1 + $0x44] sm:$0xf]
  %v113 = vld [vmem:[%s1 + $0x48] sm:$0xf]
  %v114 = vld [vmem:[%s1 + $0x4c] sm:$0xf]
  %v115 = vld [vmem:[%s1 + $0x50] sm:$0xf]
  %v116 = vld [vmem:[%s1 + $0x54] sm:$0xf]
  %v117 = vld [vmem:[%s1 + $0x58] sm:$0xf]
  %v118 = vld [vmem:[%s1 + $0x5c] sm:$0xf]
  %v119 = vld [vmem:[%s1 + $0x60] sm:$0xf]
  %v120 = vld [vmem:[%s1 + $0x64] sm:$0xf]
  %v121 = vld [vmem:[%s1 + $0x68] sm:$0xf]
  %v122 = vld [vmem:[%s1 + $0x6c] sm:$0xf]
  %v123 = vld [vmem:[%s1 + $0x70] sm:$0xf]
  %v124 = vld [vmem:[%s1 + $0x74] sm:$0xf]
  %v125 = vld [vmem:[%s1 + $0x78] sm:$0xf]
  %v126 = vld [vmem:[%s1 + $0x7c] sm:$0xf]
  %v127 = vld [vmem:[%s1 + $0x80] sm:$0xf]
  %v128 = vld [vmem:[%s1 + $0x84] sm:$0xf]
  %v129 = vld [vmem:[%s1 + $0x88] sm:$0xf]
  %v130 = vld [vmem:[%s1 + $0x8c] sm:$0xf]
  %v131 = vld [vmem:[%s1 + $0x90] sm:$0xf]
  %v132 = vld [vmem:[%s1 + $0x94] sm:$0xf]
  %v133 = vld [vmem:[%s1 + $0x98] sm:$0xf]
  %v134 = vld [vmem:[%s1 + $0x9c] sm:$0xf]
  %v135 = vld [vmem:[%s1 + $0xa0] sm:$0xf]
  %v136 = vld [vmem:[%s1 + $0xa4] sm:$0xf]
  %v137 = vld [vmem:[%s1 + $0xa8] sm:$0xf]
  %v138 = vld [vmem:[%s1 + $0xac] sm:$0xf]
  %v139 = vld [vmem:[%s1 + $0xb0] sm:$0xf]
  %v140 = vld [vmem:[%s1 + $0xb4] sm:$0xf]
  %v141 = vld [vmem:[%s1 + $0xb8] sm:$0xf]
  %v142 = vld [vmem:[%s1 + $0xbc] sm:$0xf]
  %v143 = vld [vmem:[%s1 + $0xc0] sm:$0xf]
  %v144 = vld [vmem:[%s1 + $0xc4] sm:$0xf]
  %v145 = vld [vmem:[%s1 + $0xc8] sm:$0xf]
  %v146 = vld [vmem:[%s1 + $0xcc] sm:$0xf]
  %v147 = vld [vmem:[%s1 + $0xd0] sm:$0xf]
  %v148 = vld [vmem:[%s1 + $0xd4] sm:$0xf]
  %v149 = vld [vmem:[%s1 + $0xd8] sm:$0xf]
  %v150 = vld [vmem:[%s1 + $0xdc] sm:$0xf]
  %v151 = vld [vmem:[%s1 + $0xe0] sm:$0xf]
  %v152 = vld [vmem:[%s1 + $0xe4] sm:$0xf]
  %v153 = vld [vmem:[%s1 + $0xe8] sm:$0xf]
  %v154 = vld [vmem:[%s1 + $0xec] sm:$0xf]
  %v155 = vld [vmem:[%s1 + $0xf0] sm:$0xf]
  %v156 = vld [vmem:[%s1 + $0xf4] sm:$0xf]
  %v157 = vld [vmem:[%s1 + $0xf8] sm:$0xf]
  %v158 = vld [vmem:[%s1 + $0xfc] sm:$0xf]
  %v159 = vld [vmem:[%s1 + $0x100] sm:$0xf]
  %v160 = vld [vmem:[%s1 + $0x104] sm:$0xf]
  %v161 = vld [vmem:[%s1 + $0x108] sm:$0xf]
  %v162 = vld [vmem:[%s1 + $0x10c] sm:$0xf]
  %v163 = vld [vmem:[%s1 + $0x110] sm:$0xf]
  %v164 = vld [vmem:[%s1 + $0x114] sm:$0xf]
  %v165 = vld [vmem:[%s1 + $0x118] sm:$0xf]
  %v166 = vld [vmem:[%s1 + $0x11c] sm:$0xf]
  %v167 = vld [vmem:[%s1 + $0x120] sm:$0xf]
  %v168 = vld [vmem:[%s1 + $0x124] sm:$0xf]
  %v169 = vld [vmem:[%s1 + $0x128] sm:$0xf]
  %v170 = vld [vmem:[%s1 + $0x12c] sm:$0xf]
  %v171 = vld [vmem:[%s1 + $0x130] sm:$0xf]
  %v172 = vld [vmem:[%s1 + $0x134] sm:$0xf]
  %v173 = vld [vmem:[%s1 + $0x138] sm:$0xf]
  %v174 = vld [vmem:[%s1 + $0x13c] sm:$0xf]
  %v175 = vld [vmem:[%s1 + $0x140] sm:$0xf]
  %v176 = vld [vmem:[%s1 + $0x144] sm:$0xf]
  %v177 = vld [vmem:[%s1 + $0x148] sm:$0xf]
  %v178 = vld [vmem:[%s1 + $0x14c] sm:$0xf]
  %v179 = vld [vmem:[%s1 + $0x150] sm:$0xf]
  %v180 = vld [vmem:[%s1 + $0x154] sm:$0xf]
  %v181 = vld [vmem:[%s1 + $0x158] sm:$0xf]
  %v182 = vld [vmem:[%s1 + $0x15c] sm:$0xf]
  %v183 = vld [vmem:[%s1 + $0x160] sm:$0xf]
  %v184 = vld [vmem:[%s1 + $0x164] sm:$0xf]
  %v185 = vld [vmem:[%s1 + $0x168] sm:$0xf]
  %v186 = vld [vmem:[%s1 + $0x16c] sm:$0xf]
  %v187 = vld [vmem:[%s1 + $0x170] sm:$0xf]
  %v188 = vld [vmem:[%s1 + $0x174] sm:$0xf]
  %v189 = vld [vmem:[%s1 + $0x178] sm:$0xf]
  %v190 = vld [vmem:[%s1 + $0x17c] sm:$0xf]
  %v191 = vld [vmem:[%s1 + $0x180] sm:$0xf]
  %v192 = vld [vmem:[%s1 + $0x184] sm:$0xf]
  %v193 = vld [vmem:[%s1 + $0x188] sm:$0xf]
  %v194 = vld [vmem:[%s1 + $0x18c] sm:$0xf]
  %v195 = vld [vmem:[%s1 + $0x190] sm:$0xf]
  %v196 = vld [vmem:[%s1 + $0x194] sm:$0xf]
  %v197 = vld [vmem:[%s1 + $0x198] sm:$0xf]
  %v198 = vld [vmem:[%s1 + $0x19c] sm:$0xf]
  %v199 = vld [vmem:[%s1 + $0x1a0] sm:$0xf]
  %v200 = vld [vmem:[%s1 + $0x1a4] sm:$0xf]
  %v201 = vld [vmem:[%s1 + $0x1a8] sm:$0xf]
  %v202 = vld [vmem:[%s1 + $0x1ac] sm:$0xf]
  %v203 = vld [vmem:[%s1 + $0x1b0] sm:$0xf]
  %v204 = vld [vmem:[%s1 + $0x1b4] sm:$0xf]
  %v205 = vld [vmem:[%s1 + $0x1b8] sm:$0xf]
  %v206 = vld [vmem:[%s1 + $0x1bc] sm:$0xf]
  %v207 = vld [vmem:[%s1 + $0x1c0] sm:$0xf]
  %v208 = vld [vmem:[%s1 + $0x1c4] sm:$0xf]
  %v209 = vld [vmem:[%s1 + $0x1c8] sm:$0xf]
  %v210 = vld [vmem:[%s1 + $0x1cc] sm:$0xf]
  %v211 = vld [vmem:[%s1 + $0x1d0] sm:$0xf]
  %v212 = vld [vmem:[%s1 + $0x1d4] sm:$0xf]
  %v213 = vld [vmem:[%s1 + $0x1d8] sm:$0xf]
  %v214 = vld [vmem:[%s1 + $0x1dc] sm:$0xf]
  %v215 = vld [vmem:[%s1 + $0x1e0] sm:$0xf]
  %v216 = vld [vmem:[%s1 + $0x1e4] sm:$0xf]
  %v217 = vld [vmem:[%s1 + $0x1e8] sm:$0xf]
  %v218 = vld [vmem:[%s1 + $0x1ec] sm:$0xf]
  %v219 = vld [vmem:[%s1 + $0x1f0] sm:$0xf]
  %v220 = vld [vmem:[%s1 + $0x1f4] sm:$0xf]
  %v221 = vld [vmem:[%s1 + $0x1f8] sm:$0xf]
  %v222 = vld [vmem:[%s1 + $0x1fc] sm:$0xf]
  %v223 = vld [vmem:[%s1 + $0x200] sm:$0xf]
  %v224 = vld [vmem:[%s1 + $0x204] sm:$0xf]
  %v225 = vld [vmem:[%s1 + $0x208] sm:$0xf]
  %v226 = vld [vmem:[%s1 + $0x20c] sm:$0xf]
  %v227 = vld [vmem:[%s1 + $0x210] sm:$0xf]
  %v228 = vld [vmem:[%s1 + $0x214] sm:$0xf]
  %v229 = vld [vmem:[%s1 + $0x218] sm:$0xf]
  %v230 = vld [vmem:[%s1 + $0x21c] sm:$0xf]
  %v231 = vld [vmem:[%s1 + $0x220] sm:$0xf]
  %v232 = vld [vmem:[%s1 + $0x224] sm:$0xf]
  %v233 = vld [vmem:[%s1 + $0x228] sm:$0xf]
  %v234 = vld [vmem:[%s1 + $0x22c] sm:$0xf]
  %v235 = vld [vmem:[%s1 + $0x230] sm:$0xf]
  %v236 = vld [vmem:[%s1 + $0x234] sm:$0xf]
  %v237 = vld [vmem:[%s1 + $0x238] sm:$0xf]
  %v238 = vld [vmem:[%s1 + $0x23c] sm:$0xf]
  %v239 = vld [vmem:[%s1 + $0x240] sm:$0xf]
  %v240 = vld [vmem:[%s1 + $0x244] sm:$0xf]
  %v241 = vld [vmem:[%s1 + $0x248] sm:$0xf]
  %v242 = vld [vmem:[%s1 + $0x24c] sm:$0xf]
  %v243 = vld [vmem:[%s1 + $0x250] sm:$0xf]
  %v244 = vld [vmem:[%s1 + $0x254] sm:$0xf]
  %v245 = vld [vmem:[%s1 + $0x258] sm:$0xf]
  %v246 = vld [vmem:[%s1 + $0x25c] sm:$0xf]
  %v247 = vld [vmem:[%s1 + $0x260] sm:$0xf]
  %v248 = vld [vmem:[%s1 + $0x264] sm:$0xf]
  %v249 = vld [vmem:[%s1 + $0x268] sm:$0xf]
  %v250 = vld [vmem:[%s1 + $0x26c] sm:$0xf]
  %v251 = vld [vmem:[%s1 + $0x270] sm:$0xf]
  %v252 = vld [vmem:[%s1 + $0x274] sm:$0xf]
  %v253 = vld [vmem:[%s1 + $0x278] sm:$0xf]
  %v254 = vld [vmem:[%s1 + $0x27c] sm:$0xf]
  %v255 = vld [vmem:[%s1 + $0x280] sm:$0xf]
  %v256 = vld [vmem:[%s1 + $0x284] sm:$0xf]
  %v257 = vld [vmem:[%s1 + $0x288] sm:$0xf]
  %v258 = vld [vmem:[%s1 + $0x28c] sm:$0xf]
  %v259 = vld [vmem:[%s1 + $0x290] sm:$0xf]
  %v260 = vld [vmem:[%s1 + $0x294] sm:$0xf]
  %v261 = vld [vmem:[%s1 + $0x298] sm:$0xf]
  %v262 = vld [vmem:[%s1 + $0x29c] sm:$0xf]
  %v263 = vld [vmem:[%s1 + $0x2a0] sm:$0xf]
  %v264 = vld [vmem:[%s1 + $0x2a4] sm:$0xf]
  %v265 = vld [vmem:[%s1 + $0x2a8] sm:$0xf]
  %v266 = vld [vmem:[%s1 + $0x2ac] sm:$0xf]
  %v267 = vld [vmem:[%s1 + $0x2b0] sm:$0xf]
  %v268 = vld [vmem:[%s1 + $0x2b4] sm:$0xf]
  %v269 = vld [vmem:[%s1 + $0x2b8] sm:$0xf]
  %v270 = vld [vmem:[%s1 + $0x2bc] sm:$0xf]
  %v271 = vld [vmem:[%s1 + $0x2c0] sm:$0xf]
  %v272 = vld [vmem:[%s1 + $0x2c4] sm:$0xf]
  %v273 = vld [vmem:[%s1 + $0x2c8] sm:$0xf]
  %v274 = vld [vmem:[%s1 + $0x2cc] sm:$0xf]
  %v275 = vld [vmem:[%s1 + $0x2d0] sm:$0xf]
  %v276 = vld [vmem:[%s1 + $0x2d4] sm:$0xf]
  %v277 = vld [vmem:[%s1 + $0x2d8] sm:$0xf]
  %v278 = vld [vmem:[%s1 + $0x2dc] sm:$0xf]
  %v279 = vld [vmem:[%s1 + $0x2e0] sm:$0xf]
  %v280 = vld [vmem:[%s1 + $0x2e4] sm:$0xf]
  %v281 = vld [vmem:[%s1 + $0x2e8] sm:$0xf]
  %v282 = vld [vmem:[%s1 + $0x2ec] sm:$0xf]
  %v283 = vld [vmem:[%s1 + $0x2f0] sm:$0xf]
  %v284 = vld [vmem:[%s1 + $0x2f4] sm:$0xf]
  %v285 = vld [vmem:[%s1 + $0x2f8] sm:$0xf]
  %v286 = vld [vmem:[%s1 + $0x2fc] sm:$0xf]
  %v287 = vld [vmem:[%s1 + $0x300] sm:$0xf]
  %v288 = vld [vmem:[%s1 + $0x304] sm:$0xf]
  %v289 = vld [vmem:[%s1 + $0x308] sm:$0xf]
  %v290 = vld [vmem:[%s1 + $0x30c] sm:$0xf]
  %v291 = vld [vmem:[%s1 + $0x310] sm:$0xf]
  %v292 = vld [vmem:[%s1 + $0x314] sm:$0xf]
  %v293 = vld [vmem:[%s1 + $0x318] sm:$0xf]
  %v294 = vld [vmem:[%s1 + $0x31c] sm:$0xf]
  %v295 = vld [vmem:[%s1 + $0x320] sm:$0xf]
  %v296 = vld [vmem:[%s1 + $0x324] sm:$0xf]
  %v297 = vld [vmem:[%s1 + $0x328] sm:$0xf]
  %v298 = vld [vmem:[%s1 + $0x32c] sm:$0xf]
  %v299 = vld [vmem:[%s1 + $0x330] sm:$0xf]
  %v300 = vld [vmem:[%s1 + $0x334] sm:$0xf]
  %v301 = vld [vmem:[%s1 + $0x338] sm:$0xf]
  %v302 = vld [vmem:[%s1 + $0x33c] sm:$0xf]
  %v303 = vld [vmem:[%s1 + $0x340] sm:$0xf]
  %v304 = vld [vmem:[%s1 + $0x344] sm:$0xf]
  %v305 = vld [vmem:[%s1 + $0x348] sm:$0xf]
  %v306 = vld [vmem:[%s1 + $0x34c] sm:$0xf]
  %v307 = vld [vmem:[%s1 + $0x350] sm:$0xf]
  %v308 = vld [vmem:[%s1 + $0x354] sm:$0xf]
  %v309 = vld [vmem:[%s1 + $0x358] sm:$0xf]
  %v310 = vld [vmem:[%s1 + $0x35c] sm:$0xf]
  %v311 = vld [vmem:[%s1 + $0x360] sm:$0xf]
  %v312 = vld [vmem:[%s1 + $0x364] sm:$0xf]
  %v313 = vld [vmem:[%s1 + $0x368] sm:$0xf]
  %v314 = vld [vmem:[%s1 + $0x36c] sm:$0xf]
  %v315 = vld [vmem:[%s1 + $0x370] sm:$0xf]
  %v316 = vld [vmem:[%s1 + $0x374] sm:$0xf]
  %v317 = vld [vmem:[%s1 + $0x378] sm:$0xf]
  %v318 = vld [vmem:[%s1 + $0x37c] sm:$0xf]
  %v319 = vld [vmem:[%s1 + $0x380] sm:$0xf]
  %v320 = vld [vmem:[%s1 + $0x384] sm:$0xf]
  %v321 = vld [vmem:[%s1 + $0x388] sm:$0xf]
  %v322 = vld [vmem:[%s1 + $0x38c] sm:$0xf]
  %v323 = vld [vmem:[%s1 + $0x390] sm:$0xf]
  %v324 = vld [vmem:[%s1 + $0x394] sm:$0xf]
  %v325 = vld [vmem:[%s1 + $0x398] sm:$0xf]
  %v326 = vld [vmem:[%s1 + $0x39c] sm:$0xf]
  %v327 = vld [vmem:[%s1 + $0x3a0] sm:$0xf]
  %v328 = vld [vmem:[%s1 + $0x3a4] sm:$0xf]
  %v329 = vld [vmem:[%s1 + $0x3a8] sm:$0xf]
  %v330 = vld [vmem:[%s1 + $0x3ac] sm:$0xf]
  %v331 = vld [vmem:[%s1 + $0x3b0] sm:$0xf]
  %v332 = vld [vmem:[%s1 + $0x3b4] sm:$0xf]
  %v333 = vld [vmem:[%s1 + $0x3b8] sm:$0xf]
  %v334 = vld [vmem:[%s1 + $0x3bc] sm:$0xf]
  %v335 = vld [vmem:[%s1 + $0x3c0] sm:$0xf]
  %v336 = vld [vmem:[%s1 + $0x3c4] sm:$0xf]
  %v337 = vld [vmem:[%s1 + $0x3c8] sm:$0xf]
  %v338 = vld [vmem:[%s1 + $0x3cc] sm:$0xf]
  %v339 = vld [vmem:[%s1 + $0x3d0] sm:$0xf]
  %v340 = vld [vmem:[%s1 + $0x3d4] sm:$0xf]
  %v341 = vld [vmem:[%s1 + $0x3d8] sm:$0xf]
  %v342 = vld [vmem:[%s1 + $0x3dc] sm:$0xf]
  %v343 = vld [vmem:[%s1 + $0x3e0] sm:$0xf]
  %v344 = vld [vmem:[%s1 + $0x3e4] sm:$0xf]
  %v345 = vld [vmem:[%s1 + $0x3e8] sm:$0xf]
  %v346 = vld [vmem:[%s1 + $0x3ec] sm:$0xf]
  %v347 = vld [vmem:[%s1 + $0x3f0] sm:$0xf]
  %v348 = vld [vmem:[%s1 + $0x3f4] sm:$0xf]
  %v349 = vld [vmem:[%s1 + $0x3f8] sm:$0xf]
  %v350 = vld [vmem:[%s1 + $0x3fc] sm:$0xf]
  %v351 = vld [vmem:[%s2] sm:$0x1]
  %v353 = vlaneseq
  %v354 = vshrl.u32 %v353, 7
  %v355 = vsub.s32 0, %v354
  %v356 = vrot.slane %v351, %v355
  %v614 = vunpack.c.l.b16 %v95
  %v615 = vunpack.c.l.b16 %v96
  %v616 = vunpack.c.l.b16 %v97
  %v617 = vunpack.c.l.b16 %v98
  %v618 = vunpack.c.l.b16 %v99
  %v619 = vunpack.c.l.b16 %v100
  %v620 = vunpack.c.l.b16 %v101
  %v621 = vunpack.c.l.b16 %v102
  %v622 = vunpack.c.l.b16 %v103
  %v623 = vunpack.c.l.b16 %v104
  %v624 = vunpack.c.l.b16 %v105
  %v625 = vunpack.c.l.b16 %v106
  %v626 = vunpack.c.l.b16 %v107
  %v627 = vunpack.c.l.b16 %v108
  %v628 = vunpack.c.l.b16 %v109
  %v629 = vunpack.c.l.b16 %v110
  %v630 = vunpack.c.l.b16 %v111
  %v631 = vunpack.c.l.b16 %v112
  %v632 = vunpack.c.l.b16 %v113
  %v633 = vunpack.c.l.b16 %v114
  %v634 = vunpack.c.l.b16 %v115
  %v635 = vunpack.c.l.b16 %v116
  %v636 = vunpack.c.l.b16 %v117
  %v637 = vunpack.c.l.b16 %v118
  %v638 = vunpack.c.l.b16 %v119
  %v639 = vunpack.c.l.b16 %v120
  %v640 = vunpack.c.l.b16 %v121
  %v641 = vunpack.c.l.b16 %v122
  %v642 = vunpack.c.l.b16 %v123
  %v643 = vunpack.c.l.b16 %v124
  %v644 = vunpack.c.l.b16 %v125
  %v645 = vunpack.c.l.b16 %v126
  %v646 = vunpack.c.l.b16 %v127
  %v647 = vunpack.c.l.b16 %v128
  %v648 = vunpack.c.l.b16 %v129
  %v649 = vunpack.c.l.b16 %v130
  %v650 = vunpack.c.l.b16 %v131
  %v651 = vunpack.c.l.b16 %v132
  %v652 = vunpack.c.l.b16 %v133
  %v653 = vunpack.c.l.b16 %v134
  %v654 = vunpack.c.l.b16 %v135
  %v655 = vunpack.c.l.b16 %v136
  %v656 = vunpack.c.l.b16 %v137
  %v657 = vunpack.c.l.b16 %v138
  %v658 = vunpack.c.l.b16 %v139
  %v659 = vunpack.c.l.b16 %v140
  %v660 = vunpack.c.l.b16 %v141
  %v661 = vunpack.c.l.b16 %v142
  %v662 = vunpack.c.l.b16 %v143
  %v663 = vunpack.c.l.b16 %v144
  %v664 = vunpack.c.l.b16 %v145
  %v665 = vunpack.c.l.b16 %v146
  %v666 = vunpack.c.l.b16 %v147
  %v667 = vunpack.c.l.b16 %v148
  %v668 = vunpack.c.l.b16 %v149
  %v669 = vunpack.c.l.b16 %v150
  %v670 = vunpack.c.l.b16 %v151
  %v671 = vunpack.c.l.b16 %v152
  %v672 = vunpack.c.l.b16 %v153
  %v673 = vunpack.c.l.b16 %v154
  %v674 = vunpack.c.l.b16 %v155
  %v675 = vunpack.c.l.b16 %v156
  %v676 = vunpack.c.l.b16 %v157
  %v677 = vunpack.c.l.b16 %v158
  %v678 = vunpack.c.l.b16 %v159
  %v679 = vunpack.c.l.b16 %v160
  %v680 = vunpack.c.l.b16 %v161
  %v681 = vunpack.c.l.b16 %v162
  %v682 = vunpack.c.l.b16 %v163
  %v683 = vunpack.c.l.b16 %v164
  %v684 = vunpack.c.l.b16 %v165
  %v685 = vunpack.c.l.b16 %v166
  %v686 = vunpack.c.l.b16 %v167
  %v687 = vunpack.c.l.b16 %v168
  %v688 = vunpack.c.l.b16 %v169
  %v689 = vunpack.c.l.b16 %v170
  %v690 = vunpack.c.l.b16 %v171
  %v691 = vunpack.c.l.b16 %v172
  %v692 = vunpack.c.l.b16 %v173
  %v693 = vunpack.c.l.b16 %v174
  %v694 = vunpack.c.l.b16 %v175
  %v695 = vunpack.c.l.b16 %v176
  %v696 = vunpack.c.l.b16 %v177
  %v697 = vunpack.c.l.b16 %v178
  %v698 = vunpack.c.l.b16 %v179
  %v699 = vunpack.c.l.b16 %v180
  %v700 = vunpack.c.l.b16 %v181
  %v701 = vunpack.c.l.b16 %v182
  %v702 = vunpack.c.l.b16 %v183
  %v703 = vunpack.c.l.b16 %v184
  %v704 = vunpack.c.l.b16 %v185
  %v705 = vunpack.c.l.b16 %v186
  %v706 = vunpack.c.l.b16 %v187
  %v707 = vunpack.c.l.b16 %v188
  %v708 = vunpack.c.l.b16 %v189
  %v709 = vunpack.c.l.b16 %v190
  %v710 = vunpack.c.l.b16 %v191
  %v711 = vunpack.c.l.b16 %v192
  %v712 = vunpack.c.l.b16 %v193
  %v713 = vunpack.c.l.b16 %v194
  %v714 = vunpack.c.l.b16 %v195
  %v715 = vunpack.c.l.b16 %v196
  %v716 = vunpack.c.l.b16 %v197
  %v717 = vunpack.c.l.b16 %v198
  %v718 = vunpack.c.l.b16 %v199
  %v719 = vunpack.c.l.b16 %v200
  %v720 = vunpack.c.l.b16 %v201
  %v721 = vunpack.c.l.b16 %v202
  %v722 = vunpack.c.l.b16 %v203
  %v723 = vunpack.c.l.b16 %v204
  %v724 = vunpack.c.l.b16 %v205
  %v725 = vunpack.c.l.b16 %v206
  %v726 = vunpack.c.l.b16 %v207
  %v727 = vunpack.c.l.b16 %v208
  %v728 = vunpack.c.l.b16 %v209
  %v729 = vunpack.c.l.b16 %v210
  %v730 = vunpack.c.l.b16 %v211
  %v731 = vunpack.c.l.b16 %v212
  %v732 = vunpack.c.l.b16 %v213
  %v733 = vunpack.c.l.b16 %v214
  %v734 = vunpack.c.l.b16 %v215
  %v735 = vunpack.c.l.b16 %v216
  %v736 = vunpack.c.l.b16 %v217
  %v737 = vunpack.c.l.b16 %v218
  %v738 = vunpack.c.l.b16 %v219
  %v739 = vunpack.c.l.b16 %v220
  %v740 = vunpack.c.l.b16 %v221
  %v741 = vunpack.c.l.b16 %v222
  %v742 = vunpack.c.l.b16 %v223
  %v743 = vunpack.c.l.b16 %v224
  %v744 = vunpack.c.l.b16 %v225
  %v745 = vunpack.c.l.b16 %v226
  %v746 = vunpack.c.l.b16 %v227
  %v747 = vunpack.c.l.b16 %v228
  %v748 = vunpack.c.l.b16 %v229
  %v749 = vunpack.c.l.b16 %v230
  %v750 = vunpack.c.l.b16 %v231
  %v751 = vunpack.c.l.b16 %v232
  %v752 = vunpack.c.l.b16 %v233
  %v753 = vunpack.c.l.b16 %v234
  %v754 = vunpack.c.l.b16 %v235
  %v755 = vunpack.c.l.b16 %v236
  %v756 = vunpack.c.l.b16 %v237
  %v757 = vunpack.c.l.b16 %v238
  %v758 = vunpack.c.l.b16 %v239
  %v759 = vunpack.c.l.b16 %v240
  %v760 = vunpack.c.l.b16 %v241
  %v761 = vunpack.c.l.b16 %v242
  %v762 = vunpack.c.l.b16 %v243
  %v763 = vunpack.c.l.b16 %v244
  %v764 = vunpack.c.l.b16 %v245
  %v765 = vunpack.c.l.b16 %v246
  %v766 = vunpack.c.l.b16 %v247
  %v767 = vunpack.c.l.b16 %v248
  %v768 = vunpack.c.l.b16 %v249
  %v769 = vunpack.c.l.b16 %v250
  %v770 = vunpack.c.l.b16 %v251
  %v771 = vunpack.c.l.b16 %v252
  %v772 = vunpack.c.l.b16 %v253
  %v773 = vunpack.c.l.b16 %v254
  %v774 = vunpack.c.l.b16 %v255
  %v775 = vunpack.c.l.b16 %v256
  %v776 = vunpack.c.l.b16 %v257
  %v777 = vunpack.c.l.b16 %v258
  %v778 = vunpack.c.l.b16 %v259
  %v779 = vunpack.c.l.b16 %v260
  %v780 = vunpack.c.l.b16 %v261
  %v781 = vunpack.c.l.b16 %v262
  %v782 = vunpack.c.l.b16 %v263
  %v783 = vunpack.c.l.b16 %v264
  %v784 = vunpack.c.l.b16 %v265
  %v785 = vunpack.c.l.b16 %v266
  %v786 = vunpack.c.l.b16 %v267
  %v787 = vunpack.c.l.b16 %v268
  %v788 = vunpack.c.l.b16 %v269
  %v789 = vunpack.c.l.b16 %v270
  %v790 = vunpack.c.l.b16 %v271
  %v791 = vunpack.c.l.b16 %v272
  %v792 = vunpack.c.l.b16 %v273
  %v793 = vunpack.c.l.b16 %v274
  %v794 = vunpack.c.l.b16 %v275
  %v795 = vunpack.c.l.b16 %v276
  %v796 = vunpack.c.l.b16 %v277
  %v797 = vunpack.c.l.b16 %v278
  %v798 = vunpack.c.l.b16 %v279
  %v799 = vunpack.c.l.b16 %v280
  %v800 = vunpack.c.l.b16 %v281
  %v801 = vunpack.c.l.b16 %v282
  %v802 = vunpack.c.l.b16 %v283
  %v803 = vunpack.c.l.b16 %v284
  %v804 = vunpack.c.l.b16 %v285
  %v805 = vunpack.c.l.b16 %v286
  %v806 = vunpack.c.l.b16 %v287
  %v807 = vunpack.c.l.b16 %v288
  %v808 = vunpack.c.l.b16 %v289
  %v809 = vunpack.c.l.b16 %v290
  %v810 = vunpack.c.l.b16 %v291
  %v811 = vunpack.c.l.b16 %v292
  %v812 = vunpack.c.l.b16 %v293
  %v813 = vunpack.c.l.b16 %v294
  %v814 = vunpack.c.l.b16 %v295
  %v815 = vunpack.c.l.b16 %v296
  %v816 = vunpack.c.l.b16 %v297
  %v817 = vunpack.c.l.b16 %v298
  %v818 = vunpack.c.l.b16 %v299
  %v819 = vunpack.c.l.b16 %v300
  %v820 = vunpack.c.l.b16 %v301
  %v821 = vunpack.c.l.b16 %v302
  %v822 = vunpack.c.l.b16 %v303
  %v823 = vunpack.c.l.b16 %v304
  %v824 = vunpack.c.l.b16 %v305
  %v825 = vunpack.c.l.b16 %v306
  %v826 = vunpack.c.l.b16 %v307
  %v827 = vunpack.c.l.b16 %v308
  %v828 = vunpack.c.l.b16 %v309
  %v829 = vunpack.c.l.b16 %v310
  %v830 = vunpack.c.l.b16 %v311
  %v831 = vunpack.c.l.b16 %v312
  %v832 = vunpack.c.l.b16 %v313
  %v833 = vunpack.c.l.b16 %v314
  %v834 = vunpack.c.l.b16 %v315
  %v835 = vunpack.c.l.b16 %v316
  %v836 = vunpack.c.l.b16 %v317
  %v837 = vunpack.c.l.b16 %v318
  %v838 = vunpack.c.l.b16 %v319
  %v839 = vunpack.c.l.b16 %v320
  %v840 = vunpack.c.l.b16 %v321
  %v841 = vunpack.c.l.b16 %v322
  %v842 = vunpack.c.l.b16 %v323
  %v843 = vunpack.c.l.b16 %v324
  %v844 = vunpack.c.l.b16 %v325
  %v845 = vunpack.c.l.b16 %v326
  %v846 = vunpack.c.l.b16 %v327
  %v847 = vunpack.c.l.b16 %v328
  %v848 = vunpack.c.l.b16 %v329
  %v849 = vunpack.c.l.b16 %v330
  %v850 = vunpack.c.l.b16 %v331
  %v851 = vunpack.c.l.b16 %v332
  %v852 = vunpack.c.l.b16 %v333
  %v853 = vunpack.c.l.b16 %v334
  %v854 = vunpack.c.l.b16 %v335
  %v855 = vunpack.c.l.b16 %v336
  %v856 = vunpack.c.l.b16 %v337
  %v857 = vunpack.c.l.b16 %v338
  %v858 = vunpack.c.l.b16 %v339
  %v859 = vunpack.c.l.b16 %v340
  %v860 = vunpack.c.l.b16 %v341
  %v861 = vunpack.c.l.b16 %v342
  %v862 = vunpack.c.l.b16 %v343
  %v863 = vunpack.c.l.b16 %v344
  %v864 = vunpack.c.l.b16 %v345
  %v865 = vunpack.c.l.b16 %v346
  %v866 = vunpack.c.l.b16 %v347
  %v867 = vunpack.c.l.b16 %v348
  %v868 = vunpack.c.l.b16 %v349
  %v869 = vunpack.c.l.b16 %v350
  %v870 = vpack.c.b16 %v615, %v614
  %v871 = vpack.c.b16 %v617, %v616
  %v872 = vpack.c.b16 %v619, %v618
  %v873 = vpack.c.b16 %v621, %v620
  %v874 = vpack.c.b16 %v623, %v622
  %v875 = vpack.c.b16 %v625, %v624
  %v876 = vpack.c.b16 %v627, %v626
  %v877 = vpack.c.b16 %v629, %v628
  %v878 = vpack.c.b16 %v631, %v630
  %v879 = vpack.c.b16 %v633, %v632
  %v880 = vpack.c.b16 %v635, %v634
  %v881 = vpack.c.b16 %v637, %v636
  %v882 = vpack.c.b16 %v639, %v638
  %v883 = vpack.c.b16 %v641, %v640
  %v884 = vpack.c.b16 %v643, %v642
  %v885 = vpack.c.b16 %v645, %v644
  %v886 = vpack.c.b16 %v647, %v646
  %v887 = vpack.c.b16 %v649, %v648
  %v888 = vpack.c.b16 %v651, %v650
  %v889 = vpack.c.b16 %v653, %v652
  %v890 = vpack.c.b16 %v655, %v654
  %v891 = vpack.c.b16 %v657, %v656
  %v892 = vpack.c.b16 %v659, %v658
  %v893 = vpack.c.b16 %v661, %v660
  %v894 = vpack.c.b16 %v663, %v662
  %v895 = vpack.c.b16 %v665, %v664
  %v896 = vpack.c.b16 %v667, %v666
  %v897 = vpack.c.b16 %v669, %v668
  %v898 = vpack.c.b16 %v671, %v670
  %v899 = vpack.c.b16 %v673, %v672
  %v900 = vpack.c.b16 %v675, %v674
  %v901 = vpack.c.b16 %v677, %v676
  %v902 = vpack.c.b16 %v679, %v678
  %v903 = vpack.c.b16 %v681, %v680
  %v904 = vpack.c.b16 %v683, %v682
  %v905 = vpack.c.b16 %v685, %v684
  %v906 = vpack.c.b16 %v687, %v686
  %v907 = vpack.c.b16 %v689, %v688
  %v908 = vpack.c.b16 %v691, %v690
  %v909 = vpack.c.b16 %v693, %v692
  %v910 = vpack.c.b16 %v695, %v694
  %v911 = vpack.c.b16 %v697, %v696
  %v912 = vpack.c.b16 %v699, %v698
  %v913 = vpack.c.b16 %v701, %v700
  %v914 = vpack.c.b16 %v703, %v702
  %v915 = vpack.c.b16 %v705, %v704
  %v916 = vpack.c.b16 %v707, %v706
  %v917 = vpack.c.b16 %v709, %v708
  %v918 = vpack.c.b16 %v711, %v710
  %v919 = vpack.c.b16 %v713, %v712
  %v920 = vpack.c.b16 %v715, %v714
  %v921 = vpack.c.b16 %v717, %v716
  %v922 = vpack.c.b16 %v719, %v718
  %v923 = vpack.c.b16 %v721, %v720
  %v924 = vpack.c.b16 %v723, %v722
  %v925 = vpack.c.b16 %v725, %v724
  %v926 = vpack.c.b16 %v727, %v726
  %v927 = vpack.c.b16 %v729, %v728
  %v928 = vpack.c.b16 %v731, %v730
  %v929 = vpack.c.b16 %v733, %v732
  %v930 = vpack.c.b16 %v735, %v734
  %v931 = vpack.c.b16 %v737, %v736
  %v932 = vpack.c.b16 %v739, %v738
  %v933 = vpack.c.b16 %v741, %v740
  %v934 = vpack.c.b16 %v743, %v742
  %v935 = vpack.c.b16 %v745, %v744
  %v936 = vpack.c.b16 %v747, %v746
  %v937 = vpack.c.b16 %v749, %v748
  %v938 = vpack.c.b16 %v751, %v750
  %v939 = vpack.c.b16 %v753, %v752
  %v940 = vpack.c.b16 %v755, %v754
  %v941 = vpack.c.b16 %v757, %v756
  %v942 = vpack.c.b16 %v759, %v758
  %v943 = vpack.c.b16 %v761, %v760
  %v944 = vpack.c.b16 %v763, %v762
  %v945 = vpack.c.b16 %v765, %v764
  %v946 = vpack.c.b16 %v767, %v766
  %v947 = vpack.c.b16 %v769, %v768
  %v948 = vpack.c.b16 %v771, %v770
  %v949 = vpack.c.b16 %v773, %v772
  %v950 = vpack.c.b16 %v775, %v774
  %v951 = vpack.c.b16 %v777, %v776
  %v952 = vpack.c.b16 %v779, %v778
  %v953 = vpack.c.b16 %v781, %v780
  %v954 = vpack.c.b16 %v783, %v782
  %v955 = vpack.c.b16 %v785, %v784
  %v956 = vpack.c.b16 %v787, %v786
  %v957 = vpack.c.b16 %v789, %v788
  %v958 = vpack.c.b16 %v791, %v790
  %v959 = vpack.c.b16 %v793, %v792
  %v960 = vpack.c.b16 %v795, %v794
  %v961 = vpack.c.b16 %v797, %v796
  %v962 = vpack.c.b16 %v799, %v798
  %v963 = vpack.c.b16 %v801, %v800
  %v964 = vpack.c.b16 %v803, %v802
  %v965 = vpack.c.b16 %v805, %v804
  %v966 = vpack.c.b16 %v807, %v806
  %v967 = vpack.c.b16 %v809, %v808
  %v968 = vpack.c.b16 %v811, %v810
  %v969 = vpack.c.b16 %v813, %v812
  %v970 = vpack.c.b16 %v815, %v814
  %v971 = vpack.c.b16 %v817, %v816
  %v972 = vpack.c.b16 %v819, %v818
  %v973 = vpack.c.b16 %v821, %v820
  %v974 = vpack.c.b16 %v823, %v822
  %v975 = vpack.c.b16 %v825, %v824
  %v976 = vpack.c.b16 %v827, %v826
  %v977 = vpack.c.b16 %v829, %v828
  %v978 = vpack.c.b16 %v831, %v830
  %v979 = vpack.c.b16 %v833, %v832
  %v980 = vpack.c.b16 %v835, %v834
  %v981 = vpack.c.b16 %v837, %v836
  %v982 = vpack.c.b16 %v839, %v838
  %v983 = vpack.c.b16 %v841, %v840
  %v984 = vpack.c.b16 %v843, %v842
  %v985 = vpack.c.b16 %v845, %v844
  %v986 = vpack.c.b16 %v847, %v846
  %v987 = vpack.c.b16 %v849, %v848
  %v988 = vpack.c.b16 %v851, %v850
  %v989 = vpack.c.b16 %v853, %v852
  %v990 = vpack.c.b16 %v855, %v854
  %v991 = vpack.c.b16 %v857, %v856
  %v992 = vpack.c.b16 %v859, %v858
  %v993 = vpack.c.b16 %v861, %v860
  %v994 = vpack.c.b16 %v863, %v862
  %v995 = vpack.c.b16 %v865, %v864
  %v996 = vpack.c.b16 %v867, %v866
  %v997 = vpack.c.b16 %v869, %v868
  %1126 = vmatprep.subr.bf16.mxu0 0
  %1127 = vmatpush1.bf16.msra.mxu0 %v870
  %1128 = vmatprep.subr.bf16.mxu0 0
  %1129 = vmatpush1.bf16.msra.mxu0 %v871
  %1130 = vmatprep.subr.bf16.mxu0 0
  %1131 = vmatpush1.bf16.msra.mxu0 %v872
  %1132 = vmatprep.subr.bf16.mxu0 0
  %1133 = vmatpush1.bf16.msra.mxu0 %v873
  %1134 = vmatprep.subr.bf16.mxu0 0
  %1135 = vmatpush1.bf16.msra.mxu0 %v874
  %1136 = vmatprep.subr.bf16.mxu0 0
  %1137 = vmatpush1.bf16.msra.mxu0 %v875
  %1138 = vmatprep.subr.bf16.mxu0 0
  %1139 = vmatpush1.bf16.msra.mxu0 %v876
  %1140 = vmatprep.subr.bf16.mxu0 0
  %1141 = vmatpush1.bf16.msra.mxu0 %v877
  %1142 = vmatprep.subr.bf16.mxu0 0
  %1143 = vmatpush1.bf16.msra.mxu0 %v878
  %1144 = vmatprep.subr.bf16.mxu0 0
  %1145 = vmatpush1.bf16.msra.mxu0 %v879
  %1146 = vmatprep.subr.bf16.mxu0 0
  %1147 = vmatpush1.bf16.msra.mxu0 %v880
  %1148 = vmatprep.subr.bf16.mxu0 0
  %1149 = vmatpush1.bf16.msra.mxu0 %v881
  %1150 = vmatprep.subr.bf16.mxu0 0
  %1151 = vmatpush1.bf16.msra.mxu0 %v882
  %1152 = vmatprep.subr.bf16.mxu0 0
  %1153 = vmatpush1.bf16.msra.mxu0 %v883
  %1154 = vmatprep.subr.bf16.mxu0 0
  %1155 = vmatpush1.bf16.msra.mxu0 %v884
  %1156 = vmatprep.subr.bf16.mxu0 0
  %1157 = vmatpush1.bf16.msra.mxu0 %v885
  %1158 = vmatprep.mubr.bf16.mxu0 %v64
  %1159 = vmatmul.mubr.bf16.gmra.mrb[0].mxu0 %v63
  %v1160 = vpop.f32.mrb[0].mxu0
  %v1161 = vadd.f32 %v356, %v1160
  %v1162 = vpop.f32.mrb[0].mxu0
  %v1163 = vpop.f32.mrb[0].mxu0
  %v1164 = vadd.f32 %v356, %v1163
  %v1165 = vpop.f32.mrb[0].mxu0
  %1166 = vmatprep.mubr.bf16.mxu0 %v80
  %1167 = vmatmul.mubr.bf16.gmra.mrb[0].mxu0 %v79
  %v1168 = vpop.f32.mrb[0].mxu0
  %v1169 = vadd.f32 %v356, %v1168
  %v1170 = vpop.f32.mrb[0].mxu0
  %v1171 = vpop.f32.mrb[0].mxu0
  %v1172 = vpop.f32.mrb[0].mxu0
  %1173 = vdwg.mxu0
  %1174 = vmatprep.subr.bf16.mxu0 0
  %1175 = vmatpush1.bf16.msra.mxu0 %v886
  %1176 = vmatprep.subr.bf16.mxu0 0
  %1177 = vmatpush1.bf16.msra.mxu0 %v887
  %1178 = vmatprep.subr.bf16.mxu0 0
  %1179 = vmatpush1.bf16.msra.mxu0 %v888
  %1180 = vmatprep.subr.bf16.mxu0 0
  %1181 = vmatpush1.bf16.msra.mxu0 %v889
  %1182 = vmatprep.subr.bf16.mxu0 0
  %1183 = vmatpush1.bf16.msra.mxu0 %v890
  %1184 = vmatprep.subr.bf16.mxu0 0
  %1185 = vmatpush1.bf16.msra.mxu0 %v891
  %1186 = vmatprep.subr.bf16.mxu0 0
  %1187 = vmatpush1.bf16.msra.mxu0 %v892
  %1188 = vmatprep.subr.bf16.mxu0 0
  %1189 = vmatpush1.bf16.msra.mxu0 %v893
  %1190 = vmatprep.subr.bf16.mxu0 0
  %1191 = vmatpush1.bf16.msra.mxu0 %v894
  %1192 = vmatprep.subr.bf16.mxu0 0
  %1193 = vmatpush1.bf16.msra.mxu0 %v895
  %1194 = vmatprep.subr.bf16.mxu0 0
  %1195 = vmatpush1.bf16.msra.mxu0 %v896
  %1196 = vmatprep.subr.bf16.mxu0 0
  %1197 = vmatpush1.bf16.msra.mxu0 %v897
  %1198 = vmatprep.subr.bf16.mxu0 0
  %1199 = vmatpush1.bf16.msra.mxu0 %v898
  %1200 = vmatprep.subr.bf16.mxu0 0
  %1201 = vmatpush1.bf16.msra.mxu0 %v899
  %1202 = vmatprep.subr.bf16.mxu0 0
  %1203 = vmatpush1.bf16.msra.mxu0 %v900
  %1204 = vmatprep.subr.bf16.mxu0 0
  %1205 = vmatpush1.bf16.msra.mxu0 %v901
  %1206 = vmatprep.mubr.bf16.mxu0 %v66
  %1207 = vmatmul.mubr.bf16.gmra.mrb[0].mxu0 %v65
  %v1208 = vpop.f32.mrb[0].mxu0
  %v1209 = vadd.f32 %v1161, %v1208
  %v1210 = vpop.f32.mrb[0].mxu0
  %v1211 = vpop.f32.mrb[0].mxu0
  %v1212 = vadd.f32 %v1164, %v1211
  %v1213 = vpop.f32.mrb[0].mxu0
  %1214 = vmatprep.mubr.bf16.mxu0 %v82
  %1215 = vmatmul.mubr.bf16.gmra.mrb[0].mxu0 %v81
  %v1216 = vpop.f32.mrb[0].mxu0
  %v1217 = vadd.f32 %v1169, %v1216
  %v1218 = vpop.f32.mrb[0].mxu0
  %v1219 = vpop.f32.mrb[0].mxu0
  %v1220 = vpop.f32.mrb[0].mxu0
  %1221 = vdwg.mxu0
  %1222 = vmatprep.subr.bf16.mxu0 0
  %1223 = vmatpush1.bf16.msra.mxu0 %v902
  %1224 = vmatprep.subr.bf16.mxu0 0
  %1225 = vmatpush1.bf16.msra.mxu0 %v903
  %1226 = vmatprep.subr.bf16.mxu0 0
  %1227 = vmatpush1.bf16.msra.mxu0 %v904
  %1228 = vmatprep.subr.bf16.mxu0 0
  %1229 = vmatpush1.bf16.msra.mxu0 %v905
  %1230 = vmatprep.subr.bf16.mxu0 0
  %1231 = vmatpush1.bf16.msra.mxu0 %v906
  %1232 = vmatprep.subr.bf16.mxu0 0
  %1233 = vmatpush1.bf16.msra.mxu0 %v907
  %1234 = vmatprep.subr.bf16.mxu0 0
  %1235 = vmatpush1.bf16.msra.mxu0 %v908
  %1236 = vmatprep.subr.bf16.mxu0 0
  %1237 = vmatpush1.bf16.msra.mxu0 %v909
  %1238 = vmatprep.subr.bf16.mxu0 0
  %1239 = vmatpush1.bf16.msra.mxu0 %v910
  %1240 = vmatprep.subr.bf16.mxu0 0
  %1241 = vmatpush1.bf16.msra.mxu0 %v911
  %1242 = vmatprep.subr.bf16.mxu0 0
  %1243 = vmatpush1.bf16.msra.mxu0 %v912
  %1244 = vmatprep.subr.bf16.mxu0 0
  %1245 = vmatpush1.bf16.msra.mxu0 %v913
  %1246 = vmatprep.subr.bf16.mxu0 0
  %1247 = vmatpush1.bf16.msra.mxu0 %v914
  %1248 = vmatprep.subr.bf16.mxu0 0
  %1249 = vmatpush1.bf16.msra.mxu0 %v915
  %1250 = vmatprep.subr.bf16.mxu0 0
  %1251 = vmatpush1.bf16.msra.mxu0 %v916
  %1252 = vmatprep.subr.bf16.mxu0 0
  %1253 = vmatpush1.bf16.msra.mxu0 %v917
  %1254 = vmatprep.mubr.bf16.mxu0 %v68
  %1255 = vmatmul.mubr.bf16.gmra.mrb[0].mxu0 %v67
  %v1256 = vpop.f32.mrb[0].mxu0
  %v1257 = vadd.f32 %v1209, %v1256
  %v1258 = vpop.f32.mrb[0].mxu0
  %v1259 = vpop.f32.mrb[0].mxu0
  %v1260 = vadd.f32 %v1212, %v1259
  %v1261 = vpop.f32.mrb[0].mxu0
  %1262 = vmatprep.mubr.bf16.mxu0 %v84
  %1263 = vmatmul.mubr.bf16.gmra.mrb[0].mxu0 %v83
  %v1264 = vpop.f32.mrb[0].mxu0
  %v1265 = vadd.f32 %v1217, %v1264
  %v1266 = vpop.f32.mrb[0].mxu0
  %v1267 = vpop.f32.mrb[0].mxu0
  %v1268 = vpop.f32.mrb[0].mxu0
  %1269 = vdwg.mxu0
  %1270 = vmatprep.subr.bf16.mxu0 0
  %1271 = vmatpush1.bf16.msra.mxu0 %v918
  %1272 = vmatprep.subr.bf16.mxu0 0
  %1273 = vmatpush1.bf16.msra.mxu0 %v919
  %1274 = vmatprep.subr.bf16.mxu0 0
  %1275 = vmatpush1.bf16.msra.mxu0 %v920
  %1276 = vmatprep.subr.bf16.mxu0 0
  %1277 = vmatpush1.bf16.msra.mxu0 %v921
  %1278 = vmatprep.subr.bf16.mxu0 0
  %1279 = vmatpush1.bf16.msra.mxu0 %v922
  %1280 = vmatprep.subr.bf16.mxu0 0
  %1281 = vmatpush1.bf16.msra.mxu0 %v923
  %1282 = vmatprep.subr.bf16.mxu0 0
  %1283 = vmatpush1.bf16.msra.mxu0 %v924
  %1284 = vmatprep.subr.bf16.mxu0 0
  %1285 = vmatpush1.bf16.msra.mxu0 %v925
  %1286 = vmatprep.subr.bf16.mxu0 0
  %1287 = vmatpush1.bf16.msra.mxu0 %v926
  %1288 = vmatprep.subr.bf16.mxu0 0
  %1289 = vmatpush1.bf16.msra.mxu0 %v927
  %1290 = vmatprep.subr.bf16.mxu0 0
  %1291 = vmatpush1.bf16.msra.mxu0 %v928
  %1292 = vmatprep.subr.bf16.mxu0 0
  %1293 = vmatpush1.bf16.msra.mxu0 %v929
  %1294 = vmatprep.subr.bf16.mxu0 0
  %1295 = vmatpush1.bf16.msra.mxu0 %v930
  %1296 = vmatprep.subr.bf16.mxu0 0
  %1297 = vmatpush1.bf16.msra.mxu0 %v931
  %1298 = vmatprep.subr.bf16.mxu0 0
  %1299 = vmatpush1.bf16.msra.mxu0 %v932
  %1300 = vmatprep.subr.bf16.mxu0 0
  %1301 = vmatpush1.bf16.msra.mxu0 %v933
  %1302 = vmatprep.mubr.bf16.mxu0 %v70
  %1303 = vmatmul.mubr.bf16.gmra.mrb[0].mxu0 %v69
  %v1304 = vpop.f32.mrb[0].mxu0
  %v1305 = vadd.f32 %v1257, %v1304
  %v1306 = vpop.f32.mrb[0].mxu0
  %v1307 = vpop.f32.mrb[0].mxu0
  %v1308 = vadd.f32 %v1260, %v1307
  %v1309 = vpop.f32.mrb[0].mxu0
  %1310 = vmatprep.mubr.bf16.mxu0 %v86
  %1311 = vmatmul.mubr.bf16.gmra.mrb[0].mxu0 %v85
  %v1312 = vpop.f32.mrb[0].mxu0
  %v1313 = vadd.f32 %v1265, %v1312
  %v1314 = vpop.f32.mrb[0].mxu0
  %v1315 = vpop.f32.mrb[0].mxu0
  %v1316 = vpop.f32.mrb[0].mxu0
  %1317 = vdwg.mxu0
  %1318 = vmatprep.subr.bf16.mxu0 0
  %1319 = vmatpush1.bf16.msra.mxu0 %v934
  %1320 = vmatprep.subr.bf16.mxu0 0
  %1321 = vmatpush1.bf16.msra.mxu0 %v935
  %1322 = vmatprep.subr.bf16.mxu0 0
  %1323 = vmatpush1.bf16.msra.mxu0 %v936
  %1324 = vmatprep.subr.bf16.mxu0 0
  %1325 = vmatpush1.bf16.msra.mxu0 %v937
  %1326 = vmatprep.subr.bf16.mxu0 0
  %1327 = vmatpush1.bf16.msra.mxu0 %v938
  %1328 = vmatprep.subr.bf16.mxu0 0
  %1329 = vmatpush1.bf16.msra.mxu0 %v939
  %1330 = vmatprep.subr.bf16.mxu0 0
  %1331 = vmatpush1.bf16.msra.mxu0 %v940
  %1332 = vmatprep.subr.bf16.mxu0 0
  %1333 = vmatpush1.bf16.msra.mxu0 %v941
  %1334 = vmatprep.subr.bf16.mxu0 0
  %1335 = vmatpush1.bf16.msra.mxu0 %v942
  %1336 = vmatprep.subr.bf16.mxu0 0
  %1337 = vmatpush1.bf16.msra.mxu0 %v943
  %1338 = vmatprep.subr.bf16.mxu0 0
  %1339 = vmatpush1.bf16.msra.mxu0 %v944
  %1340 = vmatprep.subr.bf16.mxu0 0
  %1341 = vmatpush1.bf16.msra.mxu0 %v945
  %1342 = vmatprep.subr.bf16.mxu0 0
  %1343 = vmatpush1.bf16.msra.mxu0 %v946
  %1344 = vmatprep.subr.bf16.mxu0 0
  %1345 = vmatpush1.bf16.msra.mxu0 %v947
  %1346 = vmatprep.subr.bf16.mxu0 0
  %1347 = vmatpush1.bf16.msra.mxu0 %v948
  %1348 = vmatprep.subr.bf16.mxu0 0
  %1349 = vmatpush1.bf16.msra.mxu0 %v949
  %1350 = vmatprep.mubr.bf16.mxu0 %v72
  %1351 = vmatmul.mubr.bf16.gmra.mrb[0].mxu0 %v71
  %v1352 = vpop.f32.mrb[0].mxu0
  %v1353 = vadd.f32 %v1305, %v1352
  %v1354 = vpop.f32.mrb[0].mxu0
  %v1355 = vpop.f32.mrb[0].mxu0
  %v1356 = vadd.f32 %v1308, %v1355
  %v1357 = vpop.f32.mrb[0].mxu0
  %1358 = vmatprep.mubr.bf16.mxu0 %v88
  %1359 = vmatmul.mubr.bf16.gmra.mrb[0].mxu0 %v87
  %v1360 = vpop.f32.mrb[0].mxu0
  %v1361 = vadd.f32 %v1313, %v1360
  %v1362 = vpop.f32.mrb[0].mxu0
  %v1363 = vpop.f32.mrb[0].mxu0
  %v1364 = vpop.f32.mrb[0].mxu0
  %1365 = vdwg.mxu0
  %1366 = vmatprep.subr.bf16.mxu0 0
  %1367 = vmatpush1.bf16.msra.mxu0 %v950
  %1368 = vmatprep.subr.bf16.mxu0 0
  %1369 = vmatpush1.bf16.msra.mxu0 %v951
  %1370 = vmatprep.subr.bf16.mxu0 0
  %1371 = vmatpush1.bf16.msra.mxu0 %v952
  %1372 = vmatprep.subr.bf16.mxu0 0
  %1373 = vmatpush1.bf16.msra.mxu0 %v953
  %1374 = vmatprep.subr.bf16.mxu0 0
  %1375 = vmatpush1.bf16.msra.mxu0 %v954
  %1376 = vmatprep.subr.bf16.mxu0 0
  %1377 = vmatpush1.bf16.msra.mxu0 %v955
  %1378 = vmatprep.subr.bf16.mxu0 0
  %1379 = vmatpush1.bf16.msra.mxu0 %v956
  %1380 = vmatprep.subr.bf16.mxu0 0
  %1381 = vmatpush1.bf16.msra.mxu0 %v957
  %1382 = vmatprep.subr.bf16.mxu0 0
  %1383 = vmatpush1.bf16.msra.mxu0 %v958
  %1384 = vmatprep.subr.bf16.mxu0 0
  %1385 = vmatpush1.bf16.msra.mxu0 %v959
  %1386 = vmatprep.subr.bf16.mxu0 0
  %1387 = vmatpush1.bf16.msra.mxu0 %v960
  %1388 = vmatprep.subr.bf16.mxu0 0
  %1389 = vmatpush1.bf16.msra.mxu0 %v961
  %1390 = vmatprep.subr.bf16.mxu0 0
  %1391 = vmatpush1.bf16.msra.mxu0 %v962
  %1392 = vmatprep.subr.bf16.mxu0 0
  %1393 = vmatpush1.bf16.msra.mxu0 %v963
  %1394 = vmatprep.subr.bf16.mxu0 0
  %1395 = vmatpush1.bf16.msra.mxu0 %v964
  %1396 = vmatprep.subr.bf16.mxu0 0
  %1397 = vmatpush1.bf16.msra.mxu0 %v965
  %1398 = vmatprep.mubr.bf16.mxu0 %v74
  %1399 = vmatmul.mubr.bf16.gmra.mrb[0].mxu0 %v73
  %v1400 = vpop.f32.mrb[0].mxu0
  %v1401 = vadd.f32 %v1353, %v1400
  %v1402 = vpop.f32.mrb[0].mxu0
  %v1403 = vpop.f32.mrb[0].mxu0
  %v1404 = vadd.f32 %v1356, %v1403
  %v1405 = vpop.f32.mrb[0].mxu0
  %1406 = vmatprep.mubr.bf16.mxu0 %v90
  %1407 = vmatmul.mubr.bf16.gmra.mrb[0].mxu0 %v89
  %v1408 = vpop.f32.mrb[0].mxu0
  %v1409 = vadd.f32 %v1361, %v1408
  %v1410 = vpop.f32.mrb[0].mxu0
  %v1411 = vpop.f32.mrb[0].mxu0
  %v1412 = vpop.f32.mrb[0].mxu0
  %1413 = vdwg.mxu0
  %1414 = vmatprep.subr.bf16.mxu0 0
  %1415 = vmatpush1.bf16.msra.mxu0 %v966
  %1416 = vmatprep.subr.bf16.mxu0 0
  %1417 = vmatpush1.bf16.msra.mxu0 %v967
  %1418 = vmatprep.subr.bf16.mxu0 0
  %1419 = vmatpush1.bf16.msra.mxu0 %v968
  %1420 = vmatprep.subr.bf16.mxu0 0
  %1421 = vmatpush1.bf16.msra.mxu0 %v969
  %1422 = vmatprep.subr.bf16.mxu0 0
  %1423 = vmatpush1.bf16.msra.mxu0 %v970
  %1424 = vmatprep.subr.bf16.mxu0 0
  %1425 = vmatpush1.bf16.msra.mxu0 %v971
  %1426 = vmatprep.subr.bf16.mxu0 0
  %1427 = vmatpush1.bf16.msra.mxu0 %v972
  %1428 = vmatprep.subr.bf16.mxu0 0
  %1429 = vmatpush1.bf16.msra.mxu0 %v973
  %1430 = vmatprep.subr.bf16.mxu0 0
  %1431 = vmatpush1.bf16.msra.mxu0 %v974
  %1432 = vmatprep.subr.bf16.mxu0 0
  %1433 = vmatpush1.bf16.msra.mxu0 %v975
  %1434 = vmatprep.subr.bf16.mxu0 0
  %1435 = vmatpush1.bf16.msra.mxu0 %v976
  %1436 = vmatprep.subr.bf16.mxu0 0
  %1437 = vmatpush1.bf16.msra.mxu0 %v977
  %1438 = vmatprep.subr.bf16.mxu0 0
  %1439 = vmatpush1.bf16.msra.mxu0 %v978
  %1440 = vmatprep.subr.bf16.mxu0 0
  %1441 = vmatpush1.bf16.msra.mxu0 %v979
  %1442 = vmatprep.subr.bf16.mxu0 0
  %1443 = vmatpush1.bf16.msra.mxu0 %v980
  %1444 = vmatprep.subr.bf16.mxu0 0
  %1445 = vmatpush1.bf16.msra.mxu0 %v981
  %1446 = vmatprep.mubr.bf16.mxu0 %v76
  %1447 = vmatmul.mubr.bf16.gmra.mrb[0].mxu0 %v75
  %v1448 = vpop.f32.mrb[0].mxu0
  %v1449 = vadd.f32 %v1401, %v1448
  %v1450 = vpop.f32.mrb[0].mxu0
  %v1451 = vpop.f32.mrb[0].mxu0
  %v1452 = vadd.f32 %v1404, %v1451
  %v1453 = vpop.f32.mrb[0].mxu0
  %1454 = vmatprep.mubr.bf16.mxu0 %v92
  %1455 = vmatmul.mubr.bf16.gmra.mrb[0].mxu0 %v91
  %v1456 = vpop.f32.mrb[0].mxu0
  %v1457 = vadd.f32 %v1409, %v1456
  %v1458 = vpop.f32.mrb[0].mxu0
  %v1459 = vpop.f32.mrb[0].mxu0
  %v1460 = vpop.f32.mrb[0].mxu0
  %1461 = vdwg.mxu0
  %1462 = vmatprep.subr.bf16.mxu0 0
  %1463 = vmatpush1.bf16.msra.mxu0 %v982
  %1464 = vmatprep.subr.bf16.mxu0 0
  %1465 = vmatpush1.bf16.msra.mxu0 %v983
  %1466 = vmatprep.subr.bf16.mxu0 0
  %1467 = vmatpush1.bf16.msra.mxu0 %v984
  %1468 = vmatprep.subr.bf16.mxu0 0
  %1469 = vmatpush1.bf16.msra.mxu0 %v985
  %1470 = vmatprep.subr.bf16.mxu0 0
  %1471 = vmatpush1.bf16.msra.mxu0 %v986
  %1472 = vmatprep.subr.bf16.mxu0 0
  %1473 = vmatpush1.bf16.msra.mxu0 %v987
  %1474 = vmatprep.subr.bf16.mxu0 0
  %1475 = vmatpush1.bf16.msra.mxu0 %v988
  %1476 = vmatprep.subr.bf16.mxu0 0
  %1477 = vmatpush1.bf16.msra.mxu0 %v989
  %1478 = vmatprep.subr.bf16.mxu0 0
  %1479 = vmatpush1.bf16.msra.mxu0 %v990
  %1480 = vmatprep.subr.bf16.mxu0 0
  %1481 = vmatpush1.bf16.msra.mxu0 %v991
  %1482 = vmatprep.subr.bf16.mxu0 0
  %1483 = vmatpush1.bf16.msra.mxu0 %v992
  %1484 = vmatprep.subr.bf16.mxu0 0
  %1485 = vmatpush1.bf16.msra.mxu0 %v993
  %1486 = vmatprep.subr.bf16.mxu0 0
  %1487 = vmatpush1.bf16.msra.mxu0 %v994
  %1488 = vmatprep.subr.bf16.mxu0 0
  %1489 = vmatpush1.bf16.msra.mxu0 %v995
  %1490 = vmatprep.subr.bf16.mxu0 0
  %1491 = vmatpush1.bf16.msra.mxu0 %v996
  %1492 = vmatprep.subr.bf16.mxu0 0
  %1493 = vmatpush1.bf16.msra.mxu0 %v997
  %1494 = vmatprep.mubr.bf16.mxu0 %v78
  %1495 = vmatmul.mubr.bf16.gmra.mrb[0].mxu0 %v77
  %v1496 = vpop.f32.mrb[0].mxu0
  %v1497 = vadd.f32 %v1449, %v1496
  %v1498 = vpop.f32.mrb[0].mxu0
  %v1499 = vpop.f32.mrb[0].mxu0
  %v1500 = vadd.f32 %v1452, %v1499
  %v1501 = vpop.f32.mrb[0].mxu0
  %1502 = vmatprep.mubr.bf16.mxu0 %v94
  %1503 = vmatmul.mubr.bf16.gmra.mrb[0].mxu0 %v93
  %v1504 = vpop.f32.mrb[0].mxu0
  %v1505 = vadd.f32 %v1457, %v1504
  %v1506 = vpop.f32.mrb[0].mxu0
  %v1507 = vpop.f32.mrb[0].mxu0
  %v1508 = vpop.f32.mrb[0].mxu0
  %1509 = vdwg.mxu0
  %vm1510 = vcmask 261120
  %1511 = vst.msk [vmem:[%s3] sm:$0xff] %vm1510, %v1497
  %1512 = vst.msk [vmem:[%s3 + $0x8] sm:$0xff] %vm1510, %v1500
  %1513 = vst.msk [vmem:[%s3 + $0x10] sm:$0xff] %vm1510, %v1505
  // Predicated region
  $region14: #{codegen_forward.44} parent=0 // pred_check
    _
  $region15: #{codegen_forward.44} parent=0 // pred_check_branch
    %1515 = sbr.rel (0) target = $region17
  $region16: #{codegen_forward.44} parent=0 // pred_region
    _
  $region17: #{codegen_forward.44} parent=0 // pred_fallthru
    _
  // Predicated region
  $region18: #{codegen_forward.44} parent=0 // pred_check
    _
  $region19: #{codegen_forward.44} parent=0 // pred_check_branch
    %1517 = sbr.rel (0) target = $region21
  $region20: #{codegen_forward.44} parent=0 // pred_region
    _
  $region21: #{codegen_forward.44} parent=0 // pred_fallthru
    _

// kernel: codegen_forward.62
$region0: #{codegen_forward.62}
  #allocation0 [shape = 'u32[]', space=smem, size = 0x4, offset = 0x4, fixed_abs, tag = 'smem constant byte address 0x4 - core index']
  #allocation1 [shape = 'u32[144,128]{1,0:T(1,128)}', space=vmem, size = 0x12000, scoped, tag = 'internal scratch']
  %s0 = inlined_call_operand.vmem [shape: f32[16,32], index: 0, kind: input, shape index: {}]
  %s1 = inlined_call_operand.vmem [shape: bf16[32,2048], index: 1, kind: input, shape index: {}]
  %s2 = inlined_call_operand.vmem [shape: f32[1,2048], index: 2, kind: input, shape index: {}]
  %s3 = inlined_call_operand.vmem [shape: f32[16,2048], index: 3, kind: output, shape index: {}]
  %s4 = sld [smem:[#allocation0]]
  $region87: #{codegen_forward.62} parent=0
    _
  %s6 = ssub.s32 1, %s4
  %s7 = scalar_select 0, %s6, %s4
  $region1: #{codegen_forward.62} parent=0
    #allocation2 [shape = 'u8[65536]{0}', space=vmem, size = 0x10000, scoped, tag = 'input window, operand 1']
    #allocation3 [shape = 'u8[65536]{0}', space=vmem, size = 0x10000, scoped, tag = 'output window, operand 0']
    loop: start=0, step=1, limit=6
    $region2: #{codegen_forward.62} parent=1 // loop_pre_header
      _
    $region3: #{codegen_forward.62} parent=1 // loop_header
      %s9 = sphi 0, %s13
      %p10 = scmp.ge.s32.totalorder %s9, 6
      %s16 = sphi 0, %s28
      %s17 = sphi 0, %s24
      %s18 = sphi 0, %s16
      %s19 = sphi 0, %s17
      %s20 = sphi 0, %s18
      %s21 = sphi 0, %s19
      %s31 = sphi 0, %s33
      %s34 = sphi 0, %s31
      %s35 = sphi 0, %s34
      %s51 = sphi 0, %s35
      %s57 = sphi 0, %s59
      %s60 = sphi 0, %s57
      %s61 = sphi 0, %s60
      %s77 = sphi 0, %s61
      %s83 = sphi 0, %s85
      %s86 = sphi 0, %s83
      %s87 = sphi 0, %s86
      %s103 = sphi 0, %s87
      %s111 = sphi 0, %s113
      %s114 = sphi 0, %s111
      %s115 = sphi 0, %s114
      %s131 = sphi 0, %s115
    $region4: #{codegen_forward.62} parent=1 // loop_header_branch
      %12 = sbr.rel (%p10) target = $region8
    $region5: #{codegen_forward.62} parent=1 // loop_body
      %s14 = ssub.s32 %s9, 1
      %s15 = ssub.s32 %s9, 2
      %s22 = sadd.s32 1, %s17
      %p23 = scmp.ge.s32.totalorder %s22, 4
      %s24 = scalar_select %p23, 0, %s22
      %s25 = sadd.s32 1, %s16
      %s26 = scalar_select %p23, %s25, %s16
      %p27 = scmp.ge.s32.totalorder %s26, 1
      %s28 = scalar_select %p27, 0, %s26
      %s29 = ssub.s32 %s16, %s28
      %p30 = scmp.eq.s32.totalorder %s29, 0
      %s32 = sadd.s32 %s31, 1
      %s33 = scalar_select %p30, %s31, %s32
      %p36 = pneg %p30
      %p37 = scmp.eq.s32.totalorder %s9, 3
      %p38 = por %p36, %p37
      %p39 = scmp.ne.s32.totalorder %s31, %s34
      %p40 = scmp.eq.s32.totalorder %s9, 0
      %p41 = por %p39, %p40
      %p42 = scmp.ne.s32.totalorder %s31, %s34
      %p43 = scmp.eq.s32.totalorder %s14, 3
      %p44 = por %p42, %p43
      %p45 = scmp.ne.s32.totalorder %s34, %s35
      %p46 = scmp.eq.s32.totalorder %s14, 0
      %p47 = por %p45, %p46
      %p48 = scmp.ne.s32.totalorder %s34, %s35
      %p49 = scmp.eq.s32.totalorder %s15, 3
      %p50 = por %p48, %p49
      %p52 = scmp.ne.s32.totalorder %s35, %s51
      %p53 = scmp.eq.s32.totalorder %s15, 0
      %p54 = por %p52, %p53
      %s55 = ssub.s32 %s17, %s24
      %p56 = scmp.eq.s32.totalorder %s55, 0
      %s58 = sadd.s32 %s57, 1
      %s59 = scalar_select %p56, %s57, %s58
      %p62 = pneg %p56
      %p63 = scmp.eq.s32.totalorder %s9, 3
      %p64 = por %p62, %p63
      %p65 = scmp.ne.s32.totalorder %s57, %s60
      %p66 = scmp.eq.s32.totalorder %s9, 0
      %p67 = por %p65, %p66
      %p68 = scmp.ne.s32.totalorder %s57, %s60
      %p69 = scmp.eq.s32.totalorder %s14, 3
      %p70 = por %p68, %p69
      %p71 = scmp.ne.s32.totalorder %s60, %s61
      %p72 = scmp.eq.s32.totalorder %s14, 0
      %p73 = por %p71, %p72
      %p74 = scmp.ne.s32.totalorder %s60, %s61
      %p75 = scmp.eq.s32.totalorder %s15, 3
      %p76 = por %p74, %p75
      %p78 = scmp.ne.s32.totalorder %s61, %s77
      %p79 = scmp.eq.s32.totalorder %s15, 0
      %p80 = por %p78, %p79
      %s81 = ssub.s32 %s17, %s24
      %p82 = scmp.eq.s32.totalorder %s81, 0
      %s84 = sadd.s32 %s83, 1
      %s85 = scalar_select %p82, %s83, %s84
      %p88 = pneg %p82
      %p89 = scmp.eq.s32.totalorder %s9, 3
      %p90 = por %p88, %p89
      %p91 = scmp.ne.s32.totalorder %s83, %s86
      %p92 = scmp.eq.s32.totalorder %s9, 0
      %p93 = por %p91, %p92
      %p94 = scmp.ne.s32.totalorder %s83, %s86
      %p95 = scmp.eq.s32.totalorder %s14, 3
      %p96 = por %p94, %p95
      %p97 = scmp.ne.s32.totalorder %s86, %s87
      %p98 = scmp.eq.s32.totalorder %s14, 0
      %p99 = por %p97, %p98
      %p100 = scmp.ne.s32.totalorder %s86, %s87
      %p101 = scmp.eq.s32.totalorder %s15, 3
      %p102 = por %p100, %p101
      %p104 = scmp.ne.s32.totalorder %s87, %s103
      %p105 = scmp.eq.s32.totalorder %s15, 0
      %p106 = por %p104, %p105
      %s107 = ssub.s32 %s16, %s28
      %s108 = ssub.s32 %s17, %s24
      %s109 = sor.u32 %s107, %s108
      %p110 = scmp.eq.s32.totalorder %s109, 0
      %s112 = sadd.s32 %s111, 1
      %s113 = scalar_select %p110, %s111, %s112
      %p116 = pneg %p110
      %p117 = scmp.eq.s32.totalorder %s9, 3
      %p118 = por %p116, %p117
      %p119 = scmp.ne.s32.totalorder %s111, %s114
      %p120 = scmp.eq.s32.totalorder %s9, 0
      %p121 = por %p119, %p120
      %p122 = scmp.ne.s32.totalorder %s111, %s114
      %p123 = scmp.eq.s32.totalorder %s14, 3
      %p124 = por %p122, %p123
      %p125 = scmp.ne.s32.totalorder %s114, %s115
      %p126 = scmp.eq.s32.totalorder %s14, 0
      %p127 = por %p125, %p126
      %p128 = scmp.ne.s32.totalorder %s114, %s115
      %p129 = scmp.eq.s32.totalorder %s15, 3
      %p130 = por %p128, %p129
      %p132 = scmp.ne.s32.totalorder %s115, %s131
      %p133 = scmp.eq.s32.totalorder %s15, 0
      %p134 = por %p132, %p133
      %p135 = scmp.le.s32.totalorder 1, %s9
      %p136 = scmp.lt.s32.totalorder %s9, 5
      %p137 = pnand %p135, %p136
      %p138 = pneg %p137
      // Predicated region
      $region9: #{codegen_forward.62} parent=5 // pred_check
        _
      $region10: #{codegen_forward.62} parent=5 // pred_check_branch
        %140 = sbr.rel (%p137) target = $region12
      $region11: #{codegen_forward.62} parent=5 // pred_region
        %s141 = ssub.s32 %s9, 1
        // Predicated region
        $region13: #{codegen_forward.62} parent=11 // pred_check
          %p142 = pneg %p47
        $region14: #{codegen_forward.62} parent=11 // pred_check_branch
          %144 = sbr.rel (%p142) target = $region16
        $region15: #{codegen_forward.62} parent=11 // pred_region
          %s145 = smul.u32 2, %s18
          %p146 = scmp.lt.s32.totalorder %s145, 1
          %s147 = scalar_select %p146, %s145, 1
          %s148 = smul.addr %s147, 8
          %s149 = scalar_lea.vmem %s0, %s148
          %s150 = smul.u32 2, %s18
        $region16: #{codegen_forward.62} parent=11 // pred_fallthru
          _
      $region12: #{codegen_forward.62} parent=5 // pred_fallthru
        _
      %p151 = scmp.lt.s32.totalorder %s9, 4
      // Predicated region
      $region17: #{codegen_forward.62} parent=5 // pred_check
        %p152 = pneg %p151
      $region18: #{codegen_forward.62} parent=5 // pred_check_branch
        %154 = sbr.rel (%p152) target = $region20
      $region19: #{codegen_forward.62} parent=5 // pred_region
        // Predicated region
        $region21: #{codegen_forward.62} parent=19 // pred_check
          %p155 = pneg %p67
        $region22: #{codegen_forward.62} parent=19 // pred_check_branch
          %157 = sbr.rel (%p155) target = $region24
        $region23: #{codegen_forward.62} parent=19 // pred_region
          %s158 = sand.u32 %s57, 1
          %s159 = sand.u32 %s57, 1
          %s160 = smul.addr %s159, 64
          %s161 = scalar_lea.vmem [#allocation2], %s160
          %s162 = smul.u32 4, %s17
          %s163 = smul.addr %s162, 4
          %s164 = scalar_lea.vmem %s1, %s163
          // Predicated region
          $region25: #{codegen_forward.62} parent=23 // pred_check
            _
          $region26: #{codegen_forward.62} parent=23 // pred_check_branch
            %166 = sbr.rel (0) target = $region28
          $region27: #{codegen_forward.62} parent=23 // pred_region
            // Predicated region
            $region29: #{codegen_forward.62} parent=27 // pred_check
              _
            $region30: #{codegen_forward.62} parent=27 // pred_check_branch
              %168 = sbr.rel (0) target = $region32
            $region31: #{codegen_forward.62} parent=27 // pred_region
              loop: start=0, step=1, limit=1
              $region33: #{codegen_forward.62} parent=31 // loop_pre_header
                _
              $region34: #{codegen_forward.62} parent=31 // loop_header
                %s170 = sphi 0, %s174
                %p171 = scmp.ge.s32.totalorder %s170, 1
                %s175 = sphi %s164, %s164
                %s176 = sphi %s161, %s161
              $region35: #{codegen_forward.62} parent=31 // loop_header_branch
                %173 = sbr.rel (%p171) target = $region39
              $region36: #{codegen_forward.62} parent=31 // loop_body
                %v177 = vld [vmem:[%s175] sm:$0xff]
                %178 = vst [vmem:[%s176] sm:$0xff] %v177
                %v179 = vld [vmem:[%s175 + $0x8] sm:$0xff]
                %180 = vst [vmem:[%s176 + $0x8] sm:$0xff] %v179
                %v181 = vld [vmem:[%s175 + $0x40] sm:$0xff]
                %182 = vst [vmem:[%s176 + $0x10] sm:$0xff] %v181
                %v183 = vld [vmem:[%s175 + $0x48] sm:$0xff]
                %184 = vst [vmem:[%s176 + $0x18] sm:$0xff] %v183
                %v185 = vld [vmem:[%s175 + $0x80] sm:$0xff]
                %186 = vst [vmem:[%s176 + $0x20] sm:$0xff] %v185
                %v187 = vld [vmem:[%s175 + $0x88] sm:$0xff]
                %188 = vst [vmem:[%s176 + $0x28] sm:$0xff] %v187
                %v189 = vld [vmem:[%s175 + $0xc0] sm:$0xff]
                %190 = vst [vmem:[%s176 + $0x30] sm:$0xff] %v189
                %v191 = vld [vmem:[%s175 + $0xc8] sm:$0xff]
                %192 = vst [vmem:[%s176 + $0x38] sm:$0xff] %v191
              $region37: #{codegen_forward.62} parent=31 // loop_footer
                %s174 = sadd.s32 1, %s170
              $region38: #{codegen_forward.62} parent=31 // loop_footer_branch
                %169 = sbr.rel target = $region34
              $region39: #{codegen_forward.62} parent=31 // loop_exit
                _
            $region32: #{codegen_forward.62} parent=27 // pred_fallthru
              _
            // Predicated region
            $region40: #{codegen_forward.62} parent=27 // pred_check
              _
            $region41: #{codegen_forward.62} parent=27 // pred_check_branch
              %194 = sbr.rel target = $region43
            $region42: #{codegen_forward.62} parent=27 // pred_region
              _
            $region43: #{codegen_forward.62} parent=27 // pred_fallthru
              _
          $region28: #{codegen_forward.62} parent=23 // pred_fallthru
            _
          %195 = vnop
        $region24: #{codegen_forward.62} parent=19 // pred_fallthru
          _
        // Predicated region
        $region44: #{codegen_forward.62} parent=19 // pred_check
          %p196 = pneg %p93
        $region45: #{codegen_forward.62} parent=19 // pred_check_branch
          %198 = sbr.rel (%p196) target = $region47
        $region46: #{codegen_forward.62} parent=19 // pred_region
          %s199 = smul.u32 4, %s17
          %p200 = scmp.lt.s32.totalorder %s199, 15
          %s201 = scalar_select %p200, %s199, 15
          %s202 = scalar_lea.vmem %s2, %s201
          %s203 = smul.u32 4, %s17
        $region47: #{codegen_forward.62} parent=19 // pred_fallthru
          _
      $region20: #{codegen_forward.62} parent=5 // pred_fallthru
        _
      %p204 = scmp.le.s32.totalorder 1, %s9
      %p205 = scmp.lt.s32.totalorder %s9, 5
      %p206 = pnand %p204, %p205
      %p207 = pneg %p206
      // Predicated region
      $region48: #{codegen_forward.62} parent=5 // pred_check
        _
      $region49: #{codegen_forward.62} parent=5 // pred_check_branch
        %209 = sbr.rel (%p206) target = $region51
      $region50: #{codegen_forward.62} parent=5 // pred_region
        %s210 = ssub.s32 %s9, 1
        %s211 = sand.u32 %s60, 1
        %s212 = sand.u32 %s60, 1
        %s213 = smul.addr %s212, 64
        %s214 = scalar_lea.vmem [#allocation2], %s213
        // Predicated region
        $region52: #{codegen_forward.62} parent=50 // pred_check
          %p215 = pneg %p73
        $region53: #{codegen_forward.62} parent=50 // pred_check_branch
          %217 = sbr.rel (%p215) target = $region55
        $region54: #{codegen_forward.62} parent=50 // pred_region
          _
        $region55: #{codegen_forward.62} parent=50 // pred_fallthru
          _
        %s218 = smul.u32 2, %s18
        %p219 = scmp.lt.s32.totalorder %s218, 1
        %s220 = scalar_select %p219, %s218, 1
        %s221 = smul.addr %s220, 8
        %s222 = scalar_lea.vmem %s0, %s221
        %p223 = pneg %p47
        %p224 = pneg %p44
        %s225 = sand.u32 %s60, 1
        %s226 = sand.u32 %s60, 1
        %s227 = smul.addr %s226, 64
        %s228 = scalar_lea.vmem [#allocation2], %s227
        %p229 = pneg %p73
        %p230 = pneg %p70
        %s231 = smul.u32 4, %s19
        %p232 = scmp.lt.s32.totalorder %s231, 15
        %s233 = scalar_select %p232, %s231, 15
        %s234 = scalar_lea.vmem %s2, %s233
        %p235 = pneg %p99
        %p236 = pneg %p96
        %p237 = pneg %p127
        %p238 = pneg %p124
        %s239 = sand.u32 %s114, 1
        %s240 = sand.u32 %s114, 1
        %s241 = smul.addr %s240, 64
        %s242 = scalar_lea.vmem [#allocation3], %s241
        %s243 = smul.u32 2, %s18
        %p244 = scmp.lt.s32.totalorder %s243, 1
        %s245 = scalar_select %p244, %s243, 1
        %s246 = smul.addr %s245, 8
        %s247 = scalar_lea.vmem %s0, %s246
        %s248 = smul.u32 2, %s18
        %s249 = smul.u32 4, %s19
        %s250 = smul.u32 4, %s19
        %p251 = scmp.lt.s32.totalorder %s250, 15
        %s252 = scalar_select %p251, %s250, 15
        %s253 = scalar_lea.vmem %s2, %s252
        %s254 = smul.u32 4, %s19
        %s255 = smul.u32 2, %s18
        %s256 = smul.u32 4, %s19
        %v258 = vld [vmem:[%s247] sm:$0xff]
        %v259 = vld [vmem:[%s247 + $0x8] sm:$0xff]
        %v260 = vpack.c.bf16 %v259, %v258
        %v261 = vld [vmem:[%s214] sm:$0xff]
        %v262 = vld [vmem:[%s214 + $0x8] sm:$0xff]
        %v263 = vld [vmem:[%s214 + $0x10] sm:$0xff]
        %v264 = vld [vmem:[%s214 + $0x18] sm:$0xff]
        %v265 = vld [vmem:[%s214 + $0x20] sm:$0xff]
        %v266 = vld [vmem:[%s214 + $0x28] sm:$0xff]
        %v267 = vld [vmem:[%s214 + $0x30] sm:$0xff]
        %v268 = vld [vmem:[%s214 + $0x38] sm:$0xff]
        %v269 = vld [vmem:[%s253] sm:$0xf]
        %v271 = vlaneseq
        %v272 = vshrl.u32 %v271, 7
        %v273 = vsub.s32 0, %v272
        %v274 = vrot.slane %v269, %v273
        %v275 = vlaneseq
        %v276 = vshrl.u32 %v275, 7
        %v277 = vsub.s32 1, %v276
        %v278 = vrot.slane %v269, %v277
        %v279 = vlaneseq
        %v280 = vshrl.u32 %v279, 7
        %v281 = vsub.s32 2, %v280
        %v282 = vrot.slane %v269, %v281
        %v283 = vlaneseq
        %v284 = vshrl.u32 %v283, 7
        %v285 = vsub.s32 3, %v284
        %v286 = vrot.slane %v269, %v285
        %v299 = vunpack.c.l.b16 %v261
        %v300 = vunpack.c.h.b16 %v261
        %v301 = vunpack.c.l.b16 %v262
        %v302 = vunpack.c.h.b16 %v262
        %v303 = vunpack.c.l.b16 %v263
        %v304 = vunpack.c.h.b16 %v263
        %v305 = vunpack.c.l.b16 %v264
        %v306 = vunpack.c.h.b16 %v264
        %v307 = vunpack.c.l.b16 %v265
        %v308 = vunpack.c.h.b16 %v265
        %v309 = vunpack.c.l.b16 %v266
        %v310 = vunpack.c.h.b16 %v266
        %v311 = vunpack.c.l.b16 %v267
        %v312 = vunpack.c.h.b16 %v267
        %v313 = vunpack.c.l.b16 %v268
        %v314 = vunpack.c.h.b16 %v268
        %v315 = vpack.c.b16 %v303, %v299
        %v316 = vpack.c.b16 %v304, %v300
        %v317 = vpack.c.b16 %v305, %v301
        %v318 = vpack.c.b16 %v306, %v302
        %v319 = vpack.c.b16 %v311, %v307
        %v320 = vpack.c.b16 %v312, %v308
        %v321 = vpack.c.b16 %v313, %v309
        %v322 = vpack.c.b16 %v314, %v310
        %vm331 = vcmask 261120
        %v333 = vsel %vm331, %v260, 0
        %335 = vmatprep.subr.bf16.mxu0 %v316
        %336 = vmatpush1.bf16.msra.mxu0 %v315
        %337 = vmatprep.subr.bf16.mxu0 %v320
        %338 = vmatpush1.bf16.msra.mxu0 %v319
        %339 = vmatprep.subr.bf16.mxu0 0
        %340 = vmatpush1.bf16.msra.mxu0 0
        %341 = vmatprep.subr.bf16.mxu0 0
        %342 = vmatpush1.bf16.msra.mxu0 0
        %343 = vmatprep.subr.bf16.mxu0 0
        %344 = vmatpush1.bf16.msra.mxu0 0
        %345 = vmatprep.subr.bf16.mxu0 0
        %346 = vmatpush1.bf16.msra.mxu0 0
        %347 = vmatprep.subr.bf16.mxu0 0
        %348 = vmatpush1.bf16.msra.mxu0 0
        %349 = vmatprep.subr.bf16.mxu0 0
        %350 = vmatpush1.bf16.msra.mxu0 0
        %351 = vmatprep.subr.bf16.mxu0 0
        %352 = vmatpush1.bf16.msra.mxu0 0
        %353 = vmatprep.subr.bf16.mxu0 0
        %354 = vmatpush1.bf16.msra.mxu0 0
        %355 = vmatprep.subr.bf16.mxu0 0
        %356 = vmatpush1.bf16.msra.mxu0 0
        %357 = vmatprep.subr.bf16.mxu0 0
        %358 = vmatpush1.bf16.msra.mxu0 0
        %359 = vmatprep.subr.bf16.mxu0 0
        %360 = vmatpush1.bf16.msra.mxu0 0
        %361 = vmatprep.subr.bf16.mxu0 0
        %362 = vmatpush1.bf16.msra.mxu0 0
        %363 = vmatprep.subr.bf16.mxu0 0
        %364 = vmatpush1.bf16.msra.mxu0 0
        %365 = vmatprep.subr.bf16.mxu0 0
        %366 = vmatpush1.bf16.msra.mxu0 0
        %367 = vmatprep.mubr.bf16.mxu0 0
        %368 = vmatmul.mubr.bf16.gmra.mrb[0].mxu0 %v333
        %v369 = vpop.f32.mrb[0].mxu0
        %v370 = vadd.f32 %v274, %v369
        %v371 = vpop.f32.mrb[0].mxu0
        %v372 = vadd.f32 %v278, %v371
        %v373 = vpop.f32.mrb[0].mxu0
        %v374 = vadd.f32 %v274, %v373
        %v375 = vpop.f32.mrb[0].mxu0
        %v376 = vadd.f32 %v278, %v375
        %377 = vdwg.mxu0
        %378 = vmatprep.subr.bf16.mxu0 %v318
        %379 = vmatpush1.bf16.msra.mxu0 %v317
        %380 = vmatprep.subr.bf16.mxu0 %v322
        %381 = vmatpush1.bf16.msra.mxu0 %v321
        %382 = vmatprep.subr.bf16.mxu0 0
        %383 = vmatpush1.bf16.msra.mxu0 0
        %384 = vmatprep.subr.bf16.mxu0 0
        %385 = vmatpush1.bf16.msra.mxu0 0
        %386 = vmatprep.subr.bf16.mxu0 0
        %387 = vmatpush1.bf16.msra.mxu0 0
        %388 = vmatprep.subr.bf16.mxu0 0
        %389 = vmatpush1.bf16.msra.mxu0 0
        %390 = vmatprep.subr.bf16.mxu0 0
        %391 = vmatpush1.bf16.msra.mxu0 0
        %392 = vmatprep.subr.bf16.mxu0 0
        %393 = vmatpush1.bf16.msra.mxu0 0
        %394 = vmatprep.subr.bf16.mxu0 0
        %395 = vmatpush1.bf16.msra.mxu0 0
        %396 = vmatprep.subr.bf16.mxu0 0
        %397 = vmatpush1.bf16.msra.mxu0 0
        %398 = vmatprep.subr.bf16.mxu0 0
        %399 = vmatpush1.bf16.msra.mxu0 0
        %400 = vmatprep.subr.bf16.mxu0 0
        %401 = vmatpush1.bf16.msra.mxu0 0
        %402 = vmatprep.subr.bf16.mxu0 0
        %403 = vmatpush1.bf16.msra.mxu0 0
        %404 = vmatprep.subr.bf16.mxu0 0
        %405 = vmatpush1.bf16.msra.mxu0 0
        %406 = vmatprep.subr.bf16.mxu0 0
        %407 = vmatpush1.bf16.msra.mxu0 0
        %408 = vmatprep.subr.bf16.mxu0 0
        %409 = vmatpush1.bf16.msra.mxu0 0
        %410 = vmatprep.mubr.bf16.mxu0 0
        %411 = vmatmul.mubr.bf16.gmra.mrb[0].mxu0 %v333
        %v412 = vpop.f32.mrb[0].mxu0
        %v413 = vadd.f32 %v282, %v412
        %v414 = vpop.f32.mrb[0].mxu0
        %v415 = vadd.f32 %v286, %v414
        %v416 = vpop.f32.mrb[0].mxu0
        %v417 = vadd.f32 %v282, %v416
        %v418 = vpop.f32.mrb[0].mxu0
        %v419 = vadd.f32 %v286, %v418
        %420 = vdwg.mxu0
        %v421 = vmax.f32 %v370, 0.0
        %v422 = vmax.f32 %v372, 0.0
        %v423 = vmax.f32 %v413, 0.0
        %v424 = vmax.f32 %v415, 0.0
        %v425 = vmax.f32 %v374, 0.0
        %v426 = vmax.f32 %v376, 0.0
        %v427 = vmax.f32 %v417, 0.0
        %v428 = vmax.f32 %v419, 0.0
        %429 = vst [vmem:[%s242] sm:$0xff] %v421
        %430 = vst [vmem:[%s242 + $0x8] sm:$0xff] %v422
        %431 = vst [vmem:[%s242 + $0x10] sm:$0xff] %v423
        %432 = vst [vmem:[%s242 + $0x18] sm:$0xff] %v424
        %433 = vst [vmem:[%s242 + $0x20] sm:$0xff] %v425
        %434 = vst [vmem:[%s242 + $0x28] sm:$0xff] %v426
        %435 = vst [vmem:[%s242 + $0x30] sm:$0xff] %v427
        %436 = vst [vmem:[%s242 + $0x38] sm:$0xff] %v428
        %s437 = sand.u32 %s114, 1
        %s438 = sand.u32 %s114, 1
        %s439 = smul.addr %s438, 64
        %s440 = scalar_lea.vmem [#allocation3], %s439
        // Predicated region
        $region56: #{codegen_forward.62} parent=50 // pred_check
          %p441 = pneg %p124
        $region57: #{codegen_forward.62} parent=50 // pred_check_branch
          %443 = sbr.rel (%p441) target = $region59
        $region58: #{codegen_forward.62} parent=50 // pred_region
          %s444 = smul.u32 2, %s18
          %s445 = smul.u32 4, %s19
          %s446 = smul.addr %s444, 16
          %s447 = sadd.s32 %s445, %s446
          %s448 = smul.addr %s447, 8
          %s449 = scalar_lea.vmem %s3, %s448
          // Predicated region
          $region60: #{codegen_forward.62} parent=58 // pred_check
            _
          $region61: #{codegen_forward.62} parent=58 // pred_check_branch
            %451 = sbr.rel (0) target = $region63
          $region62: #{codegen_forward.62} parent=58 // pred_region
            // Predicated region
            $region64: #{codegen_forward.62} parent=62 // pred_check
              _
            $region65: #{codegen_forward.62} parent=62 // pred_check_branch
              %453 = sbr.rel (0) target = $region67
            $region66: #{codegen_forward.62} parent=62 // pred_region
              loop: start=0, step=1, limit=1
              $region68: #{codegen_forward.62} parent=66 // loop_pre_header
                _
              $region69: #{codegen_forward.62} parent=66 // loop_header
                %s455 = sphi 0, %s459
                %p456 = scmp.ge.s32.totalorder %s455, 1
                %s460 = sphi %s440, %s440
                %s461 = sphi %s449, %s449
              $region70: #{codegen_forward.62} parent=66 // loop_header_branch
                %458 = sbr.rel (%p456) target = $region74
              $region71: #{codegen_forward.62} parent=66 // loop_body
                %v462 = vld [vmem:[%s460] sm:$0xff]
                %463 = vst [vmem:[%s461] sm:$0xff] %v462
                %v464 = vld [vmem:[%s460 + $0x8] sm:$0xff]
                %465 = vst [vmem:[%s461 + $0x8] sm:$0xff] %v464
                %v466 = vld [vmem:[%s460 + $0x10] sm:$0xff]
                %467 = vst [vmem:[%s461 + $0x10] sm:$0xff] %v466
                %v468 = vld [vmem:[%s460 + $0x18] sm:$0xff]
                %469 = vst [vmem:[%s461 + $0x18] sm:$0xff] %v468
                %v470 = vld [vmem:[%s460 + $0x20] sm:$0xff]
                %471 = vst [vmem:[%s461 + $0x80] sm:$0xff] %v470
                %v472 = vld [vmem:[%s460 + $0x28] sm:$0xff]
                %473 = vst [vmem:[%s461 + $0x88] sm:$0xff] %v472
                %v474 = vld [vmem:[%s460 + $0x30] sm:$0xff]
                %475 = vst [vmem:[%s461 + $0x90] sm:$0xff] %v474
                %v476 = vld [vmem:[%s460 + $0x38] sm:$0xff]
                %477 = vst [vmem:[%s461 + $0x98] sm:$0xff] %v476
              $region72: #{codegen_forward.62} parent=66 // loop_footer
                %s459 = sadd.s32 1, %s455
              $region73: #{codegen_forward.62} parent=66 // loop_footer_branch
                %454 = sbr.rel target = $region69
              $region74: #{codegen_forward.62} parent=66 // loop_exit
                _
            $region67: #{codegen_forward.62} parent=62 // pred_fallthru
              _
            // Predicated region
            $region75: #{codegen_forward.62} parent=62 // pred_check
              _
            $region76: #{codegen_forward.62} parent=62 // pred_check_branch
              %479 = sbr.rel target = $region78
            $region77: #{codegen_forward.62} parent=62 // pred_region
              _
            $region78: #{codegen_forward.62} parent=62 // pred_fallthru
              _
          $region63: #{codegen_forward.62} parent=58 // pred_fallthru
            _
          %480 = vnop
        $region59: #{codegen_forward.62} parent=50 // pred_fallthru
          _
      $region51: #{codegen_forward.62} parent=5 // pred_fallthru
        _
      %p481 = scmp.le.s32.totalorder 2, %s9
      // Predicated region
      $region79: #{codegen_forward.62} parent=5 // pred_check
        %p482 = pneg %p481
      $region80: #{codegen_forward.62} parent=5 // pred_check_branch
        %484 = sbr.rel (%p482) target = $region82
      $region81: #{codegen_forward.62} parent=5 // pred_region
        %s485 = ssub.s32 %s9, 2
        // Predicated region
        $region83: #{codegen_forward.62} parent=81 // pred_check
          %p486 = pneg %p130
        $region84: #{codegen_forward.62} parent=81 // pred_check_branch
          %488 = sbr.rel (%p486) target = $region86
        $region85: #{codegen_forward.62} parent=81 // pred_region
          %s489 = sand.u32 %s115, 1
          %s490 = sand.u32 %s115, 1
          %s491 = smul.addr %s490, 64
          %s492 = scalar_lea.vmem [#allocation3], %s491
        $region86: #{codegen_forward.62} parent=81 // pred_fallthru
          _
      $region82: #{codegen_forward.62} parent=5 // pred_fallthru
        _
    $region6: #{codegen_forward.62} parent=1 // loop_footer
      %s13 = sadd.s32 1, %s9
    $region7: #{codegen_forward.62} parent=1 // loop_footer_branch
      %8 = sbr.rel target = $region3
    $region8: #{codegen_forward.62} parent=1 // loop_exit
      _

// kernel: codegen_forward.77
$region0: #{codegen_forward.77}
  #allocation0 [shape = 'u32[]', space=smem, size = 0x4, offset = 0x4, fixed_abs, tag = 'smem constant byte address 0x4 - core index']
  #allocation1 [shape = 'u32[144,128]{1,0:T(1,128)}', space=vmem, size = 0x12000, scoped, tag = 'internal scratch']
  %s0 = inlined_call_operand.vmem [shape: f32[16,32], index: 0, kind: input, shape index: {}]
  %s1 = inlined_call_operand.vmem [shape: bf16[32,128], index: 1, kind: input, shape index: {}]
  %s2 = inlined_call_operand.vmem [shape: f32[1,128], index: 2, kind: input, shape index: {}]
  %s3 = inlined_call_operand.hbm [shape: f32[16,128], index: 3, kind: output, shape index: {}]
  %s4 = sld [smem:[#allocation0]]
  $region22: #{codegen_forward.77} parent=0
    _
  %s6 = ssub.s32 1, %s4
  %s7 = scalar_select 0, %s6, %s4
  $region1: #{codegen_forward.77} parent=0
    #allocation2 [shape = 'u8[8192]{0}', space=vmem, size = 0x2000, scoped, tag = 'output window, operand 0, single buffered']
    #allocation3 [shape = 's32[1]{0}', space=sflag, size = 0x4, scoped, tag = 'scoped memory for codegen_forward.77']
    %8 = vsyncpa [#allocation3], 0
    // Predicated region
    $region2: #{codegen_forward.77} parent=1 // pred_check
      _
    $region3: #{codegen_forward.77} parent=1 // pred_check_branch
      %10 = sbr.rel (0) target = $region5
    $region4: #{codegen_forward.77} parent=1 // pred_region
      _
    $region5: #{codegen_forward.77} parent=1 // pred_fallthru
      _
    // Predicated region
    $region6: #{codegen_forward.77} parent=1 // pred_check
      _
    $region7: #{codegen_forward.77} parent=1 // pred_check_branch
      %12 = sbr.rel (0) target = $region9
    $region8: #{codegen_forward.77} parent=1 // pred_region
      _
    $region9: #{codegen_forward.77} parent=1 // pred_fallthru
      _
    // Predicated region
    $region10: #{codegen_forward.77} parent=1 // pred_check
      _
    $region11: #{codegen_forward.77} parent=1 // pred_check_branch
      %14 = sbr.rel (0) target = $region13
    $region12: #{codegen_forward.77} parent=1 // pred_region
      _
    $region13: #{codegen_forward.77} parent=1 // pred_fallthru
      _
    %v16 = vld [vmem:[%s0] sm:$0xff]
    %v17 = vld [vmem:[%s0 + $0x8] sm:$0xff]
    %v18 = vpack.c.bf16 %v17, %v16
    %v19 = vld [vmem:[%s1] sm:$0xf]
    %v20 = vld [vmem:[%s1 + $0x4] sm:$0xf]
    %v21 = vld [vmem:[%s1 + $0x8] sm:$0xf]
    %v22 = vld [vmem:[%s1 + $0xc] sm:$0xf]
    %v23 = vld [vmem:[%s2] sm:$0x1]
    %v25 = vlaneseq
    %v26 = vshrl.u32 %v25, 7
    %v27 = vsub.s32 0, %v26
    %v28 = vrot.slane %v23, %v27
    %v34 = vunpack.c.l.b16 %v19
    %v35 = vunpack.c.l.b16 %v20
    %v36 = vunpack.c.l.b16 %v21
    %v37 = vunpack.c.l.b16 %v22
    %v38 = vpack.c.b16 %v35, %v34
    %v39 = vpack.c.b16 %v37, %v36
    %vm42 = vcmask 261120
    %v44 = vsel %vm42, %v18, 0
    %46 = vmatprep.subr.bf16.mxu0 0
    %47 = vmatpush1.bf16.msra.mxu0 %v38
    %48 = vmatprep.subr.bf16.mxu0 0
    %49 = vmatpush1.bf16.msra.mxu0 %v39
    %50 = vmatprep.subr.bf16.mxu0 0
    %51 = vmatpush1.bf16.msra.mxu0 0
    %52 = vmatprep.subr.bf16.mxu0 0
    %53 = vmatpush1.bf16.msra.mxu0 0
    %54 = vmatprep.subr.bf16.mxu0 0
    %55 = vmatpush1.bf16.msra.mxu0 0
    %56 = vmatprep.subr.bf16.mxu0 0
    %57 = vmatpush1.bf16.msra.mxu0 0
    %58 = vmatprep.subr.bf16.mxu0 0
    %59 = vmatpush1.bf16.msra.mxu0 0
    %60 = vmatprep.subr.bf16.mxu0 0
    %61 = vmatpush1.bf16.msra.mxu0 0
    %62 = vmatprep.subr.bf16.mxu0 0
    %63 = vmatpush1.bf16.msra.mxu0 0
    %64 = vmatprep.subr.bf16.mxu0 0
    %65 = vmatpush1.bf16.msra.mxu0 0
    %66 = vmatprep.subr.bf16.mxu0 0
    %67 = vmatpush1.bf16.msra.mxu0 0
    %68 = vmatprep.subr.bf16.mxu0 0
    %69 = vmatpush1.bf16.msra.mxu0 0
    %70 = vmatprep.subr.bf16.mxu0 0
    %71 = vmatpush1.bf16.msra.mxu0 0
    %72 = vmatprep.subr.bf16.mxu0 0
    %73 = vmatpush1.bf16.msra.mxu0 0
    %74 = vmatprep.subr.bf16.mxu0 0
    %75 = vmatpush1.bf16.msra.mxu0 0
    %76 = vmatprep.subr.bf16.mxu0 0
    %77 = vmatpush1.bf16.msra.mxu0 0
    %78 = vmatprep.mubr.bf16.mxu0 0
    %79 = vmatmul.mubr.bf16.gmra.mrb[0].mxu0 %v44
    %v80 = vpop.f32.mrb[0].mxu0
    %v81 = vadd.f32 %v28, %v80
    %v82 = vpop.f32.mrb[0].mxu0
    %v83 = vpop.f32.mrb[0].mxu0
    %v84 = vadd.f32 %v28, %v83
    %v85 = vpop.f32.mrb[0].mxu0
    %86 = vdwg.mxu0
    %87 = vst [vmem:[#allocation2] sm:$0xff] %v81
    %88 = vst [vmem:[#allocation2 + $0x8] sm:$0xff] %v84
    // Predicated region
    $region14: #{codegen_forward.77} parent=1 // pred_check
      _
    $region15: #{codegen_forward.77} parent=1 // pred_check_branch
      %90 = sbr.rel (0) target = $region17
    $region16: #{codegen_forward.77} parent=1 // pred_region
      %s92 = ssub.s32 256, 256
      %93 = vsyncadd [#allocation3], %s92
      %s94 = sshll.u32 [#allocation2], 4
      %s95 = int_to_ptr.vmem [resolvable:$true] %s94
      %100 = dma.vmem_to_hbm [thread:$0]  %s95, 256, %s3, [#allocation3], 128, 128, 8
    $region17: #{codegen_forward.77} parent=1 // pred_fallthru
      _
    // Predicated region
    $region18: #{codegen_forward.77} parent=1 // pred_check
      _
    $region19: #{codegen_forward.77} parent=1 // pred_check_branch
      %102 = sbr.rel (0) target = $region21
    $region20: #{codegen_forward.77} parent=1 // pred_region
      %103 = dma.done [#allocation3], 256
    $region21: #{codegen_forward.77} parent=1 // pred_fallthru
      _
    %104 = vsyncpa [#allocation3], 1

// kernel: codegen_forward.63
$region0: #{codegen_forward.63}
  #allocation0 [shape = 'u32[]', space=smem, size = 0x4, offset = 0x4, fixed_abs, tag = 'smem constant byte address 0x4 - core index']
  #allocation1 [shape = 'u32[144,128]{1,0:T(1,128)}', space=vmem, size = 0x12000, scoped, tag = 'internal scratch']
  %s0 = inlined_call_operand.vmem [shape: f32[16,2048], index: 0, kind: input, shape index: {}]
  %s1 = inlined_call_operand.vmem [shape: bf16[2048,32], index: 1, kind: input, shape index: {}]
  %s2 = inlined_call_operand.vmem [shape: f32[1,32], index: 2, kind: input, shape index: {}]
  %s3 = inlined_call_operand.vmem [shape: f32[16,32], index: 3, kind: output, shape index: {}]
  %s4 = sld [smem:[#allocation0]]
  $region22: #{codegen_forward.63} parent=0
    _
  %s6 = ssub.s32 1, %s4
  %s7 = scalar_select 0, %s6, %s4
  // Predicated region
  $region2: #{codegen_forward.63} parent=0 // pred_check
    _
  $region3: #{codegen_forward.63} parent=0 // pred_check_branch
    %9 = sbr.rel (0) target = $region5
  $region4: #{codegen_forward.63} parent=0 // pred_region
    _
  $region5: #{codegen_forward.63} parent=0 // pred_fallthru
    _
  // Predicated region
  $region6: #{codegen_forward.63} parent=0 // pred_check
    _
  $region7: #{codegen_forward.63} parent=0 // pred_check_branch
    %11 = sbr.rel (0) target = $region9
  $region8: #{codegen_forward.63} parent=0 // pred_region
    _
  $region9: #{codegen_forward.63} parent=0 // pred_fallthru
    _
  // Predicated region
  $region10: #{codegen_forward.63} parent=0 // pred_check
    _
  $region11: #{codegen_forward.63} parent=0 // pred_check_branch
    %13 = sbr.rel (0) target = $region13
  $region12: #{codegen_forward.63} parent=0 // pred_region
    _
  $region13: #{codegen_forward.63} parent=0 // pred_fallthru
    _
  %v15 = vld [vmem:[%s0] sm:$0xff]
  %v16 = vld [vmem:[%s0 + $0x8] sm:$0xff]
  %v17 = vld [vmem:[%s0 + $0x10] sm:$0xff]
  %v18 = vld [vmem:[%s0 + $0x18] sm:$0xff]
  %v19 = vld [vmem:[%s0 + $0x20] sm:$0xff]
  %v20 = vld [vmem:[%s0 + $0x28] sm:$0xff]
  %v21 = vld [vmem:[%s0 + $0x30] sm:$0xff]
  %v22 = vld [vmem:[%s0 + $0x38] sm:$0xff]
  %v23 = vld [vmem:[%s0 + $0x40] sm:$0xff]
  %v24 = vld [vmem:[%s0 + $0x48] sm:$0xff]
  %v25 = vld [vmem:[%s0 + $0x50] sm:$0xff]
  %v26 = vld [vmem:[%s0 + $0x58] sm:$0xff]
  %v27 = vld [vmem:[%s0 + $0x60] sm:$0xff]
  %v28 = vld [vmem:[%s0 + $0x68] sm:$0xff]
  %v29 = vld [vmem:[%s0 + $0x70] sm:$0xff]
  %v30 = vld [vmem:[%s0 + $0x78] sm:$0xff]
  %v31 = vld [vmem:[%s0 + $0x80] sm:$0xff]
  %v32 = vld [vmem:[%s0 + $0x88] sm:$0xff]
  %v33 = vld [vmem:[%s0 + $0x90] sm:$0xff]
  %v34 = vld [vmem:[%s0 + $0x98] sm:$0xff]
  %v35 = vld [vmem:[%s0 + $0xa0] sm:$0xff]
  %v36 = vld [vmem:[%s0 + $0xa8] sm:$0xff]
  %v37 = vld [vmem:[%s0 + $0xb0] sm:$0xff]
  %v38 = vld [vmem:[%s0 + $0xb8] sm:$0xff]
  %v39 = vld [vmem:[%s0 + $0xc0] sm:$0xff]
  %v40 = vld [vmem:[%s0 + $0xc8] sm:$0xff]
  %v41 = vld [vmem:[%s0 + $0xd0] sm:$0xff]
  %v42 = vld [vmem:[%s0 + $0xd8] sm:$0xff]
  %v43 = vld [vmem:[%s0 + $0xe0] sm:$0xff]
  %v44 = vld [vmem:[%s0 + $0xe8] sm:$0xff]
  %v45 = vld [vmem:[%s0 + $0xf0] sm:$0xff]
  %v46 = vld [vmem:[%s0 + $0xf8] sm:$0xff]
  %v47 = vpack.c.bf16 %v31, %v15
  %v48 = vpack.c.bf16 %v32, %v16
  %v49 = vpack.c.bf16 %v33, %v17
  %v50 = vpack.c.bf16 %v34, %v18
  %v51 = vpack.c.bf16 %v35, %v19
  %v52 = vpack.c.bf16 %v36, %v20
  %v53 = vpack.c.bf16 %v37, %v21
  %v54 = vpack.c.bf16 %v38, %v22
  %v55 = vpack.c.bf16 %v39, %v23
  %v56 = vpack.c.bf16 %v40, %v24
  %v57 = vpack.c.bf16 %v41, %v25
  %v58 = vpack.c.bf16 %v42, %v26
  %v59 = vpack.c.bf16 %v43, %v27
  %v60 = vpack.c.bf16 %v44, %v28
  %v61 = vpack.c.bf16 %v45, %v29
  %v62 = vpack.c.bf16 %v46, %v30
  %v63 = vld [vmem:[%s1] sm:$0xf]
  %v64 = vld [vmem:[%s1 + $0x4] sm:$0xf]
  %v65 = vld [vmem:[%s1 + $0x8] sm:$0xf]
  %v66 = vld [vmem:[%s1 + $0xc] sm:$0xf]
  %v67 = vld [vmem:[%s1 + $0x10] sm:$0xf]
  %v68 = vld [vmem:[%s1 + $0x14] sm:$0xf]
  %v69 = vld [vmem:[%s1 + $0x18] sm:$0xf]
  %v70 = vld [vmem:[%s1 + $0x1c] sm:$0xf]
  %v71 = vld [vmem:[%s1 + $0x20] sm:$0xf]
  %v72 = vld [vmem:[%s1 + $0x24] sm:$0xf]
  %v73 = vld [vmem:[%s1 + $0x28] sm:$0xf]
  %v74 = vld [vmem:[%s1 + $0x2c] sm:$0xf]
  %v75 = vld [vmem:[%s1 + $0x30] sm:$0xf]
  %v76 = vld [vmem:[%s1 + $0x34] sm:$0xf]
  %v77 = vld [vmem:[%s1 + $0x38] sm:$0xf]
  %v78 = vld [vmem:[%s1 + $0x3c] sm:$0xf]
  %v79 = vld [vmem:[%s1 + $0x40] sm:$0xf]
  %v80 = vld [vmem:[%s1 + $0x44] sm:$0xf]
  %v81 = vld [vmem:[%s1 + $0x48] sm:$0xf]
  %v82 = vld [vmem:[%s1 + $0x4c] sm:$0xf]
  %v83 = vld [vmem:[%s1 + $0x50] sm:$0xf]
  %v84 = vld [vmem:[%s1 + $0x54] sm:$0xf]
  %v85 = vld [vmem:[%s1 + $0x58] sm:$0xf]
  %v86 = vld [vmem:[%s1 + $0x5c] sm:$0xf]
  %v87 = vld [vmem:[%s1 + $0x60] sm:$0xf]
  %v88 = vld [vmem:[%s1 + $0x64] sm:$0xf]
  %v89 = vld [vmem:[%s1 + $0x68] sm:$0xf]
  %v90 = vld [vmem:[%s1 + $0x6c] sm:$0xf]
  %v91 = vld [vmem:[%s1 + $0x70] sm:$0xf]
  %v92 = vld [vmem:[%s1 + $0x74] sm:$0xf]
  %v93 = vld [vmem:[%s1 + $0x78] sm:$0xf]
  %v94 = vld [vmem:[%s1 + $0x7c] sm:$0xf]
  %v95 = vld [vmem:[%s1 + $0x80] sm:$0xf]
  %v96 = vld [vmem:[%s1 + $0x84] sm:$0xf]
  %v97 = vld [vmem:[%s1 + $0x88] sm:$0xf]
  %v98 = vld [vmem:[%s1 + $0x8c] sm:$0xf]
  %v99 = vld [vmem:[%s1 + $0x90] sm:$0xf]
  %v100 = vld [vmem:[%s1 + $0x94] sm:$0xf]
  %v101 = vld [vmem:[%s1 + $0x98] sm:$0xf]
  %v102 = vld [vmem:[%s1 + $0x9c] sm:$0xf]
  %v103 = vld [vmem:[%s1 + $0xa0] sm:$0xf]
  %v104 = vld [vmem:[%s1 + $0xa4] sm:$0xf]
  %v105 = vld [vmem:[%s1 + $0xa8] sm:$0xf]
  %v106 = vld [vmem:[%s1 + $0xac] sm:$0xf]
  %v107 = vld [vmem:[%s1 + $0xb0] sm:$0xf]
  %v108 = vld [vmem:[%s1 + $0xb4] sm:$0xf]
  %v109 = vld [vmem:[%s1 + $0xb8] sm:$0xf]
  %v110 = vld [vmem:[%s1 + $0xbc] sm:$0xf]
  %v111 = vld [vmem:[%s1 + $0xc0] sm:$0xf]
  %v112 = vld [vmem:[%s1 + $0xc4] sm:$0xf]
  %v113 = vld [vmem:[%s1 + $0xc8] sm:$0xf]
  %v114 = vld [vmem:[%s1 + $0xcc] sm:$0xf]
  %v115 = vld [vmem:[%s1 + $0xd0] sm:$0xf]
  %v116 = vld [vmem:[%s1 + $0xd4] sm:$0xf]
  %v117 = vld [vmem:[%s1 + $0xd8] sm:$0xf]
  %v118 = vld [vmem:[%s1 + $0xdc] sm:$0xf]
  %v119 = vld [vmem:[%s1 + $0xe0] sm:$0xf]
  %v120 = vld [vmem:[%s1 + $0xe4] sm:$0xf]
  %v121 = vld [vmem:[%s1 + $0xe8] sm:$0xf]
  %v122 = vld [vmem:[%s1 + $0xec] sm:$0xf]
  %v123 = vld [vmem:[%s1 + $0xf0] sm:$0xf]
  %v124 = vld [vmem:[%s1 + $0xf4] sm:$0xf]
  %v125 = vld [vmem:[%s1 + $0xf8] sm:$0xf]
  %v126 = vld [vmem:[%s1 + $0xfc] sm:$0xf]
  %v127 = vld [vmem:[%s1 + $0x100] sm:$0xf]
  %v128 = vld [vmem:[%s1 + $0x104] sm:$0xf]
  %v129 = vld [vmem:[%s1 + $0x108] sm:$0xf]
  %v130 = vld [vmem:[%s1 + $0x10c] sm:$0xf]
  %v131 = vld [vmem:[%s1 + $0x110] sm:$0xf]
  %v132 = vld [vmem:[%s1 + $0x114] sm:$0xf]
  %v133 = vld [vmem:[%s1 + $0x118] sm:$0xf]
  %v134 = vld [vmem:[%s1 + $0x11c] sm:$0xf]
  %v135 = vld [vmem:[%s1 + $0x120] sm:$0xf]
  %v136 = vld [vmem:[%s1 + $0x124] sm:$0xf]
  %v137 = vld [vmem:[%s1 + $0x128] sm:$0xf]
  %v138 = vld [vmem:[%s1 + $0x12c] sm:$0xf]
  %v139 = vld [vmem:[%s1 + $0x130] sm:$0xf]
  %v140 = vld [vmem:[%s1 + $0x134] sm:$0xf]
  %v141 = vld [vmem:[%s1 + $0x138] sm:$0xf]
  %v142 = vld [vmem:[%s1 + $0x13c] sm:$0xf]
  %v143 = vld [vmem:[%s1 + $0x140] sm:$0xf]
  %v144 = vld [vmem:[%s1 + $0x144] sm:$0xf]
  %v145 = vld [vmem:[%s1 + $0x148] sm:$0xf]
  %v146 = vld [vmem:[%s1 + $0x14c] sm:$0xf]
  %v147 = vld [vmem:[%s1 + $0x150] sm:$0xf]
  %v148 = vld [vmem:[%s1 + $0x154] sm:$0xf]
  %v149 = vld [vmem:[%s1 + $0x158] sm:$0xf]
  %v150 = vld [vmem:[%s1 + $0x15c] sm:$0xf]
  %v151 = vld [vmem:[%s1 + $0x160] sm:$0xf]
  %v152 = vld [vmem:[%s1 + $0x164] sm:$0xf]
  %v153 = vld [vmem:[%s1 + $0x168] sm:$0xf]
  %v154 = vld [vmem:[%s1 + $0x16c] sm:$0xf]
  %v155 = vld [vmem:[%s1 + $0x170] sm:$0xf]
  %v156 = vld [vmem:[%s1 + $0x174] sm:$0xf]
  %v157 = vld [vmem:[%s1 + $0x178] sm:$0xf]
  %v158 = vld [vmem:[%s1 + $0x17c] sm:$0xf]
  %v159 = vld [vmem:[%s1 + $0x180] sm:$0xf]
  %v160 = vld [vmem:[%s1 + $0x184] sm:$0xf]
  %v161 = vld [vmem:[%s1 + $0x188] sm:$0xf]
  %v162 = vld [vmem:[%s1 + $0x18c] sm:$0xf]
  %v163 = vld [vmem:[%s1 + $0x190] sm:$0xf]
  %v164 = vld [vmem:[%s1 + $0x194] sm:$0xf]
  %v165 = vld [vmem:[%s1 + $0x198] sm:$0xf]
  %v166 = vld [vmem:[%s1 + $0x19c] sm:$0xf]
  %v167 = vld [vmem:[%s1 + $0x1a0] sm:$0xf]
  %v168 = vld [vmem:[%s1 + $0x1a4] sm:$0xf]
  %v169 = vld [vmem:[%s1 + $0x1a8] sm:$0xf]
  %v170 = vld [vmem:[%s1 + $0x1ac] sm:$0xf]
  %v171 = vld [vmem:[%s1 + $0x1b0] sm:$0xf]
  %v172 = vld [vmem:[%s1 + $0x1b4] sm:$0xf]
  %v173 = vld [vmem:[%s1 + $0x1b8] sm:$0xf]
  %v174 = vld [vmem:[%s1 + $0x1bc] sm:$0xf]
  %v175 = vld [vmem:[%s1 + $0x1c0] sm:$0xf]
  %v176 = vld [vmem:[%s1 + $0x1c4] sm:$0xf]
  %v177 = vld [vmem:[%s1 + $0x1c8] sm:$0xf]
  %v178 = vld [vmem:[%s1 + $0x1cc] sm:$0xf]
  %v179 = vld [vmem:[%s1 + $0x1d0] sm:$0xf]
  %v180 = vld [vmem:[%s1 + $0x1d4] sm:$0xf]
  %v181 = vld [vmem:[%s1 + $0x1d8] sm:$0xf]
  %v182 = vld [vmem:[%s1 + $0x1dc] sm:$0xf]
  %v183 = vld [vmem:[%s1 + $0x1e0] sm:$0xf]
  %v184 = vld [vmem:[%s1 + $0x1e4] sm:$0xf]
  %v185 = vld [vmem:[%s1 + $0x1e8] sm:$0xf]
  %v186 = vld [vmem:[%s1 + $0x1ec] sm:$0xf]
  %v187 = vld [vmem:[%s1 + $0x1f0] sm:$0xf]
  %v188 = vld [vmem:[%s1 + $0x1f4] sm:$0xf]
  %v189 = vld [vmem:[%s1 + $0x1f8] sm:$0xf]
  %v190 = vld [vmem:[%s1 + $0x1fc] sm:$0xf]
  %v191 = vld [vmem:[%s1 + $0x200] sm:$0xf]
  %v192 = vld [vmem:[%s1 + $0x204] sm:$0xf]
  %v193 = vld [vmem:[%s1 + $0x208] sm:$0xf]
  %v194 = vld [vmem:[%s1 + $0x20c] sm:$0xf]
  %v195 = vld [vmem:[%s1 + $0x210] sm:$0xf]
  %v196 = vld [vmem:[%s1 + $0x214] sm:$0xf]
  %v197 = vld [vmem:[%s1 + $0x218] sm:$0xf]
  %v198 = vld [vmem:[%s1 + $0x21c] sm:$0xf]
  %v199 = vld [vmem:[%s1 + $0x220] sm:$0xf]
  %v200 = vld [vmem:[%s1 + $0x224] sm:$0xf]
  %v201 = vld [vmem:[%s1 + $0x228] sm:$0xf]
  %v202 = vld [vmem:[%s1 + $0x22c] sm:$0xf]
  %v203 = vld [vmem:[%s1 + $0x230] sm:$0xf]
  %v204 = vld [vmem:[%s1 + $0x234] sm:$0xf]
  %v205 = vld [vmem:[%s1 + $0x238] sm:$0xf]
  %v206 = vld [vmem:[%s1 + $0x23c] sm:$0xf]
  %v207 = vld [vmem:[%s1 + $0x240] sm:$0xf]
  %v208 = vld [vmem:[%s1 + $0x244] sm:$0xf]
  %v209 = vld [vmem:[%s1 + $0x248] sm:$0xf]
  %v210 = vld [vmem:[%s1 + $0x24c] sm:$0xf]
  %v211 = vld [vmem:[%s1 + $0x250] sm:$0xf]
  %v212 = vld [vmem:[%s1 + $0x254] sm:$0xf]
  %v213 = vld [vmem:[%s1 + $0x258] sm:$0xf]
  %v214 = vld [vmem:[%s1 + $0x25c] sm:$0xf]
  %v215 = vld [vmem:[%s1 + $0x260] sm:$0xf]
  %v216 = vld [vmem:[%s1 + $0x264] sm:$0xf]
  %v217 = vld [vmem:[%s1 + $0x268] sm:$0xf]
  %v218 = vld [vmem:[%s1 + $0x26c] sm:$0xf]
  %v219 = vld [vmem:[%s1 + $0x270] sm:$0xf]
  %v220 = vld [vmem:[%s1 + $0x274] sm:$0xf]
  %v221 = vld [vmem:[%s1 + $0x278] sm:$0xf]
  %v222 = vld [vmem:[%s1 + $0x27c] sm:$0xf]
  %v223 = vld [vmem:[%s1 + $0x280] sm:$0xf]
  %v224 = vld [vmem:[%s1 + $0x284] sm:$0xf]
  %v225 = vld [vmem:[%s1 + $0x288] sm:$0xf]
  %v226 = vld [vmem:[%s1 + $0x28c] sm:$0xf]
  %v227 = vld [vmem:[%s1 + $0x290] sm:$0xf]
  %v228 = vld [vmem:[%s1 + $0x294] sm:$0xf]
  %v229 = vld [vmem:[%s1 + $0x298] sm:$0xf]
  %v230 = vld [vmem:[%s1 + $0x29c] sm:$0xf]
  %v231 = vld [vmem:[%s1 + $0x2a0] sm:$0xf]
  %v232 = vld [vmem:[%s1 + $0x2a4] sm:$0xf]
  %v233 = vld [vmem:[%s1 + $0x2a8] sm:$0xf]
  %v234 = vld [vmem:[%s1 + $0x2ac] sm:$0xf]
  %v235 = vld [vmem:[%s1 + $0x2b0] sm:$0xf]
  %v236 = vld [vmem:[%s1 + $0x2b4] sm:$0xf]
  %v237 = vld [vmem:[%s1 + $0x2b8] sm:$0xf]
  %v238 = vld [vmem:[%s1 + $0x2bc] sm:$0xf]
  %v239 = vld [vmem:[%s1 + $0x2c0] sm:$0xf]
  %v240 = vld [vmem:[%s1 + $0x2c4] sm:$0xf]
  %v241 = vld [vmem:[%s1 + $0x2c8] sm:$0xf]
  %v242 = vld [vmem:[%s1 + $0x2cc] sm:$0xf]
  %v243 = vld [vmem:[%s1 + $0x2d0] sm:$0xf]
  %v244 = vld [vmem:[%s1 + $0x2d4] sm:$0xf]
  %v245 = vld [vmem:[%s1 + $0x2d8] sm:$0xf]
  %v246 = vld [vmem:[%s1 + $0x2dc] sm:$0xf]
  %v247 = vld [vmem:[%s1 + $0x2e0] sm:$0xf]
  %v248 = vld [vmem:[%s1 + $0x2e4] sm:$0xf]
  %v249 = vld [vmem:[%s1 + $0x2e8] sm:$0xf]
  %v250 = vld [vmem:[%s1 + $0x2ec] sm:$0xf]
  %v251 = vld [vmem:[%s1 + $0x2f0] sm:$0xf]
  %v252 = vld [vmem:[%s1 + $0x2f4] sm:$0xf]
  %v253 = vld [vmem:[%s1 + $0x2f8] sm:$0xf]
  %v254 = vld [vmem:[%s1 + $0x2fc] sm:$0xf]
  %v255 = vld [vmem:[%s1 + $0x300] sm:$0xf]
  %v256 = vld [vmem:[%s1 + $0x304] sm:$0xf]
  %v257 = vld [vmem:[%s1 + $0x308] sm:$0xf]
  %v258 = vld [vmem:[%s1 + $0x30c] sm:$0xf]
  %v259 = vld [vmem:[%s1 + $0x310] sm:$0xf]
  %v260 = vld [vmem:[%s1 + $0x314] sm:$0xf]
  %v261 = vld [vmem:[%s1 + $0x318] sm:$0xf]
  %v262 = vld [vmem:[%s1 + $0x31c] sm:$0xf]
  %v263 = vld [vmem:[%s1 + $0x320] sm:$0xf]
  %v264 = vld [vmem:[%s1 + $0x324] sm:$0xf]
  %v265 = vld [vmem:[%s1 + $0x328] sm:$0xf]
  %v266 = vld [vmem:[%s1 + $0x32c] sm:$0xf]
  %v267 = vld [vmem:[%s1 + $0x330] sm:$0xf]
  %v268 = vld [vmem:[%s1 + $0x334] sm:$0xf]
  %v269 = vld [vmem:[%s1 + $0x338] sm:$0xf]
  %v270 = vld [vmem:[%s1 + $0x33c] sm:$0xf]
  %v271 = vld [vmem:[%s1 + $0x340] sm:$0xf]
  %v272 = vld [vmem:[%s1 + $0x344] sm:$0xf]
  %v273 = vld [vmem:[%s1 + $0x348] sm:$0xf]
  %v274 = vld [vmem:[%s1 + $0x34c] sm:$0xf]
  %v275 = vld [vmem:[%s1 + $0x350] sm:$0xf]
  %v276 = vld [vmem:[%s1 + $0x354] sm:$0xf]
  %v277 = vld [vmem:[%s1 + $0x358] sm:$0xf]
  %v278 = vld [vmem:[%s1 + $0x35c] sm:$0xf]
  %v279 = vld [vmem:[%s1 + $0x360] sm:$0xf]
  %v280 = vld [vmem:[%s1 + $0x364] sm:$0xf]
  %v281 = vld [vmem:[%s1 + $0x368] sm:$0xf]
  %v282 = vld [vmem:[%s1 + $0x36c] sm:$0xf]
  %v283 = vld [vmem:[%s1 + $0x370] sm:$0xf]
  %v284 = vld [vmem:[%s1 + $0x374] sm:$0xf]
  %v285 = vld [vmem:[%s1 + $0x378] sm:$0xf]
  %v286 = vld [vmem:[%s1 + $0x37c] sm:$0xf]
  %v287 = vld [vmem:[%s1 + $0x380] sm:$0xf]
  %v288 = vld [vmem:[%s1 + $0x384] sm:$0xf]
  %v289 = vld [vmem:[%s1 + $0x388] sm:$0xf]
  %v290 = vld [vmem:[%s1 + $0x38c] sm:$0xf]
  %v291 = vld [vmem:[%s1 + $0x390] sm:$0xf]
  %v292 = vld [vmem:[%s1 + $0x394] sm:$0xf]
  %v293 = vld [vmem:[%s1 + $0x398] sm:$0xf]
  %v294 = vld [vmem:[%s1 + $0x39c] sm:$0xf]
  %v295 = vld [vmem:[%s1 + $0x3a0] sm:$0xf]
  %v296 = vld [vmem:[%s1 + $0x3a4] sm:$0xf]
  %v297 = vld [vmem:[%s1 + $0x3a8] sm:$0xf]
  %v298 = vld [vmem:[%s1 + $0x3ac] sm:$0xf]
  %v299 = vld [vmem:[%s1 + $0x3b0] sm:$0xf]
  %v300 = vld [vmem:[%s1 + $0x3b4] sm:$0xf]
  %v301 = vld [vmem:[%s1 + $0x3b8] sm:$0xf]
  %v302 = vld [vmem:[%s1 + $0x3bc] sm:$0xf]
  %v303 = vld [vmem:[%s1 + $0x3c0] sm:$0xf]
  %v304 = vld [vmem:[%s1 + $0x3c4] sm:$0xf]
  %v305 = vld [vmem:[%s1 + $0x3c8] sm:$0xf]
  %v306 = vld [vmem:[%s1 + $0x3cc] sm:$0xf]
  %v307 = vld [vmem:[%s1 + $0x3d0] sm:$0xf]
  %v308 = vld [vmem:[%s1 + $0x3d4] sm:$0xf]
  %v309 = vld [vmem:[%s1 + $0x3d8] sm:$0xf]
  %v310 = vld [vmem:[%s1 + $0x3dc] sm:$0xf]
  %v311 = vld [vmem:[%s1 + $0x3e0] sm:$0xf]
  %v312 = vld [vmem:[%s1 + $0x3e4] sm:$0xf]
  %v313 = vld [vmem:[%s1 + $0x3e8] sm:$0xf]
  %v314 = vld [vmem:[%s1 + $0x3ec] sm:$0xf]
  %v315 = vld [vmem:[%s1 + $0x3f0] sm:$0xf]
  %v316 = vld [vmem:[%s1 + $0x3f4] sm:$0xf]
  %v317 = vld [vmem:[%s1 + $0x3f8] sm:$0xf]
  %v318 = vld [vmem:[%s1 + $0x3fc] sm:$0xf]
  %v319 = vld [vmem:[%s2] sm:$0x1]
  %v321 = vlaneseq
  %v322 = vshrl.u32 %v321, 7
  %v323 = vsub.s32 0, %v322
  %v324 = vrot.slane %v319, %v323
  %v582 = vunpack.c.l.b16 %v63
  %v583 = vunpack.c.l.b16 %v64
  %v584 = vunpack.c.l.b16 %v65
  %v585 = vunpack.c.l.b16 %v66
  %v586 = vunpack.c.l.b16 %v67
  %v587 = vunpack.c.l.b16 %v68
  %v588 = vunpack.c.l.b16 %v69
  %v589 = vunpack.c.l.b16 %v70
  %v590 = vunpack.c.l.b16 %v71
  %v591 = vunpack.c.l.b16 %v72
  %v592 = vunpack.c.l.b16 %v73
  %v593 = vunpack.c.l.b16 %v74
  %v594 = vunpack.c.l.b16 %v75
  %v595 = vunpack.c.l.b16 %v76
  %v596 = vunpack.c.l.b16 %v77
  %v597 = vunpack.c.l.b16 %v78
  %v598 = vunpack.c.l.b16 %v79
  %v599 = vunpack.c.l.b16 %v80
  %v600 = vunpack.c.l.b16 %v81
  %v601 = vunpack.c.l.b16 %v82
  %v602 = vunpack.c.l.b16 %v83
  %v603 = vunpack.c.l.b16 %v84
  %v604 = vunpack.c.l.b16 %v85
  %v605 = vunpack.c.l.b16 %v86
  %v606 = vunpack.c.l.b16 %v87
  %v607 = vunpack.c.l.b16 %v88
  %v608 = vunpack.c.l.b16 %v89
  %v609 = vunpack.c.l.b16 %v90
  %v610 = vunpack.c.l.b16 %v91
  %v611 = vunpack.c.l.b16 %v92
  %v612 = vunpack.c.l.b16 %v93
  %v613 = vunpack.c.l.b16 %v94
  %v614 = vunpack.c.l.b16 %v95
  %v615 = vunpack.c.l.b16 %v96
  %v616 = vunpack.c.l.b16 %v97
  %v617 = vunpack.c.l.b16 %v98
  %v618 = vunpack.c.l.b16 %v99
  %v619 = vunpack.c.l.b16 %v100
  %v620 = vunpack.c.l.b16 %v101
  %v621 = vunpack.c.l.b16 %v102
  %v622 = vunpack.c.l.b16 %v103
  %v623 = vunpack.c.l.b16 %v104
  %v624 = vunpack.c.l.b16 %v105
  %v625 = vunpack.c.l.b16 %v106
  %v626 = vunpack.c.l.b16 %v107
  %v627 = vunpack.c.l.b16 %v108
  %v628 = vunpack.c.l.b16 %v109
  %v629 = vunpack.c.l.b16 %v110
  %v630 = vunpack.c.l.b16 %v111
  %v631 = vunpack.c.l.b16 %v112
  %v632 = vunpack.c.l.b16 %v113
  %v633 = vunpack.c.l.b16 %v114
  %v634 = vunpack.c.l.b16 %v115
  %v635 = vunpack.c.l.b16 %v116
  %v636 = vunpack.c.l.b16 %v117
  %v637 = vunpack.c.l.b16 %v118
  %v638 = vunpack.c.l.b16 %v119
  %v639 = vunpack.c.l.b16 %v120
  %v640 = vunpack.c.l.b16 %v121
  %v641 = vunpack.c.l.b16 %v122
  %v642 = vunpack.c.l.b16 %v123
  %v643 = vunpack.c.l.b16 %v124
  %v644 = vunpack.c.l.b16 %v125
  %v645 = vunpack.c.l.b16 %v126
  %v646 = vunpack.c.l.b16 %v127
  %v647 = vunpack.c.l.b16 %v128
  %v648 = vunpack.c.l.b16 %v129
  %v649 = vunpack.c.l.b16 %v130
  %v650 = vunpack.c.l.b16 %v131
  %v651 = vunpack.c.l.b16 %v132
  %v652 = vunpack.c.l.b16 %v133
  %v653 = vunpack.c.l.b16 %v134
  %v654 = vunpack.c.l.b16 %v135
  %v655 = vunpack.c.l.b16 %v136
  %v656 = vunpack.c.l.b16 %v137
  %v657 = vunpack.c.l.b16 %v138
  %v658 = vunpack.c.l.b16 %v139
  %v659 = vunpack.c.l.b16 %v140
  %v660 = vunpack.c.l.b16 %v141
  %v661 = vunpack.c.l.b16 %v142
  %v662 = vunpack.c.l.b16 %v143
  %v663 = vunpack.c.l.b16 %v144
  %v664 = vunpack.c.l.b16 %v145
  %v665 = vunpack.c.l.b16 %v146
  %v666 = vunpack.c.l.b16 %v147
  %v667 = vunpack.c.l.b16 %v148
  %v668 = vunpack.c.l.b16 %v149
  %v669 = vunpack.c.l.b16 %v150
  %v670 = vunpack.c.l.b16 %v151
  %v671 = vunpack.c.l.b16 %v152
  %v672 = vunpack.c.l.b16 %v153
  %v673 = vunpack.c.l.b16 %v154
  %v674 = vunpack.c.l.b16 %v155
  %v675 = vunpack.c.l.b16 %v156
  %v676 = vunpack.c.l.b16 %v157
  %v677 = vunpack.c.l.b16 %v158
  %v678 = vunpack.c.l.b16 %v159
  %v679 = vunpack.c.l.b16 %v160
  %v680 = vunpack.c.l.b16 %v161
  %v681 = vunpack.c.l.b16 %v162
  %v682 = vunpack.c.l.b16 %v163
  %v683 = vunpack.c.l.b16 %v164
  %v684 = vunpack.c.l.b16 %v165
  %v685 = vunpack.c.l.b16 %v166
  %v686 = vunpack.c.l.b16 %v167
  %v687 = vunpack.c.l.b16 %v168
  %v688 = vunpack.c.l.b16 %v169
  %v689 = vunpack.c.l.b16 %v170
  %v690 = vunpack.c.l.b16 %v171
  %v691 = vunpack.c.l.b16 %v172
  %v692 = vunpack.c.l.b16 %v173
  %v693 = vunpack.c.l.b16 %v174
  %v694 = vunpack.c.l.b16 %v175
  %v695 = vunpack.c.l.b16 %v176
  %v696 = vunpack.c.l.b16 %v177
  %v697 = vunpack.c.l.b16 %v178
  %v698 = vunpack.c.l.b16 %v179
  %v699 = vunpack.c.l.b16 %v180
  %v700 = vunpack.c.l.b16 %v181
  %v701 = vunpack.c.l.b16 %v182
  %v702 = vunpack.c.l.b16 %v183
  %v703 = vunpack.c.l.b16 %v184
  %v704 = vunpack.c.l.b16 %v185
  %v705 = vunpack.c.l.b16 %v186
  %v706 = vunpack.c.l.b16 %v187
  %v707 = vunpack.c.l.b16 %v188
  %v708 = vunpack.c.l.b16 %v189
  %v709 = vunpack.c.l.b16 %v190
  %v710 = vunpack.c.l.b16 %v191
  %v711 = vunpack.c.l.b16 %v192
  %v712 = vunpack.c.l.b16 %v193
  %v713 = vunpack.c.l.b16 %v194
  %v714 = vunpack.c.l.b16 %v195
  %v715 = vunpack.c.l.b16 %v196
  %v716 = vunpack.c.l.b16 %v197
  %v717 = vunpack.c.l.b16 %v198
  %v718 = vunpack.c.l.b16 %v199
  %v719 = vunpack.c.l.b16 %v200
  %v720 = vunpack.c.l.b16 %v201
  %v721 = vunpack.c.l.b16 %v202
  %v722 = vunpack.c.l.b16 %v203
  %v723 = vunpack.c.l.b16 %v204
  %v724 = vunpack.c.l.b16 %v205
  %v725 = vunpack.c.l.b16 %v206
  %v726 = vunpack.c.l.b16 %v207
  %v727 = vunpack.c.l.b16 %v208
  %v728 = vunpack.c.l.b16 %v209
  %v729 = vunpack.c.l.b16 %v210
  %v730 = vunpack.c.l.b16 %v211
  %v731 = vunpack.c.l.b16 %v212
  %v732 = vunpack.c.l.b16 %v213
  %v733 = vunpack.c.l.b16 %v214
  %v734 = vunpack.c.l.b16 %v215
  %v735 = vunpack.c.l.b16 %v216
  %v736 = vunpack.c.l.b16 %v217
  %v737 = vunpack.c.l.b16 %v218
  %v738 = vunpack.c.l.b16 %v219
  %v739 = vunpack.c.l.b16 %v220
  %v740 = vunpack.c.l.b16 %v221
  %v741 = vunpack.c.l.b16 %v222
  %v742 = vunpack.c.l.b16 %v223
  %v743 = vunpack.c.l.b16 %v224
  %v744 = vunpack.c.l.b16 %v225
  %v745 = vunpack.c.l.b16 %v226
  %v746 = vunpack.c.l.b16 %v227
  %v747 = vunpack.c.l.b16 %v228
  %v748 = vunpack.c.l.b16 %v229
  %v749 = vunpack.c.l.b16 %v230
  %v750 = vunpack.c.l.b16 %v231
  %v751 = vunpack.c.l.b16 %v232
  %v752 = vunpack.c.l.b16 %v233
  %v753 = vunpack.c.l.b16 %v234
  %v754 = vunpack.c.l.b16 %v235
  %v755 = vunpack.c.l.b16 %v236
  %v756 = vunpack.c.l.b16 %v237
  %v757 = vunpack.c.l.b16 %v238
  %v758 = vunpack.c.l.b16 %v239
  %v759 = vunpack.c.l.b16 %v240
  %v760 = vunpack.c.l.b16 %v241
  %v761 = vunpack.c.l.b16 %v242
  %v762 = vunpack.c.l.b16 %v243
  %v763 = vunpack.c.l.b16 %v244
  %v764 = vunpack.c.l.b16 %v245
  %v765 = vunpack.c.l.b16 %v246
  %v766 = vunpack.c.l.b16 %v247
  %v767 = vunpack.c.l.b16 %v248
  %v768 = vunpack.c.l.b16 %v249
  %v769 = vunpack.c.l.b16 %v250
  %v770 = vunpack.c.l.b16 %v251
  %v771 = vunpack.c.l.b16 %v252
  %v772 = vunpack.c.l.b16 %v253
  %v773 = vunpack.c.l.b16 %v254
  %v774 = vunpack.c.l.b16 %v255
  %v775 = vunpack.c.l.b16 %v256
  %v776 = vunpack.c.l.b16 %v257
  %v777 = vunpack.c.l.b16 %v258
  %v778 = vunpack.c.l.b16 %v259
  %v779 = vunpack.c.l.b16 %v260
  %v780 = vunpack.c.l.b16 %v261
  %v781 = vunpack.c.l.b16 %v262
  %v782 = vunpack.c.l.b16 %v263
  %v783 = vunpack.c.l.b16 %v264
  %v784 = vunpack.c.l.b16 %v265
  %v785 = vunpack.c.l.b16 %v266
  %v786 = vunpack.c.l.b16 %v267
  %v787 = vunpack.c.l.b16 %v268
  %v788 = vunpack.c.l.b16 %v269
  %v789 = vunpack.c.l.b16 %v270
  %v790 = vunpack.c.l.b16 %v271
  %v791 = vunpack.c.l.b16 %v272
  %v792 = vunpack.c.l.b16 %v273
  %v793 = vunpack.c.l.b16 %v274
  %v794 = vunpack.c.l.b16 %v275
  %v795 = vunpack.c.l.b16 %v276
  %v796 = vunpack.c.l.b16 %v277
  %v797 = vunpack.c.l.b16 %v278
  %v798 = vunpack.c.l.b16 %v279
  %v799 = vunpack.c.l.b16 %v280
  %v800 = vunpack.c.l.b16 %v281
  %v801 = vunpack.c.l.b16 %v282
  %v802 = vunpack.c.l.b16 %v283
  %v803 = vunpack.c.l.b16 %v284
  %v804 = vunpack.c.l.b16 %v285
  %v805 = vunpack.c.l.b16 %v286
  %v806 = vunpack.c.l.b16 %v287
  %v807 = vunpack.c.l.b16 %v288
  %v808 = vunpack.c.l.b16 %v289
  %v809 = vunpack.c.l.b16 %v290
  %v810 = vunpack.c.l.b16 %v291
  %v811 = vunpack.c.l.b16 %v292
  %v812 = vunpack.c.l.b16 %v293
  %v813 = vunpack.c.l.b16 %v294
  %v814 = vunpack.c.l.b16 %v295
  %v815 = vunpack.c.l.b16 %v296
  %v816 = vunpack.c.l.b16 %v297
  %v817 = vunpack.c.l.b16 %v298
  %v818 = vunpack.c.l.b16 %v299
  %v819 = vunpack.c.l.b16 %v300
  %v820 = vunpack.c.l.b16 %v301
  %v821 = vunpack.c.l.b16 %v302
  %v822 = vunpack.c.l.b16 %v303
  %v823 = vunpack.c.l.b16 %v304
  %v824 = vunpack.c.l.b16 %v305
  %v825 = vunpack.c.l.b16 %v306
  %v826 = vunpack.c.l.b16 %v307
  %v827 = vunpack.c.l.b16 %v308
  %v828 = vunpack.c.l.b16 %v309
  %v829 = vunpack.c.l.b16 %v310
  %v830 = vunpack.c.l.b16 %v311
  %v831 = vunpack.c.l.b16 %v312
  %v832 = vunpack.c.l.b16 %v313
  %v833 = vunpack.c.l.b16 %v314
  %v834 = vunpack.c.l.b16 %v315
  %v835 = vunpack.c.l.b16 %v316
  %v836 = vunpack.c.l.b16 %v317
  %v837 = vunpack.c.l.b16 %v318
  %v838 = vpack.c.b16 %v583, %v582
  %v839 = vpack.c.b16 %v585, %v584
  %v840 = vpack.c.b16 %v587, %v586
  %v841 = vpack.c.b16 %v589, %v588
  %v842 = vpack.c.b16 %v591, %v590
  %v843 = vpack.c.b16 %v593, %v592
  %v844 = vpack.c.b16 %v595, %v594
  %v845 = vpack.c.b16 %v597, %v596
  %v846 = vpack.c.b16 %v599, %v598
  %v847 = vpack.c.b16 %v601, %v600
  %v848 = vpack.c.b16 %v603, %v602
  %v849 = vpack.c.b16 %v605, %v604
  %v850 = vpack.c.b16 %v607, %v606
  %v851 = vpack.c.b16 %v609, %v608
  %v852 = vpack.c.b16 %v611, %v610
  %v853 = vpack.c.b16 %v613, %v612
  %v854 = vpack.c.b16 %v615, %v614
  %v855 = vpack.c.b16 %v617, %v616
  %v856 = vpack.c.b16 %v619, %v618
  %v857 = vpack.c.b16 %v621, %v620
  %v858 = vpack.c.b16 %v623, %v622
  %v859 = vpack.c.b16 %v625, %v624
  %v860 = vpack.c.b16 %v627, %v626
  %v861 = vpack.c.b16 %v629, %v628
  %v862 = vpack.c.b16 %v631, %v630
  %v863 = vpack.c.b16 %v633, %v632
  %v864 = vpack.c.b16 %v635, %v634
  %v865 = vpack.c.b16 %v637, %v636
  %v866 = vpack.c.b16 %v639, %v638
  %v867 = vpack.c.b16 %v641, %v640
  %v868 = vpack.c.b16 %v643, %v642
  %v869 = vpack.c.b16 %v645, %v644
  %v870 = vpack.c.b16 %v647, %v646
  %v871 = vpack.c.b16 %v649, %v648
  %v872 = vpack.c.b16 %v651, %v650
  %v873 = vpack.c.b16 %v653, %v652
  %v874 = vpack.c.b16 %v655, %v654
  %v875 = vpack.c.b16 %v657, %v656
  %v876 = vpack.c.b16 %v659, %v658
  %v877 = vpack.c.b16 %v661, %v660
  %v878 = vpack.c.b16 %v663, %v662
  %v879 = vpack.c.b16 %v665, %v664
  %v880 = vpack.c.b16 %v667, %v666
  %v881 = vpack.c.b16 %v669, %v668
  %v882 = vpack.c.b16 %v671, %v670
  %v883 = vpack.c.b16 %v673, %v672
  %v884 = vpack.c.b16 %v675, %v674
  %v885 = vpack.c.b16 %v677, %v676
  %v886 = vpack.c.b16 %v679, %v678
  %v887 = vpack.c.b16 %v681, %v680
  %v888 = vpack.c.b16 %v683, %v682
  %v889 = vpack.c.b16 %v685, %v684
  %v890 = vpack.c.b16 %v687, %v686
  %v891 = vpack.c.b16 %v689, %v688
  %v892 = vpack.c.b16 %v691, %v690
  %v893 = vpack.c.b16 %v693, %v692
  %v894 = vpack.c.b16 %v695, %v694
  %v895 = vpack.c.b16 %v697, %v696
  %v896 = vpack.c.b16 %v699, %v698
  %v897 = vpack.c.b16 %v701, %v700
  %v898 = vpack.c.b16 %v703, %v702
  %v899 = vpack.c.b16 %v705, %v704
  %v900 = vpack.c.b16 %v707, %v706
  %v901 = vpack.c.b16 %v709, %v708
  %v902 = vpack.c.b16 %v711, %v710
  %v903 = vpack.c.b16 %v713, %v712
  %v904 = vpack.c.b16 %v715, %v714
  %v905 = vpack.c.b16 %v717, %v716
  %v906 = vpack.c.b16 %v719, %v718
  %v907 = vpack.c.b16 %v721, %v720
  %v908 = vpack.c.b16 %v723, %v722
  %v909 = vpack.c.b16 %v725, %v724
  %v910 = vpack.c.b16 %v727, %v726
  %v911 = vpack.c.b16 %v729, %v728
  %v912 = vpack.c.b16 %v731, %v730
  %v913 = vpack.c.b16 %v733, %v732
  %v914 = vpack.c.b16 %v735, %v734
  %v915 = vpack.c.b16 %v737, %v736
  %v916 = vpack.c.b16 %v739, %v738
  %v917 = vpack.c.b16 %v741, %v740
  %v918 = vpack.c.b16 %v743, %v742
  %v919 = vpack.c.b16 %v745, %v744
  %v920 = vpack.c.b16 %v747, %v746
  %v921 = vpack.c.b16 %v749, %v748
  %v922 = vpack.c.b16 %v751, %v750
  %v923 = vpack.c.b16 %v753, %v752
  %v924 = vpack.c.b16 %v755, %v754
  %v925 = vpack.c.b16 %v757, %v756
  %v926 = vpack.c.b16 %v759, %v758
  %v927 = vpack.c.b16 %v761, %v760
  %v928 = vpack.c.b16 %v763, %v762
  %v929 = vpack.c.b16 %v765, %v764
  %v930 = vpack.c.b16 %v767, %v766
  %v931 = vpack.c.b16 %v769, %v768
  %v932 = vpack.c.b16 %v771, %v770
  %v933 = vpack.c.b16 %v773, %v772
  %v934 = vpack.c.b16 %v775, %v774
  %v935 = vpack.c.b16 %v777, %v776
  %v936 = vpack.c.b16 %v779, %v778
  %v937 = vpack.c.b16 %v781, %v780
  %v938 = vpack.c.b16 %v783, %v782
  %v939 = vpack.c.b16 %v785, %v784
  %v940 = vpack.c.b16 %v787, %v786
  %v941 = vpack.c.b16 %v789, %v788
  %v942 = vpack.c.b16 %v791, %v790
  %v943 = vpack.c.b16 %v793, %v792
  %v944 = vpack.c.b16 %v795, %v794
  %v945 = vpack.c.b16 %v797, %v796
  %v946 = vpack.c.b16 %v799, %v798
  %v947 = vpack.c.b16 %v801, %v800
  %v948 = vpack.c.b16 %v803, %v802
  %v949 = vpack.c.b16 %v805, %v804
  %v950 = vpack.c.b16 %v807, %v806
  %v951 = vpack.c.b16 %v809, %v808
  %v952 = vpack.c.b16 %v811, %v810
  %v953 = vpack.c.b16 %v813, %v812
  %v954 = vpack.c.b16 %v815, %v814
  %v955 = vpack.c.b16 %v817, %v816
  %v956 = vpack.c.b16 %v819, %v818
  %v957 = vpack.c.b16 %v821, %v820
  %v958 = vpack.c.b16 %v823, %v822
  %v959 = vpack.c.b16 %v825, %v824
  %v960 = vpack.c.b16 %v827, %v826
  %v961 = vpack.c.b16 %v829, %v828
  %v962 = vpack.c.b16 %v831, %v830
  %v963 = vpack.c.b16 %v833, %v832
  %v964 = vpack.c.b16 %v835, %v834
  %v965 = vpack.c.b16 %v837, %v836
  %1094 = vmatprep.subr.bf16.mxu0 0
  %1095 = vmatpush1.bf16.msra.mxu0 %v838
  %1096 = vmatprep.subr.bf16.mxu0 0
  %1097 = vmatpush1.bf16.msra.mxu0 %v839
  %1098 = vmatprep.subr.bf16.mxu0 0
  %1099 = vmatpush1.bf16.msra.mxu0 %v840
  %1100 = vmatprep.subr.bf16.mxu0 0
  %1101 = vmatpush1.bf16.msra.mxu0 %v841
  %1102 = vmatprep.subr.bf16.mxu0 0
  %1103 = vmatpush1.bf16.msra.mxu0 %v842
  %1104 = vmatprep.subr.bf16.mxu0 0
  %1105 = vmatpush1.bf16.msra.mxu0 %v843
  %1106 = vmatprep.subr.bf16.mxu0 0
  %1107 = vmatpush1.bf16.msra.mxu0 %v844
  %1108 = vmatprep.subr.bf16.mxu0 0
  %1109 = vmatpush1.bf16.msra.mxu0 %v845
  %1110 = vmatprep.subr.bf16.mxu0 0
  %1111 = vmatpush1.bf16.msra.mxu0 %v846
  %1112 = vmatprep.subr.bf16.mxu0 0
  %1113 = vmatpush1.bf16.msra.mxu0 %v847
  %1114 = vmatprep.subr.bf16.mxu0 0
  %1115 = vmatpush1.bf16.msra.mxu0 %v848
  %1116 = vmatprep.subr.bf16.mxu0 0
  %1117 = vmatpush1.bf16.msra.mxu0 %v849
  %1118 = vmatprep.subr.bf16.mxu0 0
  %1119 = vmatpush1.bf16.msra.mxu0 %v850
  %1120 = vmatprep.subr.bf16.mxu0 0
  %1121 = vmatpush1.bf16.msra.mxu0 %v851
  %1122 = vmatprep.subr.bf16.mxu0 0
  %1123 = vmatpush1.bf16.msra.mxu0 %v852
  %1124 = vmatprep.subr.bf16.mxu0 0
  %1125 = vmatpush1.bf16.msra.mxu0 %v853
  %1126 = vmatprep.mubr.bf16.mxu0 %v48
  %1127 = vmatmul.mubr.bf16.gmra.mrb[0].mxu0 %v47
  %v1128 = vpop.f32.mrb[0].mxu0
  %v1129 = vadd.f32 %v324, %v1128
  %v1130 = vpop.f32.mrb[0].mxu0
  %v1131 = vpop.f32.mrb[0].mxu0
  %v1132 = vadd.f32 %v324, %v1131
  %v1133 = vpop.f32.mrb[0].mxu0
  %1134 = vdwg.mxu0
  %1135 = vmatprep.subr.bf16.mxu0 0
  %1136 = vmatpush1.bf16.msra.mxu0 %v854
  %1137 = vmatprep.subr.bf16.mxu0 0
  %1138 = vmatpush1.bf16.msra.mxu0 %v855
  %1139 = vmatprep.subr.bf16.mxu0 0
  %1140 = vmatpush1.bf16.msra.mxu0 %v856
  %1141 = vmatprep.subr.bf16.mxu0 0
  %1142 = vmatpush1.bf16.msra.mxu0 %v857
  %1143 = vmatprep.subr.bf16.mxu0 0
  %1144 = vmatpush1.bf16.msra.mxu0 %v858
  %1145 = vmatprep.subr.bf16.mxu0 0
  %1146 = vmatpush1.bf16.msra.mxu0 %v859
  %1147 = vmatprep.subr.bf16.mxu0 0
  %1148 = vmatpush1.bf16.msra.mxu0 %v860
  %1149 = vmatprep.subr.bf16.mxu0 0
  %1150 = vmatpush1.bf16.msra.mxu0 %v861
  %1151 = vmatprep.subr.bf16.mxu0 0
  %1152 = vmatpush1.bf16.msra.mxu0 %v862
  %1153 = vmatprep.subr.bf16.mxu0 0
  %1154 = vmatpush1.bf16.msra.mxu0 %v863
  %1155 = vmatprep.subr.bf16.mxu0 0
  %1156 = vmatpush1.bf16.msra.mxu0 %v864
  %1157 = vmatprep.subr.bf16.mxu0 0
  %1158 = vmatpush1.bf16.msra.mxu0 %v865
  %1159 = vmatprep.subr.bf16.mxu0 0
  %1160 = vmatpush1.bf16.msra.mxu0 %v866
  %1161 = vmatprep.subr.bf16.mxu0 0
  %1162 = vmatpush1.bf16.msra.mxu0 %v867
  %1163 = vmatprep.subr.bf16.mxu0 0
  %1164 = vmatpush1.bf16.msra.mxu0 %v868
  %1165 = vmatprep.subr.bf16.mxu0 0
  %1166 = vmatpush1.bf16.msra.mxu0 %v869
  %1167 = vmatprep.mubr.bf16.mxu0 %v50
  %1168 = vmatmul.mubr.bf16.gmra.mrb[0].mxu0 %v49
  %v1169 = vpop.f32.mrb[0].mxu0
  %v1170 = vadd.f32 %v1129, %v1169
  %v1171 = vpop.f32.mrb[0].mxu0
  %v1172 = vpop.f32.mrb[0].mxu0
  %v1173 = vadd.f32 %v1132, %v1172
  %v1174 = vpop.f32.mrb[0].mxu0
  %1175 = vdwg.mxu0
  %1176 = vmatprep.subr.bf16.mxu0 0
  %1177 = vmatpush1.bf16.msra.mxu0 %v870
  %1178 = vmatprep.subr.bf16.mxu0 0
  %1179 = vmatpush1.bf16.msra.mxu0 %v871
  %1180 = vmatprep.subr.bf16.mxu0 0
  %1181 = vmatpush1.bf16.msra.mxu0 %v872
  %1182 = vmatprep.subr.bf16.mxu0 0
  %1183 = vmatpush1.bf16.msra.mxu0 %v873
  %1184 = vmatprep.subr.bf16.mxu0 0
  %1185 = vmatpush1.bf16.msra.mxu0 %v874
  %1186 = vmatprep.subr.bf16.mxu0 0
  %1187 = vmatpush1.bf16.msra.mxu0 %v875
  %1188 = vmatprep.subr.bf16.mxu0 0
  %1189 = vmatpush1.bf16.msra.mxu0 %v876
  %1190 = vmatprep.subr.bf16.mxu0 0
  %1191 = vmatpush1.bf16.msra.mxu0 %v877
  %1192 = vmatprep.subr.bf16.mxu0 0
  %1193 = vmatpush1.bf16.msra.mxu0 %v878
  %1194 = vmatprep.subr.bf16.mxu0 0
  %1195 = vmatpush1.bf16.msra.mxu0 %v879
  %1196 = vmatprep.subr.bf16.mxu0 0
  %1197 = vmatpush1.bf16.msra.mxu0 %v880
  %1198 = vmatprep.subr.bf16.mxu0 0
  %1199 = vmatpush1.bf16.msra.mxu0 %v881
  %1200 = vmatprep.subr.bf16.mxu0 0
  %1201 = vmatpush1.bf16.msra.mxu0 %v882
  %1202 = vmatprep.subr.bf16.mxu0 0
  %1203 = vmatpush1.bf16.msra.mxu0 %v883
  %1204 = vmatprep.subr.bf16.mxu0 0
  %1205 = vmatpush1.bf16.msra.mxu0 %v884
  %1206 = vmatprep.subr.bf16.mxu0 0
  %1207 = vmatpush1.bf16.msra.mxu0 %v885
  %1208 = vmatprep.mubr.bf16.mxu0 %v52
  %1209 = vmatmul.mubr.bf16.gmra.mrb[0].mxu0 %v51
  %v1210 = vpop.f32.mrb[0].mxu0
  %v1211 = vadd.f32 %v1170, %v1210
  %v1212 = vpop.f32.mrb[0].mxu0
  %v1213 = vpop.f32.mrb[0].mxu0
  %v1214 = vadd.f32 %v1173, %v1213
  %v1215 = vpop.f32.mrb[0].mxu0
  %1216 = vdwg.mxu0
  %1217 = vmatprep.subr.bf16.mxu0 0
  %1218 = vmatpush1.bf16.msra.mxu0 %v886
  %1219 = vmatprep.subr.bf16.mxu0 0
  %1220 = vmatpush1.bf16.msra.mxu0 %v887
  %1221 = vmatprep.subr.bf16.mxu0 0
  %1222 = vmatpush1.bf16.msra.mxu0 %v888
  %1223 = vmatprep.subr.bf16.mxu0 0
  %1224 = vmatpush1.bf16.msra.mxu0 %v889
  %1225 = vmatprep.subr.bf16.mxu0 0
  %1226 = vmatpush1.bf16.msra.mxu0 %v890
  %1227 = vmatprep.subr.bf16.mxu0 0
  %1228 = vmatpush1.bf16.msra.mxu0 %v891
  %1229 = vmatprep.subr.bf16.mxu0 0
  %1230 = vmatpush1.bf16.msra.mxu0 %v892
  %1231 = vmatprep.subr.bf16.mxu0 0
  %1232 = vmatpush1.bf16.msra.mxu0 %v893
  %1233 = vmatprep.subr.bf16.mxu0 0
  %1234 = vmatpush1.bf16.msra.mxu0 %v894
  %1235 = vmatprep.subr.bf16.mxu0 0
  %1236 = vmatpush1.bf16.msra.mxu0 %v895
  %1237 = vmatprep.subr.bf16.mxu0 0
  %1238 = vmatpush1.bf16.msra.mxu0 %v896
  %1239 = vmatprep.subr.bf16.mxu0 0
  %1240 = vmatpush1.bf16.msra.mxu0 %v897
  %1241 = vmatprep.subr.bf16.mxu0 0
  %1242 = vmatpush1.bf16.msra.mxu0 %v898
  %1243 = vmatprep.subr.bf16.mxu0 0
  %1244 = vmatpush1.bf16.msra.mxu0 %v899
  %1245 = vmatprep.subr.bf16.mxu0 0
  %1246 = vmatpush1.bf16.msra.mxu0 %v900
  %1247 = vmatprep.subr.bf16.mxu0 0
  %1248 = vmatpush1.bf16.msra.mxu0 %v901
  %1249 = vmatprep.mubr.bf16.mxu0 %v54
  %1250 = vmatmul.mubr.bf16.gmra.mrb[0].mxu0 %v53
  %v1251 = vpop.f32.mrb[0].mxu0
  %v1252 = vadd.f32 %v1211, %v1251
  %v1253 = vpop.f32.mrb[0].mxu0
  %v1254 = vpop.f32.mrb[0].mxu0
  %v1255 = vadd.f32 %v1214, %v1254
  %v1256 = vpop.f32.mrb[0].mxu0
  %1257 = vdwg.mxu0
  %1258 = vmatprep.subr.bf16.mxu0 0
  %1259 = vmatpush1.bf16.msra.mxu0 %v902
  %1260 = vmatprep.subr.bf16.mxu0 0
  %1261 = vmatpush1.bf16.msra.mxu0 %v903
  %1262 = vmatprep.subr.bf16.mxu0 0
  %1263 = vmatpush1.bf16.msra.mxu0 %v904
  %1264 = vmatprep.subr.bf16.mxu0 0
  %1265 = vmatpush1.bf16.msra.mxu0 %v905
  %1266 = vmatprep.subr.bf16.mxu0 0
  %1267 = vmatpush1.bf16.msra.mxu0 %v906
  %1268 = vmatprep.subr.bf16.mxu0 0
  %1269 = vmatpush1.bf16.msra.mxu0 %v907
  %1270 = vmatprep.subr.bf16.mxu0 0
  %1271 = vmatpush1.bf16.msra.mxu0 %v908
  %1272 = vmatprep.subr.bf16.mxu0 0
  %1273 = vmatpush1.bf16.msra.mxu0 %v909
  %1274 = vmatprep.subr.bf16.mxu0 0
  %1275 = vmatpush1.bf16.msra.mxu0 %v910
  %1276 = vmatprep.subr.bf16.mxu0 0
  %1277 = vmatpush1.bf16.msra.mxu0 %v911
  %1278 = vmatprep.subr.bf16.mxu0 0
  %1279 = vmatpush1.bf16.msra.mxu0 %v912
  %1280 = vmatprep.subr.bf16.mxu0 0
  %1281 = vmatpush1.bf16.msra.mxu0 %v913
  %1282 = vmatprep.subr.bf16.mxu0 0
  %1283 = vmatpush1.bf16.msra.mxu0 %v914
  %1284 = vmatprep.subr.bf16.mxu0 0
  %1285 = vmatpush1.bf16.msra.mxu0 %v915
  %1286 = vmatprep.subr.bf16.mxu0 0
  %1287 = vmatpush1.bf16.msra.mxu0 %v916
  %1288 = vmatprep.subr.bf16.mxu0 0
  %1289 = vmatpush1.bf16.msra.mxu0 %v917
  %1290 = vmatprep.mubr.bf16.mxu0 %v56
  %1291 = vmatmul.mubr.bf16.gmra.mrb[0].mxu0 %v55
  %v1292 = vpop.f32.mrb[0].mxu0
  %v1293 = vadd.f32 %v1252, %v1292
  %v1294 = vpop.f32.mrb[0].mxu0
  %v1295 = vpop.f32.mrb[0].mxu0
  %v1296 = vadd.f32 %v1255, %v1295
  %v1297 = vpop.f32.mrb[0].mxu0
  %1298 = vdwg.mxu0
  %1299 = vmatprep.subr.bf16.mxu0 0
  %1300 = vmatpush1.bf16.msra.mxu0 %v918
  %1301 = vmatprep.subr.bf16.mxu0 0
  %1302 = vmatpush1.bf16.msra.mxu0 %v919
  %1303 = vmatprep.subr.bf16.mxu0 0
  %1304 = vmatpush1.bf16.msra.mxu0 %v920
  %1305 = vmatprep.subr.bf16.mxu0 0
  %1306 = vmatpush1.bf16.msra.mxu0 %v921
  %1307 = vmatprep.subr.bf16.mxu0 0
  %1308 = vmatpush1.bf16.msra.mxu0 %v922
  %1309 = vmatprep.subr.bf16.mxu0 0
  %1310 = vmatpush1.bf16.msra.mxu0 %v923
  %1311 = vmatprep.subr.bf16.mxu0 0
  %1312 = vmatpush1.bf16.msra.mxu0 %v924
  %1313 = vmatprep.subr.bf16.mxu0 0
  %1314 = vmatpush1.bf16.msra.mxu0 %v925
  %1315 = vmatprep.subr.bf16.mxu0 0
  %1316 = vmatpush1.bf16.msra.mxu0 %v926
  %1317 = vmatprep.subr.bf16.mxu0 0
  %1318 = vmatpush1.bf16.msra.mxu0 %v927
  %1319 = vmatprep.subr.bf16.mxu0 0
  %1320 = vmatpush1.bf16.msra.mxu0 %v928
  %1321 = vmatprep.subr.bf16.mxu0 0
  %1322 = vmatpush1.bf16.msra.mxu0 %v929
  %1323 = vmatprep.subr.bf16.mxu0 0
  %1324 = vmatpush1.bf16.msra.mxu0 %v930
  %1325 = vmatprep.subr.bf16.mxu0 0
  %1326 = vmatpush1.bf16.msra.mxu0 %v931
  %1327 = vmatprep.subr.bf16.mxu0 0
  %1328 = vmatpush1.bf16.msra.mxu0 %v932
  %1329 = vmatprep.subr.bf16.mxu0 0
  %1330 = vmatpush1.bf16.msra.mxu0 %v933
  %1331 = vmatprep.mubr.bf16.mxu0 %v58
  %1332 = vmatmul.mubr.bf16.gmra.mrb[0].mxu0 %v57
  %v1333 = vpop.f32.mrb[0].mxu0
  %v1334 = vadd.f32 %v1293, %v1333
  %v1335 = vpop.f32.mrb[0].mxu0
  %v1336 = vpop.f32.mrb[0].mxu0
  %v1337 = vadd.f32 %v1296, %v1336
  %v1338 = vpop.f32.mrb[0].mxu0
  %1339 = vdwg.mxu0
  %1340 = vmatprep.subr.bf16.mxu0 0
  %1341 = vmatpush1.bf16.msra.mxu0 %v934
  %1342 = vmatprep.subr.bf16.mxu0 0
  %1343 = vmatpush1.bf16.msra.mxu0 %v935
  %1344 = vmatprep.subr.bf16.mxu0 0
  %1345 = vmatpush1.bf16.msra.mxu0 %v936
  %1346 = vmatprep.subr.bf16.mxu0 0
  %1347 = vmatpush1.bf16.msra.mxu0 %v937
  %1348 = vmatprep.subr.bf16.mxu0 0
  %1349 = vmatpush1.bf16.msra.mxu0 %v938
  %1350 = vmatprep.subr.bf16.mxu0 0
  %1351 = vmatpush1.bf16.msra.mxu0 %v939
  %1352 = vmatprep.subr.bf16.mxu0 0
  %1353 = vmatpush1.bf16.msra.mxu0 %v940
  %1354 = vmatprep.subr.bf16.mxu0 0
  %1355 = vmatpush1.bf16.msra.mxu0 %v941
  %1356 = vmatprep.subr.bf16.mxu0 0
  %1357 = vmatpush1.bf16.msra.mxu0 %v942
  %1358 = vmatprep.subr.bf16.mxu0 0
  %1359 = vmatpush1.bf16.msra.mxu0 %v943
  %1360 = vmatprep.subr.bf16.mxu0 0
  %1361 = vmatpush1.bf16.msra.mxu0 %v944
  %1362 = vmatprep.subr.bf16.mxu0 0
  %1363 = vmatpush1.bf16.msra.mxu0 %v945
  %1364 = vmatprep.subr.bf16.mxu0 0
  %1365 = vmatpush1.bf16.msra.mxu0 %v946
  %1366 = vmatprep.subr.bf16.mxu0 0
  %1367 = vmatpush1.bf16.msra.mxu0 %v947
  %1368 = vmatprep.subr.bf16.mxu0 0
  %1369 = vmatpush1.bf16.msra.mxu0 %v948
  %1370 = vmatprep.subr.bf16.mxu0 0
  %1371 = vmatpush1.bf16.msra.mxu0 %v949
  %1372 = vmatprep.mubr.bf16.mxu0 %v60
  %1373 = vmatmul.mubr.bf16.gmra.mrb[0].mxu0 %v59
  %v1374 = vpop.f32.mrb[0].mxu0
  %v1375 = vadd.f32 %v1334, %v1374
  %v1376 = vpop.f32.mrb[0].mxu0
  %v1377 = vpop.f32.mrb[0].mxu0
  %v1378 = vadd.f32 %v1337, %v1377
  %v1379 = vpop.f32.mrb[0].mxu0
  %1380 = vdwg.mxu0
  %1381 = vmatprep.subr.bf16.mxu0 0
  %1382 = vmatpush1.bf16.msra.mxu0 %v950
  %1383 = vmatprep.subr.bf16.mxu0 0
  %1384 = vmatpush1.bf16.msra.mxu0 %v951
  %1385 = vmatprep.subr.bf16.mxu0 0
  %1386 = vmatpush1.bf16.msra.mxu0 %v952
  %1387 = vmatprep.subr.bf16.mxu0 0
  %1388 = vmatpush1.bf16.msra.mxu0 %v953
  %1389 = vmatprep.subr.bf16.mxu0 0
  %1390 = vmatpush1.bf16.msra.mxu0 %v954
  %1391 = vmatprep.subr.bf16.mxu0 0
  %1392 = vmatpush1.bf16.msra.mxu0 %v955
  %1393 = vmatprep.subr.bf16.mxu0 0
  %1394 = vmatpush1.bf16.msra.mxu0 %v956
  %1395 = vmatprep.subr.bf16.mxu0 0
  %1396 = vmatpush1.bf16.msra.mxu0 %v957
  %1397 = vmatprep.subr.bf16.mxu0 0
  %1398 = vmatpush1.bf16.msra.mxu0 %v958
  %1399 = vmatprep.subr.bf16.mxu0 0
  %1400 = vmatpush1.bf16.msra.mxu0 %v959
  %1401 = vmatprep.subr.bf16.mxu0 0
  %1402 = vmatpush1.bf16.msra.mxu0 %v960
  %1403 = vmatprep.subr.bf16.mxu0 0
  %1404 = vmatpush1.bf16.msra.mxu0 %v961
  %1405 = vmatprep.subr.bf16.mxu0 0
  %1406 = vmatpush1.bf16.msra.mxu0 %v962
  %1407 = vmatprep.subr.bf16.mxu0 0
  %1408 = vmatpush1.bf16.msra.mxu0 %v963
  %1409 = vmatprep.subr.bf16.mxu0 0
  %1410 = vmatpush1.bf16.msra.mxu0 %v964
  %1411 = vmatprep.subr.bf16.mxu0 0
  %1412 = vmatpush1.bf16.msra.mxu0 %v965
  %1413 = vmatprep.mubr.bf16.mxu0 %v62
  %1414 = vmatmul.mubr.bf16.gmra.mrb[0].mxu0 %v61
  %v1415 = vpop.f32.mrb[0].mxu0
  %v1416 = vadd.f32 %v1375, %v1415
  %v1417 = vpop.f32.mrb[0].mxu0
  %v1418 = vpop.f32.mrb[0].mxu0
  %v1419 = vadd.f32 %v1378, %v1418
  %v1420 = vpop.f32.mrb[0].mxu0
  %1421 = vdwg.mxu0
  %vm1422 = vcmask 261120
  %1423 = vst.msk [vmem:[%s3] sm:$0xff] %vm1422, %v1416
  %1424 = vst.msk [vmem:[%s3 + $0x8] sm:$0xff] %vm1422, %v1419
  // Predicated region
  $region14: #{codegen_forward.63} parent=0 // pred_check
    _
  $region15: #{codegen_forward.63} parent=0 // pred_check_branch
    %1426 = sbr.rel (0) target = $region17
  $region16: #{codegen_forward.63} parent=0 // pred_region
    _
  $region17: #{codegen_forward.63} parent=0 // pred_fallthru
    _
  // Predicated region
  $region18: #{codegen_forward.63} parent=0 // pred_check
    _
  $region19: #{codegen_forward.63} parent=0 // pred_check_branch
    %1428 = sbr.rel (0) target = $region21
  $region20: #{codegen_forward.63} parent=0 // pred_region
    _
  $region21: #{codegen_forward.63} parent=0 // pred_fallthru
    _

</llo_original>
